<compile_context>
chip_gen: v7x
topology: tpu7x:2x2x1
jax: 0.10.0
libtpu: 0.0.40
codegen_flags: <defaults>
</compile_context>

<pallas_src>
import jax
import jax.numpy as jnp
from jax.experimental import pallas as pl
from jax.experimental.pallas import tpu as pltpu


def _cc_kernel(flow_ref, fref_ref, wq_ref, bq_ref, wk_ref, bk_ref,
               wv_ref, bv_ref, gamma_ref, out_ref,
               kw_s, vw_s, kh_s, vh_s):
    """One (batch, row-strip) step of criss-cross attention.

    Block shapes:
      flow_ref : (1, C, Ht*W) f32   lane-dense strip of f_low (also residual)
      fref_ref : (1, C, H*W)  bf16  full reference map, resident per batch
      wq/wk    : (Cqp, C) f32       (rows >= Cq are zero padding)
      bq/bk    : (Cqp, 1) f32
      wv / bv  : (C, C) / (C, 1) f32
      gamma    : (1, 1) f32 in SMEM
      out_ref  : (1, C, Ht*W) f32
      scratch  : kw_s (H, Cqp, W)  vw_s (H, C, W)   row-grouped K/V   (bf16)
                 kh_s (W, Cqp, H)  vh_s (W, C, H)   column-grouped K/V (bf16)
    """
    f32, bf16 = jnp.float32, jnp.bfloat16
    H, Cqp, W = kw_s.shape
    C = vw_s.shape[1]
    HtW = flow_ref.shape[2]
    Ht = HtW // W
    s = pl.program_id(1)
    h0 = pl.multiple_of(s * Ht, Ht)

    # ---- K/V projections from the resident f_ref block: once per batch ----
    @pl.when(s == 0)
    def _():
        xr = fref_ref[0]                                           # (C, H*W) bf16
        k2 = jnp.dot(wk_ref[...].astype(bf16), xr,
                     preferred_element_type=f32) + bk_ref[...]     # (Cqp, H*W)
        v2 = jnp.dot(wv_ref[...].astype(bf16), xr,
                     preferred_element_type=f32) + bv_ref[...]     # (C,  H*W)
        k3 = k2.reshape(Cqp, H, W).astype(bf16)
        v3 = v2.reshape(C, H, W).astype(bf16)
        # row-grouped (batch = h) layouts for the W-direction attention
        kw_s[...] = pltpu.einshape('chw->hcw', k3)                 # (H, Cqp, W)
        vw_s[...] = pltpu.einshape('chw->hcw', v3)                 # (H, C,  W)
        # column-grouped (batch = w) layouts for the H-direction attention
        kh_s[...] = pltpu.einshape('cwh->wch', jnp.swapaxes(k3, 1, 2))  # (W, Cqp, H)
        vh_s[...] = pltpu.einshape('cwh->wch', jnp.swapaxes(v3, 1, 2))  # (W, C,  H)

    # ---- Q projection for this strip of rows (single lane-dense matmul) ----
    xl = flow_ref[0]                                               # (C, Ht*W) f32
    q2 = jnp.dot(wq_ref[...].astype(bf16), xl.astype(bf16),
                 preferred_element_type=f32) + bq_ref[...]         # (Cqp, Ht*W)
    q3 = q2.reshape(Cqp, Ht, W).astype(bf16)
    q_w = pltpu.einshape('chw->hcw', q3)                           # (Ht, Cqp, W)
    q_h = pltpu.einshape('cwh->wch', jnp.swapaxes(q3, 1, 2))       # (W, Cqp, Ht)

    k_h = kh_s[...]                                                # (W, Cqp, H)
    v_h = vh_s[...]                                                # (W, C,  H)
    k_w = kw_s[pl.ds(h0, Ht)]                                      # (Ht, Cqp, W)
    v_w = vw_s[pl.ds(h0, Ht)]                                      # (Ht, C,  W)

    # ---- energies (bf16 operands, f32 accumulation) ----
    # TODO(synk): fold the small lhs transposes into the dot dimension_numbers
    #             once verified on all target generations.
    e_h = jnp.einsum('whc,wcg->whg', jnp.swapaxes(q_h, 1, 2), k_h,
                     preferred_element_type=f32)                   # (W, Ht, H)
    e_w = jnp.einsum('hwc,hcv->hwv', jnp.swapaxes(q_w, 1, 2), k_w,
                     preferred_element_type=f32)                   # (Ht, W, W)

    # diagonal mask of the H-direction energies (global row == key row).
    # -1e30 (not -inf) is safe here: the joint softmax always has unmasked
    # W-direction terms in the max/denominator.
    rows = h0 + jax.lax.broadcasted_iota(jnp.int32, (Ht, H), 0)
    cols = jax.lax.broadcasted_iota(jnp.int32, (Ht, H), 1)
    e_h = jnp.where((rows == cols)[None, :, :], -1e30, e_h)

    # ---- joint softmax over the concatenated (H + W) key axis ----
    m_wh = jnp.max(e_h, axis=2)                                    # (W, Ht)
    m_hw = jnp.maximum(m_wh.T, jnp.max(e_w, axis=2))               # (Ht, W)
    m_wh = m_hw.T

    p_h = jnp.exp(e_h - m_wh[:, :, None])                          # (W, Ht, H)
    p_w = jnp.exp(e_w - m_hw[:, :, None])                          # (Ht, W, W)

    denom = jnp.sum(p_h, axis=2).T + jnp.sum(p_w, axis=2)          # (Ht, W)
    inv_hw = pl.reciprocal(denom, approx=True)                     # EUP slot
    inv_wh = inv_hw.T

    att_h = (p_h * inv_wh[:, :, None]).astype(bf16)                # (W, Ht, H)
    att_w = (p_w * inv_hw[:, :, None]).astype(bf16)                # (Ht, W, W)

    # ---- output bmms (bf16 operands, f32 accumulation) ----
    # out_H[c,h,w] = sum_g v[c,g,w] att_h[w,h,g]   (stored at oh[w,c,h])
    oh = jnp.einsum('wcg,whg->wch', v_h, att_h,
                    preferred_element_type=f32)                    # (W, C, Ht)
    # out_W[c,h,w] = sum_v v[c,h,v] att_w[h,w,v]   (stored at ow[h,c,w])
    ow = jnp.einsum('hcv,hwv->hcw', v_w, att_w,
                    preferred_element_type=f32)                    # (Ht, C, W)

    # ---- back to (C, Ht, W), fused gamma/residual, lane-dense store ----
    oh_c = jnp.swapaxes(pltpu.einshape('wch->cwh', oh), 1, 2)      # (C, Ht, W)
    ow_c = pltpu.einshape('hcw->chw', ow)                          # (C, Ht, W)
    combined = (oh_c + ow_c).reshape(C, HtW)                       # (C, Ht*W)
    out_ref[0] = gamma_ref[0, 0] * combined + xl


def _choose_row_strip(H, W, C, max_bytes=4 * 1024 * 1024):
    """Largest proper divisor Ht of H such that Ht*W is a multiple of 128
    (lane-dense blocks/stores) and a f32 (C, Ht*W) strip stays under
    `max_bytes` (bounds peak VMEM, enough pipeline steps even at B=1)."""
    cands = [d for d in range(1, H)
             if H % d == 0 and (d * W) % 128 == 0 and C * d * W * 4 <= max_bytes]
    return max(cands) if cands else H


def criss_cross_attention(f_low, f_ref, params):
    """gamma * (out_H + out_W) + f_low — one fused, strip-tiled Pallas kernel."""
    B, C, H, W = f_low.shape
    assert f_ref.shape == (B, C, H, W), "f_ref must match f_low's shape"
    f32, bf16 = jnp.float32, jnp.bfloat16

    Cq = params['wq'].shape[0]
    Cqp = ((Cq + 7) // 8) * 8              # pad query/key channels to 8 sublanes
    wq = jnp.zeros((Cqp, C), f32).at[:Cq, :].set(params['wq'].astype(f32))
    wk = jnp.zeros((Cqp, C), f32).at[:Cq, :].set(params['wk'].astype(f32))
    bq = jnp.zeros((Cqp, 1), f32).at[:Cq, 0].set(params['bq'].astype(f32))
    bk = jnp.zeros((Cqp, 1), f32).at[:Cq, 0].set(params['bk'].astype(f32))
    wv = params['wv'].astype(f32)
    bv = params['bv'].reshape(C, 1).astype(f32)
    gamma = params['gamma'].reshape(1, 1).astype(f32)

    Ht = _choose_row_strip(H, W, C)
    n_strips = H // Ht

    # lane-dense I/O slabs; f_ref is only ever a bf16 matmul operand.
    x_low = f_low.reshape(B, C, H * W).astype(f32)
    x_ref = f_ref.reshape(B, C, H * W).astype(bf16)

    wspec = lambda b, s: (0, 0)

    out = pl.pallas_call(
        _cc_kernel,
        out_shape=jax.ShapeDtypeStruct((B, C, H * W), f32),
        grid_spec=pltpu.PrefetchScalarGridSpec(
            num_scalar_prefetch=0,
            grid=(B, n_strips),
            in_specs=[
                pl.BlockSpec((1, C, Ht * W), lambda b, s: (b, 0, s)),  # f_low strip
                pl.BlockSpec((1, C, H * W), lambda b, s: (b, 0, 0)),   # f_ref (resident)
                pl.BlockSpec((Cqp, C), wspec),                         # wq (padded)
                pl.BlockSpec((Cqp, 1), wspec),                         # bq (padded)
                pl.BlockSpec((Cqp, C), wspec),                         # wk (padded)
                pl.BlockSpec((Cqp, 1), wspec),                         # bk (padded)
                pl.BlockSpec((C, C), wspec),                           # wv
                pl.BlockSpec((C, 1), wspec),                           # bv
                pl.BlockSpec(memory_space=pltpu.MemorySpace.SMEM),     # gamma
            ],
            out_specs=pl.BlockSpec((1, C, Ht * W), lambda b, s: (b, 0, s)),
            scratch_shapes=[
                pltpu.VMEM((H, Cqp, W), bf16),   # K, row-grouped    (per batch)
                pltpu.VMEM((H, C, W), bf16),     # V, row-grouped
                pltpu.VMEM((W, Cqp, H), bf16),   # K, column-grouped
                pltpu.VMEM((W, C, H), bf16),     # V, column-grouped
            ],
        ),
        compiler_params=pltpu.CompilerParams(
            # batch axis is megacore-parallel; the strip axis stays "arbitrary"
            # so the per-batch K/V scratch written at strip 0 persists.
            dimension_semantics=("parallel", "arbitrary"),
            vmem_limit_bytes=64 * 1024 * 1024,
        ),
    )(x_low, x_ref, wq, bq, wk, bk, wv, bv, gamma)
    return out.reshape(B, C, H, W)


# ----------------------------------------------------------------------------
# Pure-JAX reference of the PyTorch forward, for correctness checking.
# ----------------------------------------------------------------------------
def reference_forward(f_low, f_ref, params):
    B, C, H, W = f_low.shape
    q = jnp.einsum('dc,bchw->bdhw', params['wq'], f_low) + params['bq'][None, :, None, None]
    k = jnp.einsum('dc,bchw->bdhw', params['wk'], f_ref) + params['bk'][None, :, None, None]
    v = jnp.einsum('dc,bchw->bdhw', params['wv'], f_ref) + params['bv'][None, :, None, None]
    energy_h = jnp.einsum('bchw,bcgw->bhwg', q, k)
    diag = jnp.arange(H)[:, None] == jnp.arange(H)[None, :]
    energy_h = jnp.where(diag[None, :, None, :], -jnp.inf, energy_h)
    energy_w = jnp.einsum('bchw,bchv->bhwv', q, k)
    att = jax.nn.softmax(jnp.concatenate([energy_h, energy_w], axis=3), axis=3)
    att_h, att_w = att[..., :H], att[..., H:]
    out_h = jnp.einsum('bcgw,bhwg->bchw', v, att_h)
    out_w = jnp.einsum('bchv,bhwv->bchw', v, att_w)
    return params['gamma'] * (out_h + out_w) + f_low


if __name__ == "__main__":
    B, C, H, W = 2, 16, 16, 16
    Cq = C // 8
    key = jax.random.PRNGKey(0)
    k1, k2, k3, k4, k5, k6, k7, k8 = jax.random.split(key, 8)
    f_low = jax.random.normal(k1, (B, C, H, W), jnp.float32)
    f_ref = jax.random.normal(k2, (B, C, H, W), jnp.float32)

    # Conv2d 1x1 weights as (out, in); gamma = 0 as in the module's __init__.
    params = dict(
        wq=0.1 * jax.random.normal(k3, (Cq, C), jnp.float32),
        bq=0.01 * jax.random.normal(k4, (Cq,), jnp.float32),
        wk=0.1 * jax.random.normal(k5, (Cq, C), jnp.float32),
        bk=0.01 * jax.random.normal(k6, (Cq,), jnp.float32),
        wv=0.1 * jax.random.normal(k7, (C, C), jnp.float32),
        bv=0.01 * jax.random.normal(k8, (C,), jnp.float32),
        gamma=jnp.zeros((1,), jnp.float32),
    )

    forward = jax.jit(criss_cross_attention)

    # run once with the module's init (gamma = 0)
    out = jax.block_until_ready(forward(f_low, f_ref, params))
    assert out.shape == (B, C, H, W)

    # numerical check with a nonzero gamma so the attention path contributes
    chk = dict(params)
    chk['gamma'] = jnp.full((1,), 0.5, jnp.float32)
    got = jax.block_until_ready(forward(f_low, f_ref, chk))
    want = reference_forward(f_low, f_ref, chk)
    err = float(jnp.max(jnp.abs(got - want)))
    # bf16 matmul operands with f32 accumulation -> slightly looser tolerance
    assert jnp.allclose(got, want, atol=2e-2, rtol=2e-2), f"max abs err {err}"

    print("KERNEL_OK")
</pallas_src>

<mosaic_0001>
module attributes {stable_mosaic.version = 11 : i64} {
  func.func @_cc_kernel(%arg0: i32, %arg1: i32, %arg2: memref<1x16x128xf32, #tpu.memory_space<vmem>>, %arg3: memref<1x16x256xbf16, #tpu.memory_space<vmem>>, %arg4: memref<8x16xf32, #tpu.memory_space<vmem>>, %arg5: memref<8x1xf32, #tpu.memory_space<vmem>>, %arg6: memref<8x16xf32, #tpu.memory_space<vmem>>, %arg7: memref<8x1xf32, #tpu.memory_space<vmem>>, %arg8: memref<16x16xf32, #tpu.memory_space<vmem>>, %arg9: memref<16x1xf32, #tpu.memory_space<vmem>>, %arg10: memref<1x1xf32, #tpu.memory_space<smem>>, %arg11: memref<1x16x128xf32, #tpu.memory_space<vmem>>, %arg12: memref<16x8x16xbf16, #tpu.memory_space<vmem>>, %arg13: memref<16x16x16xbf16, #tpu.memory_space<vmem>>, %arg14: memref<16x8x16xbf16, #tpu.memory_space<vmem>>, %arg15: memref<16x16x16xbf16, #tpu.memory_space<vmem>>) attributes {dimension_semantics = [#tpu.dimension_semantics<parallel>, #tpu.dimension_semantics<arbitrary>], iteration_bounds = array<i64: 2, 2>, scalar_prefetch = 0 : i64, scratch_operands = 4 : i64, tpu.core_type = #tpu.core_type<tc>, window_params = [{transform_indices = @transform_0, window_bounds = array<i64: 1, 16, 128>}, {transform_indices = @transform_1, window_bounds = array<i64: 1, 16, 256>}, {pipeline_mode = #tpu.pipeline_mode<synchronous>, transform_indices = @transform_2, window_bounds = array<i64: 8, 16>}, {pipeline_mode = #tpu.pipeline_mode<synchronous>, transform_indices = @transform_3, window_bounds = array<i64: 8, 1>}, {pipeline_mode = #tpu.pipeline_mode<synchronous>, transform_indices = @transform_4, window_bounds = array<i64: 8, 16>}, {pipeline_mode = #tpu.pipeline_mode<synchronous>, transform_indices = @transform_5, window_bounds = array<i64: 8, 1>}, {pipeline_mode = #tpu.pipeline_mode<synchronous>, transform_indices = @transform_6, window_bounds = array<i64: 16, 16>}, {pipeline_mode = #tpu.pipeline_mode<synchronous>, transform_indices = @transform_7, window_bounds = array<i64: 16, 1>}, {transform_indices = @transform_8, window_bounds = array<i64: 1, 1>}, {transform_indices = @transform_9, window_bounds = array<i64: 1, 16, 128>}]} {
    %c8_i32 = arith.constant 8 : i32
    %0 = arith.muli %arg1, %c8_i32 : i32
    %1 = tpu.assume_multiple %0, 8 : i32
    %c0_i32 = arith.constant 0 : i32
    %2 = arith.cmpi eq, %arg1, %c0_i32 : i32
    %3 = arith.extui %2 : i1 to i32
    %c0_i32_0 = arith.constant 0 : i32
    %4 = arith.cmpi ne, %3, %c0_i32_0 : i32
    scf.if %4 {
      %c0_31 = arith.constant 0 : index
      %c0_32 = arith.constant 0 : index
      %c0_33 = arith.constant 0 : index
      %80 = vector.load %arg3[%c0_31, %c0_32, %c0_33] : memref<1x16x256xbf16, #tpu.memory_space<vmem>>, vector<1x16x256xbf16>
      %81 = vector.shape_cast %80 : vector<1x16x256xbf16> to vector<16x256xbf16>
      %c0_34 = arith.constant 0 : index
      %c0_35 = arith.constant 0 : index
      %82 = vector.load %arg6[%c0_34, %c0_35] : memref<8x16xf32, #tpu.memory_space<vmem>>, vector<8x16xf32>
      %83 = arith.truncf %82 : vector<8x16xf32> to vector<8x16xbf16>
      %cst_36 = arith.constant dense<0.000000e+00> : vector<8x256xf32>
      %84 = tpu.matmul %83, %81, %cst_36 {dimension_numbers = #tpu.dot_dimension_numbers<[1], [0], [0], [1], [0, 0, 1, 1], [], []>} : vector<8x16xbf16>, vector<16x256xbf16>, vector<8x256xf32> -> vector<8x256xf32>
      %c0_37 = arith.constant 0 : index
      %c0_38 = arith.constant 0 : index
      %85 = vector.load %arg7[%c0_37, %c0_38] : memref<8x1xf32, #tpu.memory_space<vmem>>, vector<8x1xf32>
      %86 = vector.broadcast %85 : vector<8x1xf32> to vector<8x256xf32>
      %87 = arith.addf %84, %86 : vector<8x256xf32>
      %c0_39 = arith.constant 0 : index
      %c0_40 = arith.constant 0 : index
      %88 = vector.load %arg8[%c0_39, %c0_40] : memref<16x16xf32, #tpu.memory_space<vmem>>, vector<16x16xf32>
      %89 = arith.truncf %88 : vector<16x16xf32> to vector<16x16xbf16>
      %cst_41 = arith.constant dense<0.000000e+00> : vector<16x256xf32>
      %90 = tpu.matmul %89, %81, %cst_41 {dimension_numbers = #tpu.dot_dimension_numbers<[1], [0], [0], [1], [0, 0, 1, 1], [], []>} : vector<16x16xbf16>, vector<16x256xbf16>, vector<16x256xf32> -> vector<16x256xf32>
      %c0_42 = arith.constant 0 : index
      %c0_43 = arith.constant 0 : index
      %91 = vector.load %arg9[%c0_42, %c0_43] : memref<16x1xf32, #tpu.memory_space<vmem>>, vector<16x1xf32>
      %92 = vector.broadcast %91 : vector<16x1xf32> to vector<16x256xf32>
      %93 = arith.addf %90, %92 : vector<16x256xf32>
      %94 = vector.shape_cast %87 : vector<8x256xf32> to vector<8x16x16xf32>
      %95 = arith.truncf %94 : vector<8x16x16xf32> to vector<8x16x16xbf16>
      %96 = vector.shape_cast %93 : vector<16x256xf32> to vector<16x16x16xf32>
      %97 = arith.truncf %96 : vector<16x16x16xf32> to vector<16x16x16xbf16>
      %98 = tpu.transpose %95, [1, 0, 2] : vector<8x16x16xbf16> -> vector<16x8x16xbf16>
      %c0_44 = arith.constant 0 : index
      %c0_45 = arith.constant 0 : index
      %c0_46 = arith.constant 0 : index
      %99 = vector.load %arg12[%c0_44, %c0_45, %c0_46] : memref<16x8x16xbf16, #tpu.memory_space<vmem>>, vector<16x8x16xbf16>
      tpu.vector_store %arg12[%c0_44, %c0_45, %c0_46], %98 {strides = array<i32>} : memref<16x8x16xbf16, #tpu.memory_space<vmem>>, vector<16x8x16xbf16>,
      %100 = tpu.transpose %97, [1, 0, 2] : vector<16x16x16xbf16> -> vector<16x16x16xbf16>
      %c0_47 = arith.constant 0 : index
      %c0_48 = arith.constant 0 : index
      %c0_49 = arith.constant 0 : index
      %101 = vector.load %arg13[%c0_47, %c0_48, %c0_49] : memref<16x16x16xbf16, #tpu.memory_space<vmem>>, vector<16x16x16xbf16>
      tpu.vector_store %arg13[%c0_47, %c0_48, %c0_49], %100 {strides = array<i32>} : memref<16x16x16xbf16, #tpu.memory_space<vmem>>, vector<16x16x16xbf16>,
      %102 = tpu.transpose %95, [0, 2, 1] : vector<8x16x16xbf16> -> vector<8x16x16xbf16>
      %103 = tpu.transpose %102, [1, 0, 2] : vector<8x16x16xbf16> -> vector<16x8x16xbf16>
      %c0_50 = arith.constant 0 : index
      %c0_51 = arith.constant 0 : index
      %c0_52 = arith.constant 0 : index
      %104 = vector.load %arg14[%c0_50, %c0_51, %c0_52] : memref<16x8x16xbf16, #tpu.memory_space<vmem>>, vector<16x8x16xbf16>
      tpu.vector_store %arg14[%c0_50, %c0_51, %c0_52], %103 {strides = array<i32>} : memref<16x8x16xbf16, #tpu.memory_space<vmem>>, vector<16x8x16xbf16>,
      %105 = tpu.transpose %97, [0, 2, 1] : vector<16x16x16xbf16> -> vector<16x16x16xbf16>
      %106 = tpu.transpose %105, [1, 0, 2] : vector<16x16x16xbf16> -> vector<16x16x16xbf16>
      %c0_53 = arith.constant 0 : index
      %c0_54 = arith.constant 0 : index
      %c0_55 = arith.constant 0 : index
      %107 = vector.load %arg15[%c0_53, %c0_54, %c0_55] : memref<16x16x16xbf16, #tpu.memory_space<vmem>>, vector<16x16x16xbf16>
      tpu.vector_store %arg15[%c0_53, %c0_54, %c0_55], %106 {strides = array<i32>} : memref<16x16x16xbf16, #tpu.memory_space<vmem>>, vector<16x16x16xbf16>,
    } else {
    }
    %c0 = arith.constant 0 : index
    %c0_1 = arith.constant 0 : index
    %c0_2 = arith.constant 0 : index
    %5 = vector.load %arg2[%c0, %c0_1, %c0_2] : memref<1x16x128xf32, #tpu.memory_space<vmem>>, vector<1x16x128xf32>
    %6 = vector.shape_cast %5 : vector<1x16x128xf32> to vector<16x128xf32>
    %c0_3 = arith.constant 0 : index
    %c0_4 = arith.constant 0 : index
    %7 = vector.load %arg4[%c0_3, %c0_4] : memref<8x16xf32, #tpu.memory_space<vmem>>, vector<8x16xf32>
    %8 = arith.truncf %7 : vector<8x16xf32> to vector<8x16xbf16>
    %9 = arith.truncf %6 : vector<16x128xf32> to vector<16x128xbf16>
    %cst = arith.constant dense<0.000000e+00> : vector<8x128xf32>
    %10 = tpu.matmul %8, %9, %cst {dimension_numbers = #tpu.dot_dimension_numbers<[1], [0], [0], [1], [0, 0, 1, 1], [], []>} : vector<8x16xbf16>, vector<16x128xbf16>, vector<8x128xf32> -> vector<8x128xf32>
    %c0_5 = arith.constant 0 : index
    %c0_6 = arith.constant 0 : index
    %11 = vector.load %arg5[%c0_5, %c0_6] : memref<8x1xf32, #tpu.memory_space<vmem>>, vector<8x1xf32>
    %12 = vector.broadcast %11 : vector<8x1xf32> to vector<8x128xf32>
    %13 = arith.addf %10, %12 : vector<8x128xf32>
    %14 = vector.shape_cast %13 : vector<8x128xf32> to vector<8x8x16xf32>
    %15 = arith.truncf %14 : vector<8x8x16xf32> to vector<8x8x16xbf16>
    %16 = tpu.transpose %15, [1, 0, 2] : vector<8x8x16xbf16> -> vector<8x8x16xbf16>
    %17 = tpu.transpose %15, [0, 2, 1] : vector<8x8x16xbf16> -> vector<8x16x8xbf16>
    %18 = tpu.transpose %17, [1, 0, 2] : vector<8x16x8xbf16> -> vector<16x8x8xbf16>
    %c0_7 = arith.constant 0 : index
    %c0_8 = arith.constant 0 : index
    %c0_9 = arith.constant 0 : index
    %19 = vector.load %arg14[%c0_7, %c0_8, %c0_9] : memref<16x8x16xbf16, #tpu.memory_space<vmem>>, vector<16x8x16xbf16>
    %c0_10 = arith.constant 0 : index
    %c0_11 = arith.constant 0 : index
    %c0_12 = arith.constant 0 : index
    %20 = vector.load %arg15[%c0_10, %c0_11, %c0_12] : memref<16x16x16xbf16, #tpu.memory_space<vmem>>, vector<16x16x16xbf16>
    %21 = arith.index_cast %1 : i32 to index
    %c0_13 = arith.constant 0 : index
    %c0_14 = arith.constant 0 : index
    %22 = vector.load %arg12[%21, %c0_13, %c0_14] : memref<16x8x16xbf16, #tpu.memory_space<vmem>>, vector<8x8x16xbf16>
    %23 = arith.index_cast %1 : i32 to index
    %c0_15 = arith.constant 0 : index
    %c0_16 = arith.constant 0 : index
    %24 = vector.load %arg13[%23, %c0_15, %c0_16] : memref<16x16x16xbf16, #tpu.memory_space<vmem>>, vector<8x16x16xbf16>
    %25 = tpu.transpose %18, [0, 2, 1] : vector<16x8x8xbf16> -> vector<16x8x8xbf16>
    "tpu.trace_start"() <{level = 10 : i32, message = "whc,wcg->whg"}> : () -> ()
    %cst_17 = arith.constant dense<0.000000e+00> : vector<16x8x16xf32>
    %26 = tpu.matmul %25, %19, %cst_17 {dimension_numbers = #tpu.dot_dimension_numbers<[2], [1], [1], [2], [0, 0, 0, 1, 1, 2], [0], [0]>} : vector<16x8x8xbf16>, vector<16x8x16xbf16>, vector<16x8x16xf32> -> vector<16x8x16xf32>
    "tpu.trace_stop"() : () -> ()
    %27 = tpu.transpose %16, [0, 2, 1] : vector<8x8x16xbf16> -> vector<8x16x8xbf16>
    "tpu.trace_start"() <{level = 10 : i32, message = "hwc,hcv->hwv"}> : () -> ()
    %cst_18 = arith.constant dense<0.000000e+00> : vector<8x16x16xf32>
    %28 = tpu.matmul %27, %22, %cst_18 {dimension_numbers = #tpu.dot_dimension_numbers<[2], [1], [1], [2], [0, 0, 0, 1, 1, 2], [0], [0]>} : vector<8x16x8xbf16>, vector<8x8x16xbf16>, vector<8x16x16xf32> -> vector<8x16x16xf32>
    "tpu.trace_stop"() : () -> ()
    %29 = tpu.iota {dimensions = array<i32: 0>} : vector<8x16xi32>
    %30 = vector.broadcast %1 : i32 to vector<8x16xi32>
    %31 = arith.addi %30, %29 : vector<8x16xi32>
    %32 = tpu.iota {dimensions = array<i32: 1>} : vector<8x16xi32>
    %33 = arith.cmpi eq, %31, %32 : vector<8x16xi32>
    %34 = vector.shape_cast %33 : vector<8x16xi1> to vector<1x8x16xi1>
    %cst_19 = arith.constant -1.000000e+30 : f32
    %35 = vector.shape_cast %34 : vector<1x8x16xi1> to vector<1x8x16xi1>
    %36 = vector.broadcast %35 : vector<1x8x16xi1> to vector<16x8x16xi1>
    %37 = vector.broadcast %cst_19 : f32 to vector<16x8x16xf32>
    %38 = arith.select %36, %37, %26 : vector<16x8x16xi1>, vector<16x8x16xf32>
    %cst_20 = arith.constant dense<0xFF800000> : vector<16x8xf32>
    %39 = vector.multi_reduction <maximumf>, %38, %cst_20 [2] : vector<16x8x16xf32> to vector<16x8xf32>
    %40 = tpu.transpose %39, [1, 0] : vector<16x8xf32> -> vector<8x16xf32>
    %cst_21 = arith.constant dense<0xFF800000> : vector<8x16xf32>
    %41 = vector.multi_reduction <maximumf>, %28, %cst_21 [2] : vector<8x16x16xf32> to vector<8x16xf32>
    %42 = arith.maximumf %40, %41 : vector<8x16xf32>
    %43 = tpu.transpose %42, [1, 0] : vector<8x16xf32> -> vector<16x8xf32>
    %44 = vector.shape_cast %43 : vector<16x8xf32> to vector<16x8x1xf32>
    %45 = vector.broadcast %44 : vector<16x8x1xf32> to vector<16x8x16xf32>
    %46 = arith.subf %38, %45 : vector<16x8x16xf32>
    %47 = math.exp %46 : vector<16x8x16xf32>
    %48 = vector.shape_cast %42 : vector<8x16xf32> to vector<8x16x1xf32>
    %49 = vector.broadcast %48 : vector<8x16x1xf32> to vector<8x16x16xf32>
    %50 = arith.subf %28, %49 : vector<8x16x16xf32>
    %51 = math.exp %50 : vector<8x16x16xf32>
    %cst_22 = arith.constant dense<0.000000e+00> : vector<16x8xf32>
    %52 = vector.multi_reduction <add>, %47, %cst_22 [2] : vector<16x8x16xf32> to vector<16x8xf32>
    %53 = tpu.transpose %52, [1, 0] : vector<16x8xf32> -> vector<8x16xf32>
    %cst_23 = arith.constant dense<0.000000e+00> : vector<8x16xf32>
    %54 = vector.multi_reduction <add>, %51, %cst_23 [2] : vector<8x16x16xf32> to vector<8x16xf32>
    %55 = arith.addf %53, %54 : vector<8x16xf32>
    %56 = tpu.reciprocal %55 {approx = true} : vector<8x16xf32> -> vector<8x16xf32>
    %57 = tpu.transpose %56, [1, 0] : vector<8x16xf32> -> vector<16x8xf32>
    %58 = vector.shape_cast %57 : vector<16x8xf32> to vector<16x8x1xf32>
    %59 = vector.broadcast %58 : vector<16x8x1xf32> to vector<16x8x16xf32>
    %60 = arith.mulf %47, %59 : vector<16x8x16xf32>
    %61 = arith.truncf %60 : vector<16x8x16xf32> to vector<16x8x16xbf16>
    %62 = vector.shape_cast %56 : vector<8x16xf32> to vector<8x16x1xf32>
    %63 = vector.broadcast %62 : vector<8x16x1xf32> to vector<8x16x16xf32>
    %64 = arith.mulf %51, %63 : vector<8x16x16xf32>
    %65 = arith.truncf %64 : vector<8x16x16xf32> to vector<8x16x16xbf16>
    "tpu.trace_start"() <{level = 10 : i32, message = "wcg,whg->wch"}> : () -> ()
    %cst_24 = arith.constant dense<0.000000e+00> : vector<16x16x8xf32>
    %66 = tpu.matmul %20, %61, %cst_24 {dimension_numbers = #tpu.dot_dimension_numbers<[2], [2], [1], [1], [0, 0, 0, 1, 1, 1], [0], [0]>} : vector<16x16x16xbf16>, vector<16x8x16xbf16>, vector<16x16x8xf32> -> vector<16x16x8xf32>
    "tpu.trace_stop"() : () -> ()
    "tpu.trace_start"() <{level = 10 : i32, message = "hcv,hwv->hcw"}> : () -> ()
    %cst_25 = arith.constant dense<0.000000e+00> : vector<8x16x16xf32>
    %67 = tpu.matmul %24, %65, %cst_25 {dimension_numbers = #tpu.dot_dimension_numbers<[2], [2], [1], [1], [0, 0, 0, 1, 1, 1], [0], [0]>} : vector<8x16x16xbf16>, vector<8x16x16xbf16>, vector<8x16x16xf32> -> vector<8x16x16xf32>
    "tpu.trace_stop"() : () -> ()
    %68 = tpu.transpose %66, [1, 0, 2] : vector<16x16x8xf32> -> vector<16x16x8xf32>
    %69 = tpu.transpose %68, [0, 2, 1] : vector<16x16x8xf32> -> vector<16x8x16xf32>
    %70 = tpu.transpose %67, [1, 0, 2] : vector<8x16x16xf32> -> vector<16x8x16xf32>
    %71 = arith.addf %69, %70 : vector<16x8x16xf32>
    %72 = vector.shape_cast %71 : vector<16x8x16xf32> to vector<16x128xf32>
    %c0_26 = arith.constant 0 : index
    %c0_27 = arith.constant 0 : index
    %73 = memref.load %arg10[%c0_26, %c0_27] : memref<1x1xf32, #tpu.memory_space<smem>>
    %74 = vector.broadcast %73 : f32 to vector<16x128xf32>
    %75 = arith.mulf %74, %72 : vector<16x128xf32>
    %76 = arith.addf %75, %6 : vector<16x128xf32>
    %c0_28 = arith.constant 0 : index
    %c0_29 = arith.constant 0 : index
    %c0_30 = arith.constant 0 : index
    %77 = vector.load %arg11[%c0_28, %c0_29, %c0_30] : memref<1x16x128xf32, #tpu.memory_space<vmem>>, vector<1x16x128xf32>
    %78 = vector.shape_cast %77 : vector<1x16x128xf32> to vector<16x128xf32>
    %79 = vector.shape_cast %76 : vector<16x128xf32> to vector<1x16x128xf32>
    tpu.vector_store %arg11[%c0_28, %c0_29, %c0_30], %79 {strides = array<i32>} : memref<1x16x128xf32, #tpu.memory_space<vmem>>, vector<1x16x128xf32>,
    return
  }
  func.func @transform_0(%arg0: i32, %arg1: i32) -> (i32, i32, i32) {
    %c0_i32 = arith.constant 0 : i32
    %c0_i32_0 = arith.constant 0 : i32
    return %arg0, %c0_i32, %arg1 : i32, i32, i32
  }
  func.func @transform_1(%arg0: i32, %arg1: i32) -> (i32, i32, i32) {
    %c0_i32 = arith.constant 0 : i32
    %c0_i32_0 = arith.constant 0 : i32
    %c0_i32_1 = arith.constant 0 : i32
    return %arg0, %c0_i32, %c0_i32_0 : i32, i32, i32
  }
  func.func @transform_2(%arg0: i32, %arg1: i32) -> (i32, i32) {
    %c0_i32 = arith.constant 0 : i32
    %c0_i32_0 = arith.constant 0 : i32
    %c0_i32_1 = arith.constant 0 : i32
    return %c0_i32, %c0_i32_0 : i32, i32
  }
  func.func @transform_3(%arg0: i32, %arg1: i32) -> (i32, i32) {
    %c0_i32 = arith.constant 0 : i32
    %c0_i32_0 = arith.constant 0 : i32
    %c0_i32_1 = arith.constant 0 : i32
    return %c0_i32, %c0_i32_0 : i32, i32
  }
  func.func @transform_4(%arg0: i32, %arg1: i32) -> (i32, i32) {
    %c0_i32 = arith.constant 0 : i32
    %c0_i32_0 = arith.constant 0 : i32
    %c0_i32_1 = arith.constant 0 : i32
    return %c0_i32, %c0_i32_0 : i32, i32
  }
  func.func @transform_5(%arg0: i32, %arg1: i32) -> (i32, i32) {
    %c0_i32 = arith.constant 0 : i32
    %c0_i32_0 = arith.constant 0 : i32
    %c0_i32_1 = arith.constant 0 : i32
    return %c0_i32, %c0_i32_0 : i32, i32
  }
  func.func @transform_6(%arg0: i32, %arg1: i32) -> (i32, i32) {
    %c0_i32 = arith.constant 0 : i32
    %c0_i32_0 = arith.constant 0 : i32
    %c0_i32_1 = arith.constant 0 : i32
    return %c0_i32, %c0_i32_0 : i32, i32
  }
  func.func @transform_7(%arg0: i32, %arg1: i32) -> (i32, i32) {
    %c0_i32 = arith.constant 0 : i32
    %c0_i32_0 = arith.constant 0 : i32
    %c0_i32_1 = arith.constant 0 : i32
    return %c0_i32, %c0_i32_0 : i32, i32
  }
  func.func @transform_8(%arg0: i32, %arg1: i32) -> (i32, i32) {
    %c0_i32 = arith.constant 0 : i32
    %c0_i32_0 = arith.constant 0 : i32
    %c0_i32_1 = arith.constant 0 : i32
    return %c0_i32, %c0_i32_0 : i32, i32
  }
  func.func @transform_9(%arg0: i32, %arg1: i32) -> (i32, i32, i32) {
    %c0_i32 = arith.constant 0 : i32
    %c0_i32_0 = arith.constant 0 : i32
    return %arg0, %c0_i32, %arg1 : i32, i32, i32
  }
}

</mosaic_0001>

<llo_original>
// kernel: criss_cross_attention.1
$region0: #{criss_cross_attention.1}
  #allocation0 [shape = 'u32[]', space=smem, size = 0x4, offset = 0x4, fixed_abs, tag = 'smem constant byte address 0x4 - core index']
  #allocation1 [shape = 'u32[144,128]{1,0:T(1,128)}', space=vmem, size = 0x12000, scoped, tag = 'internal scratch']
  #allocation2 [shape = 'bf16[16,8,16]{2,1,0:T(8,128)(2,1)}', space=vmem, size = 0x8000, scoped, tag = 'scratch operand']
  #allocation3 [shape = 'bf16[16,16,16]{2,1,0:T(16,128)(2,1)}', space=vmem, size = 0x10000, scoped, tag = 'scratch operand']
  #allocation4 [shape = 'bf16[16,8,16]{2,1,0:T(8,128)(2,1)}', space=vmem, size = 0x8000, scoped, tag = 'scratch operand']
  #allocation5 [shape = 'bf16[16,16,16]{2,1,0:T(16,128)(2,1)}', space=vmem, size = 0x10000, scoped, tag = 'scratch operand']
  #allocation6 [shape = 'f32[1,1]{1,0:T(1,128)S(6)}', space=smem, size = 0x200, scoped, tag = 'scoped memory for criss_cross_attention.1']
  %s0 = inlined_call_operand.hbm [shape: f32[2,16,256], index: 0, kind: input, shape index: {}]
  %s1 = inlined_call_operand.hbm [shape: bf16[2,16,256], index: 1, kind: input, shape index: {}]
  %s2 = inlined_call_operand.hbm [shape: f32[8,16], index: 2, kind: input, shape index: {}]
  %s3 = inlined_call_operand.hbm [shape: f32[8,1], index: 3, kind: input, shape index: {}]
  %s4 = inlined_call_operand.hbm [shape: f32[8,16], index: 4, kind: input, shape index: {}]
  %s5 = inlined_call_operand.hbm [shape: f32[8,1], index: 5, kind: input, shape index: {}]
  %s6 = inlined_call_operand.hbm [shape: f32[16,16], index: 6, kind: input, shape index: {}]
  %s7 = inlined_call_operand.hbm [shape: f32[16,1], index: 7, kind: input, shape index: {}]
  %s8 = inlined_call_operand.<no memory space> [shape: f32[1,1], index: 8, kind: input, shape index: {}]
  %s9 = inlined_call_operand.hbm [shape: f32[2,16,256], index: 9, kind: output, shape index: {}]
  %s10 = sld [smem:[#allocation0]]
  $region105: #{criss_cross_attention.1} parent=0
    _
  %s12 = ssub.s32 1, %s10
  %s13 = scalar_select 0, %s12, %s10
  %14 = sst [smem:[#allocation6]] %s8
  $region1: #{criss_cross_attention.1} parent=0
    #allocation7 [shape = 'u8[16384]{0}', space=vmem, size = 0x4000, scoped, tag = 'input window, operand 0']
    #allocation8 [shape = 's32[2]{0}', space=sflag, size = 0x8, scoped, tag = 'scoped memory for criss_cross_attention.1']
    #allocation9 [shape = 's32[2]{0}', space=sflag, size = 0x8, scoped, tag = 'scoped memory for criss_cross_attention.1']
    #allocation10 [shape = 'u8[16384]{0}', space=vmem, size = 0x4000, scoped, tag = 'input window, operand 1']
    #allocation11 [shape = 's32[2]{0}', space=sflag, size = 0x8, scoped, tag = 'scoped memory for criss_cross_attention.1']
    #allocation12 [shape = 'u8[4096]{0}', space=vmem, size = 0x1000, scoped, tag = 'input window, operand 2, single buffered']
    #allocation13 [shape = 'u8[4096]{0}', space=vmem, size = 0x1000, scoped, tag = 'input window, operand 3, single buffered']
    #allocation14 [shape = 's32[1]{0}', space=sflag, size = 0x4, scoped, tag = 'scoped memory for criss_cross_attention.1']
    #allocation15 [shape = 'u8[4096]{0}', space=vmem, size = 0x1000, scoped, tag = 'input window, operand 4, single buffered']
    #allocation16 [shape = 'u8[4096]{0}', space=vmem, size = 0x1000, scoped, tag = 'input window, operand 5, single buffered']
    #allocation17 [shape = 's32[1]{0}', space=sflag, size = 0x4, scoped, tag = 'scoped memory for criss_cross_attention.1']
    #allocation18 [shape = 'u8[8192]{0}', space=vmem, size = 0x2000, scoped, tag = 'input window, operand 6, single buffered']
    #allocation19 [shape = 'u8[8192]{0}', space=vmem, size = 0x2000, scoped, tag = 'input window, operand 7, single buffered']
    #allocation20 [shape = 's32[1]{0}', space=sflag, size = 0x4, scoped, tag = 'scoped memory for criss_cross_attention.1']
    #allocation21 [shape = 'u8[16384]{0}', space=vmem, size = 0x4000, scoped, tag = 'output window, operand 0']
    %15 = vsyncpa [#allocation8], 0
    %s16 = scalar_lea.sflag [#allocation8], 1
    %17 = vsyncpa %s16, 0
    %18 = vsyncpa [#allocation11], 0
    %s19 = scalar_lea.sflag [#allocation11], 1
    %20 = vsyncpa %s19, 0
    %21 = vsyncpa [#allocation14], 0
    %22 = vsyncpa [#allocation17], 0
    %23 = vsyncpa [#allocation20], 0
    %24 = vsyncpa [#allocation9], 0
    %s25 = scalar_lea.sflag [#allocation9], 1
    %26 = vsyncpa %s25, 0
    loop: start=0, step=1, limit=6
    $region2: #{criss_cross_attention.1} parent=1 // loop_pre_header
      _
    $region3: #{criss_cross_attention.1} parent=1 // loop_header
      %s28 = sphi 0, %s32
      %p29 = scmp.ge.s32.totalorder %s28, 6
      %s35 = sphi 0, %s47
      %s36 = sphi 0, %s43
      %s37 = sphi 0, %s35
      %s38 = sphi 0, %s36
      %s39 = sphi 0, %s37
      %s40 = sphi 0, %s38
      %s52 = sphi 0, %s54
      %s55 = sphi 0, %s52
      %s56 = sphi 0, %s55
      %s72 = sphi 0, %s56
      %s78 = sphi 0, %s80
      %s81 = sphi 0, %s78
      %s82 = sphi 0, %s81
      %s98 = sphi 0, %s82
      %s102 = sphi 0, %s102
      %s104 = sphi 0, %s102
      %s105 = sphi 0, %s104
      %s119 = sphi 0, %s105
      %s123 = sphi 0, %s123
      %s125 = sphi 0, %s123
      %s126 = sphi 0, %s125
      %s140 = sphi 0, %s126
      %s144 = sphi 0, %s144
      %s146 = sphi 0, %s144
      %s147 = sphi 0, %s146
      %s161 = sphi 0, %s147
      %s165 = sphi 0, %s165
      %s167 = sphi 0, %s165
      %s168 = sphi 0, %s167
      %s182 = sphi 0, %s168
      %s186 = sphi 0, %s186
      %s188 = sphi 0, %s186
      %s189 = sphi 0, %s188
      %s203 = sphi 0, %s189
      %s207 = sphi 0, %s207
      %s209 = sphi 0, %s207
      %s210 = sphi 0, %s209
      %s224 = sphi 0, %s210
      %s228 = sphi 0, %s228
      %s230 = sphi 0, %s228
      %s231 = sphi 0, %s230
      %s245 = sphi 0, %s231
      %s253 = sphi 0, %s255
      %s256 = sphi 0, %s253
      %s257 = sphi 0, %s256
      %s273 = sphi 0, %s257
    $region4: #{criss_cross_attention.1} parent=1 // loop_header_branch
      %31 = sbr.rel (%p29) target = $region8
    $region5: #{criss_cross_attention.1} parent=1 // loop_body
      %s33 = ssub.s32 %s28, 1
      %s34 = ssub.s32 %s28, 2
      %s41 = sadd.s32 1, %s36
      %p42 = scmp.ge.s32.totalorder %s41, 2
      %s43 = scalar_select %p42, 0, %s41
      %s44 = sadd.s32 1, %s35
      %s45 = scalar_select %p42, %s44, %s35
      %p46 = scmp.ge.s32.totalorder %s45, 2
      %s47 = scalar_select %p46, 0, %s45
      %s48 = ssub.s32 %s35, %s47
      %s49 = ssub.s32 %s36, %s43
      %s50 = sor.u32 %s48, %s49
      %p51 = scmp.eq.s32.totalorder %s50, 0
      %s53 = sadd.s32 %s52, 1
      %s54 = scalar_select %p51, %s52, %s53
      %p57 = pneg %p51
      %p58 = scmp.eq.s32.totalorder %s28, 3
      %p59 = por %p57, %p58
      %p60 = scmp.ne.s32.totalorder %s52, %s55
      %p61 = scmp.eq.s32.totalorder %s28, 0
      %p62 = por %p60, %p61
      %p63 = scmp.ne.s32.totalorder %s52, %s55
      %p64 = scmp.eq.s32.totalorder %s33, 3
      %p65 = por %p63, %p64
      %p66 = scmp.ne.s32.totalorder %s55, %s56
      %p67 = scmp.eq.s32.totalorder %s33, 0
      %p68 = por %p66, %p67
      %p69 = scmp.ne.s32.totalorder %s55, %s56
      %p70 = scmp.eq.s32.totalorder %s34, 3
      %p71 = por %p69, %p70
      %p73 = scmp.ne.s32.totalorder %s56, %s72
      %p74 = scmp.eq.s32.totalorder %s34, 0
      %p75 = por %p73, %p74
      %s76 = ssub.s32 %s35, %s47
      %p77 = scmp.eq.s32.totalorder %s76, 0
      %s79 = sadd.s32 %s78, 1
      %s80 = scalar_select %p77, %s78, %s79
      %p83 = pneg %p77
      %p84 = scmp.eq.s32.totalorder %s28, 3
      %p85 = por %p83, %p84
      %p86 = scmp.ne.s32.totalorder %s78, %s81
      %p87 = scmp.eq.s32.totalorder %s28, 0
      %p88 = por %p86, %p87
      %p89 = scmp.ne.s32.totalorder %s78, %s81
      %p90 = scmp.eq.s32.totalorder %s33, 3
      %p91 = por %p89, %p90
      %p92 = scmp.ne.s32.totalorder %s81, %s82
      %p93 = scmp.eq.s32.totalorder %s33, 0
      %p94 = por %p92, %p93
      %p95 = scmp.ne.s32.totalorder %s81, %s82
      %p96 = scmp.eq.s32.totalorder %s34, 3
      %p97 = por %p95, %p96
      %p99 = scmp.ne.s32.totalorder %s82, %s98
      %p100 = scmp.eq.s32.totalorder %s34, 0
      %p101 = por %p99, %p100
      %s103 = sadd.s32 %s102, 1
      %p106 = scmp.eq.s32.totalorder %s28, 3
      %p107 = scmp.ne.s32.totalorder %s102, %s104
      %p108 = scmp.eq.s32.totalorder %s28, 0
      %p109 = por %p107, %p108
      %p110 = scmp.ne.s32.totalorder %s102, %s104
      %p111 = scmp.eq.s32.totalorder %s33, 3
      %p112 = por %p110, %p111
      %p113 = scmp.ne.s32.totalorder %s104, %s105
      %p114 = scmp.eq.s32.totalorder %s33, 0
      %p115 = por %p113, %p114
      %p116 = scmp.ne.s32.totalorder %s104, %s105
      %p117 = scmp.eq.s32.totalorder %s34, 3
      %p118 = por %p116, %p117
      %p120 = scmp.ne.s32.totalorder %s105, %s119
      %p121 = scmp.eq.s32.totalorder %s34, 0
      %p122 = por %p120, %p121
      %s124 = sadd.s32 %s123, 1
      %p127 = scmp.eq.s32.totalorder %s28, 3
      %p128 = scmp.ne.s32.totalorder %s123, %s125
      %p129 = scmp.eq.s32.totalorder %s28, 0
      %p130 = por %p128, %p129
      %p131 = scmp.ne.s32.totalorder %s123, %s125
      %p132 = scmp.eq.s32.totalorder %s33, 3
      %p133 = por %p131, %p132
      %p134 = scmp.ne.s32.totalorder %s125, %s126
      %p135 = scmp.eq.s32.totalorder %s33, 0
      %p136 = por %p134, %p135
      %p137 = scmp.ne.s32.totalorder %s125, %s126
      %p138 = scmp.eq.s32.totalorder %s34, 3
      %p139 = por %p137, %p138
      %p141 = scmp.ne.s32.totalorder %s126, %s140
      %p142 = scmp.eq.s32.totalorder %s34, 0
      %p143 = por %p141, %p142
      %s145 = sadd.s32 %s144, 1
      %p148 = scmp.eq.s32.totalorder %s28, 3
      %p149 = scmp.ne.s32.totalorder %s144, %s146
      %p150 = scmp.eq.s32.totalorder %s28, 0
      %p151 = por %p149, %p150
      %p152 = scmp.ne.s32.totalorder %s144, %s146
      %p153 = scmp.eq.s32.totalorder %s33, 3
      %p154 = por %p152, %p153
      %p155 = scmp.ne.s32.totalorder %s146, %s147
      %p156 = scmp.eq.s32.totalorder %s33, 0
      %p157 = por %p155, %p156
      %p158 = scmp.ne.s32.totalorder %s146, %s147
      %p159 = scmp.eq.s32.totalorder %s34, 3
      %p160 = por %p158, %p159
      %p162 = scmp.ne.s32.totalorder %s147, %s161
      %p163 = scmp.eq.s32.totalorder %s34, 0
      %p164 = por %p162, %p163
      %s166 = sadd.s32 %s165, 1
      %p169 = scmp.eq.s32.totalorder %s28, 3
      %p170 = scmp.ne.s32.totalorder %s165, %s167
      %p171 = scmp.eq.s32.totalorder %s28, 0
      %p172 = por %p170, %p171
      %p173 = scmp.ne.s32.totalorder %s165, %s167
      %p174 = scmp.eq.s32.totalorder %s33, 3
      %p175 = por %p173, %p174
      %p176 = scmp.ne.s32.totalorder %s167, %s168
      %p177 = scmp.eq.s32.totalorder %s33, 0
      %p178 = por %p176, %p177
      %p179 = scmp.ne.s32.totalorder %s167, %s168
      %p180 = scmp.eq.s32.totalorder %s34, 3
      %p181 = por %p179, %p180
      %p183 = scmp.ne.s32.totalorder %s168, %s182
      %p184 = scmp.eq.s32.totalorder %s34, 0
      %p185 = por %p183, %p184
      %s187 = sadd.s32 %s186, 1
      %p190 = scmp.eq.s32.totalorder %s28, 3
      %p191 = scmp.ne.s32.totalorder %s186, %s188
      %p192 = scmp.eq.s32.totalorder %s28, 0
      %p193 = por %p191, %p192
      %p194 = scmp.ne.s32.totalorder %s186, %s188
      %p195 = scmp.eq.s32.totalorder %s33, 3
      %p196 = por %p194, %p195
      %p197 = scmp.ne.s32.totalorder %s188, %s189
      %p198 = scmp.eq.s32.totalorder %s33, 0
      %p199 = por %p197, %p198
      %p200 = scmp.ne.s32.totalorder %s188, %s189
      %p201 = scmp.eq.s32.totalorder %s34, 3
      %p202 = por %p200, %p201
      %p204 = scmp.ne.s32.totalorder %s189, %s203
      %p205 = scmp.eq.s32.totalorder %s34, 0
      %p206 = por %p204, %p205
      %s208 = sadd.s32 %s207, 1
      %p211 = scmp.eq.s32.totalorder %s28, 3
      %p212 = scmp.ne.s32.totalorder %s207, %s209
      %p213 = scmp.eq.s32.totalorder %s28, 0
      %p214 = por %p212, %p213
      %p215 = scmp.ne.s32.totalorder %s207, %s209
      %p216 = scmp.eq.s32.totalorder %s33, 3
      %p217 = por %p215, %p216
      %p218 = scmp.ne.s32.totalorder %s209, %s210
      %p219 = scmp.eq.s32.totalorder %s33, 0
      %p220 = por %p218, %p219
      %p221 = scmp.ne.s32.totalorder %s209, %s210
      %p222 = scmp.eq.s32.totalorder %s34, 3
      %p223 = por %p221, %p222
      %p225 = scmp.ne.s32.totalorder %s210, %s224
      %p226 = scmp.eq.s32.totalorder %s34, 0
      %p227 = por %p225, %p226
      %s229 = sadd.s32 %s228, 1
      %p232 = scmp.eq.s32.totalorder %s28, 3
      %p233 = scmp.ne.s32.totalorder %s228, %s230
      %p234 = scmp.eq.s32.totalorder %s28, 0
      %p235 = por %p233, %p234
      %p236 = scmp.ne.s32.totalorder %s228, %s230
      %p237 = scmp.eq.s32.totalorder %s33, 3
      %p238 = por %p236, %p237
      %p239 = scmp.ne.s32.totalorder %s230, %s231
      %p240 = scmp.eq.s32.totalorder %s33, 0
      %p241 = por %p239, %p240
      %p242 = scmp.ne.s32.totalorder %s230, %s231
      %p243 = scmp.eq.s32.totalorder %s34, 3
      %p244 = por %p242, %p243
      %p246 = scmp.ne.s32.totalorder %s231, %s245
      %p247 = scmp.eq.s32.totalorder %s34, 0
      %p248 = por %p246, %p247
      %s249 = ssub.s32 %s35, %s47
      %s250 = ssub.s32 %s36, %s43
      %s251 = sor.u32 %s249, %s250
      %p252 = scmp.eq.s32.totalorder %s251, 0
      %s254 = sadd.s32 %s253, 1
      %s255 = scalar_select %p252, %s253, %s254
      %p258 = pneg %p252
      %p259 = scmp.eq.s32.totalorder %s28, 3
      %p260 = por %p258, %p259
      %p261 = scmp.ne.s32.totalorder %s253, %s256
      %p262 = scmp.eq.s32.totalorder %s28, 0
      %p263 = por %p261, %p262
      %p264 = scmp.ne.s32.totalorder %s253, %s256
      %p265 = scmp.eq.s32.totalorder %s33, 3
      %p266 = por %p264, %p265
      %p267 = scmp.ne.s32.totalorder %s256, %s257
      %p268 = scmp.eq.s32.totalorder %s33, 0
      %p269 = por %p267, %p268
      %p270 = scmp.ne.s32.totalorder %s256, %s257
      %p271 = scmp.eq.s32.totalorder %s34, 3
      %p272 = por %p270, %p271
      %p274 = scmp.ne.s32.totalorder %s257, %s273
      %p275 = scmp.eq.s32.totalorder %s34, 0
      %p276 = por %p274, %p275
      %p277 = scmp.le.s32.totalorder 1, %s28
      %p278 = scmp.lt.s32.totalorder %s28, 5
      %p279 = pnand %p277, %p278
      %p280 = pneg %p279
      // Predicated region
      $region9: #{criss_cross_attention.1} parent=5 // pred_check
        _
      $region10: #{criss_cross_attention.1} parent=5 // pred_check_branch
        %282 = sbr.rel (%p279) target = $region12
      $region11: #{criss_cross_attention.1} parent=5 // pred_region
        %s283 = ssub.s32 %s28, 1
        // Predicated region
        $region13: #{criss_cross_attention.1} parent=11 // pred_check
          %p284 = pneg %p115
        $region14: #{criss_cross_attention.1} parent=11 // pred_check_branch
          %286 = sbr.rel (%p284) target = $region16
        $region15: #{criss_cross_attention.1} parent=11 // pred_region
          %s288 = ssub.s32 128, 128
          %289 = vsyncadd [#allocation11], %s288
          %s291 = sshll.u32 [#allocation12], 4
          %s292 = int_to_ptr.vmem [resolvable:$true] %s291
          %294 = dma.hbm_to_vmem [thread:$0]  %s2, 128, %s292, [#allocation11]
        $region16: #{criss_cross_attention.1} parent=11 // pred_fallthru
          _
        // Predicated region
        $region17: #{criss_cross_attention.1} parent=11 // pred_check
          %p295 = pneg %p136
        $region18: #{criss_cross_attention.1} parent=11 // pred_check_branch
          %297 = sbr.rel (%p295) target = $region20
        $region19: #{criss_cross_attention.1} parent=11 // pred_region
          %s299 = ssub.s32 128, 128
          %300 = vsyncadd [#allocation14], %s299
          %s302 = sshll.u32 [#allocation13], 4
          %s303 = int_to_ptr.vmem [resolvable:$true] %s302
          %305 = dma.hbm_to_vmem [thread:$0]  %s3, 128, %s303, [#allocation14]
        $region20: #{criss_cross_attention.1} parent=11 // pred_fallthru
          _
        // Predicated region
        $region21: #{criss_cross_attention.1} parent=11 // pred_check
          %p306 = pneg %p157
        $region22: #{criss_cross_attention.1} parent=11 // pred_check_branch
          %308 = sbr.rel (%p306) target = $region24
        $region23: #{criss_cross_attention.1} parent=11 // pred_region
          %s310 = ssub.s32 128, 128
          %311 = vsyncadd [#allocation14], %s310
          %s313 = sshll.u32 [#allocation15], 4
          %s314 = int_to_ptr.vmem [resolvable:$true] %s313
          %316 = dma.hbm_to_vmem [thread:$0]  %s4, 128, %s314, [#allocation14]
        $region24: #{criss_cross_attention.1} parent=11 // pred_fallthru
          _
        // Predicated region
        $region25: #{criss_cross_attention.1} parent=11 // pred_check
          %p317 = pneg %p178
        $region26: #{criss_cross_attention.1} parent=11 // pred_check_branch
          %319 = sbr.rel (%p317) target = $region28
        $region27: #{criss_cross_attention.1} parent=11 // pred_region
          %s321 = ssub.s32 128, 128
          %322 = vsyncadd [#allocation17], %s321
          %s324 = sshll.u32 [#allocation16], 4
          %s325 = int_to_ptr.vmem [resolvable:$true] %s324
          %327 = dma.hbm_to_vmem [thread:$0]  %s5, 128, %s325, [#allocation17]
        $region28: #{criss_cross_attention.1} parent=11 // pred_fallthru
          _
        // Predicated region
        $region29: #{criss_cross_attention.1} parent=11 // pred_check
          %p328 = pneg %p199
        $region30: #{criss_cross_attention.1} parent=11 // pred_check_branch
          %330 = sbr.rel (%p328) target = $region32
        $region31: #{criss_cross_attention.1} parent=11 // pred_region
          %s332 = ssub.s32 256, 256
          %333 = vsyncadd [#allocation17], %s332
          %s334 = sshll.u32 [#allocation18], 4
          %s335 = int_to_ptr.vmem [resolvable:$true] %s334
          %340 = dma.hbm_to_vmem [thread:$0]  %s6, 256, %s335, [#allocation17], 128, 128, 8
        $region32: #{criss_cross_attention.1} parent=11 // pred_fallthru
          _
        // Predicated region
        $region33: #{criss_cross_attention.1} parent=11 // pred_check
          %p341 = pneg %p220
        $region34: #{criss_cross_attention.1} parent=11 // pred_check_branch
          %343 = sbr.rel (%p341) target = $region36
        $region35: #{criss_cross_attention.1} parent=11 // pred_region
          %s345 = ssub.s32 256, 256
          %346 = vsyncadd [#allocation20], %s345
          %s347 = sshll.u32 [#allocation19], 4
          %s348 = int_to_ptr.vmem [resolvable:$true] %s347
          %353 = dma.hbm_to_vmem [thread:$0]  %s7, 256, %s348, [#allocation20], 128, 128, 8
        $region36: #{criss_cross_attention.1} parent=11 // pred_fallthru
          _
        // Predicated region
        $region37: #{criss_cross_attention.1} parent=11 // pred_check
          %p354 = pneg %p241
        $region38: #{criss_cross_attention.1} parent=11 // pred_check_branch
          %356 = sbr.rel (%p354) target = $region40
        $region39: #{criss_cross_attention.1} parent=11 // pred_region
          _
        $region40: #{criss_cross_attention.1} parent=11 // pred_fallthru
          _
      $region12: #{criss_cross_attention.1} parent=5 // pred_fallthru
        _
      %p357 = scmp.lt.s32.totalorder %s28, 4
      // Predicated region
      $region41: #{criss_cross_attention.1} parent=5 // pred_check
        %p358 = pneg %p357
      $region42: #{criss_cross_attention.1} parent=5 // pred_check_branch
        %360 = sbr.rel (%p358) target = $region44
      $region43: #{criss_cross_attention.1} parent=5 // pred_region
        // Predicated region
        $region45: #{criss_cross_attention.1} parent=43 // pred_check
          %p361 = pneg %p62
        $region46: #{criss_cross_attention.1} parent=43 // pred_check_branch
          %363 = sbr.rel (%p361) target = $region48
        $region47: #{criss_cross_attention.1} parent=43 // pred_region
          %s364 = sand.u32 %s52, 1
          %s365 = scalar_lea.sflag [#allocation8], %s364
          %s366 = sand.u32 %s52, 1
          %s367 = smul.addr %s366, 16
          %s368 = scalar_lea.vmem [#allocation7], %s367
          %s370 = ssub.s32 256, 256
          %371 = vsyncadd %s365, %s370
          %s372 = smul.addr %s35, 4
          %s373 = sadd.s32 %s36, %s372
          %s374 = smul.addr %s373, 128
          %s375 = scalar_lea.hbm %s0, %s374
          %s376 = sshll.u32 %s368, 4
          %s377 = int_to_ptr.vmem [resolvable:$true] %s376
          %382 = dma.hbm_to_vmem [thread:$0]  %s375, 256, %s377, %s365, 256, 128, 8
        $region48: #{criss_cross_attention.1} parent=43 // pred_fallthru
          _
        // Predicated region
        $region49: #{criss_cross_attention.1} parent=43 // pred_check
          %p383 = pneg %p88
        $region50: #{criss_cross_attention.1} parent=43 // pred_check_branch
          %385 = sbr.rel (%p383) target = $region52
        $region51: #{criss_cross_attention.1} parent=43 // pred_region
          %s386 = sand.u32 %s28, 1
          %s387 = scalar_lea.sflag [#allocation11], %s386
          %s388 = sand.u32 %s78, 1
          %s389 = smul.addr %s388, 16
          %s390 = scalar_lea.vmem [#allocation10], %s389
          %s392 = ssub.s32 256, 256
          %393 = vsyncadd %s387, %s392
          %s394 = smul.addr %s35, 4
          %s395 = smul.addr %s394, 64
          %s396 = scalar_lea.hbm %s1, %s395
          %s397 = sshll.u32 %s390, 4
          %s398 = int_to_ptr.vmem [resolvable:$true] %s397
          %403 = dma.hbm_to_vmem [thread:$0]  %s396, 256, %s398, %s387, 128, 128, 8
        $region52: #{criss_cross_attention.1} parent=43 // pred_fallthru
          _
      $region44: #{criss_cross_attention.1} parent=5 // pred_fallthru
        _
      %p404 = scmp.le.s32.totalorder 1, %s28
      %p405 = scmp.lt.s32.totalorder %s28, 5
      %p406 = pnand %p404, %p405
      %p407 = pneg %p406
      // Predicated region
      $region53: #{criss_cross_attention.1} parent=5 // pred_check
        _
      $region54: #{criss_cross_attention.1} parent=5 // pred_check_branch
        %409 = sbr.rel (%p406) target = $region56
      $region55: #{criss_cross_attention.1} parent=5 // pred_region
        %s410 = ssub.s32 %s28, 1
        %s411 = sand.u32 %s55, 1
        %s412 = scalar_lea.sflag [#allocation8], %s411
        %s413 = sand.u32 %s55, 1
        %s414 = smul.addr %s413, 16
        %s415 = scalar_lea.vmem [#allocation7], %s414
        // Predicated region
        $region57: #{criss_cross_attention.1} parent=55 // pred_check
          %p416 = pneg %p68
        $region58: #{criss_cross_attention.1} parent=55 // pred_check_branch
          %418 = sbr.rel (%p416) target = $region60
        $region59: #{criss_cross_attention.1} parent=55 // pred_region
          %419 = dma.done %s412, 256
        $region60: #{criss_cross_attention.1} parent=55 // pred_fallthru
          _
        %s420 = sand.u32 %s33, 1
        %s421 = scalar_lea.sflag [#allocation11], %s420
        %s422 = sand.u32 %s81, 1
        %s423 = smul.addr %s422, 16
        %s424 = scalar_lea.vmem [#allocation10], %s423
        // Predicated region
        $region61: #{criss_cross_attention.1} parent=55 // pred_check
          %p425 = pneg %p94
        $region62: #{criss_cross_attention.1} parent=55 // pred_check_branch
          %427 = sbr.rel (%p425) target = $region64
        $region63: #{criss_cross_attention.1} parent=55 // pred_region
          %428 = dma.done %s421, 256
        $region64: #{criss_cross_attention.1} parent=55 // pred_fallthru
          _
        // Predicated region
        $region65: #{criss_cross_attention.1} parent=55 // pred_check
          %p429 = pneg %p115
        $region66: #{criss_cross_attention.1} parent=55 // pred_check_branch
          %431 = sbr.rel (%p429) target = $region68
        $region67: #{criss_cross_attention.1} parent=55 // pred_region
          %432 = dma.done [#allocation11], 128
        $region68: #{criss_cross_attention.1} parent=55 // pred_fallthru
          _
        // Predicated region
        $region69: #{criss_cross_attention.1} parent=55 // pred_check
          %p433 = pneg %p136
        $region70: #{criss_cross_attention.1} parent=55 // pred_check_branch
          %435 = sbr.rel (%p433) target = $region72
        $region71: #{criss_cross_attention.1} parent=55 // pred_region
          %436 = dma.done [#allocation14], 128
        $region72: #{criss_cross_attention.1} parent=55 // pred_fallthru
          _
        // Predicated region
        $region73: #{criss_cross_attention.1} parent=55 // pred_check
          %p437 = pneg %p157
        $region74: #{criss_cross_attention.1} parent=55 // pred_check_branch
          %439 = sbr.rel (%p437) target = $region76
        $region75: #{criss_cross_attention.1} parent=55 // pred_region
          %440 = dma.done [#allocation14], 128
        $region76: #{criss_cross_attention.1} parent=55 // pred_fallthru
          _
        // Predicated region
        $region77: #{criss_cross_attention.1} parent=55 // pred_check
          %p441 = pneg %p178
        $region78: #{criss_cross_attention.1} parent=55 // pred_check_branch
          %443 = sbr.rel (%p441) target = $region80
        $region79: #{criss_cross_attention.1} parent=55 // pred_region
          %444 = dma.done [#allocation17], 128
        $region80: #{criss_cross_attention.1} parent=55 // pred_fallthru
          _
        // Predicated region
        $region81: #{criss_cross_attention.1} parent=55 // pred_check
          %p445 = pneg %p199
        $region82: #{criss_cross_attention.1} parent=55 // pred_check_branch
          %447 = sbr.rel (%p445) target = $region84
        $region83: #{criss_cross_attention.1} parent=55 // pred_region
          %448 = dma.done [#allocation17], 256
        $region84: #{criss_cross_attention.1} parent=55 // pred_fallthru
          _
        // Predicated region
        $region85: #{criss_cross_attention.1} parent=55 // pred_check
          %p449 = pneg %p220
        $region86: #{criss_cross_attention.1} parent=55 // pred_check_branch
          %451 = sbr.rel (%p449) target = $region88
        $region87: #{criss_cross_attention.1} parent=55 // pred_region
          %452 = dma.done [#allocation20], 256
        $region88: #{criss_cross_attention.1} parent=55 // pred_fallthru
          _
        %s453 = sand.u32 %s55, 1
        %s454 = scalar_lea.sflag [#allocation8], %s453
        %s455 = sand.u32 %s55, 1
        %s456 = smul.addr %s455, 16
        %s457 = scalar_lea.vmem [#allocation7], %s456
        %p458 = pneg %p68
        %p459 = pneg %p65
        %s460 = sand.u32 %s33, 1
        %s461 = scalar_lea.sflag [#allocation11], %s460
        %s462 = sand.u32 %s81, 1
        %s463 = smul.addr %s462, 16
        %s464 = scalar_lea.vmem [#allocation10], %s463
        %p465 = pneg %p94
        %p466 = pneg %p91
        %p467 = pneg %p115
        %p468 = pneg %p112
        %p469 = pneg %p136
        %p470 = pneg %p133
        %p471 = pneg %p157
        %p472 = pneg %p154
        %p473 = pneg %p178
        %p474 = pneg %p175
        %p475 = pneg %p199
        %p476 = pneg %p196
        %p477 = pneg %p220
        %p478 = pneg %p217
        %p479 = pneg %p241
        %p480 = pneg %p238
        %p481 = pneg %p269
        %p482 = pneg %p266
        %s483 = sand.u32 %s256, 1
        %s484 = scalar_lea.sflag [#allocation9], %s483
        %s485 = sand.u32 %s256, 1
        %s486 = smul.addr %s485, 16
        %s487 = scalar_lea.vmem [#allocation21], %s486
        %s489 = smul.u32 %s38, 8
        %p490 = scmp.eq.s32.totalorder %s38, 0
        // Predicated region
        $region89: #{criss_cross_attention.1} parent=55 // pred_check
          %p491 = pneg %p490
        $region90: #{criss_cross_attention.1} parent=55 // pred_check_branch
          %493 = sbr.rel (%p491) target = $region92
        $region91: #{criss_cross_attention.1} parent=55 // pred_region
          %v494 = vld [vmem:[%s424] sm:$0xff]
          %v495 = vld [vmem:[%s424 + $0x8] sm:$0xff]
          %v496 = vld [vmem:[#allocation15] sm:$0xff]
          %v497 = vpack.c.bf16 %v496, %v496
          %v498 = vld [vmem:[#allocation16] sm:$0xff]
          %500 = vset.pattern.permute.xlu0 0
          %501 = vperm.xlu0 %500, %v498
          %v502 = vpop.permute.xlu0 %501
          %v506 = vunpack.c.l.b16 %v494
          %v507 = vunpack.c.h.b16 %v494
          %v508 = vunpack.c.l.b16 %v495
          %v509 = vunpack.c.h.b16 %v495
          %v510 = vpack.c.b16 %v508, %v506
          %v511 = vpack.c.b16 %v509, %v507
          %vm514 = vcmask 130048
          %v516 = vsel %vm514, %v497, 0
          %518 = vmatprep.subr.bf16.mxu0 %v511
          %519 = vmatpush1.bf16.msra.mxu0 %v510
          %520 = vmatprep.subr.bf16.mxu0 0
          %521 = vmatpush1.bf16.msra.mxu0 0
          %522 = vmatprep.subr.bf16.mxu0 0
          %523 = vmatpush1.bf16.msra.mxu0 0
          %524 = vmatprep.subr.bf16.mxu0 0
          %525 = vmatpush1.bf16.msra.mxu0 0
          %526 = vmatprep.subr.bf16.mxu0 0
          %527 = vmatpush1.bf16.msra.mxu0 0
          %528 = vmatprep.subr.bf16.mxu0 0
          %529 = vmatpush1.bf16.msra.mxu0 0
          %530 = vmatprep.subr.bf16.mxu0 0
          %531 = vmatpush1.bf16.msra.mxu0 0
          %532 = vmatprep.subr.bf16.mxu0 0
          %533 = vmatpush1.bf16.msra.mxu0 0
          %534 = vmatprep.subr.bf16.mxu0 0
          %535 = vmatpush1.bf16.msra.mxu0 0
          %536 = vmatprep.subr.bf16.mxu0 0
          %537 = vmatpush1.bf16.msra.mxu0 0
          %538 = vmatprep.subr.bf16.mxu0 0
          %539 = vmatpush1.bf16.msra.mxu0 0
          %540 = vmatprep.subr.bf16.mxu0 0
          %541 = vmatpush1.bf16.msra.mxu0 0
          %542 = vmatprep.subr.bf16.mxu0 0
          %543 = vmatpush1.bf16.msra.mxu0 0
          %544 = vmatprep.subr.bf16.mxu0 0
          %545 = vmatpush1.bf16.msra.mxu0 0
          %546 = vmatprep.subr.bf16.mxu0 0
          %547 = vmatpush1.bf16.msra.mxu0 0
          %548 = vmatprep.subr.bf16.mxu0 0
          %549 = vmatpush1.bf16.msra.mxu0 0
          %550 = vmatprep.mubr.bf16.mxu0 0
          %551 = vmatmul.mubr.bf16.gmra.mrb[0].mxu0 %v516
          %v552 = vpop.f32.mrb[0].mxu0
          %v553 = vadd.f32 %v502, %v552
          %v554 = vpop.f32.mrb[0].mxu0
          %v555 = vadd.f32 %v502, %v554
          %v556 = vpop.f32.mrb[0].mxu0
          %v557 = vpop.f32.mrb[0].mxu0
          %558 = vdwg.mxu0
          %v559 = vld [vmem:[#allocation18] sm:$0xff]
          %v560 = vld [vmem:[#allocation18 + $0x8] sm:$0xff]
          %v561 = vpack.c.bf16 %v560, %v559
          %v562 = vld [vmem:[#allocation19] sm:$0xff]
          %v563 = vld [vmem:[#allocation19 + $0x8] sm:$0xff]
          %565 = vset.pattern.permute.xlu0 0
          %566 = vperm.xlu0 %565, %v562
          %v567 = vpop.permute.xlu0 %566
          %570 = vset.pattern.permute.xlu0 0
          %571 = vperm.xlu0 %570, %v563
          %v572 = vpop.permute.xlu0 %571
          %v575 = vsel %vm514, %v561, 0
          %577 = vmatprep.subr.bf16.mxu0 %v511
          %578 = vmatpush1.bf16.msra.mxu0 %v510
          %579 = vmatprep.subr.bf16.mxu0 0
          %580 = vmatpush1.bf16.msra.mxu0 0
          %581 = vmatprep.subr.bf16.mxu0 0
          %582 = vmatpush1.bf16.msra.mxu0 0
          %583 = vmatprep.subr.bf16.mxu0 0
          %584 = vmatpush1.bf16.msra.mxu0 0
          %585 = vmatprep.subr.bf16.mxu0 0
          %586 = vmatpush1.bf16.msra.mxu0 0
          %587 = vmatprep.subr.bf16.mxu0 0
          %588 = vmatpush1.bf16.msra.mxu0 0
          %589 = vmatprep.subr.bf16.mxu0 0
          %590 = vmatpush1.bf16.msra.mxu0 0
          %591 = vmatprep.subr.bf16.mxu0 0
          %592 = vmatpush1.bf16.msra.mxu0 0
          %593 = vmatprep.subr.bf16.mxu0 0
          %594 = vmatpush1.bf16.msra.mxu0 0
          %595 = vmatprep.subr.bf16.mxu0 0
          %596 = vmatpush1.bf16.msra.mxu0 0
          %597 = vmatprep.subr.bf16.mxu0 0
          %598 = vmatpush1.bf16.msra.mxu0 0
          %599 = vmatprep.subr.bf16.mxu0 0
          %600 = vmatpush1.bf16.msra.mxu0 0
          %601 = vmatprep.subr.bf16.mxu0 0
          %602 = vmatpush1.bf16.msra.mxu0 0
          %603 = vmatprep.subr.bf16.mxu0 0
          %604 = vmatpush1.bf16.msra.mxu0 0
          %605 = vmatprep.subr.bf16.mxu0 0
          %606 = vmatpush1.bf16.msra.mxu0 0
          %607 = vmatprep.subr.bf16.mxu0 0
          %608 = vmatpush1.bf16.msra.mxu0 0
          %609 = vmatprep.mubr.bf16.mxu0 0
          %610 = vmatmul.mubr.bf16.gmra.mrb[0].mxu0 %v575
          %v611 = vpop.f32.mrb[0].mxu0
          %v612 = vadd.f32 %v567, %v611
          %v613 = vpop.f32.mrb[0].mxu0
          %v614 = vadd.f32 %v567, %v613
          %v615 = vpop.f32.mrb[0].mxu0
          %v616 = vadd.f32 %v572, %v615
          %v617 = vpop.f32.mrb[0].mxu0
          %v618 = vadd.f32 %v572, %v617
          %619 = vdwg.mxu0
          %621 = vrot.lane.b32.xlu0 %v553, 112
          %v622 = vpop.permute.xlu0 %621
          %624 = vrot.lane.b32.xlu0 %v553, 96
          %v625 = vpop.permute.xlu0 %624
          %627 = vrot.lane.b32.xlu0 %v553, 80
          %v628 = vpop.permute.xlu0 %627
          %630 = vrot.lane.b32.xlu0 %v553, 64
          %v631 = vpop.permute.xlu0 %630
          %633 = vrot.lane.b32.xlu0 %v553, 48
          %v634 = vpop.permute.xlu0 %633
          %636 = vrot.lane.b32.xlu0 %v553, 32
          %v637 = vpop.permute.xlu0 %636
          %639 = vrot.lane.b32.xlu0 %v553, 16
          %v640 = vpop.permute.xlu0 %639
          %643 = vrot.lane.b32.xlu0 %v555, 112
          %v644 = vpop.permute.xlu0 %643
          %646 = vrot.lane.b32.xlu0 %v555, 96
          %v647 = vpop.permute.xlu0 %646
          %649 = vrot.lane.b32.xlu0 %v555, 80
          %v650 = vpop.permute.xlu0 %649
          %652 = vrot.lane.b32.xlu0 %v555, 64
          %v653 = vpop.permute.xlu0 %652
          %655 = vrot.lane.b32.xlu0 %v555, 48
          %v656 = vpop.permute.xlu0 %655
          %658 = vrot.lane.b32.xlu0 %v555, 32
          %v659 = vpop.permute.xlu0 %658
          %661 = vrot.lane.b32.xlu0 %v555, 16
          %v662 = vpop.permute.xlu0 %661
          %v664 = vcombine.low %v553, %v625
          %v665 = vcombine.high %v553, %v625
          %v667 = vunpack.c.l.s4 1983009808
          %v668 = vunpack.c.0.s8 %v667
          %v669 = vlaneseq
          %v670 = vshrl.u32 %v669, 7
          %v671 = vsub.s32 %v668, %v670
          %v672 = vrot.slane %v664, %v671
          %v674 = vunpack.c.l.s4 1983009808
          %v675 = vunpack.c.0.s8 %v674
          %v676 = vlaneseq
          %v677 = vshrl.u32 %v676, 7
          %v678 = vsub.s32 %v675, %v677
          %v679 = vrot.slane %v665, %v678
          %v680 = vcombine.low %v622, %v628
          %v681 = vcombine.high %v622, %v628
          %v683 = vunpack.c.l.s4 1983009808
          %v684 = vunpack.c.0.s8 %v683
          %v685 = vlaneseq
          %v686 = vshrl.u32 %v685, 7
          %v687 = vsub.s32 %v684, %v686
          %v688 = vrot.slane %v680, %v687
          %v690 = vunpack.c.l.s4 1983009808
          %v691 = vunpack.c.0.s8 %v690
          %v692 = vlaneseq
          %v693 = vshrl.u32 %v692, 7
          %v694 = vsub.s32 %v691, %v693
          %v695 = vrot.slane %v681, %v694
          %v696 = vcombine.low %v631, %v637
          %v697 = vcombine.high %v631, %v637
          %v699 = vunpack.c.l.s4 1983009808
          %v700 = vunpack.c.0.s8 %v699
          %v701 = vlaneseq
          %v702 = vshrl.u32 %v701, 7
          %v703 = vsub.s32 %v700, %v702
          %v704 = vrot.slane %v696, %v703
          %v706 = vunpack.c.l.s4 1983009808
          %v707 = vunpack.c.0.s8 %v706
          %v708 = vlaneseq
          %v709 = vshrl.u32 %v708, 7
          %v710 = vsub.s32 %v707, %v709
          %v711 = vrot.slane %v697, %v710
          %v712 = vcombine.low %v634, %v640
          %v713 = vcombine.high %v634, %v640
          %v715 = vunpack.c.l.s4 1983009808
          %v716 = vunpack.c.0.s8 %v715
          %v717 = vlaneseq
          %v718 = vshrl.u32 %v717, 7
          %v719 = vsub.s32 %v716, %v718
          %v720 = vrot.slane %v712, %v719
          %v722 = vunpack.c.l.s4 1983009808
          %v723 = vunpack.c.0.s8 %v722
          %v724 = vlaneseq
          %v725 = vshrl.u32 %v724, 7
          %v726 = vsub.s32 %v723, %v725
          %v727 = vrot.slane %v713, %v726
          %v728 = vcombine.low %v672, %v688
          %v729 = vcombine.high %v672, %v688
          %v731 = vunpack.c.l.s4 1934713408
          %v732 = vunpack.c.0.s8 %v731
          %v733 = vlaneseq
          %v734 = vshrl.u32 %v733, 7
          %v735 = vsub.s32 %v732, %v734
          %v736 = vrot.slane %v728, %v735
          %v738 = vunpack.c.l.s4 1934713408
          %v739 = vunpack.c.0.s8 %v738
          %v740 = vlaneseq
          %v741 = vshrl.u32 %v740, 7
          %v742 = vsub.s32 %v739, %v741
          %v743 = vrot.slane %v729, %v742
          %v744 = vcombine.low %v679, %v695
          %v745 = vcombine.high %v679, %v695
          %v747 = vunpack.c.l.s4 1934713408
          %v748 = vunpack.c.0.s8 %v747
          %v749 = vlaneseq
          %v750 = vshrl.u32 %v749, 7
          %v751 = vsub.s32 %v748, %v750
          %v752 = vrot.slane %v744, %v751
          %v754 = vunpack.c.l.s4 1934713408
          %v755 = vunpack.c.0.s8 %v754
          %v756 = vlaneseq
          %v757 = vshrl.u32 %v756, 7
          %v758 = vsub.s32 %v755, %v757
          %v759 = vrot.slane %v745, %v758
          %v760 = vcombine.low %v704, %v720
          %v761 = vcombine.high %v704, %v720
          %v763 = vunpack.c.l.s4 1934713408
          %v764 = vunpack.c.0.s8 %v763
          %v765 = vlaneseq
          %v766 = vshrl.u32 %v765, 7
          %v767 = vsub.s32 %v764, %v766
          %v768 = vrot.slane %v760, %v767
          %v770 = vunpack.c.l.s4 1934713408
          %v771 = vunpack.c.0.s8 %v770
          %v772 = vlaneseq
          %v773 = vshrl.u32 %v772, 7
          %v774 = vsub.s32 %v771, %v773
          %v775 = vrot.slane %v761, %v774
          %v776 = vcombine.low %v711, %v727
          %v777 = vcombine.high %v711, %v727
          %v779 = vunpack.c.l.s4 1934713408
          %v780 = vunpack.c.0.s8 %v779
          %v781 = vlaneseq
          %v782 = vshrl.u32 %v781, 7
          %v783 = vsub.s32 %v780, %v782
          %v784 = vrot.slane %v776, %v783
          %v786 = vunpack.c.l.s4 1934713408
          %v787 = vunpack.c.0.s8 %v786
          %v788 = vlaneseq
          %v789 = vshrl.u32 %v788, 7
          %v790 = vsub.s32 %v787, %v789
          %v791 = vrot.slane %v777, %v790
          %v792 = vcombine.low %v736, %v768
          %v793 = vcombine.high %v736, %v768
          %v794 = vcombine.low %v743, %v775
          %v795 = vcombine.high %v743, %v775
          %v796 = vcombine.low %v752, %v784
          %v797 = vcombine.high %v752, %v784
          %v798 = vcombine.low %v759, %v791
          %v799 = vcombine.high %v759, %v791
          %v800 = vcombine.low %v555, %v647
          %v801 = vcombine.high %v555, %v647
          %v803 = vunpack.c.l.s4 1983009808
          %v804 = vunpack.c.0.s8 %v803
          %v805 = vlaneseq
          %v806 = vshrl.u32 %v805, 7
          %v807 = vsub.s32 %v804, %v806
          %v808 = vrot.slane %v800, %v807
          %v810 = vunpack.c.l.s4 1983009808
          %v811 = vunpack.c.0.s8 %v810
          %v812 = vlaneseq
          %v813 = vshrl.u32 %v812, 7
          %v814 = vsub.s32 %v811, %v813
          %v815 = vrot.slane %v801, %v814
          %v816 = vcombine.low %v644, %v650
          %v817 = vcombine.high %v644, %v650
          %v819 = vunpack.c.l.s4 1983009808
          %v820 = vunpack.c.0.s8 %v819
          %v821 = vlaneseq
          %v822 = vshrl.u32 %v821, 7
          %v823 = vsub.s32 %v820, %v822
          %v824 = vrot.slane %v816, %v823
          %v826 = vunpack.c.l.s4 1983009808
          %v827 = vunpack.c.0.s8 %v826
          %v828 = vlaneseq
          %v829 = vshrl.u32 %v828, 7
          %v830 = vsub.s32 %v827, %v829
          %v831 = vrot.slane %v817, %v830
          %v832 = vcombine.low %v653, %v659
          %v833 = vcombine.high %v653, %v659
          %v835 = vunpack.c.l.s4 1983009808
          %v836 = vunpack.c.0.s8 %v835
          %v837 = vlaneseq
          %v838 = vshrl.u32 %v837, 7
          %v839 = vsub.s32 %v836, %v838
          %v840 = vrot.slane %v832, %v839
          %v842 = vunpack.c.l.s4 1983009808
          %v843 = vunpack.c.0.s8 %v842
          %v844 = vlaneseq
          %v845 = vshrl.u32 %v844, 7
          %v846 = vsub.s32 %v843, %v845
          %v847 = vrot.slane %v833, %v846
          %v848 = vcombine.low %v656, %v662
          %v849 = vcombine.high %v656, %v662
          %v851 = vunpack.c.l.s4 1983009808
          %v852 = vunpack.c.0.s8 %v851
          %v853 = vlaneseq
          %v854 = vshrl.u32 %v853, 7
          %v855 = vsub.s32 %v852, %v854
          %v856 = vrot.slane %v848, %v855
          %v858 = vunpack.c.l.s4 1983009808
          %v859 = vunpack.c.0.s8 %v858
          %v860 = vlaneseq
          %v861 = vshrl.u32 %v860, 7
          %v862 = vsub.s32 %v859, %v861
          %v863 = vrot.slane %v849, %v862
          %v864 = vcombine.low %v808, %v824
          %v865 = vcombine.high %v808, %v824
          %v867 = vunpack.c.l.s4 1934713408
          %v868 = vunpack.c.0.s8 %v867
          %v869 = vlaneseq
          %v870 = vshrl.u32 %v869, 7
          %v871 = vsub.s32 %v868, %v870
          %v872 = vrot.slane %v864, %v871
          %v874 = vunpack.c.l.s4 1934713408
          %v875 = vunpack.c.0.s8 %v874
          %v876 = vlaneseq
          %v877 = vshrl.u32 %v876, 7
          %v878 = vsub.s32 %v875, %v877
          %v879 = vrot.slane %v865, %v878
          %v880 = vcombine.low %v815, %v831
          %v881 = vcombine.high %v815, %v831
          %v883 = vunpack.c.l.s4 1934713408
          %v884 = vunpack.c.0.s8 %v883
          %v885 = vlaneseq
          %v886 = vshrl.u32 %v885, 7
          %v887 = vsub.s32 %v884, %v886
          %v888 = vrot.slane %v880, %v887
          %v890 = vunpack.c.l.s4 1934713408
          %v891 = vunpack.c.0.s8 %v890
          %v892 = vlaneseq
          %v893 = vshrl.u32 %v892, 7
          %v894 = vsub.s32 %v891, %v893
          %v895 = vrot.slane %v881, %v894
          %v896 = vcombine.low %v840, %v856
          %v897 = vcombine.high %v840, %v856
          %v899 = vunpack.c.l.s4 1934713408
          %v900 = vunpack.c.0.s8 %v899
          %v901 = vlaneseq
          %v902 = vshrl.u32 %v901, 7
          %v903 = vsub.s32 %v900, %v902
          %v904 = vrot.slane %v896, %v903
          %v906 = vunpack.c.l.s4 1934713408
          %v907 = vunpack.c.0.s8 %v906
          %v908 = vlaneseq
          %v909 = vshrl.u32 %v908, 7
          %v910 = vsub.s32 %v907, %v909
          %v911 = vrot.slane %v897, %v910
          %v912 = vcombine.low %v847, %v863
          %v913 = vcombine.high %v847, %v863
          %v915 = vunpack.c.l.s4 1934713408
          %v916 = vunpack.c.0.s8 %v915
          %v917 = vlaneseq
          %v918 = vshrl.u32 %v917, 7
          %v919 = vsub.s32 %v916, %v918
          %v920 = vrot.slane %v912, %v919
          %v922 = vunpack.c.l.s4 1934713408
          %v923 = vunpack.c.0.s8 %v922
          %v924 = vlaneseq
          %v925 = vshrl.u32 %v924, 7
          %v926 = vsub.s32 %v923, %v925
          %v927 = vrot.slane %v913, %v926
          %v928 = vcombine.low %v872, %v904
          %v929 = vcombine.high %v872, %v904
          %v930 = vcombine.low %v879, %v911
          %v931 = vcombine.high %v879, %v911
          %v932 = vcombine.low %v888, %v920
          %v933 = vcombine.high %v888, %v920
          %v934 = vcombine.low %v895, %v927
          %v935 = vcombine.high %v895, %v927
          %v936 = vpack.c.bf16 %v928, %v792
          %v937 = vpack.c.bf16 %v929, %v793
          %v938 = vpack.c.bf16 %v930, %v794
          %v939 = vpack.c.bf16 %v931, %v795
          %v940 = vpack.c.bf16 %v932, %v796
          %v941 = vpack.c.bf16 %v933, %v797
          %v942 = vpack.c.bf16 %v934, %v798
          %v943 = vpack.c.bf16 %v935, %v799
          %946 = vrot.lane.b32.xlu0 %v612, 112
          %v947 = vpop.permute.xlu0 %946
          %948 = vrot.lane.b32.xlu0 %v616, 112
          %v949 = vpop.permute.xlu0 %948
          %952 = vrot.lane.b32.xlu0 %v612, 96
          %v953 = vpop.permute.xlu0 %952
          %954 = vrot.lane.b32.xlu0 %v616, 96
          %v955 = vpop.permute.xlu0 %954
          %958 = vrot.lane.b32.xlu0 %v612, 80
          %v959 = vpop.permute.xlu0 %958
          %960 = vrot.lane.b32.xlu0 %v616, 80
          %v961 = vpop.permute.xlu0 %960
          %964 = vrot.lane.b32.xlu0 %v612, 64
          %v965 = vpop.permute.xlu0 %964
          %966 = vrot.lane.b32.xlu0 %v616, 64
          %v967 = vpop.permute.xlu0 %966
          %970 = vrot.lane.b32.xlu0 %v612, 48
          %v971 = vpop.permute.xlu0 %970
          %972 = vrot.lane.b32.xlu0 %v616, 48
          %v973 = vpop.permute.xlu0 %972
          %976 = vrot.lane.b32.xlu0 %v612, 32
          %v977 = vpop.permute.xlu0 %976
          %978 = vrot.lane.b32.xlu0 %v616, 32
          %v979 = vpop.permute.xlu0 %978
          %982 = vrot.lane.b32.xlu0 %v612, 16
          %v983 = vpop.permute.xlu0 %982
          %984 = vrot.lane.b32.xlu0 %v616, 16
          %v985 = vpop.permute.xlu0 %984
          %990 = vrot.lane.b32.xlu0 %v614, 112
          %v991 = vpop.permute.xlu0 %990
          %992 = vrot.lane.b32.xlu0 %v618, 112
          %v993 = vpop.permute.xlu0 %992
          %996 = vrot.lane.b32.xlu0 %v614, 96
          %v997 = vpop.permute.xlu0 %996
          %998 = vrot.lane.b32.xlu0 %v618, 96
          %v999 = vpop.permute.xlu0 %998
          %1002 = vrot.lane.b32.xlu0 %v614, 80
          %v1003 = vpop.permute.xlu0 %1002
          %1004 = vrot.lane.b32.xlu0 %v618, 80
          %v1005 = vpop.permute.xlu0 %1004
          %1008 = vrot.lane.b32.xlu0 %v614, 64
          %v1009 = vpop.permute.xlu0 %1008
          %1010 = vrot.lane.b32.xlu0 %v618, 64
          %v1011 = vpop.permute.xlu0 %1010
          %1014 = vrot.lane.b32.xlu0 %v614, 48
          %v1015 = vpop.permute.xlu0 %1014
          %1016 = vrot.lane.b32.xlu0 %v618, 48
          %v1017 = vpop.permute.xlu0 %1016
          %1020 = vrot.lane.b32.xlu0 %v614, 32
          %v1021 = vpop.permute.xlu0 %1020
          %1022 = vrot.lane.b32.xlu0 %v618, 32
          %v1023 = vpop.permute.xlu0 %1022
          %1026 = vrot.lane.b32.xlu0 %v614, 16
          %v1027 = vpop.permute.xlu0 %1026
          %1028 = vrot.lane.b32.xlu0 %v618, 16
          %v1029 = vpop.permute.xlu0 %1028
          %v1032 = vcombine.low %v612, %v953
          %v1033 = vcombine.high %v612, %v953
          %v1035 = vunpack.c.l.s4 1983009808
          %v1036 = vunpack.c.0.s8 %v1035
          %v1037 = vlaneseq
          %v1038 = vshrl.u32 %v1037, 7
          %v1039 = vsub.s32 %v1036, %v1038
          %v1040 = vrot.slane %v1032, %v1039
          %v1042 = vunpack.c.l.s4 1983009808
          %v1043 = vunpack.c.0.s8 %v1042
          %v1044 = vlaneseq
          %v1045 = vshrl.u32 %v1044, 7
          %v1046 = vsub.s32 %v1043, %v1045
          %v1047 = vrot.slane %v1033, %v1046
          %v1048 = vcombine.low %v947, %v959
          %v1049 = vcombine.high %v947, %v959
          %v1051 = vunpack.c.l.s4 1983009808
          %v1052 = vunpack.c.0.s8 %v1051
          %v1053 = vlaneseq
          %v1054 = vshrl.u32 %v1053, 7
          %v1055 = vsub.s32 %v1052, %v1054
          %v1056 = vrot.slane %v1048, %v1055
          %v1058 = vunpack.c.l.s4 1983009808
          %v1059 = vunpack.c.0.s8 %v1058
          %v1060 = vlaneseq
          %v1061 = vshrl.u32 %v1060, 7
          %v1062 = vsub.s32 %v1059, %v1061
          %v1063 = vrot.slane %v1049, %v1062
          %v1064 = vcombine.low %v965, %v977
          %v1065 = vcombine.high %v965, %v977
          %v1067 = vunpack.c.l.s4 1983009808
          %v1068 = vunpack.c.0.s8 %v1067
          %v1069 = vlaneseq
          %v1070 = vshrl.u32 %v1069, 7
          %v1071 = vsub.s32 %v1068, %v1070
          %v1072 = vrot.slane %v1064, %v1071
          %v1074 = vunpack.c.l.s4 1983009808
          %v1075 = vunpack.c.0.s8 %v1074
          %v1076 = vlaneseq
          %v1077 = vshrl.u32 %v1076, 7
          %v1078 = vsub.s32 %v1075, %v1077
          %v1079 = vrot.slane %v1065, %v1078
          %v1080 = vcombine.low %v971, %v983
          %v1081 = vcombine.high %v971, %v983
          %v1083 = vunpack.c.l.s4 1983009808
          %v1084 = vunpack.c.0.s8 %v1083
          %v1085 = vlaneseq
          %v1086 = vshrl.u32 %v1085, 7
          %v1087 = vsub.s32 %v1084, %v1086
          %v1088 = vrot.slane %v1080, %v1087
          %v1090 = vunpack.c.l.s4 1983009808
          %v1091 = vunpack.c.0.s8 %v1090
          %v1092 = vlaneseq
          %v1093 = vshrl.u32 %v1092, 7
          %v1094 = vsub.s32 %v1091, %v1093
          %v1095 = vrot.slane %v1081, %v1094
          %v1096 = vcombine.low %v1040, %v1056
          %v1097 = vcombine.high %v1040, %v1056
          %v1099 = vunpack.c.l.s4 1934713408
          %v1100 = vunpack.c.0.s8 %v1099
          %v1101 = vlaneseq
          %v1102 = vshrl.u32 %v1101, 7
          %v1103 = vsub.s32 %v1100, %v1102
          %v1104 = vrot.slane %v1096, %v1103
          %v1106 = vunpack.c.l.s4 1934713408
          %v1107 = vunpack.c.0.s8 %v1106
          %v1108 = vlaneseq
          %v1109 = vshrl.u32 %v1108, 7
          %v1110 = vsub.s32 %v1107, %v1109
          %v1111 = vrot.slane %v1097, %v1110
          %v1112 = vcombine.low %v1047, %v1063
          %v1113 = vcombine.high %v1047, %v1063
          %v1115 = vunpack.c.l.s4 1934713408
          %v1116 = vunpack.c.0.s8 %v1115
          %v1117 = vlaneseq
          %v1118 = vshrl.u32 %v1117, 7
          %v1119 = vsub.s32 %v1116, %v1118
          %v1120 = vrot.slane %v1112, %v1119
          %v1122 = vunpack.c.l.s4 1934713408
          %v1123 = vunpack.c.0.s8 %v1122
          %v1124 = vlaneseq
          %v1125 = vshrl.u32 %v1124, 7
          %v1126 = vsub.s32 %v1123, %v1125
          %v1127 = vrot.slane %v1113, %v1126
          %v1128 = vcombine.low %v1072, %v1088
          %v1129 = vcombine.high %v1072, %v1088
          %v1131 = vunpack.c.l.s4 1934713408
          %v1132 = vunpack.c.0.s8 %v1131
          %v1133 = vlaneseq
          %v1134 = vshrl.u32 %v1133, 7
          %v1135 = vsub.s32 %v1132, %v1134
          %v1136 = vrot.slane %v1128, %v1135
          %v1138 = vunpack.c.l.s4 1934713408
          %v1139 = vunpack.c.0.s8 %v1138
          %v1140 = vlaneseq
          %v1141 = vshrl.u32 %v1140, 7
          %v1142 = vsub.s32 %v1139, %v1141
          %v1143 = vrot.slane %v1129, %v1142
          %v1144 = vcombine.low %v1079, %v1095
          %v1145 = vcombine.high %v1079, %v1095
          %v1147 = vunpack.c.l.s4 1934713408
          %v1148 = vunpack.c.0.s8 %v1147
          %v1149 = vlaneseq
          %v1150 = vshrl.u32 %v1149, 7
          %v1151 = vsub.s32 %v1148, %v1150
          %v1152 = vrot.slane %v1144, %v1151
          %v1154 = vunpack.c.l.s4 1934713408
          %v1155 = vunpack.c.0.s8 %v1154
          %v1156 = vlaneseq
          %v1157 = vshrl.u32 %v1156, 7
          %v1158 = vsub.s32 %v1155, %v1157
          %v1159 = vrot.slane %v1145, %v1158
          %v1160 = vcombine.low %v1104, %v1136
          %v1161 = vcombine.high %v1104, %v1136
          %v1162 = vcombine.low %v1111, %v1143
          %v1163 = vcombine.high %v1111, %v1143
          %v1164 = vcombine.low %v1120, %v1152
          %v1165 = vcombine.high %v1120, %v1152
          %v1166 = vcombine.low %v1127, %v1159
          %v1167 = vcombine.high %v1127, %v1159
          %v1168 = vcombine.low %v614, %v997
          %v1169 = vcombine.high %v614, %v997
          %v1171 = vunpack.c.l.s4 1983009808
          %v1172 = vunpack.c.0.s8 %v1171
          %v1173 = vlaneseq
          %v1174 = vshrl.u32 %v1173, 7
          %v1175 = vsub.s32 %v1172, %v1174
          %v1176 = vrot.slane %v1168, %v1175
          %v1178 = vunpack.c.l.s4 1983009808
          %v1179 = vunpack.c.0.s8 %v1178
          %v1180 = vlaneseq
          %v1181 = vshrl.u32 %v1180, 7
          %v1182 = vsub.s32 %v1179, %v1181
          %v1183 = vrot.slane %v1169, %v1182
          %v1184 = vcombine.low %v991, %v1003
          %v1185 = vcombine.high %v991, %v1003
          %v1187 = vunpack.c.l.s4 1983009808
          %v1188 = vunpack.c.0.s8 %v1187
          %v1189 = vlaneseq
          %v1190 = vshrl.u32 %v1189, 7
          %v1191 = vsub.s32 %v1188, %v1190
          %v1192 = vrot.slane %v1184, %v1191
          %v1194 = vunpack.c.l.s4 1983009808
          %v1195 = vunpack.c.0.s8 %v1194
          %v1196 = vlaneseq
          %v1197 = vshrl.u32 %v1196, 7
          %v1198 = vsub.s32 %v1195, %v1197
          %v1199 = vrot.slane %v1185, %v1198
          %v1200 = vcombine.low %v1009, %v1021
          %v1201 = vcombine.high %v1009, %v1021
          %v1203 = vunpack.c.l.s4 1983009808
          %v1204 = vunpack.c.0.s8 %v1203
          %v1205 = vlaneseq
          %v1206 = vshrl.u32 %v1205, 7
          %v1207 = vsub.s32 %v1204, %v1206
          %v1208 = vrot.slane %v1200, %v1207
          %v1210 = vunpack.c.l.s4 1983009808
          %v1211 = vunpack.c.0.s8 %v1210
          %v1212 = vlaneseq
          %v1213 = vshrl.u32 %v1212, 7
          %v1214 = vsub.s32 %v1211, %v1213
          %v1215 = vrot.slane %v1201, %v1214
          %v1216 = vcombine.low %v1015, %v1027
          %v1217 = vcombine.high %v1015, %v1027
          %v1219 = vunpack.c.l.s4 1983009808
          %v1220 = vunpack.c.0.s8 %v1219
          %v1221 = vlaneseq
          %v1222 = vshrl.u32 %v1221, 7
          %v1223 = vsub.s32 %v1220, %v1222
          %v1224 = vrot.slane %v1216, %v1223
          %v1226 = vunpack.c.l.s4 1983009808
          %v1227 = vunpack.c.0.s8 %v1226
          %v1228 = vlaneseq
          %v1229 = vshrl.u32 %v1228, 7
          %v1230 = vsub.s32 %v1227, %v1229
          %v1231 = vrot.slane %v1217, %v1230
          %v1232 = vcombine.low %v1176, %v1192
          %v1233 = vcombine.high %v1176, %v1192
          %v1235 = vunpack.c.l.s4 1934713408
          %v1236 = vunpack.c.0.s8 %v1235
          %v1237 = vlaneseq
          %v1238 = vshrl.u32 %v1237, 7
          %v1239 = vsub.s32 %v1236, %v1238
          %v1240 = vrot.slane %v1232, %v1239
          %v1242 = vunpack.c.l.s4 1934713408
          %v1243 = vunpack.c.0.s8 %v1242
          %v1244 = vlaneseq
          %v1245 = vshrl.u32 %v1244, 7
          %v1246 = vsub.s32 %v1243, %v1245
          %v1247 = vrot.slane %v1233, %v1246
          %v1248 = vcombine.low %v1183, %v1199
          %v1249 = vcombine.high %v1183, %v1199
          %v1251 = vunpack.c.l.s4 1934713408
          %v1252 = vunpack.c.0.s8 %v1251
          %v1253 = vlaneseq
          %v1254 = vshrl.u32 %v1253, 7
          %v1255 = vsub.s32 %v1252, %v1254
          %v1256 = vrot.slane %v1248, %v1255
          %v1258 = vunpack.c.l.s4 1934713408
          %v1259 = vunpack.c.0.s8 %v1258
          %v1260 = vlaneseq
          %v1261 = vshrl.u32 %v1260, 7
          %v1262 = vsub.s32 %v1259, %v1261
          %v1263 = vrot.slane %v1249, %v1262
          %v1264 = vcombine.low %v1208, %v1224
          %v1265 = vcombine.high %v1208, %v1224
          %v1267 = vunpack.c.l.s4 1934713408
          %v1268 = vunpack.c.0.s8 %v1267
          %v1269 = vlaneseq
          %v1270 = vshrl.u32 %v1269, 7
          %v1271 = vsub.s32 %v1268, %v1270
          %v1272 = vrot.slane %v1264, %v1271
          %v1274 = vunpack.c.l.s4 1934713408
          %v1275 = vunpack.c.0.s8 %v1274
          %v1276 = vlaneseq
          %v1277 = vshrl.u32 %v1276, 7
          %v1278 = vsub.s32 %v1275, %v1277
          %v1279 = vrot.slane %v1265, %v1278
          %v1280 = vcombine.low %v1215, %v1231
          %v1281 = vcombine.high %v1215, %v1231
          %v1283 = vunpack.c.l.s4 1934713408
          %v1284 = vunpack.c.0.s8 %v1283
          %v1285 = vlaneseq
          %v1286 = vshrl.u32 %v1285, 7
          %v1287 = vsub.s32 %v1284, %v1286
          %v1288 = vrot.slane %v1280, %v1287
          %v1290 = vunpack.c.l.s4 1934713408
          %v1291 = vunpack.c.0.s8 %v1290
          %v1292 = vlaneseq
          %v1293 = vshrl.u32 %v1292, 7
          %v1294 = vsub.s32 %v1291, %v1293
          %v1295 = vrot.slane %v1281, %v1294
          %v1296 = vcombine.low %v1240, %v1272
          %v1297 = vcombine.high %v1240, %v1272
          %v1298 = vcombine.low %v1247, %v1279
          %v1299 = vcombine.high %v1247, %v1279
          %v1300 = vcombine.low %v1256, %v1288
          %v1301 = vcombine.high %v1256, %v1288
          %v1302 = vcombine.low %v1263, %v1295
          %v1303 = vcombine.high %v1263, %v1295
          %v1304 = vcombine.low %v616, %v955
          %v1305 = vcombine.high %v616, %v955
          %v1307 = vunpack.c.l.s4 1983009808
          %v1308 = vunpack.c.0.s8 %v1307
          %v1309 = vlaneseq
          %v1310 = vshrl.u32 %v1309, 7
          %v1311 = vsub.s32 %v1308, %v1310
          %v1312 = vrot.slane %v1304, %v1311
          %v1314 = vunpack.c.l.s4 1983009808
          %v1315 = vunpack.c.0.s8 %v1314
          %v1316 = vlaneseq
          %v1317 = vshrl.u32 %v1316, 7
          %v1318 = vsub.s32 %v1315, %v1317
          %v1319 = vrot.slane %v1305, %v1318
          %v1320 = vcombine.low %v949, %v961
          %v1321 = vcombine.high %v949, %v961
          %v1323 = vunpack.c.l.s4 1983009808
          %v1324 = vunpack.c.0.s8 %v1323
          %v1325 = vlaneseq
          %v1326 = vshrl.u32 %v1325, 7
          %v1327 = vsub.s32 %v1324, %v1326
          %v1328 = vrot.slane %v1320, %v1327
          %v1330 = vunpack.c.l.s4 1983009808
          %v1331 = vunpack.c.0.s8 %v1330
          %v1332 = vlaneseq
          %v1333 = vshrl.u32 %v1332, 7
          %v1334 = vsub.s32 %v1331, %v1333
          %v1335 = vrot.slane %v1321, %v1334
          %v1336 = vcombine.low %v967, %v979
          %v1337 = vcombine.high %v967, %v979
          %v1339 = vunpack.c.l.s4 1983009808
          %v1340 = vunpack.c.0.s8 %v1339
          %v1341 = vlaneseq
          %v1342 = vshrl.u32 %v1341, 7
          %v1343 = vsub.s32 %v1340, %v1342
          %v1344 = vrot.slane %v1336, %v1343
          %v1346 = vunpack.c.l.s4 1983009808
          %v1347 = vunpack.c.0.s8 %v1346
          %v1348 = vlaneseq
          %v1349 = vshrl.u32 %v1348, 7
          %v1350 = vsub.s32 %v1347, %v1349
          %v1351 = vrot.slane %v1337, %v1350
          %v1352 = vcombine.low %v973, %v985
          %v1353 = vcombine.high %v973, %v985
          %v1355 = vunpack.c.l.s4 1983009808
          %v1356 = vunpack.c.0.s8 %v1355
          %v1357 = vlaneseq
          %v1358 = vshrl.u32 %v1357, 7
          %v1359 = vsub.s32 %v1356, %v1358
          %v1360 = vrot.slane %v1352, %v1359
          %v1362 = vunpack.c.l.s4 1983009808
          %v1363 = vunpack.c.0.s8 %v1362
          %v1364 = vlaneseq
          %v1365 = vshrl.u32 %v1364, 7
          %v1366 = vsub.s32 %v1363, %v1365
          %v1367 = vrot.slane %v1353, %v1366
          %v1368 = vcombine.low %v1312, %v1328
          %v1369 = vcombine.high %v1312, %v1328
          %v1371 = vunpack.c.l.s4 1934713408
          %v1372 = vunpack.c.0.s8 %v1371
          %v1373 = vlaneseq
          %v1374 = vshrl.u32 %v1373, 7
          %v1375 = vsub.s32 %v1372, %v1374
          %v1376 = vrot.slane %v1368, %v1375
          %v1378 = vunpack.c.l.s4 1934713408
          %v1379 = vunpack.c.0.s8 %v1378
          %v1380 = vlaneseq
          %v1381 = vshrl.u32 %v1380, 7
          %v1382 = vsub.s32 %v1379, %v1381
          %v1383 = vrot.slane %v1369, %v1382
          %v1384 = vcombine.low %v1319, %v1335
          %v1385 = vcombine.high %v1319, %v1335
          %v1387 = vunpack.c.l.s4 1934713408
          %v1388 = vunpack.c.0.s8 %v1387
          %v1389 = vlaneseq
          %v1390 = vshrl.u32 %v1389, 7
          %v1391 = vsub.s32 %v1388, %v1390
          %v1392 = vrot.slane %v1384, %v1391
          %v1394 = vunpack.c.l.s4 1934713408
          %v1395 = vunpack.c.0.s8 %v1394
          %v1396 = vlaneseq
          %v1397 = vshrl.u32 %v1396, 7
          %v1398 = vsub.s32 %v1395, %v1397
          %v1399 = vrot.slane %v1385, %v1398
          %v1400 = vcombine.low %v1344, %v1360
          %v1401 = vcombine.high %v1344, %v1360
          %v1403 = vunpack.c.l.s4 1934713408
          %v1404 = vunpack.c.0.s8 %v1403
          %v1405 = vlaneseq
          %v1406 = vshrl.u32 %v1405, 7
          %v1407 = vsub.s32 %v1404, %v1406
          %v1408 = vrot.slane %v1400, %v1407
          %v1410 = vunpack.c.l.s4 1934713408
          %v1411 = vunpack.c.0.s8 %v1410
          %v1412 = vlaneseq
          %v1413 = vshrl.u32 %v1412, 7
          %v1414 = vsub.s32 %v1411, %v1413
          %v1415 = vrot.slane %v1401, %v1414
          %v1416 = vcombine.low %v1351, %v1367
          %v1417 = vcombine.high %v1351, %v1367
          %v1419 = vunpack.c.l.s4 1934713408
          %v1420 = vunpack.c.0.s8 %v1419
          %v1421 = vlaneseq
          %v1422 = vshrl.u32 %v1421, 7
          %v1423 = vsub.s32 %v1420, %v1422
          %v1424 = vrot.slane %v1416, %v1423
          %v1426 = vunpack.c.l.s4 1934713408
          %v1427 = vunpack.c.0.s8 %v1426
          %v1428 = vlaneseq
          %v1429 = vshrl.u32 %v1428, 7
          %v1430 = vsub.s32 %v1427, %v1429
          %v1431 = vrot.slane %v1417, %v1430
          %v1432 = vcombine.low %v1376, %v1408
          %v1433 = vcombine.high %v1376, %v1408
          %v1434 = vcombine.low %v1383, %v1415
          %v1435 = vcombine.high %v1383, %v1415
          %v1436 = vcombine.low %v1392, %v1424
          %v1437 = vcombine.high %v1392, %v1424
          %v1438 = vcombine.low %v1399, %v1431
          %v1439 = vcombine.high %v1399, %v1431
          %v1440 = vcombine.low %v618, %v999
          %v1441 = vcombine.high %v618, %v999
          %v1443 = vunpack.c.l.s4 1983009808
          %v1444 = vunpack.c.0.s8 %v1443
          %v1445 = vlaneseq
          %v1446 = vshrl.u32 %v1445, 7
          %v1447 = vsub.s32 %v1444, %v1446
          %v1448 = vrot.slane %v1440, %v1447
          %v1450 = vunpack.c.l.s4 1983009808
          %v1451 = vunpack.c.0.s8 %v1450
          %v1452 = vlaneseq
          %v1453 = vshrl.u32 %v1452, 7
          %v1454 = vsub.s32 %v1451, %v1453
          %v1455 = vrot.slane %v1441, %v1454
          %v1456 = vcombine.low %v993, %v1005
          %v1457 = vcombine.high %v993, %v1005
          %v1459 = vunpack.c.l.s4 1983009808
          %v1460 = vunpack.c.0.s8 %v1459
          %v1461 = vlaneseq
          %v1462 = vshrl.u32 %v1461, 7
          %v1463 = vsub.s32 %v1460, %v1462
          %v1464 = vrot.slane %v1456, %v1463
          %v1466 = vunpack.c.l.s4 1983009808
          %v1467 = vunpack.c.0.s8 %v1466
          %v1468 = vlaneseq
          %v1469 = vshrl.u32 %v1468, 7
          %v1470 = vsub.s32 %v1467, %v1469
          %v1471 = vrot.slane %v1457, %v1470
          %v1472 = vcombine.low %v1011, %v1023
          %v1473 = vcombine.high %v1011, %v1023
          %v1475 = vunpack.c.l.s4 1983009808
          %v1476 = vunpack.c.0.s8 %v1475
          %v1477 = vlaneseq
          %v1478 = vshrl.u32 %v1477, 7
          %v1479 = vsub.s32 %v1476, %v1478
          %v1480 = vrot.slane %v1472, %v1479
          %v1482 = vunpack.c.l.s4 1983009808
          %v1483 = vunpack.c.0.s8 %v1482
          %v1484 = vlaneseq
          %v1485 = vshrl.u32 %v1484, 7
          %v1486 = vsub.s32 %v1483, %v1485
          %v1487 = vrot.slane %v1473, %v1486
          %v1488 = vcombine.low %v1017, %v1029
          %v1489 = vcombine.high %v1017, %v1029
          %v1491 = vunpack.c.l.s4 1983009808
          %v1492 = vunpack.c.0.s8 %v1491
          %v1493 = vlaneseq
          %v1494 = vshrl.u32 %v1493, 7
          %v1495 = vsub.s32 %v1492, %v1494
          %v1496 = vrot.slane %v1488, %v1495
          %v1498 = vunpack.c.l.s4 1983009808
          %v1499 = vunpack.c.0.s8 %v1498
          %v1500 = vlaneseq
          %v1501 = vshrl.u32 %v1500, 7
          %v1502 = vsub.s32 %v1499, %v1501
          %v1503 = vrot.slane %v1489, %v1502
          %v1504 = vcombine.low %v1448, %v1464
          %v1505 = vcombine.high %v1448, %v1464
          %v1507 = vunpack.c.l.s4 1934713408
          %v1508 = vunpack.c.0.s8 %v1507
          %v1509 = vlaneseq
          %v1510 = vshrl.u32 %v1509, 7
          %v1511 = vsub.s32 %v1508, %v1510
          %v1512 = vrot.slane %v1504, %v1511
          %v1514 = vunpack.c.l.s4 1934713408
          %v1515 = vunpack.c.0.s8 %v1514
          %v1516 = vlaneseq
          %v1517 = vshrl.u32 %v1516, 7
          %v1518 = vsub.s32 %v1515, %v1517
          %v1519 = vrot.slane %v1505, %v1518
          %v1520 = vcombine.low %v1455, %v1471
          %v1521 = vcombine.high %v1455, %v1471
          %v1523 = vunpack.c.l.s4 1934713408
          %v1524 = vunpack.c.0.s8 %v1523
          %v1525 = vlaneseq
          %v1526 = vshrl.u32 %v1525, 7
          %v1527 = vsub.s32 %v1524, %v1526
          %v1528 = vrot.slane %v1520, %v1527
          %v1530 = vunpack.c.l.s4 1934713408
          %v1531 = vunpack.c.0.s8 %v1530
          %v1532 = vlaneseq
          %v1533 = vshrl.u32 %v1532, 7
          %v1534 = vsub.s32 %v1531, %v1533
          %v1535 = vrot.slane %v1521, %v1534
          %v1536 = vcombine.low %v1480, %v1496
          %v1537 = vcombine.high %v1480, %v1496
          %v1539 = vunpack.c.l.s4 1934713408
          %v1540 = vunpack.c.0.s8 %v1539
          %v1541 = vlaneseq
          %v1542 = vshrl.u32 %v1541, 7
          %v1543 = vsub.s32 %v1540, %v1542
          %v1544 = vrot.slane %v1536, %v1543
          %v1546 = vunpack.c.l.s4 1934713408
          %v1547 = vunpack.c.0.s8 %v1546
          %v1548 = vlaneseq
          %v1549 = vshrl.u32 %v1548, 7
          %v1550 = vsub.s32 %v1547, %v1549
          %v1551 = vrot.slane %v1537, %v1550
          %v1552 = vcombine.low %v1487, %v1503
          %v1553 = vcombine.high %v1487, %v1503
          %v1555 = vunpack.c.l.s4 1934713408
          %v1556 = vunpack.c.0.s8 %v1555
          %v1557 = vlaneseq
          %v1558 = vshrl.u32 %v1557, 7
          %v1559 = vsub.s32 %v1556, %v1558
          %v1560 = vrot.slane %v1552, %v1559
          %v1562 = vunpack.c.l.s4 1934713408
          %v1563 = vunpack.c.0.s8 %v1562
          %v1564 = vlaneseq
          %v1565 = vshrl.u32 %v1564, 7
          %v1566 = vsub.s32 %v1563, %v1565
          %v1567 = vrot.slane %v1553, %v1566
          %v1568 = vcombine.low %v1512, %v1544
          %v1569 = vcombine.high %v1512, %v1544
          %v1570 = vcombine.low %v1519, %v1551
          %v1571 = vcombine.high %v1519, %v1551
          %v1572 = vcombine.low %v1528, %v1560
          %v1573 = vcombine.high %v1528, %v1560
          %v1574 = vcombine.low %v1535, %v1567
          %v1575 = vcombine.high %v1535, %v1567
          %v1576 = vpack.c.bf16 %v1296, %v1160
          %v1577 = vpack.c.bf16 %v1297, %v1161
          %v1578 = vpack.c.bf16 %v1298, %v1162
          %v1579 = vpack.c.bf16 %v1299, %v1163
          %v1580 = vpack.c.bf16 %v1300, %v1164
          %v1581 = vpack.c.bf16 %v1301, %v1165
          %v1582 = vpack.c.bf16 %v1302, %v1166
          %v1583 = vpack.c.bf16 %v1303, %v1167
          %v1584 = vpack.c.bf16 %v1568, %v1432
          %v1585 = vpack.c.bf16 %v1569, %v1433
          %v1586 = vpack.c.bf16 %v1570, %v1434
          %v1587 = vpack.c.bf16 %v1571, %v1435
          %v1588 = vpack.c.bf16 %v1572, %v1436
          %v1589 = vpack.c.bf16 %v1573, %v1437
          %v1590 = vpack.c.bf16 %v1574, %v1438
          %v1591 = vpack.c.bf16 %v1575, %v1439
          %v1594 = vpack.i.b16 %v937, %v936
          %v1596 = vshrl.u32 %v936, 16
          %v1597 = vshrl.u32 %v937, 16
          %v1598 = vpack.i.b16 %v1597, %v1596
          %v1602 = vpack.i.b16 %v939, %v938
          %v1604 = vshrl.u32 %v938, 16
          %v1605 = vshrl.u32 %v939, 16
          %v1606 = vpack.i.b16 %v1605, %v1604
          %v1610 = vpack.i.b16 %v941, %v940
          %v1612 = vshrl.u32 %v940, 16
          %v1613 = vshrl.u32 %v941, 16
          %v1614 = vpack.i.b16 %v1613, %v1612
          %v1618 = vpack.i.b16 %v943, %v942
          %v1620 = vshrl.u32 %v942, 16
          %v1621 = vshrl.u32 %v943, 16
          %v1622 = vpack.i.b16 %v1621, %v1620
          %v1624 = vcombine.low %v1594, %v1610
          %v1625 = vcombine.high %v1594, %v1610
          %v1627 = vunpack.c.l.s4 1983009808
          %v1628 = vunpack.c.0.s8 %v1627
          %v1629 = vlaneseq
          %v1630 = vshrl.u32 %v1629, 7
          %v1631 = vsub.s32 %v1628, %v1630
          %v1632 = vrot.slane %v1624, %v1631
          %v1634 = vunpack.c.l.s4 1983009808
          %v1635 = vunpack.c.0.s8 %v1634
          %v1636 = vlaneseq
          %v1637 = vshrl.u32 %v1636, 7
          %v1638 = vsub.s32 %v1635, %v1637
          %v1639 = vrot.slane %v1625, %v1638
          %v1640 = vcombine.low %v1602, %v1618
          %v1641 = vcombine.high %v1602, %v1618
          %v1643 = vunpack.c.l.s4 1983009808
          %v1644 = vunpack.c.0.s8 %v1643
          %v1645 = vlaneseq
          %v1646 = vshrl.u32 %v1645, 7
          %v1647 = vsub.s32 %v1644, %v1646
          %v1648 = vrot.slane %v1640, %v1647
          %v1650 = vunpack.c.l.s4 1983009808
          %v1651 = vunpack.c.0.s8 %v1650
          %v1652 = vlaneseq
          %v1653 = vshrl.u32 %v1652, 7
          %v1654 = vsub.s32 %v1651, %v1653
          %v1655 = vrot.slane %v1641, %v1654
          %v1656 = vcombine.low %v1632, %v1648
          %v1657 = vcombine.high %v1632, %v1648
          %v1659 = vunpack.c.l.s4 1934713408
          %v1660 = vunpack.c.0.s8 %v1659
          %v1661 = vlaneseq
          %v1662 = vshrl.u32 %v1661, 7
          %v1663 = vsub.s32 %v1660, %v1662
          %v1664 = vrot.slane %v1656, %v1663
          %v1666 = vunpack.c.l.s4 1934713408
          %v1667 = vunpack.c.0.s8 %v1666
          %v1668 = vlaneseq
          %v1669 = vshrl.u32 %v1668, 7
          %v1670 = vsub.s32 %v1667, %v1669
          %v1671 = vrot.slane %v1657, %v1670
          %v1672 = vcombine.low %v1639, %v1655
          %v1673 = vcombine.high %v1639, %v1655
          %v1675 = vunpack.c.l.s4 1934713408
          %v1676 = vunpack.c.0.s8 %v1675
          %v1677 = vlaneseq
          %v1678 = vshrl.u32 %v1677, 7
          %v1679 = vsub.s32 %v1676, %v1678
          %v1680 = vrot.slane %v1672, %v1679
          %v1682 = vunpack.c.l.s4 1934713408
          %v1683 = vunpack.c.0.s8 %v1682
          %v1684 = vlaneseq
          %v1685 = vshrl.u32 %v1684, 7
          %v1686 = vsub.s32 %v1683, %v1685
          %v1687 = vrot.slane %v1673, %v1686
          %v1688 = vcombine.high %v1664, 0
          %v1689 = vcombine.high %v1671, 0
          %v1690 = vcombine.high %v1680, 0
          %v1691 = vcombine.high %v1687, 0
          %v1692 = vcombine.low %v1598, %v1614
          %v1693 = vcombine.high %v1598, %v1614
          %v1695 = vunpack.c.l.s4 1983009808
          %v1696 = vunpack.c.0.s8 %v1695
          %v1697 = vlaneseq
          %v1698 = vshrl.u32 %v1697, 7
          %v1699 = vsub.s32 %v1696, %v1698
          %v1700 = vrot.slane %v1692, %v1699
          %v1702 = vunpack.c.l.s4 1983009808
          %v1703 = vunpack.c.0.s8 %v1702
          %v1704 = vlaneseq
          %v1705 = vshrl.u32 %v1704, 7
          %v1706 = vsub.s32 %v1703, %v1705
          %v1707 = vrot.slane %v1693, %v1706
          %v1708 = vcombine.low %v1606, %v1622
          %v1709 = vcombine.high %v1606, %v1622
          %v1711 = vunpack.c.l.s4 1983009808
          %v1712 = vunpack.c.0.s8 %v1711
          %v1713 = vlaneseq
          %v1714 = vshrl.u32 %v1713, 7
          %v1715 = vsub.s32 %v1712, %v1714
          %v1716 = vrot.slane %v1708, %v1715
          %v1718 = vunpack.c.l.s4 1983009808
          %v1719 = vunpack.c.0.s8 %v1718
          %v1720 = vlaneseq
          %v1721 = vshrl.u32 %v1720, 7
          %v1722 = vsub.s32 %v1719, %v1721
          %v1723 = vrot.slane %v1709, %v1722
          %v1724 = vcombine.low %v1700, %v1716
          %v1725 = vcombine.high %v1700, %v1716
          %v1727 = vunpack.c.l.s4 1934713408
          %v1728 = vunpack.c.0.s8 %v1727
          %v1729 = vlaneseq
          %v1730 = vshrl.u32 %v1729, 7
          %v1731 = vsub.s32 %v1728, %v1730
          %v1732 = vrot.slane %v1724, %v1731
          %v1734 = vunpack.c.l.s4 1934713408
          %v1735 = vunpack.c.0.s8 %v1734
          %v1736 = vlaneseq
          %v1737 = vshrl.u32 %v1736, 7
          %v1738 = vsub.s32 %v1735, %v1737
          %v1739 = vrot.slane %v1725, %v1738
          %v1740 = vcombine.low %v1707, %v1723
          %v1741 = vcombine.high %v1707, %v1723
          %v1743 = vunpack.c.l.s4 1934713408
          %v1744 = vunpack.c.0.s8 %v1743
          %v1745 = vlaneseq
          %v1746 = vshrl.u32 %v1745, 7
          %v1747 = vsub.s32 %v1744, %v1746
          %v1748 = vrot.slane %v1740, %v1747
          %v1750 = vunpack.c.l.s4 1934713408
          %v1751 = vunpack.c.0.s8 %v1750
          %v1752 = vlaneseq
          %v1753 = vshrl.u32 %v1752, 7
          %v1754 = vsub.s32 %v1751, %v1753
          %v1755 = vrot.slane %v1741, %v1754
          %v1756 = vcombine.high %v1732, 0
          %v1757 = vcombine.high %v1739, 0
          %v1758 = vcombine.high %v1748, 0
          %v1759 = vcombine.high %v1755, 0
          %vm1760 = vcmask 125952
          %1761 = vst.msk [vmem:[#allocation2] sm:$0xf] %vm1760, %v1664
          %1762 = vst.msk [vmem:[#allocation2 + $0x4] sm:$0xf] %vm1760, %v1732
          %1763 = vst.msk [vmem:[#allocation2 + $0x8] sm:$0xf] %vm1760, %v1688
          %1764 = vst.msk [vmem:[#allocation2 + $0xc] sm:$0xf] %vm1760, %v1756
          %1765 = vst.msk [vmem:[#allocation2 + $0x10] sm:$0xf] %vm1760, %v1671
          %1766 = vst.msk [vmem:[#allocation2 + $0x14] sm:$0xf] %vm1760, %v1739
          %1767 = vst.msk [vmem:[#allocation2 + $0x18] sm:$0xf] %vm1760, %v1689
          %1768 = vst.msk [vmem:[#allocation2 + $0x1c] sm:$0xf] %vm1760, %v1757
          %1769 = vst.msk [vmem:[#allocation2 + $0x20] sm:$0xf] %vm1760, %v1680
          %1770 = vst.msk [vmem:[#allocation2 + $0x24] sm:$0xf] %vm1760, %v1748
          %1771 = vst.msk [vmem:[#allocation2 + $0x28] sm:$0xf] %vm1760, %v1690
          %1772 = vst.msk [vmem:[#allocation2 + $0x2c] sm:$0xf] %vm1760, %v1758
          %1773 = vst.msk [vmem:[#allocation2 + $0x30] sm:$0xf] %vm1760, %v1687
          %1774 = vst.msk [vmem:[#allocation2 + $0x34] sm:$0xf] %vm1760, %v1755
          %1775 = vst.msk [vmem:[#allocation2 + $0x38] sm:$0xf] %vm1760, %v1691
          %1776 = vst.msk [vmem:[#allocation2 + $0x3c] sm:$0xf] %vm1760, %v1759
          %v1777 = vcombine.low %v1576, %v1580
          %v1778 = vcombine.high %v1576, %v1580
          %v1780 = vunpack.c.l.s4 1983009808
          %v1781 = vunpack.c.0.s8 %v1780
          %v1782 = vlaneseq
          %v1783 = vshrl.u32 %v1782, 7
          %v1784 = vsub.s32 %v1781, %v1783
          %v1785 = vrot.slane %v1777, %v1784
          %v1787 = vunpack.c.l.s4 1983009808
          %v1788 = vunpack.c.0.s8 %v1787
          %v1789 = vlaneseq
          %v1790 = vshrl.u32 %v1789, 7
          %v1791 = vsub.s32 %v1788, %v1790
          %v1792 = vrot.slane %v1778, %v1791
          %v1793 = vcombine.low %v1578, %v1582
          %v1794 = vcombine.high %v1578, %v1582
          %v1796 = vunpack.c.l.s4 1983009808
          %v1797 = vunpack.c.0.s8 %v1796
          %v1798 = vlaneseq
          %v1799 = vshrl.u32 %v1798, 7
          %v1800 = vsub.s32 %v1797, %v1799
          %v1801 = vrot.slane %v1793, %v1800
          %v1803 = vunpack.c.l.s4 1983009808
          %v1804 = vunpack.c.0.s8 %v1803
          %v1805 = vlaneseq
          %v1806 = vshrl.u32 %v1805, 7
          %v1807 = vsub.s32 %v1804, %v1806
          %v1808 = vrot.slane %v1794, %v1807
          %v1809 = vcombine.low %v1584, %v1588
          %v1810 = vcombine.high %v1584, %v1588
          %v1812 = vunpack.c.l.s4 1983009808
          %v1813 = vunpack.c.0.s8 %v1812
          %v1814 = vlaneseq
          %v1815 = vshrl.u32 %v1814, 7
          %v1816 = vsub.s32 %v1813, %v1815
          %v1817 = vrot.slane %v1809, %v1816
          %v1819 = vunpack.c.l.s4 1983009808
          %v1820 = vunpack.c.0.s8 %v1819
          %v1821 = vlaneseq
          %v1822 = vshrl.u32 %v1821, 7
          %v1823 = vsub.s32 %v1820, %v1822
          %v1824 = vrot.slane %v1810, %v1823
          %v1825 = vcombine.low %v1586, %v1590
          %v1826 = vcombine.high %v1586, %v1590
          %v1828 = vunpack.c.l.s4 1983009808
          %v1829 = vunpack.c.0.s8 %v1828
          %v1830 = vlaneseq
          %v1831 = vshrl.u32 %v1830, 7
          %v1832 = vsub.s32 %v1829, %v1831
          %v1833 = vrot.slane %v1825, %v1832
          %v1835 = vunpack.c.l.s4 1983009808
          %v1836 = vunpack.c.0.s8 %v1835
          %v1837 = vlaneseq
          %v1838 = vshrl.u32 %v1837, 7
          %v1839 = vsub.s32 %v1836, %v1838
          %v1840 = vrot.slane %v1826, %v1839
          %v1841 = vcombine.low %v1785, %v1801
          %v1842 = vcombine.high %v1785, %v1801
          %v1844 = vunpack.c.l.s4 1934713408
          %v1845 = vunpack.c.0.s8 %v1844
          %v1846 = vlaneseq
          %v1847 = vshrl.u32 %v1846, 7
          %v1848 = vsub.s32 %v1845, %v1847
          %v1849 = vrot.slane %v1841, %v1848
          %v1851 = vunpack.c.l.s4 1934713408
          %v1852 = vunpack.c.0.s8 %v1851
          %v1853 = vlaneseq
          %v1854 = vshrl.u32 %v1853, 7
          %v1855 = vsub.s32 %v1852, %v1854
          %v1856 = vrot.slane %v1842, %v1855
          %v1857 = vcombine.low %v1792, %v1808
          %v1858 = vcombine.high %v1792, %v1808
          %v1860 = vunpack.c.l.s4 1934713408
          %v1861 = vunpack.c.0.s8 %v1860
          %v1862 = vlaneseq
          %v1863 = vshrl.u32 %v1862, 7
          %v1864 = vsub.s32 %v1861, %v1863
          %v1865 = vrot.slane %v1857, %v1864
          %v1867 = vunpack.c.l.s4 1934713408
          %v1868 = vunpack.c.0.s8 %v1867
          %v1869 = vlaneseq
          %v1870 = vshrl.u32 %v1869, 7
          %v1871 = vsub.s32 %v1868, %v1870
          %v1872 = vrot.slane %v1858, %v1871
          %v1873 = vcombine.low %v1817, %v1833
          %v1874 = vcombine.high %v1817, %v1833
          %v1876 = vunpack.c.l.s4 1934713408
          %v1877 = vunpack.c.0.s8 %v1876
          %v1878 = vlaneseq
          %v1879 = vshrl.u32 %v1878, 7
          %v1880 = vsub.s32 %v1877, %v1879
          %v1881 = vrot.slane %v1873, %v1880
          %v1883 = vunpack.c.l.s4 1934713408
          %v1884 = vunpack.c.0.s8 %v1883
          %v1885 = vlaneseq
          %v1886 = vshrl.u32 %v1885, 7
          %v1887 = vsub.s32 %v1884, %v1886
          %v1888 = vrot.slane %v1874, %v1887
          %v1889 = vcombine.low %v1824, %v1840
          %v1890 = vcombine.high %v1824, %v1840
          %v1892 = vunpack.c.l.s4 1934713408
          %v1893 = vunpack.c.0.s8 %v1892
          %v1894 = vlaneseq
          %v1895 = vshrl.u32 %v1894, 7
          %v1896 = vsub.s32 %v1893, %v1895
          %v1897 = vrot.slane %v1889, %v1896
          %v1899 = vunpack.c.l.s4 1934713408
          %v1900 = vunpack.c.0.s8 %v1899
          %v1901 = vlaneseq
          %v1902 = vshrl.u32 %v1901, 7
          %v1903 = vsub.s32 %v1900, %v1902
          %v1904 = vrot.slane %v1890, %v1903
          %v1905 = vcombine.low %v1849, %v1881
          %v1906 = vcombine.high %v1849, %v1881
          %v1907 = vcombine.low %v1856, %v1888
          %v1908 = vcombine.high %v1856, %v1888
          %v1909 = vcombine.low %v1865, %v1897
          %v1910 = vcombine.high %v1865, %v1897
          %v1911 = vcombine.low %v1872, %v1904
          %v1912 = vcombine.high %v1872, %v1904
          %v1913 = vcombine.low %v1577, %v1581
          %v1914 = vcombine.high %v1577, %v1581
          %v1916 = vunpack.c.l.s4 1983009808
          %v1917 = vunpack.c.0.s8 %v1916
          %v1918 = vlaneseq
          %v1919 = vshrl.u32 %v1918, 7
          %v1920 = vsub.s32 %v1917, %v1919
          %v1921 = vrot.slane %v1913, %v1920
          %v1923 = vunpack.c.l.s4 1983009808
          %v1924 = vunpack.c.0.s8 %v1923
          %v1925 = vlaneseq
          %v1926 = vshrl.u32 %v1925, 7
          %v1927 = vsub.s32 %v1924, %v1926
          %v1928 = vrot.slane %v1914, %v1927
          %v1929 = vcombine.low %v1579, %v1583
          %v1930 = vcombine.high %v1579, %v1583
          %v1932 = vunpack.c.l.s4 1983009808
          %v1933 = vunpack.c.0.s8 %v1932
          %v1934 = vlaneseq
          %v1935 = vshrl.u32 %v1934, 7
          %v1936 = vsub.s32 %v1933, %v1935
          %v1937 = vrot.slane %v1929, %v1936
          %v1939 = vunpack.c.l.s4 1983009808
          %v1940 = vunpack.c.0.s8 %v1939
          %v1941 = vlaneseq
          %v1942 = vshrl.u32 %v1941, 7
          %v1943 = vsub.s32 %v1940, %v1942
          %v1944 = vrot.slane %v1930, %v1943
          %v1945 = vcombine.low %v1585, %v1589
          %v1946 = vcombine.high %v1585, %v1589
          %v1948 = vunpack.c.l.s4 1983009808
          %v1949 = vunpack.c.0.s8 %v1948
          %v1950 = vlaneseq
          %v1951 = vshrl.u32 %v1950, 7
          %v1952 = vsub.s32 %v1949, %v1951
          %v1953 = vrot.slane %v1945, %v1952
          %v1955 = vunpack.c.l.s4 1983009808
          %v1956 = vunpack.c.0.s8 %v1955
          %v1957 = vlaneseq
          %v1958 = vshrl.u32 %v1957, 7
          %v1959 = vsub.s32 %v1956, %v1958
          %v1960 = vrot.slane %v1946, %v1959
          %v1961 = vcombine.low %v1587, %v1591
          %v1962 = vcombine.high %v1587, %v1591
          %v1964 = vunpack.c.l.s4 1983009808
          %v1965 = vunpack.c.0.s8 %v1964
          %v1966 = vlaneseq
          %v1967 = vshrl.u32 %v1966, 7
          %v1968 = vsub.s32 %v1965, %v1967
          %v1969 = vrot.slane %v1961, %v1968
          %v1971 = vunpack.c.l.s4 1983009808
          %v1972 = vunpack.c.0.s8 %v1971
          %v1973 = vlaneseq
          %v1974 = vshrl.u32 %v1973, 7
          %v1975 = vsub.s32 %v1972, %v1974
          %v1976 = vrot.slane %v1962, %v1975
          %v1977 = vcombine.low %v1921, %v1937
          %v1978 = vcombine.high %v1921, %v1937
          %v1980 = vunpack.c.l.s4 1934713408
          %v1981 = vunpack.c.0.s8 %v1980
          %v1982 = vlaneseq
          %v1983 = vshrl.u32 %v1982, 7
          %v1984 = vsub.s32 %v1981, %v1983
          %v1985 = vrot.slane %v1977, %v1984
          %v1987 = vunpack.c.l.s4 1934713408
          %v1988 = vunpack.c.0.s8 %v1987
          %v1989 = vlaneseq
          %v1990 = vshrl.u32 %v1989, 7
          %v1991 = vsub.s32 %v1988, %v1990
          %v1992 = vrot.slane %v1978, %v1991
          %v1993 = vcombine.low %v1928, %v1944
          %v1994 = vcombine.high %v1928, %v1944
          %v1996 = vunpack.c.l.s4 1934713408
          %v1997 = vunpack.c.0.s8 %v1996
          %v1998 = vlaneseq
          %v1999 = vshrl.u32 %v1998, 7
          %v2000 = vsub.s32 %v1997, %v1999
          %v2001 = vrot.slane %v1993, %v2000
          %v2003 = vunpack.c.l.s4 1934713408
          %v2004 = vunpack.c.0.s8 %v2003
          %v2005 = vlaneseq
          %v2006 = vshrl.u32 %v2005, 7
          %v2007 = vsub.s32 %v2004, %v2006
          %v2008 = vrot.slane %v1994, %v2007
          %v2009 = vcombine.low %v1953, %v1969
          %v2010 = vcombine.high %v1953, %v1969
          %v2012 = vunpack.c.l.s4 1934713408
          %v2013 = vunpack.c.0.s8 %v2012
          %v2014 = vlaneseq
          %v2015 = vshrl.u32 %v2014, 7
          %v2016 = vsub.s32 %v2013, %v2015
          %v2017 = vrot.slane %v2009, %v2016
          %v2019 = vunpack.c.l.s4 1934713408
          %v2020 = vunpack.c.0.s8 %v2019
          %v2021 = vlaneseq
          %v2022 = vshrl.u32 %v2021, 7
          %v2023 = vsub.s32 %v2020, %v2022
          %v2024 = vrot.slane %v2010, %v2023
          %v2025 = vcombine.low %v1960, %v1976
          %v2026 = vcombine.high %v1960, %v1976
          %v2028 = vunpack.c.l.s4 1934713408
          %v2029 = vunpack.c.0.s8 %v2028
          %v2030 = vlaneseq
          %v2031 = vshrl.u32 %v2030, 7
          %v2032 = vsub.s32 %v2029, %v2031
          %v2033 = vrot.slane %v2025, %v2032
          %v2035 = vunpack.c.l.s4 1934713408
          %v2036 = vunpack.c.0.s8 %v2035
          %v2037 = vlaneseq
          %v2038 = vshrl.u32 %v2037, 7
          %v2039 = vsub.s32 %v2036, %v2038
          %v2040 = vrot.slane %v2026, %v2039
          %v2041 = vcombine.low %v1985, %v2017
          %v2042 = vcombine.high %v1985, %v2017
          %v2043 = vcombine.low %v1992, %v2024
          %v2044 = vcombine.high %v1992, %v2024
          %v2045 = vcombine.low %v2001, %v2033
          %v2046 = vcombine.high %v2001, %v2033
          %v2047 = vcombine.low %v2008, %v2040
          %v2048 = vcombine.high %v2008, %v2040
          %v2051 = vpack.i.b16 %v2041, %v1905
          %v2053 = vshrl.u32 %v1905, 16
          %v2054 = vshrl.u32 %v2041, 16
          %v2055 = vpack.i.b16 %v2054, %v2053
          %v2059 = vpack.i.b16 %v2042, %v1906
          %v2061 = vshrl.u32 %v1906, 16
          %v2062 = vshrl.u32 %v2042, 16
          %v2063 = vpack.i.b16 %v2062, %v2061
          %v2067 = vpack.i.b16 %v2043, %v1907
          %v2069 = vshrl.u32 %v1907, 16
          %v2070 = vshrl.u32 %v2043, 16
          %v2071 = vpack.i.b16 %v2070, %v2069
          %v2075 = vpack.i.b16 %v2044, %v1908
          %v2077 = vshrl.u32 %v1908, 16
          %v2078 = vshrl.u32 %v2044, 16
          %v2079 = vpack.i.b16 %v2078, %v2077
          %v2083 = vpack.i.b16 %v2045, %v1909
          %v2085 = vshrl.u32 %v1909, 16
          %v2086 = vshrl.u32 %v2045, 16
          %v2087 = vpack.i.b16 %v2086, %v2085
          %v2091 = vpack.i.b16 %v2046, %v1910
          %v2093 = vshrl.u32 %v1910, 16
          %v2094 = vshrl.u32 %v2046, 16
          %v2095 = vpack.i.b16 %v2094, %v2093
          %v2099 = vpack.i.b16 %v2047, %v1911
          %v2101 = vshrl.u32 %v1911, 16
          %v2102 = vshrl.u32 %v2047, 16
          %v2103 = vpack.i.b16 %v2102, %v2101
          %v2107 = vpack.i.b16 %v2048, %v1912
          %v2109 = vshrl.u32 %v1912, 16
          %v2110 = vshrl.u32 %v2048, 16
          %v2111 = vpack.i.b16 %v2110, %v2109
          %2113 = vst.msk [vmem:[#allocation3] sm:$0xff] %vm514, %v2051
          %2114 = vst.msk [vmem:[#allocation3 + $0x8] sm:$0xff] %vm514, %v2055
          %2115 = vst.msk [vmem:[#allocation3 + $0x10] sm:$0xff] %vm514, %v2059
          %2116 = vst.msk [vmem:[#allocation3 + $0x18] sm:$0xff] %vm514, %v2063
          %2117 = vst.msk [vmem:[#allocation3 + $0x20] sm:$0xff] %vm514, %v2067
          %2118 = vst.msk [vmem:[#allocation3 + $0x28] sm:$0xff] %vm514, %v2071
          %2119 = vst.msk [vmem:[#allocation3 + $0x30] sm:$0xff] %vm514, %v2075
          %2120 = vst.msk [vmem:[#allocation3 + $0x38] sm:$0xff] %vm514, %v2079
          %2121 = vst.msk [vmem:[#allocation3 + $0x40] sm:$0xff] %vm514, %v2083
          %2122 = vst.msk [vmem:[#allocation3 + $0x48] sm:$0xff] %vm514, %v2087
          %2123 = vst.msk [vmem:[#allocation3 + $0x50] sm:$0xff] %vm514, %v2091
          %2124 = vst.msk [vmem:[#allocation3 + $0x58] sm:$0xff] %vm514, %v2095
          %2125 = vst.msk [vmem:[#allocation3 + $0x60] sm:$0xff] %vm514, %v2099
          %2126 = vst.msk [vmem:[#allocation3 + $0x68] sm:$0xff] %vm514, %v2103
          %2127 = vst.msk [vmem:[#allocation3 + $0x70] sm:$0xff] %vm514, %v2107
          %2128 = vst.msk [vmem:[#allocation3 + $0x78] sm:$0xff] %vm514, %v2111
          %2129 = vxpose.xlu0.c.b16.start [1/8] %v936, 128
          %2130 = vxpose.xlu0.c.b16.cont [2/8] 0, 128
          %2131 = vxpose.xlu0.c.b16.cont [3/8] 0, 128
          %2132 = vxpose.xlu0.c.b16.cont [4/8] 0, 128
          %2133 = vxpose.xlu0.c.b16.cont [5/8] 0, 128
          %2134 = vxpose.xlu0.c.b16.cont [6/8] 0, 128
          %2135 = vxpose.xlu0.c.b16.cont [7/8] 0, 128
          %2136 = vxpose.xlu0.c.b16.end [8/8] 0, 128
          %v2137 = vpop.trf.xlu0
          %v2138 = vpop.trf.xlu0
          %v2139 = vpop.trf.xlu0
          %v2140 = vpop.trf.xlu0
          %v2141 = vpop.trf.xlu0
          %v2142 = vpop.trf.xlu0
          %v2143 = vpop.trf.xlu0
          %v2144 = vpop.trf.xlu0
          %2145 = vxpose.xlu0.c.b16.start [1/8] %v937, 128
          %2146 = vxpose.xlu0.c.b16.cont [2/8] 0, 128
          %2147 = vxpose.xlu0.c.b16.cont [3/8] 0, 128
          %2148 = vxpose.xlu0.c.b16.cont [4/8] 0, 128
          %2149 = vxpose.xlu0.c.b16.cont [5/8] 0, 128
          %2150 = vxpose.xlu0.c.b16.cont [6/8] 0, 128
          %2151 = vxpose.xlu0.c.b16.cont [7/8] 0, 128
          %2152 = vxpose.xlu0.c.b16.end [8/8] 0, 128
          %v2153 = vpop.trf.xlu0
          %v2154 = vpop.trf.xlu0
          %v2155 = vpop.trf.xlu0
          %v2156 = vpop.trf.xlu0
          %v2157 = vpop.trf.xlu0
          %v2158 = vpop.trf.xlu0
          %v2159 = vpop.trf.xlu0
          %v2160 = vpop.trf.xlu0
          %2161 = vxpose.xlu0.c.b16.start [1/8] %v938, 128
          %2162 = vxpose.xlu0.c.b16.cont [2/8] 0, 128
          %2163 = vxpose.xlu0.c.b16.cont [3/8] 0, 128
          %2164 = vxpose.xlu0.c.b16.cont [4/8] 0, 128
          %2165 = vxpose.xlu0.c.b16.cont [5/8] 0, 128
          %2166 = vxpose.xlu0.c.b16.cont [6/8] 0, 128
          %2167 = vxpose.xlu0.c.b16.cont [7/8] 0, 128
          %2168 = vxpose.xlu0.c.b16.end [8/8] 0, 128
          %v2169 = vpop.trf.xlu0
          %v2170 = vpop.trf.xlu0
          %v2171 = vpop.trf.xlu0
          %v2172 = vpop.trf.xlu0
          %v2173 = vpop.trf.xlu0
          %v2174 = vpop.trf.xlu0
          %v2175 = vpop.trf.xlu0
          %v2176 = vpop.trf.xlu0
          %2177 = vxpose.xlu0.c.b16.start [1/8] %v939, 128
          %2178 = vxpose.xlu0.c.b16.cont [2/8] 0, 128
          %2179 = vxpose.xlu0.c.b16.cont [3/8] 0, 128
          %2180 = vxpose.xlu0.c.b16.cont [4/8] 0, 128
          %2181 = vxpose.xlu0.c.b16.cont [5/8] 0, 128
          %2182 = vxpose.xlu0.c.b16.cont [6/8] 0, 128
          %2183 = vxpose.xlu0.c.b16.cont [7/8] 0, 128
          %2184 = vxpose.xlu0.c.b16.end [8/8] 0, 128
          %v2185 = vpop.trf.xlu0
          %v2186 = vpop.trf.xlu0
          %v2187 = vpop.trf.xlu0
          %v2188 = vpop.trf.xlu0
          %v2189 = vpop.trf.xlu0
          %v2190 = vpop.trf.xlu0
          %v2191 = vpop.trf.xlu0
          %v2192 = vpop.trf.xlu0
          %2193 = vxpose.xlu0.c.b16.start [1/8] %v940, 128
          %2194 = vxpose.xlu0.c.b16.cont [2/8] 0, 128
          %2195 = vxpose.xlu0.c.b16.cont [3/8] 0, 128
          %2196 = vxpose.xlu0.c.b16.cont [4/8] 0, 128
          %2197 = vxpose.xlu0.c.b16.cont [5/8] 0, 128
          %2198 = vxpose.xlu0.c.b16.cont [6/8] 0, 128
          %2199 = vxpose.xlu0.c.b16.cont [7/8] 0, 128
          %2200 = vxpose.xlu0.c.b16.end [8/8] 0, 128
          %v2201 = vpop.trf.xlu0
          %v2202 = vpop.trf.xlu0
          %v2203 = vpop.trf.xlu0
          %v2204 = vpop.trf.xlu0
          %v2205 = vpop.trf.xlu0
          %v2206 = vpop.trf.xlu0
          %v2207 = vpop.trf.xlu0
          %v2208 = vpop.trf.xlu0
          %2209 = vxpose.xlu0.c.b16.start [1/8] %v941, 128
          %2210 = vxpose.xlu0.c.b16.cont [2/8] 0, 128
          %2211 = vxpose.xlu0.c.b16.cont [3/8] 0, 128
          %2212 = vxpose.xlu0.c.b16.cont [4/8] 0, 128
          %2213 = vxpose.xlu0.c.b16.cont [5/8] 0, 128
          %2214 = vxpose.xlu0.c.b16.cont [6/8] 0, 128
          %2215 = vxpose.xlu0.c.b16.cont [7/8] 0, 128
          %2216 = vxpose.xlu0.c.b16.end [8/8] 0, 128
          %v2217 = vpop.trf.xlu0
          %v2218 = vpop.trf.xlu0
          %v2219 = vpop.trf.xlu0
          %v2220 = vpop.trf.xlu0
          %v2221 = vpop.trf.xlu0
          %v2222 = vpop.trf.xlu0
          %v2223 = vpop.trf.xlu0
          %v2224 = vpop.trf.xlu0
          %2225 = vxpose.xlu0.c.b16.start [1/8] %v942, 128
          %2226 = vxpose.xlu0.c.b16.cont [2/8] 0, 128
          %2227 = vxpose.xlu0.c.b16.cont [3/8] 0, 128
          %2228 = vxpose.xlu0.c.b16.cont [4/8] 0, 128
          %2229 = vxpose.xlu0.c.b16.cont [5/8] 0, 128
          %2230 = vxpose.xlu0.c.b16.cont [6/8] 0, 128
          %2231 = vxpose.xlu0.c.b16.cont [7/8] 0, 128
          %2232 = vxpose.xlu0.c.b16.end [8/8] 0, 128
          %v2233 = vpop.trf.xlu0
          %v2234 = vpop.trf.xlu0
          %v2235 = vpop.trf.xlu0
          %v2236 = vpop.trf.xlu0
          %v2237 = vpop.trf.xlu0
          %v2238 = vpop.trf.xlu0
          %v2239 = vpop.trf.xlu0
          %v2240 = vpop.trf.xlu0
          %2241 = vxpose.xlu0.c.b16.start [1/8] %v943, 128
          %2242 = vxpose.xlu0.c.b16.cont [2/8] 0, 128
          %2243 = vxpose.xlu0.c.b16.cont [3/8] 0, 128
          %2244 = vxpose.xlu0.c.b16.cont [4/8] 0, 128
          %2245 = vxpose.xlu0.c.b16.cont [5/8] 0, 128
          %2246 = vxpose.xlu0.c.b16.cont [6/8] 0, 128
          %2247 = vxpose.xlu0.c.b16.cont [7/8] 0, 128
          %2248 = vxpose.xlu0.c.b16.end [8/8] 0, 128
          %v2249 = vpop.trf.xlu0
          %v2250 = vpop.trf.xlu0
          %v2251 = vpop.trf.xlu0
          %v2252 = vpop.trf.xlu0
          %v2253 = vpop.trf.xlu0
          %v2254 = vpop.trf.xlu0
          %v2255 = vpop.trf.xlu0
          %v2256 = vpop.trf.xlu0
          %v2259 = vpack.i.b16 %v2153, %v2137
          %v2261 = vshrl.u32 %v2137, 16
          %v2262 = vshrl.u32 %v2153, 16
          %v2263 = vpack.i.b16 %v2262, %v2261
          %v2267 = vpack.i.b16 %v2185, %v2169
          %v2269 = vshrl.u32 %v2169, 16
          %v2270 = vshrl.u32 %v2185, 16
          %v2271 = vpack.i.b16 %v2270, %v2269
          %v2275 = vpack.i.b16 %v2217, %v2201
          %v2277 = vshrl.u32 %v2201, 16
          %v2278 = vshrl.u32 %v2217, 16
          %v2279 = vpack.i.b16 %v2278, %v2277
          %v2283 = vpack.i.b16 %v2249, %v2233
          %v2285 = vshrl.u32 %v2233, 16
          %v2286 = vshrl.u32 %v2249, 16
          %v2287 = vpack.i.b16 %v2286, %v2285
          %v2289 = vcombine.low %v2259, %v2275
          %v2290 = vcombine.high %v2259, %v2275
          %v2292 = vunpack.c.l.s4 1983009808
          %v2293 = vunpack.c.0.s8 %v2292
          %v2294 = vlaneseq
          %v2295 = vshrl.u32 %v2294, 7
          %v2296 = vsub.s32 %v2293, %v2295
          %v2297 = vrot.slane %v2289, %v2296
          %v2299 = vunpack.c.l.s4 1983009808
          %v2300 = vunpack.c.0.s8 %v2299
          %v2301 = vlaneseq
          %v2302 = vshrl.u32 %v2301, 7
          %v2303 = vsub.s32 %v2300, %v2302
          %v2304 = vrot.slane %v2290, %v2303
          %v2305 = vcombine.low %v2267, %v2283
          %v2306 = vcombine.high %v2267, %v2283
          %v2308 = vunpack.c.l.s4 1983009808
          %v2309 = vunpack.c.0.s8 %v2308
          %v2310 = vlaneseq
          %v2311 = vshrl.u32 %v2310, 7
          %v2312 = vsub.s32 %v2309, %v2311
          %v2313 = vrot.slane %v2305, %v2312
          %v2315 = vunpack.c.l.s4 1983009808
          %v2316 = vunpack.c.0.s8 %v2315
          %v2317 = vlaneseq
          %v2318 = vshrl.u32 %v2317, 7
          %v2319 = vsub.s32 %v2316, %v2318
          %v2320 = vrot.slane %v2306, %v2319
          %v2321 = vcombine.low %v2297, %v2313
          %v2322 = vcombine.high %v2297, %v2313
          %v2324 = vunpack.c.l.s4 1934713408
          %v2325 = vunpack.c.0.s8 %v2324
          %v2326 = vlaneseq
          %v2327 = vshrl.u32 %v2326, 7
          %v2328 = vsub.s32 %v2325, %v2327
          %v2329 = vrot.slane %v2321, %v2328
          %v2331 = vunpack.c.l.s4 1934713408
          %v2332 = vunpack.c.0.s8 %v2331
          %v2333 = vlaneseq
          %v2334 = vshrl.u32 %v2333, 7
          %v2335 = vsub.s32 %v2332, %v2334
          %v2336 = vrot.slane %v2322, %v2335
          %v2337 = vcombine.low %v2304, %v2320
          %v2338 = vcombine.high %v2304, %v2320
          %v2340 = vunpack.c.l.s4 1934713408
          %v2341 = vunpack.c.0.s8 %v2340
          %v2342 = vlaneseq
          %v2343 = vshrl.u32 %v2342, 7
          %v2344 = vsub.s32 %v2341, %v2343
          %v2345 = vrot.slane %v2337, %v2344
          %v2347 = vunpack.c.l.s4 1934713408
          %v2348 = vunpack.c.0.s8 %v2347
          %v2349 = vlaneseq
          %v2350 = vshrl.u32 %v2349, 7
          %v2351 = vsub.s32 %v2348, %v2350
          %v2352 = vrot.slane %v2338, %v2351
          %v2353 = vcombine.high %v2329, 0
          %v2354 = vcombine.high %v2336, 0
          %v2355 = vcombine.high %v2345, 0
          %v2356 = vcombine.high %v2352, 0
          %v2357 = vcombine.low %v2263, %v2279
          %v2358 = vcombine.high %v2263, %v2279
          %v2360 = vunpack.c.l.s4 1983009808
          %v2361 = vunpack.c.0.s8 %v2360
          %v2362 = vlaneseq
          %v2363 = vshrl.u32 %v2362, 7
          %v2364 = vsub.s32 %v2361, %v2363
          %v2365 = vrot.slane %v2357, %v2364
          %v2367 = vunpack.c.l.s4 1983009808
          %v2368 = vunpack.c.0.s8 %v2367
          %v2369 = vlaneseq
          %v2370 = vshrl.u32 %v2369, 7
          %v2371 = vsub.s32 %v2368, %v2370
          %v2372 = vrot.slane %v2358, %v2371
          %v2373 = vcombine.low %v2271, %v2287
          %v2374 = vcombine.high %v2271, %v2287
          %v2376 = vunpack.c.l.s4 1983009808
          %v2377 = vunpack.c.0.s8 %v2376
          %v2378 = vlaneseq
          %v2379 = vshrl.u32 %v2378, 7
          %v2380 = vsub.s32 %v2377, %v2379
          %v2381 = vrot.slane %v2373, %v2380
          %v2383 = vunpack.c.l.s4 1983009808
          %v2384 = vunpack.c.0.s8 %v2383
          %v2385 = vlaneseq
          %v2386 = vshrl.u32 %v2385, 7
          %v2387 = vsub.s32 %v2384, %v2386
          %v2388 = vrot.slane %v2374, %v2387
          %v2389 = vcombine.low %v2365, %v2381
          %v2390 = vcombine.high %v2365, %v2381
          %v2392 = vunpack.c.l.s4 1934713408
          %v2393 = vunpack.c.0.s8 %v2392
          %v2394 = vlaneseq
          %v2395 = vshrl.u32 %v2394, 7
          %v2396 = vsub.s32 %v2393, %v2395
          %v2397 = vrot.slane %v2389, %v2396
          %v2399 = vunpack.c.l.s4 1934713408
          %v2400 = vunpack.c.0.s8 %v2399
          %v2401 = vlaneseq
          %v2402 = vshrl.u32 %v2401, 7
          %v2403 = vsub.s32 %v2400, %v2402
          %v2404 = vrot.slane %v2390, %v2403
          %v2405 = vcombine.low %v2372, %v2388
          %v2406 = vcombine.high %v2372, %v2388
          %v2408 = vunpack.c.l.s4 1934713408
          %v2409 = vunpack.c.0.s8 %v2408
          %v2410 = vlaneseq
          %v2411 = vshrl.u32 %v2410, 7
          %v2412 = vsub.s32 %v2409, %v2411
          %v2413 = vrot.slane %v2405, %v2412
          %v2415 = vunpack.c.l.s4 1934713408
          %v2416 = vunpack.c.0.s8 %v2415
          %v2417 = vlaneseq
          %v2418 = vshrl.u32 %v2417, 7
          %v2419 = vsub.s32 %v2416, %v2418
          %v2420 = vrot.slane %v2406, %v2419
          %v2421 = vcombine.high %v2397, 0
          %v2422 = vcombine.high %v2404, 0
          %v2423 = vcombine.high %v2413, 0
          %v2424 = vcombine.high %v2420, 0
          %2425 = vst.msk [vmem:[#allocation4] sm:$0xf] %vm1760, %v2329
          %2426 = vst.msk [vmem:[#allocation4 + $0x4] sm:$0xf] %vm1760, %v2397
          %2427 = vst.msk [vmem:[#allocation4 + $0x8] sm:$0xf] %vm1760, %v2353
          %2428 = vst.msk [vmem:[#allocation4 + $0xc] sm:$0xf] %vm1760, %v2421
          %2429 = vst.msk [vmem:[#allocation4 + $0x10] sm:$0xf] %vm1760, %v2336
          %2430 = vst.msk [vmem:[#allocation4 + $0x14] sm:$0xf] %vm1760, %v2404
          %2431 = vst.msk [vmem:[#allocation4 + $0x18] sm:$0xf] %vm1760, %v2354
          %2432 = vst.msk [vmem:[#allocation4 + $0x1c] sm:$0xf] %vm1760, %v2422
          %2433 = vst.msk [vmem:[#allocation4 + $0x20] sm:$0xf] %vm1760, %v2345
          %2434 = vst.msk [vmem:[#allocation4 + $0x24] sm:$0xf] %vm1760, %v2413
          %2435 = vst.msk [vmem:[#allocation4 + $0x28] sm:$0xf] %vm1760, %v2355
          %2436 = vst.msk [vmem:[#allocation4 + $0x2c] sm:$0xf] %vm1760, %v2423
          %2437 = vst.msk [vmem:[#allocation4 + $0x30] sm:$0xf] %vm1760, %v2352
          %2438 = vst.msk [vmem:[#allocation4 + $0x34] sm:$0xf] %vm1760, %v2420
          %2439 = vst.msk [vmem:[#allocation4 + $0x38] sm:$0xf] %vm1760, %v2356
          %2440 = vst.msk [vmem:[#allocation4 + $0x3c] sm:$0xf] %vm1760, %v2424
          %2441 = vxpose.xlu0.c.b16.start [1/8] %v1576, 128
          %2442 = vxpose.xlu0.c.b16.cont [2/8] 0, 128
          %2443 = vxpose.xlu0.c.b16.cont [3/8] 0, 128
          %2444 = vxpose.xlu0.c.b16.cont [4/8] 0, 128
          %2445 = vxpose.xlu0.c.b16.cont [5/8] 0, 128
          %2446 = vxpose.xlu0.c.b16.cont [6/8] 0, 128
          %2447 = vxpose.xlu0.c.b16.cont [7/8] 0, 128
          %2448 = vxpose.xlu0.c.b16.end [8/8] 0, 128
          %v2449 = vpop.trf.xlu0
          %v2450 = vpop.trf.xlu0
          %v2451 = vpop.trf.xlu0
          %v2452 = vpop.trf.xlu0
          %v2453 = vpop.trf.xlu0
          %v2454 = vpop.trf.xlu0
          %v2455 = vpop.trf.xlu0
          %v2456 = vpop.trf.xlu0
          %2457 = vxpose.xlu0.c.b16.start [1/8] %v1577, 128
          %2458 = vxpose.xlu0.c.b16.cont [2/8] 0, 128
          %2459 = vxpose.xlu0.c.b16.cont [3/8] 0, 128
          %2460 = vxpose.xlu0.c.b16.cont [4/8] 0, 128
          %2461 = vxpose.xlu0.c.b16.cont [5/8] 0, 128
          %2462 = vxpose.xlu0.c.b16.cont [6/8] 0, 128
          %2463 = vxpose.xlu0.c.b16.cont [7/8] 0, 128
          %2464 = vxpose.xlu0.c.b16.end [8/8] 0, 128
          %v2465 = vpop.trf.xlu0
          %v2466 = vpop.trf.xlu0
          %v2467 = vpop.trf.xlu0
          %v2468 = vpop.trf.xlu0
          %v2469 = vpop.trf.xlu0
          %v2470 = vpop.trf.xlu0
          %v2471 = vpop.trf.xlu0
          %v2472 = vpop.trf.xlu0
          %2473 = vxpose.xlu0.c.b16.start [1/8] %v1578, 128
          %2474 = vxpose.xlu0.c.b16.cont [2/8] 0, 128
          %2475 = vxpose.xlu0.c.b16.cont [3/8] 0, 128
          %2476 = vxpose.xlu0.c.b16.cont [4/8] 0, 128
          %2477 = vxpose.xlu0.c.b16.cont [5/8] 0, 128
          %2478 = vxpose.xlu0.c.b16.cont [6/8] 0, 128
          %2479 = vxpose.xlu0.c.b16.cont [7/8] 0, 128
          %2480 = vxpose.xlu0.c.b16.end [8/8] 0, 128
          %v2481 = vpop.trf.xlu0
          %v2482 = vpop.trf.xlu0
          %v2483 = vpop.trf.xlu0
          %v2484 = vpop.trf.xlu0
          %v2485 = vpop.trf.xlu0
          %v2486 = vpop.trf.xlu0
          %v2487 = vpop.trf.xlu0
          %v2488 = vpop.trf.xlu0
          %2489 = vxpose.xlu0.c.b16.start [1/8] %v1579, 128
          %2490 = vxpose.xlu0.c.b16.cont [2/8] 0, 128
          %2491 = vxpose.xlu0.c.b16.cont [3/8] 0, 128
          %2492 = vxpose.xlu0.c.b16.cont [4/8] 0, 128
          %2493 = vxpose.xlu0.c.b16.cont [5/8] 0, 128
          %2494 = vxpose.xlu0.c.b16.cont [6/8] 0, 128
          %2495 = vxpose.xlu0.c.b16.cont [7/8] 0, 128
          %2496 = vxpose.xlu0.c.b16.end [8/8] 0, 128
          %v2497 = vpop.trf.xlu0
          %v2498 = vpop.trf.xlu0
          %v2499 = vpop.trf.xlu0
          %v2500 = vpop.trf.xlu0
          %v2501 = vpop.trf.xlu0
          %v2502 = vpop.trf.xlu0
          %v2503 = vpop.trf.xlu0
          %v2504 = vpop.trf.xlu0
          %2505 = vxpose.xlu0.c.b16.start [1/8] %v1580, 128
          %2506 = vxpose.xlu0.c.b16.cont [2/8] 0, 128
          %2507 = vxpose.xlu0.c.b16.cont [3/8] 0, 128
          %2508 = vxpose.xlu0.c.b16.cont [4/8] 0, 128
          %2509 = vxpose.xlu0.c.b16.cont [5/8] 0, 128
          %2510 = vxpose.xlu0.c.b16.cont [6/8] 0, 128
          %2511 = vxpose.xlu0.c.b16.cont [7/8] 0, 128
          %2512 = vxpose.xlu0.c.b16.end [8/8] 0, 128
          %v2513 = vpop.trf.xlu0
          %v2514 = vpop.trf.xlu0
          %v2515 = vpop.trf.xlu0
          %v2516 = vpop.trf.xlu0
          %v2517 = vpop.trf.xlu0
          %v2518 = vpop.trf.xlu0
          %v2519 = vpop.trf.xlu0
          %v2520 = vpop.trf.xlu0
          %2521 = vxpose.xlu0.c.b16.start [1/8] %v1581, 128
          %2522 = vxpose.xlu0.c.b16.cont [2/8] 0, 128
          %2523 = vxpose.xlu0.c.b16.cont [3/8] 0, 128
          %2524 = vxpose.xlu0.c.b16.cont [4/8] 0, 128
          %2525 = vxpose.xlu0.c.b16.cont [5/8] 0, 128
          %2526 = vxpose.xlu0.c.b16.cont [6/8] 0, 128
          %2527 = vxpose.xlu0.c.b16.cont [7/8] 0, 128
          %2528 = vxpose.xlu0.c.b16.end [8/8] 0, 128
          %v2529 = vpop.trf.xlu0
          %v2530 = vpop.trf.xlu0
          %v2531 = vpop.trf.xlu0
          %v2532 = vpop.trf.xlu0
          %v2533 = vpop.trf.xlu0
          %v2534 = vpop.trf.xlu0
          %v2535 = vpop.trf.xlu0
          %v2536 = vpop.trf.xlu0
          %2537 = vxpose.xlu0.c.b16.start [1/8] %v1582, 128
          %2538 = vxpose.xlu0.c.b16.cont [2/8] 0, 128
          %2539 = vxpose.xlu0.c.b16.cont [3/8] 0, 128
          %2540 = vxpose.xlu0.c.b16.cont [4/8] 0, 128
          %2541 = vxpose.xlu0.c.b16.cont [5/8] 0, 128
          %2542 = vxpose.xlu0.c.b16.cont [6/8] 0, 128
          %2543 = vxpose.xlu0.c.b16.cont [7/8] 0, 128
          %2544 = vxpose.xlu0.c.b16.end [8/8] 0, 128
          %v2545 = vpop.trf.xlu0
          %v2546 = vpop.trf.xlu0
          %v2547 = vpop.trf.xlu0
          %v2548 = vpop.trf.xlu0
          %v2549 = vpop.trf.xlu0
          %v2550 = vpop.trf.xlu0
          %v2551 = vpop.trf.xlu0
          %v2552 = vpop.trf.xlu0
          %2553 = vxpose.xlu0.c.b16.start [1/8] %v1583, 128
          %2554 = vxpose.xlu0.c.b16.cont [2/8] 0, 128
          %2555 = vxpose.xlu0.c.b16.cont [3/8] 0, 128
          %2556 = vxpose.xlu0.c.b16.cont [4/8] 0, 128
          %2557 = vxpose.xlu0.c.b16.cont [5/8] 0, 128
          %2558 = vxpose.xlu0.c.b16.cont [6/8] 0, 128
          %2559 = vxpose.xlu0.c.b16.cont [7/8] 0, 128
          %2560 = vxpose.xlu0.c.b16.end [8/8] 0, 128
          %v2561 = vpop.trf.xlu0
          %v2562 = vpop.trf.xlu0
          %v2563 = vpop.trf.xlu0
          %v2564 = vpop.trf.xlu0
          %v2565 = vpop.trf.xlu0
          %v2566 = vpop.trf.xlu0
          %v2567 = vpop.trf.xlu0
          %v2568 = vpop.trf.xlu0
          %2569 = vxpose.xlu0.c.b16.start [1/8] %v1584, 128
          %2570 = vxpose.xlu0.c.b16.cont [2/8] 0, 128
          %2571 = vxpose.xlu0.c.b16.cont [3/8] 0, 128
          %2572 = vxpose.xlu0.c.b16.cont [4/8] 0, 128
          %2573 = vxpose.xlu0.c.b16.cont [5/8] 0, 128
          %2574 = vxpose.xlu0.c.b16.cont [6/8] 0, 128
          %2575 = vxpose.xlu0.c.b16.cont [7/8] 0, 128
          %2576 = vxpose.xlu0.c.b16.end [8/8] 0, 128
          %v2577 = vpop.trf.xlu0
          %v2578 = vpop.trf.xlu0
          %v2579 = vpop.trf.xlu0
          %v2580 = vpop.trf.xlu0
          %v2581 = vpop.trf.xlu0
          %v2582 = vpop.trf.xlu0
          %v2583 = vpop.trf.xlu0
          %v2584 = vpop.trf.xlu0
          %2585 = vxpose.xlu0.c.b16.start [1/8] %v1585, 128
          %2586 = vxpose.xlu0.c.b16.cont [2/8] 0, 128
          %2587 = vxpose.xlu0.c.b16.cont [3/8] 0, 128
          %2588 = vxpose.xlu0.c.b16.cont [4/8] 0, 128
          %2589 = vxpose.xlu0.c.b16.cont [5/8] 0, 128
          %2590 = vxpose.xlu0.c.b16.cont [6/8] 0, 128
          %2591 = vxpose.xlu0.c.b16.cont [7/8] 0, 128
          %2592 = vxpose.xlu0.c.b16.end [8/8] 0, 128
          %v2593 = vpop.trf.xlu0
          %v2594 = vpop.trf.xlu0
          %v2595 = vpop.trf.xlu0
          %v2596 = vpop.trf.xlu0
          %v2597 = vpop.trf.xlu0
          %v2598 = vpop.trf.xlu0
          %v2599 = vpop.trf.xlu0
          %v2600 = vpop.trf.xlu0
          %2601 = vxpose.xlu0.c.b16.start [1/8] %v1586, 128
          %2602 = vxpose.xlu0.c.b16.cont [2/8] 0, 128
          %2603 = vxpose.xlu0.c.b16.cont [3/8] 0, 128
          %2604 = vxpose.xlu0.c.b16.cont [4/8] 0, 128
          %2605 = vxpose.xlu0.c.b16.cont [5/8] 0, 128
          %2606 = vxpose.xlu0.c.b16.cont [6/8] 0, 128
          %2607 = vxpose.xlu0.c.b16.cont [7/8] 0, 128
          %2608 = vxpose.xlu0.c.b16.end [8/8] 0, 128
          %v2609 = vpop.trf.xlu0
          %v2610 = vpop.trf.xlu0
          %v2611 = vpop.trf.xlu0
          %v2612 = vpop.trf.xlu0
          %v2613 = vpop.trf.xlu0
          %v2614 = vpop.trf.xlu0
          %v2615 = vpop.trf.xlu0
          %v2616 = vpop.trf.xlu0
          %2617 = vxpose.xlu0.c.b16.start [1/8] %v1587, 128
          %2618 = vxpose.xlu0.c.b16.cont [2/8] 0, 128
          %2619 = vxpose.xlu0.c.b16.cont [3/8] 0, 128
          %2620 = vxpose.xlu0.c.b16.cont [4/8] 0, 128
          %2621 = vxpose.xlu0.c.b16.cont [5/8] 0, 128
          %2622 = vxpose.xlu0.c.b16.cont [6/8] 0, 128
          %2623 = vxpose.xlu0.c.b16.cont [7/8] 0, 128
          %2624 = vxpose.xlu0.c.b16.end [8/8] 0, 128
          %v2625 = vpop.trf.xlu0
          %v2626 = vpop.trf.xlu0
          %v2627 = vpop.trf.xlu0
          %v2628 = vpop.trf.xlu0
          %v2629 = vpop.trf.xlu0
          %v2630 = vpop.trf.xlu0
          %v2631 = vpop.trf.xlu0
          %v2632 = vpop.trf.xlu0
          %2633 = vxpose.xlu0.c.b16.start [1/8] %v1588, 128
          %2634 = vxpose.xlu0.c.b16.cont [2/8] 0, 128
          %2635 = vxpose.xlu0.c.b16.cont [3/8] 0, 128
          %2636 = vxpose.xlu0.c.b16.cont [4/8] 0, 128
          %2637 = vxpose.xlu0.c.b16.cont [5/8] 0, 128
          %2638 = vxpose.xlu0.c.b16.cont [6/8] 0, 128
          %2639 = vxpose.xlu0.c.b16.cont [7/8] 0, 128
          %2640 = vxpose.xlu0.c.b16.end [8/8] 0, 128
          %v2641 = vpop.trf.xlu0
          %v2642 = vpop.trf.xlu0
          %v2643 = vpop.trf.xlu0
          %v2644 = vpop.trf.xlu0
          %v2645 = vpop.trf.xlu0
          %v2646 = vpop.trf.xlu0
          %v2647 = vpop.trf.xlu0
          %v2648 = vpop.trf.xlu0
          %2649 = vxpose.xlu0.c.b16.start [1/8] %v1589, 128
          %2650 = vxpose.xlu0.c.b16.cont [2/8] 0, 128
          %2651 = vxpose.xlu0.c.b16.cont [3/8] 0, 128
          %2652 = vxpose.xlu0.c.b16.cont [4/8] 0, 128
          %2653 = vxpose.xlu0.c.b16.cont [5/8] 0, 128
          %2654 = vxpose.xlu0.c.b16.cont [6/8] 0, 128
          %2655 = vxpose.xlu0.c.b16.cont [7/8] 0, 128
          %2656 = vxpose.xlu0.c.b16.end [8/8] 0, 128
          %v2657 = vpop.trf.xlu0
          %v2658 = vpop.trf.xlu0
          %v2659 = vpop.trf.xlu0
          %v2660 = vpop.trf.xlu0
          %v2661 = vpop.trf.xlu0
          %v2662 = vpop.trf.xlu0
          %v2663 = vpop.trf.xlu0
          %v2664 = vpop.trf.xlu0
          %2665 = vxpose.xlu0.c.b16.start [1/8] %v1590, 128
          %2666 = vxpose.xlu0.c.b16.cont [2/8] 0, 128
          %2667 = vxpose.xlu0.c.b16.cont [3/8] 0, 128
          %2668 = vxpose.xlu0.c.b16.cont [4/8] 0, 128
          %2669 = vxpose.xlu0.c.b16.cont [5/8] 0, 128
          %2670 = vxpose.xlu0.c.b16.cont [6/8] 0, 128
          %2671 = vxpose.xlu0.c.b16.cont [7/8] 0, 128
          %2672 = vxpose.xlu0.c.b16.end [8/8] 0, 128
          %v2673 = vpop.trf.xlu0
          %v2674 = vpop.trf.xlu0
          %v2675 = vpop.trf.xlu0
          %v2676 = vpop.trf.xlu0
          %v2677 = vpop.trf.xlu0
          %v2678 = vpop.trf.xlu0
          %v2679 = vpop.trf.xlu0
          %v2680 = vpop.trf.xlu0
          %2681 = vxpose.xlu0.c.b16.start [1/8] %v1591, 128
          %2682 = vxpose.xlu0.c.b16.cont [2/8] 0, 128
          %2683 = vxpose.xlu0.c.b16.cont [3/8] 0, 128
          %2684 = vxpose.xlu0.c.b16.cont [4/8] 0, 128
          %2685 = vxpose.xlu0.c.b16.cont [5/8] 0, 128
          %2686 = vxpose.xlu0.c.b16.cont [6/8] 0, 128
          %2687 = vxpose.xlu0.c.b16.cont [7/8] 0, 128
          %2688 = vxpose.xlu0.c.b16.end [8/8] 0, 128
          %v2689 = vpop.trf.xlu0
          %v2690 = vpop.trf.xlu0
          %v2691 = vpop.trf.xlu0
          %v2692 = vpop.trf.xlu0
          %v2693 = vpop.trf.xlu0
          %v2694 = vpop.trf.xlu0
          %v2695 = vpop.trf.xlu0
          %v2696 = vpop.trf.xlu0
          %v2697 = vcombine.low %v2449, %v2513
          %v2698 = vcombine.high %v2449, %v2513
          %v2700 = vunpack.c.l.s4 1983009808
          %v2701 = vunpack.c.0.s8 %v2700
          %v2702 = vlaneseq
          %v2703 = vshrl.u32 %v2702, 7
          %v2704 = vsub.s32 %v2701, %v2703
          %v2705 = vrot.slane %v2697, %v2704
          %v2707 = vunpack.c.l.s4 1983009808
          %v2708 = vunpack.c.0.s8 %v2707
          %v2709 = vlaneseq
          %v2710 = vshrl.u32 %v2709, 7
          %v2711 = vsub.s32 %v2708, %v2710
          %v2712 = vrot.slane %v2698, %v2711
          %v2713 = vcombine.low %v2481, %v2545
          %v2714 = vcombine.high %v2481, %v2545
          %v2716 = vunpack.c.l.s4 1983009808
          %v2717 = vunpack.c.0.s8 %v2716
          %v2718 = vlaneseq
          %v2719 = vshrl.u32 %v2718, 7
          %v2720 = vsub.s32 %v2717, %v2719
          %v2721 = vrot.slane %v2713, %v2720
          %v2723 = vunpack.c.l.s4 1983009808
          %v2724 = vunpack.c.0.s8 %v2723
          %v2725 = vlaneseq
          %v2726 = vshrl.u32 %v2725, 7
          %v2727 = vsub.s32 %v2724, %v2726
          %v2728 = vrot.slane %v2714, %v2727
          %v2729 = vcombine.low %v2577, %v2641
          %v2730 = vcombine.high %v2577, %v2641
          %v2732 = vunpack.c.l.s4 1983009808
          %v2733 = vunpack.c.0.s8 %v2732
          %v2734 = vlaneseq
          %v2735 = vshrl.u32 %v2734, 7
          %v2736 = vsub.s32 %v2733, %v2735
          %v2737 = vrot.slane %v2729, %v2736
          %v2739 = vunpack.c.l.s4 1983009808
          %v2740 = vunpack.c.0.s8 %v2739
          %v2741 = vlaneseq
          %v2742 = vshrl.u32 %v2741, 7
          %v2743 = vsub.s32 %v2740, %v2742
          %v2744 = vrot.slane %v2730, %v2743
          %v2745 = vcombine.low %v2609, %v2673
          %v2746 = vcombine.high %v2609, %v2673
          %v2748 = vunpack.c.l.s4 1983009808
          %v2749 = vunpack.c.0.s8 %v2748
          %v2750 = vlaneseq
          %v2751 = vshrl.u32 %v2750, 7
          %v2752 = vsub.s32 %v2749, %v2751
          %v2753 = vrot.slane %v2745, %v2752
          %v2755 = vunpack.c.l.s4 1983009808
          %v2756 = vunpack.c.0.s8 %v2755
          %v2757 = vlaneseq
          %v2758 = vshrl.u32 %v2757, 7
          %v2759 = vsub.s32 %v2756, %v2758
          %v2760 = vrot.slane %v2746, %v2759
          %v2761 = vcombine.low %v2705, %v2721
          %v2762 = vcombine.high %v2705, %v2721
          %v2764 = vunpack.c.l.s4 1934713408
          %v2765 = vunpack.c.0.s8 %v2764
          %v2766 = vlaneseq
          %v2767 = vshrl.u32 %v2766, 7
          %v2768 = vsub.s32 %v2765, %v2767
          %v2769 = vrot.slane %v2761, %v2768
          %v2771 = vunpack.c.l.s4 1934713408
          %v2772 = vunpack.c.0.s8 %v2771
          %v2773 = vlaneseq
          %v2774 = vshrl.u32 %v2773, 7
          %v2775 = vsub.s32 %v2772, %v2774
          %v2776 = vrot.slane %v2762, %v2775
          %v2777 = vcombine.low %v2712, %v2728
          %v2778 = vcombine.high %v2712, %v2728
          %v2780 = vunpack.c.l.s4 1934713408
          %v2781 = vunpack.c.0.s8 %v2780
          %v2782 = vlaneseq
          %v2783 = vshrl.u32 %v2782, 7
          %v2784 = vsub.s32 %v2781, %v2783
          %v2785 = vrot.slane %v2777, %v2784
          %v2787 = vunpack.c.l.s4 1934713408
          %v2788 = vunpack.c.0.s8 %v2787
          %v2789 = vlaneseq
          %v2790 = vshrl.u32 %v2789, 7
          %v2791 = vsub.s32 %v2788, %v2790
          %v2792 = vrot.slane %v2778, %v2791
          %v2793 = vcombine.low %v2737, %v2753
          %v2794 = vcombine.high %v2737, %v2753
          %v2796 = vunpack.c.l.s4 1934713408
          %v2797 = vunpack.c.0.s8 %v2796
          %v2798 = vlaneseq
          %v2799 = vshrl.u32 %v2798, 7
          %v2800 = vsub.s32 %v2797, %v2799
          %v2801 = vrot.slane %v2793, %v2800
          %v2803 = vunpack.c.l.s4 1934713408
          %v2804 = vunpack.c.0.s8 %v2803
          %v2805 = vlaneseq
          %v2806 = vshrl.u32 %v2805, 7
          %v2807 = vsub.s32 %v2804, %v2806
          %v2808 = vrot.slane %v2794, %v2807
          %v2809 = vcombine.low %v2744, %v2760
          %v2810 = vcombine.high %v2744, %v2760
          %v2812 = vunpack.c.l.s4 1934713408
          %v2813 = vunpack.c.0.s8 %v2812
          %v2814 = vlaneseq
          %v2815 = vshrl.u32 %v2814, 7
          %v2816 = vsub.s32 %v2813, %v2815
          %v2817 = vrot.slane %v2809, %v2816
          %v2819 = vunpack.c.l.s4 1934713408
          %v2820 = vunpack.c.0.s8 %v2819
          %v2821 = vlaneseq
          %v2822 = vshrl.u32 %v2821, 7
          %v2823 = vsub.s32 %v2820, %v2822
          %v2824 = vrot.slane %v2810, %v2823
          %v2825 = vcombine.low %v2769, %v2801
          %v2826 = vcombine.high %v2769, %v2801
          %v2827 = vcombine.low %v2776, %v2808
          %v2828 = vcombine.high %v2776, %v2808
          %v2829 = vcombine.low %v2785, %v2817
          %v2830 = vcombine.high %v2785, %v2817
          %v2831 = vcombine.low %v2792, %v2824
          %v2832 = vcombine.high %v2792, %v2824
          %v2833 = vcombine.low %v2465, %v2529
          %v2834 = vcombine.high %v2465, %v2529
          %v2836 = vunpack.c.l.s4 1983009808
          %v2837 = vunpack.c.0.s8 %v2836
          %v2838 = vlaneseq
          %v2839 = vshrl.u32 %v2838, 7
          %v2840 = vsub.s32 %v2837, %v2839
          %v2841 = vrot.slane %v2833, %v2840
          %v2843 = vunpack.c.l.s4 1983009808
          %v2844 = vunpack.c.0.s8 %v2843
          %v2845 = vlaneseq
          %v2846 = vshrl.u32 %v2845, 7
          %v2847 = vsub.s32 %v2844, %v2846
          %v2848 = vrot.slane %v2834, %v2847
          %v2849 = vcombine.low %v2497, %v2561
          %v2850 = vcombine.high %v2497, %v2561
          %v2852 = vunpack.c.l.s4 1983009808
          %v2853 = vunpack.c.0.s8 %v2852
          %v2854 = vlaneseq
          %v2855 = vshrl.u32 %v2854, 7
          %v2856 = vsub.s32 %v2853, %v2855
          %v2857 = vrot.slane %v2849, %v2856
          %v2859 = vunpack.c.l.s4 1983009808
          %v2860 = vunpack.c.0.s8 %v2859
          %v2861 = vlaneseq
          %v2862 = vshrl.u32 %v2861, 7
          %v2863 = vsub.s32 %v2860, %v2862
          %v2864 = vrot.slane %v2850, %v2863
          %v2865 = vcombine.low %v2593, %v2657
          %v2866 = vcombine.high %v2593, %v2657
          %v2868 = vunpack.c.l.s4 1983009808
          %v2869 = vunpack.c.0.s8 %v2868
          %v2870 = vlaneseq
          %v2871 = vshrl.u32 %v2870, 7
          %v2872 = vsub.s32 %v2869, %v2871
          %v2873 = vrot.slane %v2865, %v2872
          %v2875 = vunpack.c.l.s4 1983009808
          %v2876 = vunpack.c.0.s8 %v2875
          %v2877 = vlaneseq
          %v2878 = vshrl.u32 %v2877, 7
          %v2879 = vsub.s32 %v2876, %v2878
          %v2880 = vrot.slane %v2866, %v2879
          %v2881 = vcombine.low %v2625, %v2689
          %v2882 = vcombine.high %v2625, %v2689
          %v2884 = vunpack.c.l.s4 1983009808
          %v2885 = vunpack.c.0.s8 %v2884
          %v2886 = vlaneseq
          %v2887 = vshrl.u32 %v2886, 7
          %v2888 = vsub.s32 %v2885, %v2887
          %v2889 = vrot.slane %v2881, %v2888
          %v2891 = vunpack.c.l.s4 1983009808
          %v2892 = vunpack.c.0.s8 %v2891
          %v2893 = vlaneseq
          %v2894 = vshrl.u32 %v2893, 7
          %v2895 = vsub.s32 %v2892, %v2894
          %v2896 = vrot.slane %v2882, %v2895
          %v2897 = vcombine.low %v2841, %v2857
          %v2898 = vcombine.high %v2841, %v2857
          %v2900 = vunpack.c.l.s4 1934713408
          %v2901 = vunpack.c.0.s8 %v2900
          %v2902 = vlaneseq
          %v2903 = vshrl.u32 %v2902, 7
          %v2904 = vsub.s32 %v2901, %v2903
          %v2905 = vrot.slane %v2897, %v2904
          %v2907 = vunpack.c.l.s4 1934713408
          %v2908 = vunpack.c.0.s8 %v2907
          %v2909 = vlaneseq
          %v2910 = vshrl.u32 %v2909, 7
          %v2911 = vsub.s32 %v2908, %v2910
          %v2912 = vrot.slane %v2898, %v2911
          %v2913 = vcombine.low %v2848, %v2864
          %v2914 = vcombine.high %v2848, %v2864
          %v2916 = vunpack.c.l.s4 1934713408
          %v2917 = vunpack.c.0.s8 %v2916
          %v2918 = vlaneseq
          %v2919 = vshrl.u32 %v2918, 7
          %v2920 = vsub.s32 %v2917, %v2919
          %v2921 = vrot.slane %v2913, %v2920
          %v2923 = vunpack.c.l.s4 1934713408
          %v2924 = vunpack.c.0.s8 %v2923
          %v2925 = vlaneseq
          %v2926 = vshrl.u32 %v2925, 7
          %v2927 = vsub.s32 %v2924, %v2926
          %v2928 = vrot.slane %v2914, %v2927
          %v2929 = vcombine.low %v2873, %v2889
          %v2930 = vcombine.high %v2873, %v2889
          %v2932 = vunpack.c.l.s4 1934713408
          %v2933 = vunpack.c.0.s8 %v2932
          %v2934 = vlaneseq
          %v2935 = vshrl.u32 %v2934, 7
          %v2936 = vsub.s32 %v2933, %v2935
          %v2937 = vrot.slane %v2929, %v2936
          %v2939 = vunpack.c.l.s4 1934713408
          %v2940 = vunpack.c.0.s8 %v2939
          %v2941 = vlaneseq
          %v2942 = vshrl.u32 %v2941, 7
          %v2943 = vsub.s32 %v2940, %v2942
          %v2944 = vrot.slane %v2930, %v2943
          %v2945 = vcombine.low %v2880, %v2896
          %v2946 = vcombine.high %v2880, %v2896
          %v2948 = vunpack.c.l.s4 1934713408
          %v2949 = vunpack.c.0.s8 %v2948
          %v2950 = vlaneseq
          %v2951 = vshrl.u32 %v2950, 7
          %v2952 = vsub.s32 %v2949, %v2951
          %v2953 = vrot.slane %v2945, %v2952
          %v2955 = vunpack.c.l.s4 1934713408
          %v2956 = vunpack.c.0.s8 %v2955
          %v2957 = vlaneseq
          %v2958 = vshrl.u32 %v2957, 7
          %v2959 = vsub.s32 %v2956, %v2958
          %v2960 = vrot.slane %v2946, %v2959
          %v2961 = vcombine.low %v2905, %v2937
          %v2962 = vcombine.high %v2905, %v2937
          %v2963 = vcombine.low %v2912, %v2944
          %v2964 = vcombine.high %v2912, %v2944
          %v2965 = vcombine.low %v2921, %v2953
          %v2966 = vcombine.high %v2921, %v2953
          %v2967 = vcombine.low %v2928, %v2960
          %v2968 = vcombine.high %v2928, %v2960
          %v2971 = vpack.i.b16 %v2961, %v2825
          %v2973 = vshrl.u32 %v2825, 16
          %v2974 = vshrl.u32 %v2961, 16
          %v2975 = vpack.i.b16 %v2974, %v2973
          %v2979 = vpack.i.b16 %v2962, %v2826
          %v2981 = vshrl.u32 %v2826, 16
          %v2982 = vshrl.u32 %v2962, 16
          %v2983 = vpack.i.b16 %v2982, %v2981
          %v2987 = vpack.i.b16 %v2963, %v2827
          %v2989 = vshrl.u32 %v2827, 16
          %v2990 = vshrl.u32 %v2963, 16
          %v2991 = vpack.i.b16 %v2990, %v2989
          %v2995 = vpack.i.b16 %v2964, %v2828
          %v2997 = vshrl.u32 %v2828, 16
          %v2998 = vshrl.u32 %v2964, 16
          %v2999 = vpack.i.b16 %v2998, %v2997
          %v3003 = vpack.i.b16 %v2965, %v2829
          %v3005 = vshrl.u32 %v2829, 16
          %v3006 = vshrl.u32 %v2965, 16
          %v3007 = vpack.i.b16 %v3006, %v3005
          %v3011 = vpack.i.b16 %v2966, %v2830
          %v3013 = vshrl.u32 %v2830, 16
          %v3014 = vshrl.u32 %v2966, 16
          %v3015 = vpack.i.b16 %v3014, %v3013
          %v3019 = vpack.i.b16 %v2967, %v2831
          %v3021 = vshrl.u32 %v2831, 16
          %v3022 = vshrl.u32 %v2967, 16
          %v3023 = vpack.i.b16 %v3022, %v3021
          %v3027 = vpack.i.b16 %v2968, %v2832
          %v3029 = vshrl.u32 %v2832, 16
          %v3030 = vshrl.u32 %v2968, 16
          %v3031 = vpack.i.b16 %v3030, %v3029
          %3033 = vst.msk [vmem:[#allocation5] sm:$0xff] %vm514, %v2971
          %3034 = vst.msk [vmem:[#allocation5 + $0x8] sm:$0xff] %vm514, %v2975
          %3035 = vst.msk [vmem:[#allocation5 + $0x10] sm:$0xff] %vm514, %v2979
          %3036 = vst.msk [vmem:[#allocation5 + $0x18] sm:$0xff] %vm514, %v2983
          %3037 = vst.msk [vmem:[#allocation5 + $0x20] sm:$0xff] %vm514, %v2987
          %3038 = vst.msk [vmem:[#allocation5 + $0x28] sm:$0xff] %vm514, %v2991
          %3039 = vst.msk [vmem:[#allocation5 + $0x30] sm:$0xff] %vm514, %v2995
          %3040 = vst.msk [vmem:[#allocation5 + $0x38] sm:$0xff] %vm514, %v2999
          %3041 = vst.msk [vmem:[#allocation5 + $0x40] sm:$0xff] %vm514, %v3003
          %3042 = vst.msk [vmem:[#allocation5 + $0x48] sm:$0xff] %vm514, %v3007
          %3043 = vst.msk [vmem:[#allocation5 + $0x50] sm:$0xff] %vm514, %v3011
          %3044 = vst.msk [vmem:[#allocation5 + $0x58] sm:$0xff] %vm514, %v3015
          %3045 = vst.msk [vmem:[#allocation5 + $0x60] sm:$0xff] %vm514, %v3019
          %3046 = vst.msk [vmem:[#allocation5 + $0x68] sm:$0xff] %vm514, %v3023
          %3047 = vst.msk [vmem:[#allocation5 + $0x70] sm:$0xff] %vm514, %v3027
          %3048 = vst.msk [vmem:[#allocation5 + $0x78] sm:$0xff] %vm514, %v3031
        $region92: #{criss_cross_attention.1} parent=55 // pred_fallthru
          _
        %v3049 = vld [vmem:[%s415] sm:$0xff]
        %v3050 = vld [vmem:[%s415 + $0x8] sm:$0xff]
        %v3051 = vld [vmem:[#allocation12] sm:$0xff]
        %v3052 = vpack.c.bf16 %v3051, %v3051
        %v3053 = vpack.c.bf16 %v3050, %v3049
        %v3054 = vld [vmem:[#allocation13] sm:$0xff]
        %3056 = vset.pattern.permute.xlu0 0
        %3057 = vperm.xlu0 %3056, %v3054
        %v3058 = vpop.permute.xlu0 %3057
        %vm3060 = vcmask 130048
        %v3062 = vsel %vm3060, %v3052, 0
        %3064 = vmatprep.subr.bf16.mxu0 0
        %3065 = vmatpush1.bf16.msra.mxu0 %v3053
        %3066 = vmatprep.subr.bf16.mxu0 0
        %3067 = vmatpush1.bf16.msra.mxu0 0
        %3068 = vmatprep.subr.bf16.mxu0 0
        %3069 = vmatpush1.bf16.msra.mxu0 0
        %3070 = vmatprep.subr.bf16.mxu0 0
        %3071 = vmatpush1.bf16.msra.mxu0 0
        %3072 = vmatprep.subr.bf16.mxu0 0
        %3073 = vmatpush1.bf16.msra.mxu0 0
        %3074 = vmatprep.subr.bf16.mxu0 0
        %3075 = vmatpush1.bf16.msra.mxu0 0
        %3076 = vmatprep.subr.bf16.mxu0 0
        %3077 = vmatpush1.bf16.msra.mxu0 0
        %3078 = vmatprep.subr.bf16.mxu0 0
        %3079 = vmatpush1.bf16.msra.mxu0 0
        %3080 = vmatprep.subr.bf16.mxu0 0
        %3081 = vmatpush1.bf16.msra.mxu0 0
        %3082 = vmatprep.subr.bf16.mxu0 0
        %3083 = vmatpush1.bf16.msra.mxu0 0
        %3084 = vmatprep.subr.bf16.mxu0 0
        %3085 = vmatpush1.bf16.msra.mxu0 0
        %3086 = vmatprep.subr.bf16.mxu0 0
        %3087 = vmatpush1.bf16.msra.mxu0 0
        %3088 = vmatprep.subr.bf16.mxu0 0
        %3089 = vmatpush1.bf16.msra.mxu0 0
        %3090 = vmatprep.subr.bf16.mxu0 0
        %3091 = vmatpush1.bf16.msra.mxu0 0
        %3092 = vmatprep.subr.bf16.mxu0 0
        %3093 = vmatpush1.bf16.msra.mxu0 0
        %3094 = vmatprep.subr.bf16.mxu0 0
        %3095 = vmatpush1.bf16.msra.mxu0 0
        %3096 = vmatprep.mubr.bf16.mxu0 0
        %3097 = vmatmul.mubr.bf16.gmra.mrb[0].mxu0 %v3062
        %v3098 = vpop.f32.mrb[0].mxu0
        %v3099 = vadd.f32 %v3058, %v3098
        %v3100 = vpop.f32.mrb[0].mxu0
        %v3101 = vpop.f32.mrb[0].mxu0
        %v3102 = vpop.f32.mrb[0].mxu0
        %3103 = vdwg.mxu0
        %3105 = vrot.lane.b32.xlu0 %v3099, 112
        %v3106 = vpop.permute.xlu0 %3105
        %3108 = vrot.lane.b32.xlu0 %v3099, 96
        %v3109 = vpop.permute.xlu0 %3108
        %3111 = vrot.lane.b32.xlu0 %v3099, 80
        %v3112 = vpop.permute.xlu0 %3111
        %3114 = vrot.lane.b32.xlu0 %v3099, 64
        %v3115 = vpop.permute.xlu0 %3114
        %3117 = vrot.lane.b32.xlu0 %v3099, 48
        %v3118 = vpop.permute.xlu0 %3117
        %3120 = vrot.lane.b32.xlu0 %v3099, 32
        %v3121 = vpop.permute.xlu0 %3120
        %3123 = vrot.lane.b32.xlu0 %v3099, 16
        %v3124 = vpop.permute.xlu0 %3123
        %v3126 = vcombine.low %v3099, %v3109
        %v3127 = vcombine.high %v3099, %v3109
        %v3129 = vunpack.c.l.s4 1983009808
        %v3130 = vunpack.c.0.s8 %v3129
        %v3131 = vlaneseq
        %v3132 = vshrl.u32 %v3131, 7
        %v3133 = vsub.s32 %v3130, %v3132
        %v3134 = vrot.slane %v3126, %v3133
        %v3136 = vunpack.c.l.s4 1983009808
        %v3137 = vunpack.c.0.s8 %v3136
        %v3138 = vlaneseq
        %v3139 = vshrl.u32 %v3138, 7
        %v3140 = vsub.s32 %v3137, %v3139
        %v3141 = vrot.slane %v3127, %v3140
        %v3142 = vcombine.low %v3106, %v3112
        %v3143 = vcombine.high %v3106, %v3112
        %v3145 = vunpack.c.l.s4 1983009808
        %v3146 = vunpack.c.0.s8 %v3145
        %v3147 = vlaneseq
        %v3148 = vshrl.u32 %v3147, 7
        %v3149 = vsub.s32 %v3146, %v3148
        %v3150 = vrot.slane %v3142, %v3149
        %v3152 = vunpack.c.l.s4 1983009808
        %v3153 = vunpack.c.0.s8 %v3152
        %v3154 = vlaneseq
        %v3155 = vshrl.u32 %v3154, 7
        %v3156 = vsub.s32 %v3153, %v3155
        %v3157 = vrot.slane %v3143, %v3156
        %v3158 = vcombine.low %v3115, %v3121
        %v3159 = vcombine.high %v3115, %v3121
        %v3161 = vunpack.c.l.s4 1983009808
        %v3162 = vunpack.c.0.s8 %v3161
        %v3163 = vlaneseq
        %v3164 = vshrl.u32 %v3163, 7
        %v3165 = vsub.s32 %v3162, %v3164
        %v3166 = vrot.slane %v3158, %v3165
        %v3168 = vunpack.c.l.s4 1983009808
        %v3169 = vunpack.c.0.s8 %v3168
        %v3170 = vlaneseq
        %v3171 = vshrl.u32 %v3170, 7
        %v3172 = vsub.s32 %v3169, %v3171
        %v3173 = vrot.slane %v3159, %v3172
        %v3174 = vcombine.low %v3118, %v3124
        %v3175 = vcombine.high %v3118, %v3124
        %v3177 = vunpack.c.l.s4 1983009808
        %v3178 = vunpack.c.0.s8 %v3177
        %v3179 = vlaneseq
        %v3180 = vshrl.u32 %v3179, 7
        %v3181 = vsub.s32 %v3178, %v3180
        %v3182 = vrot.slane %v3174, %v3181
        %v3184 = vunpack.c.l.s4 1983009808
        %v3185 = vunpack.c.0.s8 %v3184
        %v3186 = vlaneseq
        %v3187 = vshrl.u32 %v3186, 7
        %v3188 = vsub.s32 %v3185, %v3187
        %v3189 = vrot.slane %v3175, %v3188
        %v3190 = vcombine.low %v3134, %v3150
        %v3191 = vcombine.high %v3134, %v3150
        %v3193 = vunpack.c.l.s4 1934713408
        %v3194 = vunpack.c.0.s8 %v3193
        %v3195 = vlaneseq
        %v3196 = vshrl.u32 %v3195, 7
        %v3197 = vsub.s32 %v3194, %v3196
        %v3198 = vrot.slane %v3190, %v3197
        %v3200 = vunpack.c.l.s4 1934713408
        %v3201 = vunpack.c.0.s8 %v3200
        %v3202 = vlaneseq
        %v3203 = vshrl.u32 %v3202, 7
        %v3204 = vsub.s32 %v3201, %v3203
        %v3205 = vrot.slane %v3191, %v3204
        %v3206 = vcombine.low %v3141, %v3157
        %v3207 = vcombine.high %v3141, %v3157
        %v3209 = vunpack.c.l.s4 1934713408
        %v3210 = vunpack.c.0.s8 %v3209
        %v3211 = vlaneseq
        %v3212 = vshrl.u32 %v3211, 7
        %v3213 = vsub.s32 %v3210, %v3212
        %v3214 = vrot.slane %v3206, %v3213
        %v3216 = vunpack.c.l.s4 1934713408
        %v3217 = vunpack.c.0.s8 %v3216
        %v3218 = vlaneseq
        %v3219 = vshrl.u32 %v3218, 7
        %v3220 = vsub.s32 %v3217, %v3219
        %v3221 = vrot.slane %v3207, %v3220
        %v3222 = vcombine.low %v3166, %v3182
        %v3223 = vcombine.high %v3166, %v3182
        %v3225 = vunpack.c.l.s4 1934713408
        %v3226 = vunpack.c.0.s8 %v3225
        %v3227 = vlaneseq
        %v3228 = vshrl.u32 %v3227, 7
        %v3229 = vsub.s32 %v3226, %v3228
        %v3230 = vrot.slane %v3222, %v3229
        %v3232 = vunpack.c.l.s4 1934713408
        %v3233 = vunpack.c.0.s8 %v3232
        %v3234 = vlaneseq
        %v3235 = vshrl.u32 %v3234, 7
        %v3236 = vsub.s32 %v3233, %v3235
        %v3237 = vrot.slane %v3223, %v3236
        %v3238 = vcombine.low %v3173, %v3189
        %v3239 = vcombine.high %v3173, %v3189
        %v3241 = vunpack.c.l.s4 1934713408
        %v3242 = vunpack.c.0.s8 %v3241
        %v3243 = vlaneseq
        %v3244 = vshrl.u32 %v3243, 7
        %v3245 = vsub.s32 %v3242, %v3244
        %v3246 = vrot.slane %v3238, %v3245
        %v3248 = vunpack.c.l.s4 1934713408
        %v3249 = vunpack.c.0.s8 %v3248
        %v3250 = vlaneseq
        %v3251 = vshrl.u32 %v3250, 7
        %v3252 = vsub.s32 %v3249, %v3251
        %v3253 = vrot.slane %v3239, %v3252
        %v3254 = vcombine.low %v3198, %v3230
        %v3255 = vcombine.high %v3198, %v3230
        %v3256 = vcombine.low %v3205, %v3237
        %v3257 = vcombine.high %v3205, %v3237
        %v3258 = vcombine.low %v3214, %v3246
        %v3259 = vcombine.high %v3214, %v3246
        %v3260 = vcombine.low %v3221, %v3253
        %v3261 = vcombine.high %v3221, %v3253
        %v3262 = vpack.c.bf16 %v3254, %v3254
        %v3263 = vpack.c.bf16 %v3255, %v3255
        %v3264 = vpack.c.bf16 %v3256, %v3256
        %v3265 = vpack.c.bf16 %v3257, %v3257
        %v3266 = vpack.c.bf16 %v3258, %v3258
        %v3267 = vpack.c.bf16 %v3259, %v3259
        %v3268 = vpack.c.bf16 %v3260, %v3260
        %v3269 = vpack.c.bf16 %v3261, %v3261
        %v3270 = vcombine.low %v3262, %v3266
        %v3272 = vunpack.c.l.s4 1983009808
        %v3273 = vunpack.c.0.s8 %v3272
        %v3274 = vlaneseq
        %v3275 = vshrl.u32 %v3274, 7
        %v3276 = vsub.s32 %v3273, %v3275
        %v3277 = vrot.slane %v3270, %v3276
        %v3278 = vcombine.low %v3264, %v3268
        %v3280 = vunpack.c.l.s4 1983009808
        %v3281 = vunpack.c.0.s8 %v3280
        %v3282 = vlaneseq
        %v3283 = vshrl.u32 %v3282, 7
        %v3284 = vsub.s32 %v3281, %v3283
        %v3285 = vrot.slane %v3278, %v3284
        %v3286 = vcombine.low %v3277, %v3285
        %v3287 = vcombine.high %v3277, %v3285
        %v3289 = vunpack.c.l.s4 1934713408
        %v3290 = vunpack.c.0.s8 %v3289
        %v3291 = vlaneseq
        %v3292 = vshrl.u32 %v3291, 7
        %v3293 = vsub.s32 %v3290, %v3292
        %v3294 = vrot.slane %v3286, %v3293
        %v3296 = vunpack.c.l.s4 1934713408
        %v3297 = vunpack.c.0.s8 %v3296
        %v3298 = vlaneseq
        %v3299 = vshrl.u32 %v3298, 7
        %v3300 = vsub.s32 %v3297, %v3299
        %v3301 = vrot.slane %v3287, %v3300
        %v3302 = vcombine.high %v3294, 0
        %v3303 = vcombine.high %v3301, 0
        %v3304 = vcombine.low %v3263, %v3267
        %v3306 = vunpack.c.l.s4 1983009808
        %v3307 = vunpack.c.0.s8 %v3306
        %v3308 = vlaneseq
        %v3309 = vshrl.u32 %v3308, 7
        %v3310 = vsub.s32 %v3307, %v3309
        %v3311 = vrot.slane %v3304, %v3310
        %v3312 = vcombine.low %v3265, %v3269
        %v3314 = vunpack.c.l.s4 1983009808
        %v3315 = vunpack.c.0.s8 %v3314
        %v3316 = vlaneseq
        %v3317 = vshrl.u32 %v3316, 7
        %v3318 = vsub.s32 %v3315, %v3317
        %v3319 = vrot.slane %v3312, %v3318
        %v3320 = vcombine.low %v3311, %v3319
        %v3321 = vcombine.high %v3311, %v3319
        %v3323 = vunpack.c.l.s4 1934713408
        %v3324 = vunpack.c.0.s8 %v3323
        %v3325 = vlaneseq
        %v3326 = vshrl.u32 %v3325, 7
        %v3327 = vsub.s32 %v3324, %v3326
        %v3328 = vrot.slane %v3320, %v3327
        %v3330 = vunpack.c.l.s4 1934713408
        %v3331 = vunpack.c.0.s8 %v3330
        %v3332 = vlaneseq
        %v3333 = vshrl.u32 %v3332, 7
        %v3334 = vsub.s32 %v3331, %v3333
        %v3335 = vrot.slane %v3321, %v3334
        %v3336 = vcombine.high %v3328, 0
        %v3337 = vcombine.high %v3335, 0
        %v3340 = vpack.i.b16 %v3328, %v3294
        %v3342 = vshrl.u32 %v3294, 16
        %v3343 = vshrl.u32 %v3328, 16
        %v3344 = vpack.i.b16 %v3343, %v3342
        %v3348 = vpack.i.b16 %v3336, %v3302
        %v3350 = vshrl.u32 %v3302, 16
        %v3351 = vshrl.u32 %v3336, 16
        %v3352 = vpack.i.b16 %v3351, %v3350
        %v3356 = vpack.i.b16 %v3335, %v3301
        %v3358 = vshrl.u32 %v3301, 16
        %v3359 = vshrl.u32 %v3335, 16
        %v3360 = vpack.i.b16 %v3359, %v3358
        %v3364 = vpack.i.b16 %v3337, %v3303
        %v3366 = vshrl.u32 %v3303, 16
        %v3367 = vshrl.u32 %v3337, 16
        %v3368 = vpack.i.b16 %v3367, %v3366
        %3370 = vxpose.xlu0.c.b16.start [1/8] %v3262, 128
        %3371 = vxpose.xlu0.c.b16.cont [2/8] 0, 128
        %3372 = vxpose.xlu0.c.b16.cont [3/8] 0, 128
        %3373 = vxpose.xlu0.c.b16.cont [4/8] 0, 128
        %3374 = vxpose.xlu0.c.b16.cont [5/8] 0, 128
        %3375 = vxpose.xlu0.c.b16.cont [6/8] 0, 128
        %3376 = vxpose.xlu0.c.b16.cont [7/8] 0, 128
        %3377 = vxpose.xlu0.c.b16.end [8/8] 0, 128
        %v3378 = vpop.trf.xlu0
        %v3379 = vpop.trf.xlu0
        %v3380 = vpop.trf.xlu0
        %v3381 = vpop.trf.xlu0
        %v3382 = vpop.trf.xlu0
        %v3383 = vpop.trf.xlu0
        %v3384 = vpop.trf.xlu0
        %v3385 = vpop.trf.xlu0
        %3386 = vxpose.xlu0.c.b16.start [1/8] %v3263, 128
        %3387 = vxpose.xlu0.c.b16.cont [2/8] 0, 128
        %3388 = vxpose.xlu0.c.b16.cont [3/8] 0, 128
        %3389 = vxpose.xlu0.c.b16.cont [4/8] 0, 128
        %3390 = vxpose.xlu0.c.b16.cont [5/8] 0, 128
        %3391 = vxpose.xlu0.c.b16.cont [6/8] 0, 128
        %3392 = vxpose.xlu0.c.b16.cont [7/8] 0, 128
        %3393 = vxpose.xlu0.c.b16.end [8/8] 0, 128
        %v3394 = vpop.trf.xlu0
        %v3395 = vpop.trf.xlu0
        %v3396 = vpop.trf.xlu0
        %v3397 = vpop.trf.xlu0
        %v3398 = vpop.trf.xlu0
        %v3399 = vpop.trf.xlu0
        %v3400 = vpop.trf.xlu0
        %v3401 = vpop.trf.xlu0
        %3402 = vxpose.xlu0.c.b16.start [1/8] %v3264, 128
        %3403 = vxpose.xlu0.c.b16.cont [2/8] 0, 128
        %3404 = vxpose.xlu0.c.b16.cont [3/8] 0, 128
        %3405 = vxpose.xlu0.c.b16.cont [4/8] 0, 128
        %3406 = vxpose.xlu0.c.b16.cont [5/8] 0, 128
        %3407 = vxpose.xlu0.c.b16.cont [6/8] 0, 128
        %3408 = vxpose.xlu0.c.b16.cont [7/8] 0, 128
        %3409 = vxpose.xlu0.c.b16.end [8/8] 0, 128
        %v3410 = vpop.trf.xlu0
        %v3411 = vpop.trf.xlu0
        %v3412 = vpop.trf.xlu0
        %v3413 = vpop.trf.xlu0
        %v3414 = vpop.trf.xlu0
        %v3415 = vpop.trf.xlu0
        %v3416 = vpop.trf.xlu0
        %v3417 = vpop.trf.xlu0
        %3418 = vxpose.xlu0.c.b16.start [1/8] %v3265, 128
        %3419 = vxpose.xlu0.c.b16.cont [2/8] 0, 128
        %3420 = vxpose.xlu0.c.b16.cont [3/8] 0, 128
        %3421 = vxpose.xlu0.c.b16.cont [4/8] 0, 128
        %3422 = vxpose.xlu0.c.b16.cont [5/8] 0, 128
        %3423 = vxpose.xlu0.c.b16.cont [6/8] 0, 128
        %3424 = vxpose.xlu0.c.b16.cont [7/8] 0, 128
        %3425 = vxpose.xlu0.c.b16.end [8/8] 0, 128
        %v3426 = vpop.trf.xlu0
        %v3427 = vpop.trf.xlu0
        %v3428 = vpop.trf.xlu0
        %v3429 = vpop.trf.xlu0
        %v3430 = vpop.trf.xlu0
        %v3431 = vpop.trf.xlu0
        %v3432 = vpop.trf.xlu0
        %v3433 = vpop.trf.xlu0
        %3434 = vxpose.xlu0.c.b16.start [1/8] %v3266, 128
        %3435 = vxpose.xlu0.c.b16.cont [2/8] 0, 128
        %3436 = vxpose.xlu0.c.b16.cont [3/8] 0, 128
        %3437 = vxpose.xlu0.c.b16.cont [4/8] 0, 128
        %3438 = vxpose.xlu0.c.b16.cont [5/8] 0, 128
        %3439 = vxpose.xlu0.c.b16.cont [6/8] 0, 128
        %3440 = vxpose.xlu0.c.b16.cont [7/8] 0, 128
        %3441 = vxpose.xlu0.c.b16.end [8/8] 0, 128
        %v3442 = vpop.trf.xlu0
        %v3443 = vpop.trf.xlu0
        %v3444 = vpop.trf.xlu0
        %v3445 = vpop.trf.xlu0
        %v3446 = vpop.trf.xlu0
        %v3447 = vpop.trf.xlu0
        %v3448 = vpop.trf.xlu0
        %v3449 = vpop.trf.xlu0
        %3450 = vxpose.xlu0.c.b16.start [1/8] %v3267, 128
        %3451 = vxpose.xlu0.c.b16.cont [2/8] 0, 128
        %3452 = vxpose.xlu0.c.b16.cont [3/8] 0, 128
        %3453 = vxpose.xlu0.c.b16.cont [4/8] 0, 128
        %3454 = vxpose.xlu0.c.b16.cont [5/8] 0, 128
        %3455 = vxpose.xlu0.c.b16.cont [6/8] 0, 128
        %3456 = vxpose.xlu0.c.b16.cont [7/8] 0, 128
        %3457 = vxpose.xlu0.c.b16.end [8/8] 0, 128
        %v3458 = vpop.trf.xlu0
        %v3459 = vpop.trf.xlu0
        %v3460 = vpop.trf.xlu0
        %v3461 = vpop.trf.xlu0
        %v3462 = vpop.trf.xlu0
        %v3463 = vpop.trf.xlu0
        %v3464 = vpop.trf.xlu0
        %v3465 = vpop.trf.xlu0
        %3466 = vxpose.xlu0.c.b16.start [1/8] %v3268, 128
        %3467 = vxpose.xlu0.c.b16.cont [2/8] 0, 128
        %3468 = vxpose.xlu0.c.b16.cont [3/8] 0, 128
        %3469 = vxpose.xlu0.c.b16.cont [4/8] 0, 128
        %3470 = vxpose.xlu0.c.b16.cont [5/8] 0, 128
        %3471 = vxpose.xlu0.c.b16.cont [6/8] 0, 128
        %3472 = vxpose.xlu0.c.b16.cont [7/8] 0, 128
        %3473 = vxpose.xlu0.c.b16.end [8/8] 0, 128
        %v3474 = vpop.trf.xlu0
        %v3475 = vpop.trf.xlu0
        %v3476 = vpop.trf.xlu0
        %v3477 = vpop.trf.xlu0
        %v3478 = vpop.trf.xlu0
        %v3479 = vpop.trf.xlu0
        %v3480 = vpop.trf.xlu0
        %v3481 = vpop.trf.xlu0
        %3482 = vxpose.xlu0.c.b16.start [1/8] %v3269, 128
        %3483 = vxpose.xlu0.c.b16.cont [2/8] 0, 128
        %3484 = vxpose.xlu0.c.b16.cont [3/8] 0, 128
        %3485 = vxpose.xlu0.c.b16.cont [4/8] 0, 128
        %3486 = vxpose.xlu0.c.b16.cont [5/8] 0, 128
        %3487 = vxpose.xlu0.c.b16.cont [6/8] 0, 128
        %3488 = vxpose.xlu0.c.b16.cont [7/8] 0, 128
        %3489 = vxpose.xlu0.c.b16.end [8/8] 0, 128
        %v3490 = vpop.trf.xlu0
        %v3491 = vpop.trf.xlu0
        %v3492 = vpop.trf.xlu0
        %v3493 = vpop.trf.xlu0
        %v3494 = vpop.trf.xlu0
        %v3495 = vpop.trf.xlu0
        %v3496 = vpop.trf.xlu0
        %v3497 = vpop.trf.xlu0
        %v3500 = vpack.i.b16 %v3394, %v3378
        %v3502 = vshrl.u32 %v3378, 16
        %v3503 = vshrl.u32 %v3394, 16
        %v3504 = vpack.i.b16 %v3503, %v3502
        %v3508 = vpack.i.b16 %v3426, %v3410
        %v3510 = vshrl.u32 %v3410, 16
        %v3511 = vshrl.u32 %v3426, 16
        %v3512 = vpack.i.b16 %v3511, %v3510
        %v3516 = vpack.i.b16 %v3458, %v3442
        %v3518 = vshrl.u32 %v3442, 16
        %v3519 = vshrl.u32 %v3458, 16
        %v3520 = vpack.i.b16 %v3519, %v3518
        %v3524 = vpack.i.b16 %v3490, %v3474
        %v3526 = vshrl.u32 %v3474, 16
        %v3527 = vshrl.u32 %v3490, 16
        %v3528 = vpack.i.b16 %v3527, %v3526
        %v3530 = vcombine.low %v3500, %v3516
        %v3531 = vcombine.high %v3500, %v3516
        %v3533 = vunpack.c.l.s4 1983009808
        %v3534 = vunpack.c.0.s8 %v3533
        %v3535 = vlaneseq
        %v3536 = vshrl.u32 %v3535, 7
        %v3537 = vsub.s32 %v3534, %v3536
        %v3538 = vrot.slane %v3530, %v3537
        %v3540 = vunpack.c.l.s4 1983009808
        %v3541 = vunpack.c.0.s8 %v3540
        %v3542 = vlaneseq
        %v3543 = vshrl.u32 %v3542, 7
        %v3544 = vsub.s32 %v3541, %v3543
        %v3545 = vrot.slane %v3531, %v3544
        %v3546 = vcombine.low %v3508, %v3524
        %v3547 = vcombine.high %v3508, %v3524
        %v3549 = vunpack.c.l.s4 1983009808
        %v3550 = vunpack.c.0.s8 %v3549
        %v3551 = vlaneseq
        %v3552 = vshrl.u32 %v3551, 7
        %v3553 = vsub.s32 %v3550, %v3552
        %v3554 = vrot.slane %v3546, %v3553
        %v3556 = vunpack.c.l.s4 1983009808
        %v3557 = vunpack.c.0.s8 %v3556
        %v3558 = vlaneseq
        %v3559 = vshrl.u32 %v3558, 7
        %v3560 = vsub.s32 %v3557, %v3559
        %v3561 = vrot.slane %v3547, %v3560
        %v3562 = vcombine.low %v3538, %v3554
        %v3563 = vcombine.high %v3538, %v3554
        %v3565 = vunpack.c.l.s4 1934713408
        %v3566 = vunpack.c.0.s8 %v3565
        %v3567 = vlaneseq
        %v3568 = vshrl.u32 %v3567, 7
        %v3569 = vsub.s32 %v3566, %v3568
        %v3570 = vrot.slane %v3562, %v3569
        %v3572 = vunpack.c.l.s4 1934713408
        %v3573 = vunpack.c.0.s8 %v3572
        %v3574 = vlaneseq
        %v3575 = vshrl.u32 %v3574, 7
        %v3576 = vsub.s32 %v3573, %v3575
        %v3577 = vrot.slane %v3563, %v3576
        %v3578 = vcombine.low %v3545, %v3561
        %v3579 = vcombine.high %v3545, %v3561
        %v3581 = vunpack.c.l.s4 1934713408
        %v3582 = vunpack.c.0.s8 %v3581
        %v3583 = vlaneseq
        %v3584 = vshrl.u32 %v3583, 7
        %v3585 = vsub.s32 %v3582, %v3584
        %v3586 = vrot.slane %v3578, %v3585
        %v3588 = vunpack.c.l.s4 1934713408
        %v3589 = vunpack.c.0.s8 %v3588
        %v3590 = vlaneseq
        %v3591 = vshrl.u32 %v3590, 7
        %v3592 = vsub.s32 %v3589, %v3591
        %v3593 = vrot.slane %v3579, %v3592
        %v3594 = vcombine.high %v3570, 0
        %v3595 = vcombine.high %v3577, 0
        %v3596 = vcombine.high %v3586, 0
        %v3597 = vcombine.high %v3593, 0
        %v3598 = vcombine.low %v3504, %v3520
        %v3599 = vcombine.high %v3504, %v3520
        %v3601 = vunpack.c.l.s4 1983009808
        %v3602 = vunpack.c.0.s8 %v3601
        %v3603 = vlaneseq
        %v3604 = vshrl.u32 %v3603, 7
        %v3605 = vsub.s32 %v3602, %v3604
        %v3606 = vrot.slane %v3598, %v3605
        %v3608 = vunpack.c.l.s4 1983009808
        %v3609 = vunpack.c.0.s8 %v3608
        %v3610 = vlaneseq
        %v3611 = vshrl.u32 %v3610, 7
        %v3612 = vsub.s32 %v3609, %v3611
        %v3613 = vrot.slane %v3599, %v3612
        %v3614 = vcombine.low %v3512, %v3528
        %v3615 = vcombine.high %v3512, %v3528
        %v3617 = vunpack.c.l.s4 1983009808
        %v3618 = vunpack.c.0.s8 %v3617
        %v3619 = vlaneseq
        %v3620 = vshrl.u32 %v3619, 7
        %v3621 = vsub.s32 %v3618, %v3620
        %v3622 = vrot.slane %v3614, %v3621
        %v3624 = vunpack.c.l.s4 1983009808
        %v3625 = vunpack.c.0.s8 %v3624
        %v3626 = vlaneseq
        %v3627 = vshrl.u32 %v3626, 7
        %v3628 = vsub.s32 %v3625, %v3627
        %v3629 = vrot.slane %v3615, %v3628
        %v3630 = vcombine.low %v3606, %v3622
        %v3631 = vcombine.high %v3606, %v3622
        %v3633 = vunpack.c.l.s4 1934713408
        %v3634 = vunpack.c.0.s8 %v3633
        %v3635 = vlaneseq
        %v3636 = vshrl.u32 %v3635, 7
        %v3637 = vsub.s32 %v3634, %v3636
        %v3638 = vrot.slane %v3630, %v3637
        %v3640 = vunpack.c.l.s4 1934713408
        %v3641 = vunpack.c.0.s8 %v3640
        %v3642 = vlaneseq
        %v3643 = vshrl.u32 %v3642, 7
        %v3644 = vsub.s32 %v3641, %v3643
        %v3645 = vrot.slane %v3631, %v3644
        %v3646 = vcombine.low %v3613, %v3629
        %v3647 = vcombine.high %v3613, %v3629
        %v3649 = vunpack.c.l.s4 1934713408
        %v3650 = vunpack.c.0.s8 %v3649
        %v3651 = vlaneseq
        %v3652 = vshrl.u32 %v3651, 7
        %v3653 = vsub.s32 %v3650, %v3652
        %v3654 = vrot.slane %v3646, %v3653
        %v3656 = vunpack.c.l.s4 1934713408
        %v3657 = vunpack.c.0.s8 %v3656
        %v3658 = vlaneseq
        %v3659 = vshrl.u32 %v3658, 7
        %v3660 = vsub.s32 %v3657, %v3659
        %v3661 = vrot.slane %v3647, %v3660
        %v3662 = vcombine.high %v3638, 0
        %v3663 = vcombine.high %v3645, 0
        %v3664 = vcombine.high %v3654, 0
        %v3665 = vcombine.high %v3661, 0
        %v3666 = vld [vmem:[#allocation4] sm:$0xf]
        %v3667 = vld [vmem:[#allocation4 + $0x4] sm:$0xf]
        %v3668 = vld [vmem:[#allocation4 + $0x8] sm:$0xf]
        %v3669 = vld [vmem:[#allocation4 + $0xc] sm:$0xf]
        %v3670 = vld [vmem:[#allocation4 + $0x10] sm:$0xf]
        %v3671 = vld [vmem:[#allocation4 + $0x14] sm:$0xf]
        %v3672 = vld [vmem:[#allocation4 + $0x18] sm:$0xf]
        %v3673 = vld [vmem:[#allocation4 + $0x1c] sm:$0xf]
        %v3674 = vld [vmem:[#allocation4 + $0x20] sm:$0xf]
        %v3675 = vld [vmem:[#allocation4 + $0x24] sm:$0xf]
        %v3676 = vld [vmem:[#allocation4 + $0x28] sm:$0xf]
        %v3677 = vld [vmem:[#allocation4 + $0x2c] sm:$0xf]
        %v3678 = vld [vmem:[#allocation4 + $0x30] sm:$0xf]
        %v3679 = vld [vmem:[#allocation4 + $0x34] sm:$0xf]
        %v3680 = vld [vmem:[#allocation4 + $0x38] sm:$0xf]
        %v3681 = vld [vmem:[#allocation4 + $0x3c] sm:$0xf]
        %v3682 = vld [vmem:[#allocation5] sm:$0xff]
        %v3683 = vld [vmem:[#allocation5 + $0x8] sm:$0xff]
        %v3684 = vld [vmem:[#allocation5 + $0x10] sm:$0xff]
        %v3685 = vld [vmem:[#allocation5 + $0x18] sm:$0xff]
        %v3686 = vld [vmem:[#allocation5 + $0x20] sm:$0xff]
        %v3687 = vld [vmem:[#allocation5 + $0x28] sm:$0xff]
        %v3688 = vld [vmem:[#allocation5 + $0x30] sm:$0xff]
        %v3689 = vld [vmem:[#allocation5 + $0x38] sm:$0xff]
        %v3690 = vld [vmem:[#allocation5 + $0x40] sm:$0xff]
        %v3691 = vld [vmem:[#allocation5 + $0x48] sm:$0xff]
        %v3692 = vld [vmem:[#allocation5 + $0x50] sm:$0xff]
        %v3693 = vld [vmem:[#allocation5 + $0x58] sm:$0xff]
        %v3694 = vld [vmem:[#allocation5 + $0x60] sm:$0xff]
        %v3695 = vld [vmem:[#allocation5 + $0x68] sm:$0xff]
        %v3696 = vld [vmem:[#allocation5 + $0x70] sm:$0xff]
        %v3697 = vld [vmem:[#allocation5 + $0x78] sm:$0xff]
        %s3698 = smul.addr %s489, 4
        %s3699 = scalar_lea.vmem [#allocation2], %s3698
        %v3700 = vld [vmem:[%s3699] sm:$0xf]
        %v3701 = vld [vmem:[%s3699 + $0x4] sm:$0xf]
        %v3702 = vld [vmem:[%s3699 + $0x8] sm:$0xf]
        %v3703 = vld [vmem:[%s3699 + $0xc] sm:$0xf]
        %v3704 = vld [vmem:[%s3699 + $0x10] sm:$0xf]
        %v3705 = vld [vmem:[%s3699 + $0x14] sm:$0xf]
        %v3706 = vld [vmem:[%s3699 + $0x18] sm:$0xf]
        %v3707 = vld [vmem:[%s3699 + $0x1c] sm:$0xf]
        %s3708 = smul.addr %s489, 8
        %s3709 = scalar_lea.vmem [#allocation3], %s3708
        %v3710 = vld [vmem:[%s3709] sm:$0xff]
        %v3711 = vld [vmem:[%s3709 + $0x8] sm:$0xff]
        %v3712 = vld [vmem:[%s3709 + $0x10] sm:$0xff]
        %v3713 = vld [vmem:[%s3709 + $0x18] sm:$0xff]
        %v3714 = vld [vmem:[%s3709 + $0x20] sm:$0xff]
        %v3715 = vld [vmem:[%s3709 + $0x28] sm:$0xff]
        %v3716 = vld [vmem:[%s3709 + $0x30] sm:$0xff]
        %v3717 = vld [vmem:[%s3709 + $0x38] sm:$0xff]
        %3718 = vxpose.xlu0.c.b16.start [1/8] %v3570, 128
        %3719 = vxpose.xlu0.c.b16.cont [2/8] 0, 128
        %3720 = vxpose.xlu0.c.b16.cont [3/8] 0, 128
        %3721 = vxpose.xlu0.c.b16.cont [4/8] 0, 128
        %3722 = vxpose.xlu0.c.b16.cont [5/8] 0, 128
        %3723 = vxpose.xlu0.c.b16.cont [6/8] 0, 128
        %3724 = vxpose.xlu0.c.b16.cont [7/8] 0, 128
        %3725 = vxpose.xlu0.c.b16.end [8/8] 0, 128
        %v3726 = vpop.trf.xlu0
        %v3727 = vpop.trf.xlu0
        %v3728 = vpop.trf.xlu0
        %v3729 = vpop.trf.xlu0
        %v3730 = vpop.trf.xlu0
        %v3731 = vpop.trf.xlu0
        %v3732 = vpop.trf.xlu0
        %v3733 = vpop.trf.xlu0
        %3734 = vxpose.xlu0.c.b16.start [1/8] %v3638, 128
        %3735 = vxpose.xlu0.c.b16.cont [2/8] 0, 128
        %3736 = vxpose.xlu0.c.b16.cont [3/8] 0, 128
        %3737 = vxpose.xlu0.c.b16.cont [4/8] 0, 128
        %3738 = vxpose.xlu0.c.b16.cont [5/8] 0, 128
        %3739 = vxpose.xlu0.c.b16.cont [6/8] 0, 128
        %3740 = vxpose.xlu0.c.b16.cont [7/8] 0, 128
        %3741 = vxpose.xlu0.c.b16.end [8/8] 0, 128
        %v3742 = vpop.trf.xlu0
        %v3743 = vpop.trf.xlu0
        %v3744 = vpop.trf.xlu0
        %v3745 = vpop.trf.xlu0
        %v3746 = vpop.trf.xlu0
        %v3747 = vpop.trf.xlu0
        %v3748 = vpop.trf.xlu0
        %v3749 = vpop.trf.xlu0
        %3750 = vxpose.xlu0.c.b16.start [1/8] %v3594, 128
        %3751 = vxpose.xlu0.c.b16.cont [2/8] 0, 128
        %3752 = vxpose.xlu0.c.b16.cont [3/8] 0, 128
        %3753 = vxpose.xlu0.c.b16.cont [4/8] 0, 128
        %3754 = vxpose.xlu0.c.b16.cont [5/8] 0, 128
        %3755 = vxpose.xlu0.c.b16.cont [6/8] 0, 128
        %3756 = vxpose.xlu0.c.b16.cont [7/8] 0, 128
        %3757 = vxpose.xlu0.c.b16.end [8/8] 0, 128
        %v3758 = vpop.trf.xlu0
        %v3759 = vpop.trf.xlu0
        %v3760 = vpop.trf.xlu0
        %v3761 = vpop.trf.xlu0
        %v3762 = vpop.trf.xlu0
        %v3763 = vpop.trf.xlu0
        %v3764 = vpop.trf.xlu0
        %v3765 = vpop.trf.xlu0
        %3766 = vxpose.xlu0.c.b16.start [1/8] %v3662, 128
        %3767 = vxpose.xlu0.c.b16.cont [2/8] 0, 128
        %3768 = vxpose.xlu0.c.b16.cont [3/8] 0, 128
        %3769 = vxpose.xlu0.c.b16.cont [4/8] 0, 128
        %3770 = vxpose.xlu0.c.b16.cont [5/8] 0, 128
        %3771 = vxpose.xlu0.c.b16.cont [6/8] 0, 128
        %3772 = vxpose.xlu0.c.b16.cont [7/8] 0, 128
        %3773 = vxpose.xlu0.c.b16.end [8/8] 0, 128
        %v3774 = vpop.trf.xlu0
        %v3775 = vpop.trf.xlu0
        %v3776 = vpop.trf.xlu0
        %v3777 = vpop.trf.xlu0
        %v3778 = vpop.trf.xlu0
        %v3779 = vpop.trf.xlu0
        %v3780 = vpop.trf.xlu0
        %v3781 = vpop.trf.xlu0
        %3782 = vxpose.xlu0.c.b16.start [1/8] %v3577, 128
        %3783 = vxpose.xlu0.c.b16.cont [2/8] 0, 128
        %3784 = vxpose.xlu0.c.b16.cont [3/8] 0, 128
        %3785 = vxpose.xlu0.c.b16.cont [4/8] 0, 128
        %3786 = vxpose.xlu0.c.b16.cont [5/8] 0, 128
        %3787 = vxpose.xlu0.c.b16.cont [6/8] 0, 128
        %3788 = vxpose.xlu0.c.b16.cont [7/8] 0, 128
        %3789 = vxpose.xlu0.c.b16.end [8/8] 0, 128
        %v3790 = vpop.trf.xlu0
        %v3791 = vpop.trf.xlu0
        %v3792 = vpop.trf.xlu0
        %v3793 = vpop.trf.xlu0
        %v3794 = vpop.trf.xlu0
        %v3795 = vpop.trf.xlu0
        %v3796 = vpop.trf.xlu0
        %v3797 = vpop.trf.xlu0
        %3798 = vxpose.xlu0.c.b16.start [1/8] %v3645, 128
        %3799 = vxpose.xlu0.c.b16.cont [2/8] 0, 128
        %3800 = vxpose.xlu0.c.b16.cont [3/8] 0, 128
        %3801 = vxpose.xlu0.c.b16.cont [4/8] 0, 128
        %3802 = vxpose.xlu0.c.b16.cont [5/8] 0, 128
        %3803 = vxpose.xlu0.c.b16.cont [6/8] 0, 128
        %3804 = vxpose.xlu0.c.b16.cont [7/8] 0, 128
        %3805 = vxpose.xlu0.c.b16.end [8/8] 0, 128
        %v3806 = vpop.trf.xlu0
        %v3807 = vpop.trf.xlu0
        %v3808 = vpop.trf.xlu0
        %v3809 = vpop.trf.xlu0
        %v3810 = vpop.trf.xlu0
        %v3811 = vpop.trf.xlu0
        %v3812 = vpop.trf.xlu0
        %v3813 = vpop.trf.xlu0
        %3814 = vxpose.xlu0.c.b16.start [1/8] %v3595, 128
        %3815 = vxpose.xlu0.c.b16.cont [2/8] 0, 128
        %3816 = vxpose.xlu0.c.b16.cont [3/8] 0, 128
        %3817 = vxpose.xlu0.c.b16.cont [4/8] 0, 128
        %3818 = vxpose.xlu0.c.b16.cont [5/8] 0, 128
        %3819 = vxpose.xlu0.c.b16.cont [6/8] 0, 128
        %3820 = vxpose.xlu0.c.b16.cont [7/8] 0, 128
        %3821 = vxpose.xlu0.c.b16.end [8/8] 0, 128
        %v3822 = vpop.trf.xlu0
        %v3823 = vpop.trf.xlu0
        %v3824 = vpop.trf.xlu0
        %v3825 = vpop.trf.xlu0
        %v3826 = vpop.trf.xlu0
        %v3827 = vpop.trf.xlu0
        %v3828 = vpop.trf.xlu0
        %v3829 = vpop.trf.xlu0
        %3830 = vxpose.xlu0.c.b16.start [1/8] %v3663, 128
        %3831 = vxpose.xlu0.c.b16.cont [2/8] 0, 128
        %3832 = vxpose.xlu0.c.b16.cont [3/8] 0, 128
        %3833 = vxpose.xlu0.c.b16.cont [4/8] 0, 128
        %3834 = vxpose.xlu0.c.b16.cont [5/8] 0, 128
        %3835 = vxpose.xlu0.c.b16.cont [6/8] 0, 128
        %3836 = vxpose.xlu0.c.b16.cont [7/8] 0, 128
        %3837 = vxpose.xlu0.c.b16.end [8/8] 0, 128
        %v3838 = vpop.trf.xlu0
        %v3839 = vpop.trf.xlu0
        %v3840 = vpop.trf.xlu0
        %v3841 = vpop.trf.xlu0
        %v3842 = vpop.trf.xlu0
        %v3843 = vpop.trf.xlu0
        %v3844 = vpop.trf.xlu0
        %v3845 = vpop.trf.xlu0
        %3846 = vxpose.xlu0.c.b16.start [1/8] %v3586, 128
        %3847 = vxpose.xlu0.c.b16.cont [2/8] 0, 128
        %3848 = vxpose.xlu0.c.b16.cont [3/8] 0, 128
        %3849 = vxpose.xlu0.c.b16.cont [4/8] 0, 128
        %3850 = vxpose.xlu0.c.b16.cont [5/8] 0, 128
        %3851 = vxpose.xlu0.c.b16.cont [6/8] 0, 128
        %3852 = vxpose.xlu0.c.b16.cont [7/8] 0, 128
        %3853 = vxpose.xlu0.c.b16.end [8/8] 0, 128
        %v3854 = vpop.trf.xlu0
        %v3855 = vpop.trf.xlu0
        %v3856 = vpop.trf.xlu0
        %v3857 = vpop.trf.xlu0
        %v3858 = vpop.trf.xlu0
        %v3859 = vpop.trf.xlu0
        %v3860 = vpop.trf.xlu0
        %v3861 = vpop.trf.xlu0
        %3862 = vxpose.xlu0.c.b16.start [1/8] %v3654, 128
        %3863 = vxpose.xlu0.c.b16.cont [2/8] 0, 128
        %3864 = vxpose.xlu0.c.b16.cont [3/8] 0, 128
        %3865 = vxpose.xlu0.c.b16.cont [4/8] 0, 128
        %3866 = vxpose.xlu0.c.b16.cont [5/8] 0, 128
        %3867 = vxpose.xlu0.c.b16.cont [6/8] 0, 128
        %3868 = vxpose.xlu0.c.b16.cont [7/8] 0, 128
        %3869 = vxpose.xlu0.c.b16.end [8/8] 0, 128
        %v3870 = vpop.trf.xlu0
        %v3871 = vpop.trf.xlu0
        %v3872 = vpop.trf.xlu0
        %v3873 = vpop.trf.xlu0
        %v3874 = vpop.trf.xlu0
        %v3875 = vpop.trf.xlu0
        %v3876 = vpop.trf.xlu0
        %v3877 = vpop.trf.xlu0
        %3878 = vxpose.xlu0.c.b16.start [1/8] %v3596, 128
        %3879 = vxpose.xlu0.c.b16.cont [2/8] 0, 128
        %3880 = vxpose.xlu0.c.b16.cont [3/8] 0, 128
        %3881 = vxpose.xlu0.c.b16.cont [4/8] 0, 128
        %3882 = vxpose.xlu0.c.b16.cont [5/8] 0, 128
        %3883 = vxpose.xlu0.c.b16.cont [6/8] 0, 128
        %3884 = vxpose.xlu0.c.b16.cont [7/8] 0, 128
        %3885 = vxpose.xlu0.c.b16.end [8/8] 0, 128
        %v3886 = vpop.trf.xlu0
        %v3887 = vpop.trf.xlu0
        %v3888 = vpop.trf.xlu0
        %v3889 = vpop.trf.xlu0
        %v3890 = vpop.trf.xlu0
        %v3891 = vpop.trf.xlu0
        %v3892 = vpop.trf.xlu0
        %v3893 = vpop.trf.xlu0
        %3894 = vxpose.xlu0.c.b16.start [1/8] %v3664, 128
        %3895 = vxpose.xlu0.c.b16.cont [2/8] 0, 128
        %3896 = vxpose.xlu0.c.b16.cont [3/8] 0, 128
        %3897 = vxpose.xlu0.c.b16.cont [4/8] 0, 128
        %3898 = vxpose.xlu0.c.b16.cont [5/8] 0, 128
        %3899 = vxpose.xlu0.c.b16.cont [6/8] 0, 128
        %3900 = vxpose.xlu0.c.b16.cont [7/8] 0, 128
        %3901 = vxpose.xlu0.c.b16.end [8/8] 0, 128
        %v3902 = vpop.trf.xlu0
        %v3903 = vpop.trf.xlu0
        %v3904 = vpop.trf.xlu0
        %v3905 = vpop.trf.xlu0
        %v3906 = vpop.trf.xlu0
        %v3907 = vpop.trf.xlu0
        %v3908 = vpop.trf.xlu0
        %v3909 = vpop.trf.xlu0
        %3910 = vxpose.xlu0.c.b16.start [1/8] %v3593, 128
        %3911 = vxpose.xlu0.c.b16.cont [2/8] 0, 128
        %3912 = vxpose.xlu0.c.b16.cont [3/8] 0, 128
        %3913 = vxpose.xlu0.c.b16.cont [4/8] 0, 128
        %3914 = vxpose.xlu0.c.b16.cont [5/8] 0, 128
        %3915 = vxpose.xlu0.c.b16.cont [6/8] 0, 128
        %3916 = vxpose.xlu0.c.b16.cont [7/8] 0, 128
        %3917 = vxpose.xlu0.c.b16.end [8/8] 0, 128
        %v3918 = vpop.trf.xlu0
        %v3919 = vpop.trf.xlu0
        %v3920 = vpop.trf.xlu0
        %v3921 = vpop.trf.xlu0
        %v3922 = vpop.trf.xlu0
        %v3923 = vpop.trf.xlu0
        %v3924 = vpop.trf.xlu0
        %v3925 = vpop.trf.xlu0
        %3926 = vxpose.xlu0.c.b16.start [1/8] %v3661, 128
        %3927 = vxpose.xlu0.c.b16.cont [2/8] 0, 128
        %3928 = vxpose.xlu0.c.b16.cont [3/8] 0, 128
        %3929 = vxpose.xlu0.c.b16.cont [4/8] 0, 128
        %3930 = vxpose.xlu0.c.b16.cont [5/8] 0, 128
        %3931 = vxpose.xlu0.c.b16.cont [6/8] 0, 128
        %3932 = vxpose.xlu0.c.b16.cont [7/8] 0, 128
        %3933 = vxpose.xlu0.c.b16.end [8/8] 0, 128
        %v3934 = vpop.trf.xlu0
        %v3935 = vpop.trf.xlu0
        %v3936 = vpop.trf.xlu0
        %v3937 = vpop.trf.xlu0
        %v3938 = vpop.trf.xlu0
        %v3939 = vpop.trf.xlu0
        %v3940 = vpop.trf.xlu0
        %v3941 = vpop.trf.xlu0
        %3942 = vxpose.xlu0.c.b16.start [1/8] %v3597, 128
        %3943 = vxpose.xlu0.c.b16.cont [2/8] 0, 128
        %3944 = vxpose.xlu0.c.b16.cont [3/8] 0, 128
        %3945 = vxpose.xlu0.c.b16.cont [4/8] 0, 128
        %3946 = vxpose.xlu0.c.b16.cont [5/8] 0, 128
        %3947 = vxpose.xlu0.c.b16.cont [6/8] 0, 128
        %3948 = vxpose.xlu0.c.b16.cont [7/8] 0, 128
        %3949 = vxpose.xlu0.c.b16.end [8/8] 0, 128
        %v3950 = vpop.trf.xlu0
        %v3951 = vpop.trf.xlu0
        %v3952 = vpop.trf.xlu0
        %v3953 = vpop.trf.xlu0
        %v3954 = vpop.trf.xlu0
        %v3955 = vpop.trf.xlu0
        %v3956 = vpop.trf.xlu0
        %v3957 = vpop.trf.xlu0
        %3958 = vxpose.xlu0.c.b16.start [1/8] %v3665, 128
        %3959 = vxpose.xlu0.c.b16.cont [2/8] 0, 128
        %3960 = vxpose.xlu0.c.b16.cont [3/8] 0, 128
        %3961 = vxpose.xlu0.c.b16.cont [4/8] 0, 128
        %3962 = vxpose.xlu0.c.b16.cont [5/8] 0, 128
        %3963 = vxpose.xlu0.c.b16.cont [6/8] 0, 128
        %3964 = vxpose.xlu0.c.b16.cont [7/8] 0, 128
        %3965 = vxpose.xlu0.c.b16.end [8/8] 0, 128
        %v3966 = vpop.trf.xlu0
        %v3967 = vpop.trf.xlu0
        %v3968 = vpop.trf.xlu0
        %v3969 = vpop.trf.xlu0
        %v3970 = vpop.trf.xlu0
        %v3971 = vpop.trf.xlu0
        %v3972 = vpop.trf.xlu0
        %v3973 = vpop.trf.xlu0
        %vm3974 = vcmask 64512
        %v3976 = vsel %vm3974, %v3726, 0
        %vm3978 = vcmask 1043456
        %v3980 = vsel %vm3978, %v3666, 0
        %3982 = vmatprep.subr.bf16.mxu0 0
        %3983 = vmatpush1.bf16.msra.mxu0 %v3980
        %3984 = vmatprep.subr.bf16.mxu0 0
        %3985 = vmatpush1.bf16.msra.mxu0 0
        %3986 = vmatprep.subr.bf16.mxu0 0
        %3987 = vmatpush1.bf16.msra.mxu0 0
        %3988 = vmatprep.subr.bf16.mxu0 0
        %3989 = vmatpush1.bf16.msra.mxu0 0
        %3990 = vmatprep.subr.bf16.mxu0 0
        %3991 = vmatpush1.bf16.msra.mxu0 0
        %3992 = vmatprep.subr.bf16.mxu0 0
        %3993 = vmatpush1.bf16.msra.mxu0 0
        %3994 = vmatprep.subr.bf16.mxu0 0
        %3995 = vmatpush1.bf16.msra.mxu0 0
        %3996 = vmatprep.subr.bf16.mxu0 0
        %3997 = vmatpush1.bf16.msra.mxu0 0
        %3998 = vmatprep.subr.bf16.mxu0 0
        %3999 = vmatpush1.bf16.msra.mxu0 0
        %4000 = vmatprep.subr.bf16.mxu0 0
        %4001 = vmatpush1.bf16.msra.mxu0 0
        %4002 = vmatprep.subr.bf16.mxu0 0
        %4003 = vmatpush1.bf16.msra.mxu0 0
        %4004 = vmatprep.subr.bf16.mxu0 0
        %4005 = vmatpush1.bf16.msra.mxu0 0
        %4006 = vmatprep.subr.bf16.mxu0 0
        %4007 = vmatpush1.bf16.msra.mxu0 0
        %4008 = vmatprep.subr.bf16.mxu0 0
        %4009 = vmatpush1.bf16.msra.mxu0 0
        %4010 = vmatprep.subr.bf16.mxu0 0
        %4011 = vmatpush1.bf16.msra.mxu0 0
        %4012 = vmatprep.subr.bf16.mxu0 0
        %4013 = vmatpush1.bf16.msra.mxu0 0
        %4014 = vmatprep.mubr.bf16.mxu0 0
        %4015 = vmatmul.mubr.bf16.gmra.mrb[0].mxu0 %v3976
        %v4016 = vpop.f32.mrb[0].mxu0
        %v4017 = vadd.f32 0.0, %v4016
        %v4018 = vpop.f32.mrb[0].mxu0
        %v4019 = vpop.f32.mrb[0].mxu0
        %v4020 = vpop.f32.mrb[0].mxu0
        %4021 = vdwg.mxu0
        %v4023 = vsel %vm3974, %v3742, 0
        %v4026 = vsel %vm3978, %v3667, 0
        %4028 = vmatprep.subr.bf16.mxu0 0
        %4029 = vmatpush1.bf16.msra.mxu0 %v4026
        %4030 = vmatprep.subr.bf16.mxu0 0
        %4031 = vmatpush1.bf16.msra.mxu0 0
        %4032 = vmatprep.subr.bf16.mxu0 0
        %4033 = vmatpush1.bf16.msra.mxu0 0
        %4034 = vmatprep.subr.bf16.mxu0 0
        %4035 = vmatpush1.bf16.msra.mxu0 0
        %4036 = vmatprep.subr.bf16.mxu0 0
        %4037 = vmatpush1.bf16.msra.mxu0 0
        %4038 = vmatprep.subr.bf16.mxu0 0
        %4039 = vmatpush1.bf16.msra.mxu0 0
        %4040 = vmatprep.subr.bf16.mxu0 0
        %4041 = vmatpush1.bf16.msra.mxu0 0
        %4042 = vmatprep.subr.bf16.mxu0 0
        %4043 = vmatpush1.bf16.msra.mxu0 0
        %4044 = vmatprep.subr.bf16.mxu0 0
        %4045 = vmatpush1.bf16.msra.mxu0 0
        %4046 = vmatprep.subr.bf16.mxu0 0
        %4047 = vmatpush1.bf16.msra.mxu0 0
        %4048 = vmatprep.subr.bf16.mxu0 0
        %4049 = vmatpush1.bf16.msra.mxu0 0
        %4050 = vmatprep.subr.bf16.mxu0 0
        %4051 = vmatpush1.bf16.msra.mxu0 0
        %4052 = vmatprep.subr.bf16.mxu0 0
        %4053 = vmatpush1.bf16.msra.mxu0 0
        %4054 = vmatprep.subr.bf16.mxu0 0
        %4055 = vmatpush1.bf16.msra.mxu0 0
        %4056 = vmatprep.subr.bf16.mxu0 0
        %4057 = vmatpush1.bf16.msra.mxu0 0
        %4058 = vmatprep.subr.bf16.mxu0 0
        %4059 = vmatpush1.bf16.msra.mxu0 0
        %4060 = vmatprep.mubr.bf16.mxu0 0
        %4061 = vmatmul.mubr.bf16.gmra.mrb[0].mxu0 %v4023
        %v4062 = vpop.f32.mrb[0].mxu0
        %v4063 = vadd.f32 0.0, %v4062
        %v4064 = vpop.f32.mrb[0].mxu0
        %v4065 = vpop.f32.mrb[0].mxu0
        %v4066 = vpop.f32.mrb[0].mxu0
        %4067 = vdwg.mxu0
        %v4069 = vsel %vm3974, %v3758, 0
        %v4072 = vsel %vm3978, %v3668, 0
        %4074 = vmatprep.subr.bf16.mxu0 0
        %4075 = vmatpush1.bf16.msra.mxu0 %v4072
        %4076 = vmatprep.subr.bf16.mxu0 0
        %4077 = vmatpush1.bf16.msra.mxu0 0
        %4078 = vmatprep.subr.bf16.mxu0 0
        %4079 = vmatpush1.bf16.msra.mxu0 0
        %4080 = vmatprep.subr.bf16.mxu0 0
        %4081 = vmatpush1.bf16.msra.mxu0 0
        %4082 = vmatprep.subr.bf16.mxu0 0
        %4083 = vmatpush1.bf16.msra.mxu0 0
        %4084 = vmatprep.subr.bf16.mxu0 0
        %4085 = vmatpush1.bf16.msra.mxu0 0
        %4086 = vmatprep.subr.bf16.mxu0 0
        %4087 = vmatpush1.bf16.msra.mxu0 0
        %4088 = vmatprep.subr.bf16.mxu0 0
        %4089 = vmatpush1.bf16.msra.mxu0 0
        %4090 = vmatprep.subr.bf16.mxu0 0
        %4091 = vmatpush1.bf16.msra.mxu0 0
        %4092 = vmatprep.subr.bf16.mxu0 0
        %4093 = vmatpush1.bf16.msra.mxu0 0
        %4094 = vmatprep.subr.bf16.mxu0 0
        %4095 = vmatpush1.bf16.msra.mxu0 0
        %4096 = vmatprep.subr.bf16.mxu0 0
        %4097 = vmatpush1.bf16.msra.mxu0 0
        %4098 = vmatprep.subr.bf16.mxu0 0
        %4099 = vmatpush1.bf16.msra.mxu0 0
        %4100 = vmatprep.subr.bf16.mxu0 0
        %4101 = vmatpush1.bf16.msra.mxu0 0
        %4102 = vmatprep.subr.bf16.mxu0 0
        %4103 = vmatpush1.bf16.msra.mxu0 0
        %4104 = vmatprep.subr.bf16.mxu0 0
        %4105 = vmatpush1.bf16.msra.mxu0 0
        %4106 = vmatprep.mubr.bf16.mxu0 0
        %4107 = vmatmul.mubr.bf16.gmra.mrb[0].mxu0 %v4069
        %v4108 = vpop.f32.mrb[0].mxu0
        %v4109 = vadd.f32 0.0, %v4108
        %v4110 = vpop.f32.mrb[0].mxu0
        %v4111 = vpop.f32.mrb[0].mxu0
        %v4112 = vpop.f32.mrb[0].mxu0
        %4113 = vdwg.mxu0
        %v4115 = vsel %vm3974, %v3774, 0
        %v4118 = vsel %vm3978, %v3669, 0
        %4120 = vmatprep.subr.bf16.mxu0 0
        %4121 = vmatpush1.bf16.msra.mxu0 %v4118
        %4122 = vmatprep.subr.bf16.mxu0 0
        %4123 = vmatpush1.bf16.msra.mxu0 0
        %4124 = vmatprep.subr.bf16.mxu0 0
        %4125 = vmatpush1.bf16.msra.mxu0 0
        %4126 = vmatprep.subr.bf16.mxu0 0
        %4127 = vmatpush1.bf16.msra.mxu0 0
        %4128 = vmatprep.subr.bf16.mxu0 0
        %4129 = vmatpush1.bf16.msra.mxu0 0
        %4130 = vmatprep.subr.bf16.mxu0 0
        %4131 = vmatpush1.bf16.msra.mxu0 0
        %4132 = vmatprep.subr.bf16.mxu0 0
        %4133 = vmatpush1.bf16.msra.mxu0 0
        %4134 = vmatprep.subr.bf16.mxu0 0
        %4135 = vmatpush1.bf16.msra.mxu0 0
        %4136 = vmatprep.subr.bf16.mxu0 0
        %4137 = vmatpush1.bf16.msra.mxu0 0
        %4138 = vmatprep.subr.bf16.mxu0 0
        %4139 = vmatpush1.bf16.msra.mxu0 0
        %4140 = vmatprep.subr.bf16.mxu0 0
        %4141 = vmatpush1.bf16.msra.mxu0 0
        %4142 = vmatprep.subr.bf16.mxu0 0
        %4143 = vmatpush1.bf16.msra.mxu0 0
        %4144 = vmatprep.subr.bf16.mxu0 0
        %4145 = vmatpush1.bf16.msra.mxu0 0
        %4146 = vmatprep.subr.bf16.mxu0 0
        %4147 = vmatpush1.bf16.msra.mxu0 0
        %4148 = vmatprep.subr.bf16.mxu0 0
        %4149 = vmatpush1.bf16.msra.mxu0 0
        %4150 = vmatprep.subr.bf16.mxu0 0
        %4151 = vmatpush1.bf16.msra.mxu0 0
        %4152 = vmatprep.mubr.bf16.mxu0 0
        %4153 = vmatmul.mubr.bf16.gmra.mrb[0].mxu0 %v4115
        %v4154 = vpop.f32.mrb[0].mxu0
        %v4155 = vadd.f32 0.0, %v4154
        %v4156 = vpop.f32.mrb[0].mxu0
        %v4157 = vpop.f32.mrb[0].mxu0
        %v4158 = vpop.f32.mrb[0].mxu0
        %4159 = vdwg.mxu0
        %v4161 = vsel %vm3974, %v3790, 0
        %v4164 = vsel %vm3978, %v3670, 0
        %4166 = vmatprep.subr.bf16.mxu0 0
        %4167 = vmatpush1.bf16.msra.mxu0 %v4164
        %4168 = vmatprep.subr.bf16.mxu0 0
        %4169 = vmatpush1.bf16.msra.mxu0 0
        %4170 = vmatprep.subr.bf16.mxu0 0
        %4171 = vmatpush1.bf16.msra.mxu0 0
        %4172 = vmatprep.subr.bf16.mxu0 0
        %4173 = vmatpush1.bf16.msra.mxu0 0
        %4174 = vmatprep.subr.bf16.mxu0 0
        %4175 = vmatpush1.bf16.msra.mxu0 0
        %4176 = vmatprep.subr.bf16.mxu0 0
        %4177 = vmatpush1.bf16.msra.mxu0 0
        %4178 = vmatprep.subr.bf16.mxu0 0
        %4179 = vmatpush1.bf16.msra.mxu0 0
        %4180 = vmatprep.subr.bf16.mxu0 0
        %4181 = vmatpush1.bf16.msra.mxu0 0
        %4182 = vmatprep.subr.bf16.mxu0 0
        %4183 = vmatpush1.bf16.msra.mxu0 0
        %4184 = vmatprep.subr.bf16.mxu0 0
        %4185 = vmatpush1.bf16.msra.mxu0 0
        %4186 = vmatprep.subr.bf16.mxu0 0
        %4187 = vmatpush1.bf16.msra.mxu0 0
        %4188 = vmatprep.subr.bf16.mxu0 0
        %4189 = vmatpush1.bf16.msra.mxu0 0
        %4190 = vmatprep.subr.bf16.mxu0 0
        %4191 = vmatpush1.bf16.msra.mxu0 0
        %4192 = vmatprep.subr.bf16.mxu0 0
        %4193 = vmatpush1.bf16.msra.mxu0 0
        %4194 = vmatprep.subr.bf16.mxu0 0
        %4195 = vmatpush1.bf16.msra.mxu0 0
        %4196 = vmatprep.subr.bf16.mxu0 0
        %4197 = vmatpush1.bf16.msra.mxu0 0
        %4198 = vmatprep.mubr.bf16.mxu0 0
        %4199 = vmatmul.mubr.bf16.gmra.mrb[0].mxu0 %v4161
        %v4200 = vpop.f32.mrb[0].mxu0
        %v4201 = vadd.f32 0.0, %v4200
        %v4202 = vpop.f32.mrb[0].mxu0
        %v4203 = vpop.f32.mrb[0].mxu0
        %v4204 = vpop.f32.mrb[0].mxu0
        %4205 = vdwg.mxu0
        %v4207 = vsel %vm3974, %v3806, 0
        %v4210 = vsel %vm3978, %v3671, 0
        %4212 = vmatprep.subr.bf16.mxu0 0
        %4213 = vmatpush1.bf16.msra.mxu0 %v4210
        %4214 = vmatprep.subr.bf16.mxu0 0
        %4215 = vmatpush1.bf16.msra.mxu0 0
        %4216 = vmatprep.subr.bf16.mxu0 0
        %4217 = vmatpush1.bf16.msra.mxu0 0
        %4218 = vmatprep.subr.bf16.mxu0 0
        %4219 = vmatpush1.bf16.msra.mxu0 0
        %4220 = vmatprep.subr.bf16.mxu0 0
        %4221 = vmatpush1.bf16.msra.mxu0 0
        %4222 = vmatprep.subr.bf16.mxu0 0
        %4223 = vmatpush1.bf16.msra.mxu0 0
        %4224 = vmatprep.subr.bf16.mxu0 0
        %4225 = vmatpush1.bf16.msra.mxu0 0
        %4226 = vmatprep.subr.bf16.mxu0 0
        %4227 = vmatpush1.bf16.msra.mxu0 0
        %4228 = vmatprep.subr.bf16.mxu0 0
        %4229 = vmatpush1.bf16.msra.mxu0 0
        %4230 = vmatprep.subr.bf16.mxu0 0
        %4231 = vmatpush1.bf16.msra.mxu0 0
        %4232 = vmatprep.subr.bf16.mxu0 0
        %4233 = vmatpush1.bf16.msra.mxu0 0
        %4234 = vmatprep.subr.bf16.mxu0 0
        %4235 = vmatpush1.bf16.msra.mxu0 0
        %4236 = vmatprep.subr.bf16.mxu0 0
        %4237 = vmatpush1.bf16.msra.mxu0 0
        %4238 = vmatprep.subr.bf16.mxu0 0
        %4239 = vmatpush1.bf16.msra.mxu0 0
        %4240 = vmatprep.subr.bf16.mxu0 0
        %4241 = vmatpush1.bf16.msra.mxu0 0
        %4242 = vmatprep.subr.bf16.mxu0 0
        %4243 = vmatpush1.bf16.msra.mxu0 0
        %4244 = vmatprep.mubr.bf16.mxu0 0
        %4245 = vmatmul.mubr.bf16.gmra.mrb[0].mxu0 %v4207
        %v4246 = vpop.f32.mrb[0].mxu0
        %v4247 = vadd.f32 0.0, %v4246
        %v4248 = vpop.f32.mrb[0].mxu0
        %v4249 = vpop.f32.mrb[0].mxu0
        %v4250 = vpop.f32.mrb[0].mxu0
        %4251 = vdwg.mxu0
        %v4253 = vsel %vm3974, %v3822, 0
        %v4256 = vsel %vm3978, %v3672, 0
        %4258 = vmatprep.subr.bf16.mxu0 0
        %4259 = vmatpush1.bf16.msra.mxu0 %v4256
        %4260 = vmatprep.subr.bf16.mxu0 0
        %4261 = vmatpush1.bf16.msra.mxu0 0
        %4262 = vmatprep.subr.bf16.mxu0 0
        %4263 = vmatpush1.bf16.msra.mxu0 0
        %4264 = vmatprep.subr.bf16.mxu0 0
        %4265 = vmatpush1.bf16.msra.mxu0 0
        %4266 = vmatprep.subr.bf16.mxu0 0
        %4267 = vmatpush1.bf16.msra.mxu0 0
        %4268 = vmatprep.subr.bf16.mxu0 0
        %4269 = vmatpush1.bf16.msra.mxu0 0
        %4270 = vmatprep.subr.bf16.mxu0 0
        %4271 = vmatpush1.bf16.msra.mxu0 0
        %4272 = vmatprep.subr.bf16.mxu0 0
        %4273 = vmatpush1.bf16.msra.mxu0 0
        %4274 = vmatprep.subr.bf16.mxu0 0
        %4275 = vmatpush1.bf16.msra.mxu0 0
        %4276 = vmatprep.subr.bf16.mxu0 0
        %4277 = vmatpush1.bf16.msra.mxu0 0
        %4278 = vmatprep.subr.bf16.mxu0 0
        %4279 = vmatpush1.bf16.msra.mxu0 0
        %4280 = vmatprep.subr.bf16.mxu0 0
        %4281 = vmatpush1.bf16.msra.mxu0 0
        %4282 = vmatprep.subr.bf16.mxu0 0
        %4283 = vmatpush1.bf16.msra.mxu0 0
        %4284 = vmatprep.subr.bf16.mxu0 0
        %4285 = vmatpush1.bf16.msra.mxu0 0
        %4286 = vmatprep.subr.bf16.mxu0 0
        %4287 = vmatpush1.bf16.msra.mxu0 0
        %4288 = vmatprep.subr.bf16.mxu0 0
        %4289 = vmatpush1.bf16.msra.mxu0 0
        %4290 = vmatprep.mubr.bf16.mxu0 0
        %4291 = vmatmul.mubr.bf16.gmra.mrb[0].mxu0 %v4253
        %v4292 = vpop.f32.mrb[0].mxu0
        %v4293 = vadd.f32 0.0, %v4292
        %v4294 = vpop.f32.mrb[0].mxu0
        %v4295 = vpop.f32.mrb[0].mxu0
        %v4296 = vpop.f32.mrb[0].mxu0
        %4297 = vdwg.mxu0
        %v4299 = vsel %vm3974, %v3838, 0
        %v4302 = vsel %vm3978, %v3673, 0
        %4304 = vmatprep.subr.bf16.mxu0 0
        %4305 = vmatpush1.bf16.msra.mxu0 %v4302
        %4306 = vmatprep.subr.bf16.mxu0 0
        %4307 = vmatpush1.bf16.msra.mxu0 0
        %4308 = vmatprep.subr.bf16.mxu0 0
        %4309 = vmatpush1.bf16.msra.mxu0 0
        %4310 = vmatprep.subr.bf16.mxu0 0
        %4311 = vmatpush1.bf16.msra.mxu0 0
        %4312 = vmatprep.subr.bf16.mxu0 0
        %4313 = vmatpush1.bf16.msra.mxu0 0
        %4314 = vmatprep.subr.bf16.mxu0 0
        %4315 = vmatpush1.bf16.msra.mxu0 0
        %4316 = vmatprep.subr.bf16.mxu0 0
        %4317 = vmatpush1.bf16.msra.mxu0 0
        %4318 = vmatprep.subr.bf16.mxu0 0
        %4319 = vmatpush1.bf16.msra.mxu0 0
        %4320 = vmatprep.subr.bf16.mxu0 0
        %4321 = vmatpush1.bf16.msra.mxu0 0
        %4322 = vmatprep.subr.bf16.mxu0 0
        %4323 = vmatpush1.bf16.msra.mxu0 0
        %4324 = vmatprep.subr.bf16.mxu0 0
        %4325 = vmatpush1.bf16.msra.mxu0 0
        %4326 = vmatprep.subr.bf16.mxu0 0
        %4327 = vmatpush1.bf16.msra.mxu0 0
        %4328 = vmatprep.subr.bf16.mxu0 0
        %4329 = vmatpush1.bf16.msra.mxu0 0
        %4330 = vmatprep.subr.bf16.mxu0 0
        %4331 = vmatpush1.bf16.msra.mxu0 0
        %4332 = vmatprep.subr.bf16.mxu0 0
        %4333 = vmatpush1.bf16.msra.mxu0 0
        %4334 = vmatprep.subr.bf16.mxu0 0
        %4335 = vmatpush1.bf16.msra.mxu0 0
        %4336 = vmatprep.mubr.bf16.mxu0 0
        %4337 = vmatmul.mubr.bf16.gmra.mrb[0].mxu0 %v4299
        %v4338 = vpop.f32.mrb[0].mxu0
        %v4339 = vadd.f32 0.0, %v4338
        %v4340 = vpop.f32.mrb[0].mxu0
        %v4341 = vpop.f32.mrb[0].mxu0
        %v4342 = vpop.f32.mrb[0].mxu0
        %4343 = vdwg.mxu0
        %v4345 = vsel %vm3974, %v3854, 0
        %v4348 = vsel %vm3978, %v3674, 0
        %4350 = vmatprep.subr.bf16.mxu0 0
        %4351 = vmatpush1.bf16.msra.mxu0 %v4348
        %4352 = vmatprep.subr.bf16.mxu0 0
        %4353 = vmatpush1.bf16.msra.mxu0 0
        %4354 = vmatprep.subr.bf16.mxu0 0
        %4355 = vmatpush1.bf16.msra.mxu0 0
        %4356 = vmatprep.subr.bf16.mxu0 0
        %4357 = vmatpush1.bf16.msra.mxu0 0
        %4358 = vmatprep.subr.bf16.mxu0 0
        %4359 = vmatpush1.bf16.msra.mxu0 0
        %4360 = vmatprep.subr.bf16.mxu0 0
        %4361 = vmatpush1.bf16.msra.mxu0 0
        %4362 = vmatprep.subr.bf16.mxu0 0
        %4363 = vmatpush1.bf16.msra.mxu0 0
        %4364 = vmatprep.subr.bf16.mxu0 0
        %4365 = vmatpush1.bf16.msra.mxu0 0
        %4366 = vmatprep.subr.bf16.mxu0 0
        %4367 = vmatpush1.bf16.msra.mxu0 0
        %4368 = vmatprep.subr.bf16.mxu0 0
        %4369 = vmatpush1.bf16.msra.mxu0 0
        %4370 = vmatprep.subr.bf16.mxu0 0
        %4371 = vmatpush1.bf16.msra.mxu0 0
        %4372 = vmatprep.subr.bf16.mxu0 0
        %4373 = vmatpush1.bf16.msra.mxu0 0
        %4374 = vmatprep.subr.bf16.mxu0 0
        %4375 = vmatpush1.bf16.msra.mxu0 0
        %4376 = vmatprep.subr.bf16.mxu0 0
        %4377 = vmatpush1.bf16.msra.mxu0 0
        %4378 = vmatprep.subr.bf16.mxu0 0
        %4379 = vmatpush1.bf16.msra.mxu0 0
        %4380 = vmatprep.subr.bf16.mxu0 0
        %4381 = vmatpush1.bf16.msra.mxu0 0
        %4382 = vmatprep.mubr.bf16.mxu0 0
        %4383 = vmatmul.mubr.bf16.gmra.mrb[0].mxu0 %v4345
        %v4384 = vpop.f32.mrb[0].mxu0
        %v4385 = vadd.f32 0.0, %v4384
        %v4386 = vpop.f32.mrb[0].mxu0
        %v4387 = vpop.f32.mrb[0].mxu0
        %v4388 = vpop.f32.mrb[0].mxu0
        %4389 = vdwg.mxu0
        %v4391 = vsel %vm3974, %v3870, 0
        %v4394 = vsel %vm3978, %v3675, 0
        %4396 = vmatprep.subr.bf16.mxu0 0
        %4397 = vmatpush1.bf16.msra.mxu0 %v4394
        %4398 = vmatprep.subr.bf16.mxu0 0
        %4399 = vmatpush1.bf16.msra.mxu0 0
        %4400 = vmatprep.subr.bf16.mxu0 0
        %4401 = vmatpush1.bf16.msra.mxu0 0
        %4402 = vmatprep.subr.bf16.mxu0 0
        %4403 = vmatpush1.bf16.msra.mxu0 0
        %4404 = vmatprep.subr.bf16.mxu0 0
        %4405 = vmatpush1.bf16.msra.mxu0 0
        %4406 = vmatprep.subr.bf16.mxu0 0
        %4407 = vmatpush1.bf16.msra.mxu0 0
        %4408 = vmatprep.subr.bf16.mxu0 0
        %4409 = vmatpush1.bf16.msra.mxu0 0
        %4410 = vmatprep.subr.bf16.mxu0 0
        %4411 = vmatpush1.bf16.msra.mxu0 0
        %4412 = vmatprep.subr.bf16.mxu0 0
        %4413 = vmatpush1.bf16.msra.mxu0 0
        %4414 = vmatprep.subr.bf16.mxu0 0
        %4415 = vmatpush1.bf16.msra.mxu0 0
        %4416 = vmatprep.subr.bf16.mxu0 0
        %4417 = vmatpush1.bf16.msra.mxu0 0
        %4418 = vmatprep.subr.bf16.mxu0 0
        %4419 = vmatpush1.bf16.msra.mxu0 0
        %4420 = vmatprep.subr.bf16.mxu0 0
        %4421 = vmatpush1.bf16.msra.mxu0 0
        %4422 = vmatprep.subr.bf16.mxu0 0
        %4423 = vmatpush1.bf16.msra.mxu0 0
        %4424 = vmatprep.subr.bf16.mxu0 0
        %4425 = vmatpush1.bf16.msra.mxu0 0
        %4426 = vmatprep.subr.bf16.mxu0 0
        %4427 = vmatpush1.bf16.msra.mxu0 0
        %4428 = vmatprep.mubr.bf16.mxu0 0
        %4429 = vmatmul.mubr.bf16.gmra.mrb[0].mxu0 %v4391
        %v4430 = vpop.f32.mrb[0].mxu0
        %v4431 = vadd.f32 0.0, %v4430
        %v4432 = vpop.f32.mrb[0].mxu0
        %v4433 = vpop.f32.mrb[0].mxu0
        %v4434 = vpop.f32.mrb[0].mxu0
        %4435 = vdwg.mxu0
        %v4437 = vsel %vm3974, %v3886, 0
        %v4440 = vsel %vm3978, %v3676, 0
        %4442 = vmatprep.subr.bf16.mxu0 0
        %4443 = vmatpush1.bf16.msra.mxu0 %v4440
        %4444 = vmatprep.subr.bf16.mxu0 0
        %4445 = vmatpush1.bf16.msra.mxu0 0
        %4446 = vmatprep.subr.bf16.mxu0 0
        %4447 = vmatpush1.bf16.msra.mxu0 0
        %4448 = vmatprep.subr.bf16.mxu0 0
        %4449 = vmatpush1.bf16.msra.mxu0 0
        %4450 = vmatprep.subr.bf16.mxu0 0
        %4451 = vmatpush1.bf16.msra.mxu0 0
        %4452 = vmatprep.subr.bf16.mxu0 0
        %4453 = vmatpush1.bf16.msra.mxu0 0
        %4454 = vmatprep.subr.bf16.mxu0 0
        %4455 = vmatpush1.bf16.msra.mxu0 0
        %4456 = vmatprep.subr.bf16.mxu0 0
        %4457 = vmatpush1.bf16.msra.mxu0 0
        %4458 = vmatprep.subr.bf16.mxu0 0
        %4459 = vmatpush1.bf16.msra.mxu0 0
        %4460 = vmatprep.subr.bf16.mxu0 0
        %4461 = vmatpush1.bf16.msra.mxu0 0
        %4462 = vmatprep.subr.bf16.mxu0 0
        %4463 = vmatpush1.bf16.msra.mxu0 0
        %4464 = vmatprep.subr.bf16.mxu0 0
        %4465 = vmatpush1.bf16.msra.mxu0 0
        %4466 = vmatprep.subr.bf16.mxu0 0
        %4467 = vmatpush1.bf16.msra.mxu0 0
        %4468 = vmatprep.subr.bf16.mxu0 0
        %4469 = vmatpush1.bf16.msra.mxu0 0
        %4470 = vmatprep.subr.bf16.mxu0 0
        %4471 = vmatpush1.bf16.msra.mxu0 0
        %4472 = vmatprep.subr.bf16.mxu0 0
        %4473 = vmatpush1.bf16.msra.mxu0 0
        %4474 = vmatprep.mubr.bf16.mxu0 0
        %4475 = vmatmul.mubr.bf16.gmra.mrb[0].mxu0 %v4437
        %v4476 = vpop.f32.mrb[0].mxu0
        %v4477 = vadd.f32 0.0, %v4476
        %v4478 = vpop.f32.mrb[0].mxu0
        %v4479 = vpop.f32.mrb[0].mxu0
        %v4480 = vpop.f32.mrb[0].mxu0
        %4481 = vdwg.mxu0
        %v4483 = vsel %vm3974, %v3902, 0
        %v4486 = vsel %vm3978, %v3677, 0
        %4488 = vmatprep.subr.bf16.mxu0 0
        %4489 = vmatpush1.bf16.msra.mxu0 %v4486
        %4490 = vmatprep.subr.bf16.mxu0 0
        %4491 = vmatpush1.bf16.msra.mxu0 0
        %4492 = vmatprep.subr.bf16.mxu0 0
        %4493 = vmatpush1.bf16.msra.mxu0 0
        %4494 = vmatprep.subr.bf16.mxu0 0
        %4495 = vmatpush1.bf16.msra.mxu0 0
        %4496 = vmatprep.subr.bf16.mxu0 0
        %4497 = vmatpush1.bf16.msra.mxu0 0
        %4498 = vmatprep.subr.bf16.mxu0 0
        %4499 = vmatpush1.bf16.msra.mxu0 0
        %4500 = vmatprep.subr.bf16.mxu0 0
        %4501 = vmatpush1.bf16.msra.mxu0 0
        %4502 = vmatprep.subr.bf16.mxu0 0
        %4503 = vmatpush1.bf16.msra.mxu0 0
        %4504 = vmatprep.subr.bf16.mxu0 0
        %4505 = vmatpush1.bf16.msra.mxu0 0
        %4506 = vmatprep.subr.bf16.mxu0 0
        %4507 = vmatpush1.bf16.msra.mxu0 0
        %4508 = vmatprep.subr.bf16.mxu0 0
        %4509 = vmatpush1.bf16.msra.mxu0 0
        %4510 = vmatprep.subr.bf16.mxu0 0
        %4511 = vmatpush1.bf16.msra.mxu0 0
        %4512 = vmatprep.subr.bf16.mxu0 0
        %4513 = vmatpush1.bf16.msra.mxu0 0
        %4514 = vmatprep.subr.bf16.mxu0 0
        %4515 = vmatpush1.bf16.msra.mxu0 0
        %4516 = vmatprep.subr.bf16.mxu0 0
        %4517 = vmatpush1.bf16.msra.mxu0 0
        %4518 = vmatprep.subr.bf16.mxu0 0
        %4519 = vmatpush1.bf16.msra.mxu0 0
        %4520 = vmatprep.mubr.bf16.mxu0 0
        %4521 = vmatmul.mubr.bf16.gmra.mrb[0].mxu0 %v4483
        %v4522 = vpop.f32.mrb[0].mxu0
        %v4523 = vadd.f32 0.0, %v4522
        %v4524 = vpop.f32.mrb[0].mxu0
        %v4525 = vpop.f32.mrb[0].mxu0
        %v4526 = vpop.f32.mrb[0].mxu0
        %4527 = vdwg.mxu0
        %v4529 = vsel %vm3974, %v3918, 0
        %v4532 = vsel %vm3978, %v3678, 0
        %4534 = vmatprep.subr.bf16.mxu0 0
        %4535 = vmatpush1.bf16.msra.mxu0 %v4532
        %4536 = vmatprep.subr.bf16.mxu0 0
        %4537 = vmatpush1.bf16.msra.mxu0 0
        %4538 = vmatprep.subr.bf16.mxu0 0
        %4539 = vmatpush1.bf16.msra.mxu0 0
        %4540 = vmatprep.subr.bf16.mxu0 0
        %4541 = vmatpush1.bf16.msra.mxu0 0
        %4542 = vmatprep.subr.bf16.mxu0 0
        %4543 = vmatpush1.bf16.msra.mxu0 0
        %4544 = vmatprep.subr.bf16.mxu0 0
        %4545 = vmatpush1.bf16.msra.mxu0 0
        %4546 = vmatprep.subr.bf16.mxu0 0
        %4547 = vmatpush1.bf16.msra.mxu0 0
        %4548 = vmatprep.subr.bf16.mxu0 0
        %4549 = vmatpush1.bf16.msra.mxu0 0
        %4550 = vmatprep.subr.bf16.mxu0 0
        %4551 = vmatpush1.bf16.msra.mxu0 0
        %4552 = vmatprep.subr.bf16.mxu0 0
        %4553 = vmatpush1.bf16.msra.mxu0 0
        %4554 = vmatprep.subr.bf16.mxu0 0
        %4555 = vmatpush1.bf16.msra.mxu0 0
        %4556 = vmatprep.subr.bf16.mxu0 0
        %4557 = vmatpush1.bf16.msra.mxu0 0
        %4558 = vmatprep.subr.bf16.mxu0 0
        %4559 = vmatpush1.bf16.msra.mxu0 0
        %4560 = vmatprep.subr.bf16.mxu0 0
        %4561 = vmatpush1.bf16.msra.mxu0 0
        %4562 = vmatprep.subr.bf16.mxu0 0
        %4563 = vmatpush1.bf16.msra.mxu0 0
        %4564 = vmatprep.subr.bf16.mxu0 0
        %4565 = vmatpush1.bf16.msra.mxu0 0
        %4566 = vmatprep.mubr.bf16.mxu0 0
        %4567 = vmatmul.mubr.bf16.gmra.mrb[0].mxu0 %v4529
        %v4568 = vpop.f32.mrb[0].mxu0
        %v4569 = vadd.f32 0.0, %v4568
        %v4570 = vpop.f32.mrb[0].mxu0
        %v4571 = vpop.f32.mrb[0].mxu0
        %v4572 = vpop.f32.mrb[0].mxu0
        %4573 = vdwg.mxu0
        %v4575 = vsel %vm3974, %v3934, 0
        %v4578 = vsel %vm3978, %v3679, 0
        %4580 = vmatprep.subr.bf16.mxu0 0
        %4581 = vmatpush1.bf16.msra.mxu0 %v4578
        %4582 = vmatprep.subr.bf16.mxu0 0
        %4583 = vmatpush1.bf16.msra.mxu0 0
        %4584 = vmatprep.subr.bf16.mxu0 0
        %4585 = vmatpush1.bf16.msra.mxu0 0
        %4586 = vmatprep.subr.bf16.mxu0 0
        %4587 = vmatpush1.bf16.msra.mxu0 0
        %4588 = vmatprep.subr.bf16.mxu0 0
        %4589 = vmatpush1.bf16.msra.mxu0 0
        %4590 = vmatprep.subr.bf16.mxu0 0
        %4591 = vmatpush1.bf16.msra.mxu0 0
        %4592 = vmatprep.subr.bf16.mxu0 0
        %4593 = vmatpush1.bf16.msra.mxu0 0
        %4594 = vmatprep.subr.bf16.mxu0 0
        %4595 = vmatpush1.bf16.msra.mxu0 0
        %4596 = vmatprep.subr.bf16.mxu0 0
        %4597 = vmatpush1.bf16.msra.mxu0 0
        %4598 = vmatprep.subr.bf16.mxu0 0
        %4599 = vmatpush1.bf16.msra.mxu0 0
        %4600 = vmatprep.subr.bf16.mxu0 0
        %4601 = vmatpush1.bf16.msra.mxu0 0
        %4602 = vmatprep.subr.bf16.mxu0 0
        %4603 = vmatpush1.bf16.msra.mxu0 0
        %4604 = vmatprep.subr.bf16.mxu0 0
        %4605 = vmatpush1.bf16.msra.mxu0 0
        %4606 = vmatprep.subr.bf16.mxu0 0
        %4607 = vmatpush1.bf16.msra.mxu0 0
        %4608 = vmatprep.subr.bf16.mxu0 0
        %4609 = vmatpush1.bf16.msra.mxu0 0
        %4610 = vmatprep.subr.bf16.mxu0 0
        %4611 = vmatpush1.bf16.msra.mxu0 0
        %4612 = vmatprep.mubr.bf16.mxu0 0
        %4613 = vmatmul.mubr.bf16.gmra.mrb[0].mxu0 %v4575
        %v4614 = vpop.f32.mrb[0].mxu0
        %v4615 = vadd.f32 0.0, %v4614
        %v4616 = vpop.f32.mrb[0].mxu0
        %v4617 = vpop.f32.mrb[0].mxu0
        %v4618 = vpop.f32.mrb[0].mxu0
        %4619 = vdwg.mxu0
        %v4621 = vsel %vm3974, %v3950, 0
        %v4624 = vsel %vm3978, %v3680, 0
        %4626 = vmatprep.subr.bf16.mxu0 0
        %4627 = vmatpush1.bf16.msra.mxu0 %v4624
        %4628 = vmatprep.subr.bf16.mxu0 0
        %4629 = vmatpush1.bf16.msra.mxu0 0
        %4630 = vmatprep.subr.bf16.mxu0 0
        %4631 = vmatpush1.bf16.msra.mxu0 0
        %4632 = vmatprep.subr.bf16.mxu0 0
        %4633 = vmatpush1.bf16.msra.mxu0 0
        %4634 = vmatprep.subr.bf16.mxu0 0
        %4635 = vmatpush1.bf16.msra.mxu0 0
        %4636 = vmatprep.subr.bf16.mxu0 0
        %4637 = vmatpush1.bf16.msra.mxu0 0
        %4638 = vmatprep.subr.bf16.mxu0 0
        %4639 = vmatpush1.bf16.msra.mxu0 0
        %4640 = vmatprep.subr.bf16.mxu0 0
        %4641 = vmatpush1.bf16.msra.mxu0 0
        %4642 = vmatprep.subr.bf16.mxu0 0
        %4643 = vmatpush1.bf16.msra.mxu0 0
        %4644 = vmatprep.subr.bf16.mxu0 0
        %4645 = vmatpush1.bf16.msra.mxu0 0
        %4646 = vmatprep.subr.bf16.mxu0 0
        %4647 = vmatpush1.bf16.msra.mxu0 0
        %4648 = vmatprep.subr.bf16.mxu0 0
        %4649 = vmatpush1.bf16.msra.mxu0 0
        %4650 = vmatprep.subr.bf16.mxu0 0
        %4651 = vmatpush1.bf16.msra.mxu0 0
        %4652 = vmatprep.subr.bf16.mxu0 0
        %4653 = vmatpush1.bf16.msra.mxu0 0
        %4654 = vmatprep.subr.bf16.mxu0 0
        %4655 = vmatpush1.bf16.msra.mxu0 0
        %4656 = vmatprep.subr.bf16.mxu0 0
        %4657 = vmatpush1.bf16.msra.mxu0 0
        %4658 = vmatprep.mubr.bf16.mxu0 0
        %4659 = vmatmul.mubr.bf16.gmra.mrb[0].mxu0 %v4621
        %v4660 = vpop.f32.mrb[0].mxu0
        %v4661 = vadd.f32 0.0, %v4660
        %v4662 = vpop.f32.mrb[0].mxu0
        %v4663 = vpop.f32.mrb[0].mxu0
        %v4664 = vpop.f32.mrb[0].mxu0
        %4665 = vdwg.mxu0
        %v4667 = vsel %vm3974, %v3966, 0
        %v4670 = vsel %vm3978, %v3681, 0
        %4672 = vmatprep.subr.bf16.mxu0 0
        %4673 = vmatpush1.bf16.msra.mxu0 %v4670
        %4674 = vmatprep.subr.bf16.mxu0 0
        %4675 = vmatpush1.bf16.msra.mxu0 0
        %4676 = vmatprep.subr.bf16.mxu0 0
        %4677 = vmatpush1.bf16.msra.mxu0 0
        %4678 = vmatprep.subr.bf16.mxu0 0
        %4679 = vmatpush1.bf16.msra.mxu0 0
        %4680 = vmatprep.subr.bf16.mxu0 0
        %4681 = vmatpush1.bf16.msra.mxu0 0
        %4682 = vmatprep.subr.bf16.mxu0 0
        %4683 = vmatpush1.bf16.msra.mxu0 0
        %4684 = vmatprep.subr.bf16.mxu0 0
        %4685 = vmatpush1.bf16.msra.mxu0 0
        %4686 = vmatprep.subr.bf16.mxu0 0
        %4687 = vmatpush1.bf16.msra.mxu0 0
        %4688 = vmatprep.subr.bf16.mxu0 0
        %4689 = vmatpush1.bf16.msra.mxu0 0
        %4690 = vmatprep.subr.bf16.mxu0 0
        %4691 = vmatpush1.bf16.msra.mxu0 0
        %4692 = vmatprep.subr.bf16.mxu0 0
        %4693 = vmatpush1.bf16.msra.mxu0 0
        %4694 = vmatprep.subr.bf16.mxu0 0
        %4695 = vmatpush1.bf16.msra.mxu0 0
        %4696 = vmatprep.subr.bf16.mxu0 0
        %4697 = vmatpush1.bf16.msra.mxu0 0
        %4698 = vmatprep.subr.bf16.mxu0 0
        %4699 = vmatpush1.bf16.msra.mxu0 0
        %4700 = vmatprep.subr.bf16.mxu0 0
        %4701 = vmatpush1.bf16.msra.mxu0 0
        %4702 = vmatprep.subr.bf16.mxu0 0
        %4703 = vmatpush1.bf16.msra.mxu0 0
        %4704 = vmatprep.mubr.bf16.mxu0 0
        %4705 = vmatmul.mubr.bf16.gmra.mrb[0].mxu0 %v4667
        %v4706 = vpop.f32.mrb[0].mxu0
        %v4707 = vadd.f32 0.0, %v4706
        %v4708 = vpop.f32.mrb[0].mxu0
        %v4709 = vpop.f32.mrb[0].mxu0
        %v4710 = vpop.f32.mrb[0].mxu0
        %4711 = vdwg.mxu0
        %4712 = vxpose.xlu0.c.b16.start [1/8] %v3340, 128
        %4713 = vxpose.xlu0.c.b16.cont [2/8] 0, 128
        %4714 = vxpose.xlu0.c.b16.cont [3/8] 0, 128
        %4715 = vxpose.xlu0.c.b16.cont [4/8] 0, 128
        %4716 = vxpose.xlu0.c.b16.cont [5/8] 0, 128
        %4717 = vxpose.xlu0.c.b16.cont [6/8] 0, 128
        %4718 = vxpose.xlu0.c.b16.cont [7/8] 0, 128
        %4719 = vxpose.xlu0.c.b16.end [8/8] 0, 128
        %v4720 = vpop.trf.xlu0
        %v4721 = vpop.trf.xlu0
        %v4722 = vpop.trf.xlu0
        %v4723 = vpop.trf.xlu0
        %v4724 = vpop.trf.xlu0
        %v4725 = vpop.trf.xlu0
        %v4726 = vpop.trf.xlu0
        %v4727 = vpop.trf.xlu0
        %4728 = vxpose.xlu0.c.b16.start [1/8] %v3344, 128
        %4729 = vxpose.xlu0.c.b16.cont [2/8] 0, 128
        %4730 = vxpose.xlu0.c.b16.cont [3/8] 0, 128
        %4731 = vxpose.xlu0.c.b16.cont [4/8] 0, 128
        %4732 = vxpose.xlu0.c.b16.cont [5/8] 0, 128
        %4733 = vxpose.xlu0.c.b16.cont [6/8] 0, 128
        %4734 = vxpose.xlu0.c.b16.cont [7/8] 0, 128
        %4735 = vxpose.xlu0.c.b16.end [8/8] 0, 128
        %v4736 = vpop.trf.xlu0
        %v4737 = vpop.trf.xlu0
        %v4738 = vpop.trf.xlu0
        %v4739 = vpop.trf.xlu0
        %v4740 = vpop.trf.xlu0
        %v4741 = vpop.trf.xlu0
        %v4742 = vpop.trf.xlu0
        %v4743 = vpop.trf.xlu0
        %4744 = vxpose.xlu0.c.b16.start [1/8] %v3348, 128
        %4745 = vxpose.xlu0.c.b16.cont [2/8] 0, 128
        %4746 = vxpose.xlu0.c.b16.cont [3/8] 0, 128
        %4747 = vxpose.xlu0.c.b16.cont [4/8] 0, 128
        %4748 = vxpose.xlu0.c.b16.cont [5/8] 0, 128
        %4749 = vxpose.xlu0.c.b16.cont [6/8] 0, 128
        %4750 = vxpose.xlu0.c.b16.cont [7/8] 0, 128
        %4751 = vxpose.xlu0.c.b16.end [8/8] 0, 128
        %v4752 = vpop.trf.xlu0
        %v4753 = vpop.trf.xlu0
        %v4754 = vpop.trf.xlu0
        %v4755 = vpop.trf.xlu0
        %v4756 = vpop.trf.xlu0
        %v4757 = vpop.trf.xlu0
        %v4758 = vpop.trf.xlu0
        %v4759 = vpop.trf.xlu0
        %4760 = vxpose.xlu0.c.b16.start [1/8] %v3352, 128
        %4761 = vxpose.xlu0.c.b16.cont [2/8] 0, 128
        %4762 = vxpose.xlu0.c.b16.cont [3/8] 0, 128
        %4763 = vxpose.xlu0.c.b16.cont [4/8] 0, 128
        %4764 = vxpose.xlu0.c.b16.cont [5/8] 0, 128
        %4765 = vxpose.xlu0.c.b16.cont [6/8] 0, 128
        %4766 = vxpose.xlu0.c.b16.cont [7/8] 0, 128
        %4767 = vxpose.xlu0.c.b16.end [8/8] 0, 128
        %v4768 = vpop.trf.xlu0
        %v4769 = vpop.trf.xlu0
        %v4770 = vpop.trf.xlu0
        %v4771 = vpop.trf.xlu0
        %v4772 = vpop.trf.xlu0
        %v4773 = vpop.trf.xlu0
        %v4774 = vpop.trf.xlu0
        %v4775 = vpop.trf.xlu0
        %4776 = vxpose.xlu0.c.b16.start [1/8] %v3356, 128
        %4777 = vxpose.xlu0.c.b16.cont [2/8] 0, 128
        %4778 = vxpose.xlu0.c.b16.cont [3/8] 0, 128
        %4779 = vxpose.xlu0.c.b16.cont [4/8] 0, 128
        %4780 = vxpose.xlu0.c.b16.cont [5/8] 0, 128
        %4781 = vxpose.xlu0.c.b16.cont [6/8] 0, 128
        %4782 = vxpose.xlu0.c.b16.cont [7/8] 0, 128
        %4783 = vxpose.xlu0.c.b16.end [8/8] 0, 128
        %v4784 = vpop.trf.xlu0
        %v4785 = vpop.trf.xlu0
        %v4786 = vpop.trf.xlu0
        %v4787 = vpop.trf.xlu0
        %v4788 = vpop.trf.xlu0
        %v4789 = vpop.trf.xlu0
        %v4790 = vpop.trf.xlu0
        %v4791 = vpop.trf.xlu0
        %4792 = vxpose.xlu0.c.b16.start [1/8] %v3360, 128
        %4793 = vxpose.xlu0.c.b16.cont [2/8] 0, 128
        %4794 = vxpose.xlu0.c.b16.cont [3/8] 0, 128
        %4795 = vxpose.xlu0.c.b16.cont [4/8] 0, 128
        %4796 = vxpose.xlu0.c.b16.cont [5/8] 0, 128
        %4797 = vxpose.xlu0.c.b16.cont [6/8] 0, 128
        %4798 = vxpose.xlu0.c.b16.cont [7/8] 0, 128
        %4799 = vxpose.xlu0.c.b16.end [8/8] 0, 128
        %v4800 = vpop.trf.xlu0
        %v4801 = vpop.trf.xlu0
        %v4802 = vpop.trf.xlu0
        %v4803 = vpop.trf.xlu0
        %v4804 = vpop.trf.xlu0
        %v4805 = vpop.trf.xlu0
        %v4806 = vpop.trf.xlu0
        %v4807 = vpop.trf.xlu0
        %4808 = vxpose.xlu0.c.b16.start [1/8] %v3364, 128
        %4809 = vxpose.xlu0.c.b16.cont [2/8] 0, 128
        %4810 = vxpose.xlu0.c.b16.cont [3/8] 0, 128
        %4811 = vxpose.xlu0.c.b16.cont [4/8] 0, 128
        %4812 = vxpose.xlu0.c.b16.cont [5/8] 0, 128
        %4813 = vxpose.xlu0.c.b16.cont [6/8] 0, 128
        %4814 = vxpose.xlu0.c.b16.cont [7/8] 0, 128
        %4815 = vxpose.xlu0.c.b16.end [8/8] 0, 128
        %v4816 = vpop.trf.xlu0
        %v4817 = vpop.trf.xlu0
        %v4818 = vpop.trf.xlu0
        %v4819 = vpop.trf.xlu0
        %v4820 = vpop.trf.xlu0
        %v4821 = vpop.trf.xlu0
        %v4822 = vpop.trf.xlu0
        %v4823 = vpop.trf.xlu0
        %4824 = vxpose.xlu0.c.b16.start [1/8] %v3368, 128
        %4825 = vxpose.xlu0.c.b16.cont [2/8] 0, 128
        %4826 = vxpose.xlu0.c.b16.cont [3/8] 0, 128
        %4827 = vxpose.xlu0.c.b16.cont [4/8] 0, 128
        %4828 = vxpose.xlu0.c.b16.cont [5/8] 0, 128
        %4829 = vxpose.xlu0.c.b16.cont [6/8] 0, 128
        %4830 = vxpose.xlu0.c.b16.cont [7/8] 0, 128
        %4831 = vxpose.xlu0.c.b16.end [8/8] 0, 128
        %v4832 = vpop.trf.xlu0
        %v4833 = vpop.trf.xlu0
        %v4834 = vpop.trf.xlu0
        %v4835 = vpop.trf.xlu0
        %v4836 = vpop.trf.xlu0
        %v4837 = vpop.trf.xlu0
        %v4838 = vpop.trf.xlu0
        %v4839 = vpop.trf.xlu0
        %v4841 = vsel %vm3974, %v4720, 0
        %v4844 = vsel %vm3978, %v3700, 0
        %4846 = vmatprep.subr.bf16.mxu0 0
        %4847 = vmatpush1.bf16.msra.mxu0 %v4844
        %4848 = vmatprep.subr.bf16.mxu0 0
        %4849 = vmatpush1.bf16.msra.mxu0 0
        %4850 = vmatprep.subr.bf16.mxu0 0
        %4851 = vmatpush1.bf16.msra.mxu0 0
        %4852 = vmatprep.subr.bf16.mxu0 0
        %4853 = vmatpush1.bf16.msra.mxu0 0
        %4854 = vmatprep.subr.bf16.mxu0 0
        %4855 = vmatpush1.bf16.msra.mxu0 0
        %4856 = vmatprep.subr.bf16.mxu0 0
        %4857 = vmatpush1.bf16.msra.mxu0 0
        %4858 = vmatprep.subr.bf16.mxu0 0
        %4859 = vmatpush1.bf16.msra.mxu0 0
        %4860 = vmatprep.subr.bf16.mxu0 0
        %4861 = vmatpush1.bf16.msra.mxu0 0
        %4862 = vmatprep.subr.bf16.mxu0 0
        %4863 = vmatpush1.bf16.msra.mxu0 0
        %4864 = vmatprep.subr.bf16.mxu0 0
        %4865 = vmatpush1.bf16.msra.mxu0 0
        %4866 = vmatprep.subr.bf16.mxu0 0
        %4867 = vmatpush1.bf16.msra.mxu0 0
        %4868 = vmatprep.subr.bf16.mxu0 0
        %4869 = vmatpush1.bf16.msra.mxu0 0
        %4870 = vmatprep.subr.bf16.mxu0 0
        %4871 = vmatpush1.bf16.msra.mxu0 0
        %4872 = vmatprep.subr.bf16.mxu0 0
        %4873 = vmatpush1.bf16.msra.mxu0 0
        %4874 = vmatprep.subr.bf16.mxu0 0
        %4875 = vmatpush1.bf16.msra.mxu0 0
        %4876 = vmatprep.subr.bf16.mxu0 0
        %4877 = vmatpush1.bf16.msra.mxu0 0
        %4878 = vmatprep.mubr.bf16.mxu0 0
        %4879 = vmatmul.mubr.bf16.gmra.mrb[0].mxu0 %v4841
        %v4880 = vpop.f32.mrb[0].mxu0
        %v4881 = vadd.f32 0.0, %v4880
        %v4882 = vpop.f32.mrb[0].mxu0
        %v4883 = vpop.f32.mrb[0].mxu0
        %v4884 = vadd.f32 0.0, %v4883
        %v4885 = vpop.f32.mrb[0].mxu0
        %4886 = vdwg.mxu0
        %v4888 = vsel %vm3974, %v4736, 0
        %v4891 = vsel %vm3978, %v3701, 0
        %4893 = vmatprep.subr.bf16.mxu0 0
        %4894 = vmatpush1.bf16.msra.mxu0 %v4891
        %4895 = vmatprep.subr.bf16.mxu0 0
        %4896 = vmatpush1.bf16.msra.mxu0 0
        %4897 = vmatprep.subr.bf16.mxu0 0
        %4898 = vmatpush1.bf16.msra.mxu0 0
        %4899 = vmatprep.subr.bf16.mxu0 0
        %4900 = vmatpush1.bf16.msra.mxu0 0
        %4901 = vmatprep.subr.bf16.mxu0 0
        %4902 = vmatpush1.bf16.msra.mxu0 0
        %4903 = vmatprep.subr.bf16.mxu0 0
        %4904 = vmatpush1.bf16.msra.mxu0 0
        %4905 = vmatprep.subr.bf16.mxu0 0
        %4906 = vmatpush1.bf16.msra.mxu0 0
        %4907 = vmatprep.subr.bf16.mxu0 0
        %4908 = vmatpush1.bf16.msra.mxu0 0
        %4909 = vmatprep.subr.bf16.mxu0 0
        %4910 = vmatpush1.bf16.msra.mxu0 0
        %4911 = vmatprep.subr.bf16.mxu0 0
        %4912 = vmatpush1.bf16.msra.mxu0 0
        %4913 = vmatprep.subr.bf16.mxu0 0
        %4914 = vmatpush1.bf16.msra.mxu0 0
        %4915 = vmatprep.subr.bf16.mxu0 0
        %4916 = vmatpush1.bf16.msra.mxu0 0
        %4917 = vmatprep.subr.bf16.mxu0 0
        %4918 = vmatpush1.bf16.msra.mxu0 0
        %4919 = vmatprep.subr.bf16.mxu0 0
        %4920 = vmatpush1.bf16.msra.mxu0 0
        %4921 = vmatprep.subr.bf16.mxu0 0
        %4922 = vmatpush1.bf16.msra.mxu0 0
        %4923 = vmatprep.subr.bf16.mxu0 0
        %4924 = vmatpush1.bf16.msra.mxu0 0
        %4925 = vmatprep.mubr.bf16.mxu0 0
        %4926 = vmatmul.mubr.bf16.gmra.mrb[0].mxu0 %v4888
        %v4927 = vpop.f32.mrb[0].mxu0
        %v4928 = vadd.f32 0.0, %v4927
        %v4929 = vpop.f32.mrb[0].mxu0
        %v4930 = vpop.f32.mrb[0].mxu0
        %v4931 = vadd.f32 0.0, %v4930
        %v4932 = vpop.f32.mrb[0].mxu0
        %4933 = vdwg.mxu0
        %v4935 = vsel %vm3974, %v4752, 0
        %v4938 = vsel %vm3978, %v3702, 0
        %4940 = vmatprep.subr.bf16.mxu0 0
        %4941 = vmatpush1.bf16.msra.mxu0 %v4938
        %4942 = vmatprep.subr.bf16.mxu0 0
        %4943 = vmatpush1.bf16.msra.mxu0 0
        %4944 = vmatprep.subr.bf16.mxu0 0
        %4945 = vmatpush1.bf16.msra.mxu0 0
        %4946 = vmatprep.subr.bf16.mxu0 0
        %4947 = vmatpush1.bf16.msra.mxu0 0
        %4948 = vmatprep.subr.bf16.mxu0 0
        %4949 = vmatpush1.bf16.msra.mxu0 0
        %4950 = vmatprep.subr.bf16.mxu0 0
        %4951 = vmatpush1.bf16.msra.mxu0 0
        %4952 = vmatprep.subr.bf16.mxu0 0
        %4953 = vmatpush1.bf16.msra.mxu0 0
        %4954 = vmatprep.subr.bf16.mxu0 0
        %4955 = vmatpush1.bf16.msra.mxu0 0
        %4956 = vmatprep.subr.bf16.mxu0 0
        %4957 = vmatpush1.bf16.msra.mxu0 0
        %4958 = vmatprep.subr.bf16.mxu0 0
        %4959 = vmatpush1.bf16.msra.mxu0 0
        %4960 = vmatprep.subr.bf16.mxu0 0
        %4961 = vmatpush1.bf16.msra.mxu0 0
        %4962 = vmatprep.subr.bf16.mxu0 0
        %4963 = vmatpush1.bf16.msra.mxu0 0
        %4964 = vmatprep.subr.bf16.mxu0 0
        %4965 = vmatpush1.bf16.msra.mxu0 0
        %4966 = vmatprep.subr.bf16.mxu0 0
        %4967 = vmatpush1.bf16.msra.mxu0 0
        %4968 = vmatprep.subr.bf16.mxu0 0
        %4969 = vmatpush1.bf16.msra.mxu0 0
        %4970 = vmatprep.subr.bf16.mxu0 0
        %4971 = vmatpush1.bf16.msra.mxu0 0
        %4972 = vmatprep.mubr.bf16.mxu0 0
        %4973 = vmatmul.mubr.bf16.gmra.mrb[0].mxu0 %v4935
        %v4974 = vpop.f32.mrb[0].mxu0
        %v4975 = vadd.f32 0.0, %v4974
        %v4976 = vpop.f32.mrb[0].mxu0
        %v4977 = vpop.f32.mrb[0].mxu0
        %v4978 = vadd.f32 0.0, %v4977
        %v4979 = vpop.f32.mrb[0].mxu0
        %4980 = vdwg.mxu0
        %v4982 = vsel %vm3974, %v4768, 0
        %v4985 = vsel %vm3978, %v3703, 0
        %4987 = vmatprep.subr.bf16.mxu0 0
        %4988 = vmatpush1.bf16.msra.mxu0 %v4985
        %4989 = vmatprep.subr.bf16.mxu0 0
        %4990 = vmatpush1.bf16.msra.mxu0 0
        %4991 = vmatprep.subr.bf16.mxu0 0
        %4992 = vmatpush1.bf16.msra.mxu0 0
        %4993 = vmatprep.subr.bf16.mxu0 0
        %4994 = vmatpush1.bf16.msra.mxu0 0
        %4995 = vmatprep.subr.bf16.mxu0 0
        %4996 = vmatpush1.bf16.msra.mxu0 0
        %4997 = vmatprep.subr.bf16.mxu0 0
        %4998 = vmatpush1.bf16.msra.mxu0 0
        %4999 = vmatprep.subr.bf16.mxu0 0
        %5000 = vmatpush1.bf16.msra.mxu0 0
        %5001 = vmatprep.subr.bf16.mxu0 0
        %5002 = vmatpush1.bf16.msra.mxu0 0
        %5003 = vmatprep.subr.bf16.mxu0 0
        %5004 = vmatpush1.bf16.msra.mxu0 0
        %5005 = vmatprep.subr.bf16.mxu0 0
        %5006 = vmatpush1.bf16.msra.mxu0 0
        %5007 = vmatprep.subr.bf16.mxu0 0
        %5008 = vmatpush1.bf16.msra.mxu0 0
        %5009 = vmatprep.subr.bf16.mxu0 0
        %5010 = vmatpush1.bf16.msra.mxu0 0
        %5011 = vmatprep.subr.bf16.mxu0 0
        %5012 = vmatpush1.bf16.msra.mxu0 0
        %5013 = vmatprep.subr.bf16.mxu0 0
        %5014 = vmatpush1.bf16.msra.mxu0 0
        %5015 = vmatprep.subr.bf16.mxu0 0
        %5016 = vmatpush1.bf16.msra.mxu0 0
        %5017 = vmatprep.subr.bf16.mxu0 0
        %5018 = vmatpush1.bf16.msra.mxu0 0
        %5019 = vmatprep.mubr.bf16.mxu0 0
        %5020 = vmatmul.mubr.bf16.gmra.mrb[0].mxu0 %v4982
        %v5021 = vpop.f32.mrb[0].mxu0
        %v5022 = vadd.f32 0.0, %v5021
        %v5023 = vpop.f32.mrb[0].mxu0
        %v5024 = vpop.f32.mrb[0].mxu0
        %v5025 = vadd.f32 0.0, %v5024
        %v5026 = vpop.f32.mrb[0].mxu0
        %5027 = vdwg.mxu0
        %v5029 = vsel %vm3974, %v4784, 0
        %v5032 = vsel %vm3978, %v3704, 0
        %5034 = vmatprep.subr.bf16.mxu0 0
        %5035 = vmatpush1.bf16.msra.mxu0 %v5032
        %5036 = vmatprep.subr.bf16.mxu0 0
        %5037 = vmatpush1.bf16.msra.mxu0 0
        %5038 = vmatprep.subr.bf16.mxu0 0
        %5039 = vmatpush1.bf16.msra.mxu0 0
        %5040 = vmatprep.subr.bf16.mxu0 0
        %5041 = vmatpush1.bf16.msra.mxu0 0
        %5042 = vmatprep.subr.bf16.mxu0 0
        %5043 = vmatpush1.bf16.msra.mxu0 0
        %5044 = vmatprep.subr.bf16.mxu0 0
        %5045 = vmatpush1.bf16.msra.mxu0 0
        %5046 = vmatprep.subr.bf16.mxu0 0
        %5047 = vmatpush1.bf16.msra.mxu0 0
        %5048 = vmatprep.subr.bf16.mxu0 0
        %5049 = vmatpush1.bf16.msra.mxu0 0
        %5050 = vmatprep.subr.bf16.mxu0 0
        %5051 = vmatpush1.bf16.msra.mxu0 0
        %5052 = vmatprep.subr.bf16.mxu0 0
        %5053 = vmatpush1.bf16.msra.mxu0 0
        %5054 = vmatprep.subr.bf16.mxu0 0
        %5055 = vmatpush1.bf16.msra.mxu0 0
        %5056 = vmatprep.subr.bf16.mxu0 0
        %5057 = vmatpush1.bf16.msra.mxu0 0
        %5058 = vmatprep.subr.bf16.mxu0 0
        %5059 = vmatpush1.bf16.msra.mxu0 0
        %5060 = vmatprep.subr.bf16.mxu0 0
        %5061 = vmatpush1.bf16.msra.mxu0 0
        %5062 = vmatprep.subr.bf16.mxu0 0
        %5063 = vmatpush1.bf16.msra.mxu0 0
        %5064 = vmatprep.subr.bf16.mxu0 0
        %5065 = vmatpush1.bf16.msra.mxu0 0
        %5066 = vmatprep.mubr.bf16.mxu0 0
        %5067 = vmatmul.mubr.bf16.gmra.mrb[0].mxu0 %v5029
        %v5068 = vpop.f32.mrb[0].mxu0
        %v5069 = vadd.f32 0.0, %v5068
        %v5070 = vpop.f32.mrb[0].mxu0
        %v5071 = vpop.f32.mrb[0].mxu0
        %v5072 = vadd.f32 0.0, %v5071
        %v5073 = vpop.f32.mrb[0].mxu0
        %5074 = vdwg.mxu0
        %v5076 = vsel %vm3974, %v4800, 0
        %v5079 = vsel %vm3978, %v3705, 0
        %5081 = vmatprep.subr.bf16.mxu0 0
        %5082 = vmatpush1.bf16.msra.mxu0 %v5079
        %5083 = vmatprep.subr.bf16.mxu0 0
        %5084 = vmatpush1.bf16.msra.mxu0 0
        %5085 = vmatprep.subr.bf16.mxu0 0
        %5086 = vmatpush1.bf16.msra.mxu0 0
        %5087 = vmatprep.subr.bf16.mxu0 0
        %5088 = vmatpush1.bf16.msra.mxu0 0
        %5089 = vmatprep.subr.bf16.mxu0 0
        %5090 = vmatpush1.bf16.msra.mxu0 0
        %5091 = vmatprep.subr.bf16.mxu0 0
        %5092 = vmatpush1.bf16.msra.mxu0 0
        %5093 = vmatprep.subr.bf16.mxu0 0
        %5094 = vmatpush1.bf16.msra.mxu0 0
        %5095 = vmatprep.subr.bf16.mxu0 0
        %5096 = vmatpush1.bf16.msra.mxu0 0
        %5097 = vmatprep.subr.bf16.mxu0 0
        %5098 = vmatpush1.bf16.msra.mxu0 0
        %5099 = vmatprep.subr.bf16.mxu0 0
        %5100 = vmatpush1.bf16.msra.mxu0 0
        %5101 = vmatprep.subr.bf16.mxu0 0
        %5102 = vmatpush1.bf16.msra.mxu0 0
        %5103 = vmatprep.subr.bf16.mxu0 0
        %5104 = vmatpush1.bf16.msra.mxu0 0
        %5105 = vmatprep.subr.bf16.mxu0 0
        %5106 = vmatpush1.bf16.msra.mxu0 0
        %5107 = vmatprep.subr.bf16.mxu0 0
        %5108 = vmatpush1.bf16.msra.mxu0 0
        %5109 = vmatprep.subr.bf16.mxu0 0
        %5110 = vmatpush1.bf16.msra.mxu0 0
        %5111 = vmatprep.subr.bf16.mxu0 0
        %5112 = vmatpush1.bf16.msra.mxu0 0
        %5113 = vmatprep.mubr.bf16.mxu0 0
        %5114 = vmatmul.mubr.bf16.gmra.mrb[0].mxu0 %v5076
        %v5115 = vpop.f32.mrb[0].mxu0
        %v5116 = vadd.f32 0.0, %v5115
        %v5117 = vpop.f32.mrb[0].mxu0
        %v5118 = vpop.f32.mrb[0].mxu0
        %v5119 = vadd.f32 0.0, %v5118
        %v5120 = vpop.f32.mrb[0].mxu0
        %5121 = vdwg.mxu0
        %v5123 = vsel %vm3974, %v4816, 0
        %v5126 = vsel %vm3978, %v3706, 0
        %5128 = vmatprep.subr.bf16.mxu0 0
        %5129 = vmatpush1.bf16.msra.mxu0 %v5126
        %5130 = vmatprep.subr.bf16.mxu0 0
        %5131 = vmatpush1.bf16.msra.mxu0 0
        %5132 = vmatprep.subr.bf16.mxu0 0
        %5133 = vmatpush1.bf16.msra.mxu0 0
        %5134 = vmatprep.subr.bf16.mxu0 0
        %5135 = vmatpush1.bf16.msra.mxu0 0
        %5136 = vmatprep.subr.bf16.mxu0 0
        %5137 = vmatpush1.bf16.msra.mxu0 0
        %5138 = vmatprep.subr.bf16.mxu0 0
        %5139 = vmatpush1.bf16.msra.mxu0 0
        %5140 = vmatprep.subr.bf16.mxu0 0
        %5141 = vmatpush1.bf16.msra.mxu0 0
        %5142 = vmatprep.subr.bf16.mxu0 0
        %5143 = vmatpush1.bf16.msra.mxu0 0
        %5144 = vmatprep.subr.bf16.mxu0 0
        %5145 = vmatpush1.bf16.msra.mxu0 0
        %5146 = vmatprep.subr.bf16.mxu0 0
        %5147 = vmatpush1.bf16.msra.mxu0 0
        %5148 = vmatprep.subr.bf16.mxu0 0
        %5149 = vmatpush1.bf16.msra.mxu0 0
        %5150 = vmatprep.subr.bf16.mxu0 0
        %5151 = vmatpush1.bf16.msra.mxu0 0
        %5152 = vmatprep.subr.bf16.mxu0 0
        %5153 = vmatpush1.bf16.msra.mxu0 0
        %5154 = vmatprep.subr.bf16.mxu0 0
        %5155 = vmatpush1.bf16.msra.mxu0 0
        %5156 = vmatprep.subr.bf16.mxu0 0
        %5157 = vmatpush1.bf16.msra.mxu0 0
        %5158 = vmatprep.subr.bf16.mxu0 0
        %5159 = vmatpush1.bf16.msra.mxu0 0
        %5160 = vmatprep.mubr.bf16.mxu0 0
        %5161 = vmatmul.mubr.bf16.gmra.mrb[0].mxu0 %v5123
        %v5162 = vpop.f32.mrb[0].mxu0
        %v5163 = vadd.f32 0.0, %v5162
        %v5164 = vpop.f32.mrb[0].mxu0
        %v5165 = vpop.f32.mrb[0].mxu0
        %v5166 = vadd.f32 0.0, %v5165
        %v5167 = vpop.f32.mrb[0].mxu0
        %5168 = vdwg.mxu0
        %v5170 = vsel %vm3974, %v4832, 0
        %v5173 = vsel %vm3978, %v3707, 0
        %5175 = vmatprep.subr.bf16.mxu0 0
        %5176 = vmatpush1.bf16.msra.mxu0 %v5173
        %5177 = vmatprep.subr.bf16.mxu0 0
        %5178 = vmatpush1.bf16.msra.mxu0 0
        %5179 = vmatprep.subr.bf16.mxu0 0
        %5180 = vmatpush1.bf16.msra.mxu0 0
        %5181 = vmatprep.subr.bf16.mxu0 0
        %5182 = vmatpush1.bf16.msra.mxu0 0
        %5183 = vmatprep.subr.bf16.mxu0 0
        %5184 = vmatpush1.bf16.msra.mxu0 0
        %5185 = vmatprep.subr.bf16.mxu0 0
        %5186 = vmatpush1.bf16.msra.mxu0 0
        %5187 = vmatprep.subr.bf16.mxu0 0
        %5188 = vmatpush1.bf16.msra.mxu0 0
        %5189 = vmatprep.subr.bf16.mxu0 0
        %5190 = vmatpush1.bf16.msra.mxu0 0
        %5191 = vmatprep.subr.bf16.mxu0 0
        %5192 = vmatpush1.bf16.msra.mxu0 0
        %5193 = vmatprep.subr.bf16.mxu0 0
        %5194 = vmatpush1.bf16.msra.mxu0 0
        %5195 = vmatprep.subr.bf16.mxu0 0
        %5196 = vmatpush1.bf16.msra.mxu0 0
        %5197 = vmatprep.subr.bf16.mxu0 0
        %5198 = vmatpush1.bf16.msra.mxu0 0
        %5199 = vmatprep.subr.bf16.mxu0 0
        %5200 = vmatpush1.bf16.msra.mxu0 0
        %5201 = vmatprep.subr.bf16.mxu0 0
        %5202 = vmatpush1.bf16.msra.mxu0 0
        %5203 = vmatprep.subr.bf16.mxu0 0
        %5204 = vmatpush1.bf16.msra.mxu0 0
        %5205 = vmatprep.subr.bf16.mxu0 0
        %5206 = vmatpush1.bf16.msra.mxu0 0
        %5207 = vmatprep.mubr.bf16.mxu0 0
        %5208 = vmatmul.mubr.bf16.gmra.mrb[0].mxu0 %v5170
        %v5209 = vpop.f32.mrb[0].mxu0
        %v5210 = vadd.f32 0.0, %v5209
        %v5211 = vpop.f32.mrb[0].mxu0
        %v5212 = vpop.f32.mrb[0].mxu0
        %v5213 = vadd.f32 0.0, %v5212
        %v5214 = vpop.f32.mrb[0].mxu0
        %5215 = vdwg.mxu0
        %v5216 = vlaneseq
        %v5217 = vshrl.u32 %v5216, 7
        %v5218 = vstv %s489
        %v5219 = vadd.s32 %v5218, %v5217
        %v5220 = vlaneseq
        %v5221 = vand.u32 %v5220, 127
        %vm5222 = vcmp.eq.s32.totalorder %v5219, %v5221
        %v5223 = vsel %vm5222, 1, 0
        %vm5224 = vcmp.eq.s32.totalorder %v5223, 1
        %v5225 = vsel %vm5224, -1e+30, %v4017
        %v5226 = vsel %vm5224, -1e+30, %v4063
        %v5227 = vsel %vm5224, -1e+30, %v4109
        %v5228 = vsel %vm5224, -1e+30, %v4155
        %v5229 = vsel %vm5224, -1e+30, %v4201
        %v5230 = vsel %vm5224, -1e+30, %v4247
        %v5231 = vsel %vm5224, -1e+30, %v4293
        %v5232 = vsel %vm5224, -1e+30, %v4339
        %v5233 = vsel %vm5224, -1e+30, %v4385
        %v5234 = vsel %vm5224, -1e+30, %v4431
        %v5235 = vsel %vm5224, -1e+30, %v4477
        %v5236 = vsel %vm5224, -1e+30, %v4523
        %v5237 = vsel %vm5224, -1e+30, %v4569
        %v5238 = vsel %vm5224, -1e+30, %v4615
        %v5239 = vsel %vm5224, -1e+30, %v4661
        %v5240 = vsel %vm5224, -1e+30, %v4707
        %v5241 = vsel %vm3060, %v5225, -inf
        %5242 = vmax.xlane.f32.xlu0 %v5241
        %v5243 = vpop.xlane.xlu0 %5242
        %v5244 = vsel %vm3060, %v5226, -inf
        %5245 = vmax.xlane.f32.xlu0 %v5244
        %v5246 = vpop.xlane.xlu0 %5245
        %v5247 = vsel %vm3060, %v5227, -inf
        %5248 = vmax.xlane.f32.xlu0 %v5247
        %v5249 = vpop.xlane.xlu0 %5248
        %v5250 = vsel %vm3060, %v5228, -inf
        %5251 = vmax.xlane.f32.xlu0 %v5250
        %v5252 = vpop.xlane.xlu0 %5251
        %v5253 = vsel %vm3060, %v5229, -inf
        %5254 = vmax.xlane.f32.xlu0 %v5253
        %v5255 = vpop.xlane.xlu0 %5254
        %v5256 = vsel %vm3060, %v5230, -inf
        %5257 = vmax.xlane.f32.xlu0 %v5256
        %v5258 = vpop.xlane.xlu0 %5257
        %v5259 = vsel %vm3060, %v5231, -inf
        %5260 = vmax.xlane.f32.xlu0 %v5259
        %v5261 = vpop.xlane.xlu0 %5260
        %v5262 = vsel %vm3060, %v5232, -inf
        %5263 = vmax.xlane.f32.xlu0 %v5262
        %v5264 = vpop.xlane.xlu0 %5263
        %v5265 = vsel %vm3060, %v5233, -inf
        %5266 = vmax.xlane.f32.xlu0 %v5265
        %v5267 = vpop.xlane.xlu0 %5266
        %v5268 = vsel %vm3060, %v5234, -inf
        %5269 = vmax.xlane.f32.xlu0 %v5268
        %v5270 = vpop.xlane.xlu0 %5269
        %v5271 = vsel %vm3060, %v5235, -inf
        %5272 = vmax.xlane.f32.xlu0 %v5271
        %v5273 = vpop.xlane.xlu0 %5272
        %v5274 = vsel %vm3060, %v5236, -inf
        %5275 = vmax.xlane.f32.xlu0 %v5274
        %v5276 = vpop.xlane.xlu0 %5275
        %v5277 = vsel %vm3060, %v5237, -inf
        %5278 = vmax.xlane.f32.xlu0 %v5277
        %v5279 = vpop.xlane.xlu0 %5278
        %v5280 = vsel %vm3060, %v5238, -inf
        %5281 = vmax.xlane.f32.xlu0 %v5280
        %v5282 = vpop.xlane.xlu0 %5281
        %v5283 = vsel %vm3060, %v5239, -inf
        %5284 = vmax.xlane.f32.xlu0 %v5283
        %v5285 = vpop.xlane.xlu0 %5284
        %v5286 = vsel %vm3060, %v5240, -inf
        %5287 = vmax.xlane.f32.xlu0 %v5286
        %v5288 = vpop.xlane.xlu0 %5287
        %v5305 = vlaneseq
        %v5306 = vshrl.u32 %v5305, 7
        %v5307 = vsub.s32 %v5221, %v5306
        %v5308 = vrot.slane %v5243, %v5307
        %v5309 = vlaneseq
        %v5310 = vshrl.u32 %v5309, 7
        %v5311 = vsub.s32 %v5221, %v5310
        %v5312 = vrot.slane %v5246, %v5311
        %v5313 = vlaneseq
        %v5314 = vshrl.u32 %v5313, 7
        %v5315 = vsub.s32 %v5221, %v5314
        %v5316 = vrot.slane %v5249, %v5315
        %v5317 = vlaneseq
        %v5318 = vshrl.u32 %v5317, 7
        %v5319 = vsub.s32 %v5221, %v5318
        %v5320 = vrot.slane %v5252, %v5319
        %v5321 = vlaneseq
        %v5322 = vshrl.u32 %v5321, 7
        %v5323 = vsub.s32 %v5221, %v5322
        %v5324 = vrot.slane %v5255, %v5323
        %v5325 = vlaneseq
        %v5326 = vshrl.u32 %v5325, 7
        %v5327 = vsub.s32 %v5221, %v5326
        %v5328 = vrot.slane %v5258, %v5327
        %v5329 = vlaneseq
        %v5330 = vshrl.u32 %v5329, 7
        %v5331 = vsub.s32 %v5221, %v5330
        %v5332 = vrot.slane %v5261, %v5331
        %v5333 = vlaneseq
        %v5334 = vshrl.u32 %v5333, 7
        %v5335 = vsub.s32 %v5221, %v5334
        %v5336 = vrot.slane %v5264, %v5335
        %v5337 = vlaneseq
        %v5338 = vshrl.u32 %v5337, 7
        %v5339 = vsub.s32 %v5221, %v5338
        %v5340 = vrot.slane %v5267, %v5339
        %v5341 = vlaneseq
        %v5342 = vshrl.u32 %v5341, 7
        %v5343 = vsub.s32 %v5221, %v5342
        %v5344 = vrot.slane %v5270, %v5343
        %v5345 = vlaneseq
        %v5346 = vshrl.u32 %v5345, 7
        %v5347 = vsub.s32 %v5221, %v5346
        %v5348 = vrot.slane %v5273, %v5347
        %v5349 = vlaneseq
        %v5350 = vshrl.u32 %v5349, 7
        %v5351 = vsub.s32 %v5221, %v5350
        %v5352 = vrot.slane %v5276, %v5351
        %v5353 = vlaneseq
        %v5354 = vshrl.u32 %v5353, 7
        %v5355 = vsub.s32 %v5221, %v5354
        %v5356 = vrot.slane %v5279, %v5355
        %v5357 = vlaneseq
        %v5358 = vshrl.u32 %v5357, 7
        %v5359 = vsub.s32 %v5221, %v5358
        %v5360 = vrot.slane %v5282, %v5359
        %v5361 = vlaneseq
        %v5362 = vshrl.u32 %v5361, 7
        %v5363 = vsub.s32 %v5221, %v5362
        %v5364 = vrot.slane %v5285, %v5363
        %v5365 = vlaneseq
        %v5366 = vshrl.u32 %v5365, 7
        %v5367 = vsub.s32 %v5221, %v5366
        %v5368 = vrot.slane %v5288, %v5367
        %vm5369 = vcmask 1041409
        %v5370 = vsel %vm5369, %v5312, %v5308
        %vm5371 = vcmask 1042434
        %v5372 = vsel %vm5371, %v5316, %v5370
        %vm5373 = vcmask 1043459
        %v5374 = vsel %vm5373, %v5320, %v5372
        %vm5375 = vcmask 1044484
        %v5376 = vsel %vm5375, %v5324, %v5374
        %vm5377 = vcmask 1045509
        %v5378 = vsel %vm5377, %v5328, %v5376
        %vm5379 = vcmask 1046534
        %v5380 = vsel %vm5379, %v5332, %v5378
        %vm5381 = vcmask 1047559
        %v5382 = vsel %vm5381, %v5336, %v5380
        %v5383 = vsel %vm5369, %v5344, %v5340
        %v5384 = vsel %vm5371, %v5348, %v5383
        %v5385 = vsel %vm5373, %v5352, %v5384
        %v5386 = vsel %vm5375, %v5356, %v5385
        %v5387 = vsel %vm5377, %v5360, %v5386
        %v5388 = vsel %vm5379, %v5364, %v5387
        %v5389 = vsel %vm5381, %v5368, %v5388
        %5392 = vxpose.xlu0.b32.start [1/16] %v5382, 128
        %5393 = vxpose.xlu0.b32.cont [2/16] %v5389, 128
        %5394 = vxpose.xlu0.b32.cont [3/16] 0.0, 128
        %5395 = vxpose.xlu0.b32.cont [4/16] 0.0, 128
        %5396 = vxpose.xlu0.b32.cont [5/16] 0.0, 128
        %5397 = vxpose.xlu0.b32.cont [6/16] 0.0, 128
        %5398 = vxpose.xlu0.b32.cont [7/16] 0.0, 128
        %5399 = vxpose.xlu0.b32.cont [8/16] 0.0, 128
        %5400 = vxpose.xlu0.b32.cont [9/16] 0.0, 128
        %5401 = vxpose.xlu0.b32.cont [10/16] 0.0, 128
        %5402 = vxpose.xlu0.b32.cont [11/16] 0.0, 128
        %5403 = vxpose.xlu0.b32.cont [12/16] 0.0, 128
        %5404 = vxpose.xlu0.b32.cont [13/16] 0.0, 128
        %5405 = vxpose.xlu0.b32.cont [14/16] 0.0, 128
        %5406 = vxpose.xlu0.b32.cont [15/16] 0.0, 128
        %5407 = vxpose.xlu0.b32.end [16/16] 0.0, 128
        %v5408 = vpop.trf.xlu0
        %v5409 = vpop.trf.xlu0
        %v5410 = vpop.trf.xlu0
        %v5411 = vpop.trf.xlu0
        %v5412 = vpop.trf.xlu0
        %v5413 = vpop.trf.xlu0
        %v5414 = vpop.trf.xlu0
        %v5415 = vpop.trf.xlu0
        %v5416 = vpop.trf.xlu0
        %v5417 = vpop.trf.xlu0
        %v5418 = vpop.trf.xlu0
        %v5419 = vpop.trf.xlu0
        %v5420 = vpop.trf.xlu0
        %v5421 = vpop.trf.xlu0
        %v5422 = vpop.trf.xlu0
        %v5423 = vpop.trf.xlu0
        %v5424 = vsel %vm3060, %v4881, -inf
        %5425 = vmax.xlane.f32.xlu0 %v5424
        %v5426 = vpop.xlane.xlu0 %5425
        %v5427 = vsel %vm3060, %v4884, -inf
        %5428 = vmax.xlane.f32.xlu0 %v5427
        %v5429 = vpop.xlane.xlu0 %5428
        %v5430 = vsel %vm3060, %v4928, -inf
        %5431 = vmax.xlane.f32.xlu0 %v5430
        %v5432 = vpop.xlane.xlu0 %5431
        %v5433 = vsel %vm3060, %v4931, -inf
        %5434 = vmax.xlane.f32.xlu0 %v5433
        %v5435 = vpop.xlane.xlu0 %5434
        %v5436 = vsel %vm3060, %v4975, -inf
        %5437 = vmax.xlane.f32.xlu0 %v5436
        %v5438 = vpop.xlane.xlu0 %5437
        %v5439 = vsel %vm3060, %v4978, -inf
        %5440 = vmax.xlane.f32.xlu0 %v5439
        %v5441 = vpop.xlane.xlu0 %5440
        %v5442 = vsel %vm3060, %v5022, -inf
        %5443 = vmax.xlane.f32.xlu0 %v5442
        %v5444 = vpop.xlane.xlu0 %5443
        %v5445 = vsel %vm3060, %v5025, -inf
        %5446 = vmax.xlane.f32.xlu0 %v5445
        %v5447 = vpop.xlane.xlu0 %5446
        %v5448 = vsel %vm3060, %v5069, -inf
        %5449 = vmax.xlane.f32.xlu0 %v5448
        %v5450 = vpop.xlane.xlu0 %5449
        %v5451 = vsel %vm3060, %v5072, -inf
        %5452 = vmax.xlane.f32.xlu0 %v5451
        %v5453 = vpop.xlane.xlu0 %5452
        %v5454 = vsel %vm3060, %v5116, -inf
        %5455 = vmax.xlane.f32.xlu0 %v5454
        %v5456 = vpop.xlane.xlu0 %5455
        %v5457 = vsel %vm3060, %v5119, -inf
        %5458 = vmax.xlane.f32.xlu0 %v5457
        %v5459 = vpop.xlane.xlu0 %5458
        %v5460 = vsel %vm3060, %v5163, -inf
        %5461 = vmax.xlane.f32.xlu0 %v5460
        %v5462 = vpop.xlane.xlu0 %5461
        %v5463 = vsel %vm3060, %v5166, -inf
        %5464 = vmax.xlane.f32.xlu0 %v5463
        %v5465 = vpop.xlane.xlu0 %5464
        %v5466 = vsel %vm3060, %v5210, -inf
        %5467 = vmax.xlane.f32.xlu0 %v5466
        %v5468 = vpop.xlane.xlu0 %5467
        %v5469 = vsel %vm3060, %v5213, -inf
        %5470 = vmax.xlane.f32.xlu0 %v5469
        %v5471 = vpop.xlane.xlu0 %5470
        %v5488 = vlaneseq
        %v5489 = vshrl.u32 %v5488, 7
        %v5490 = vsub.s32 %v5221, %v5489
        %v5491 = vrot.slane %v5426, %v5490
        %v5492 = vadd.s32 %v5221, 4294967288
        %v5493 = vlaneseq
        %v5494 = vshrl.u32 %v5493, 7
        %v5495 = vsub.s32 %v5492, %v5494
        %v5496 = vrot.slane %v5429, %v5495
        %vm5497 = vcmask 130112
        %v5498 = vsel %vm5497, %v5496, %v5491
        %v5499 = vlaneseq
        %v5500 = vshrl.u32 %v5499, 7
        %v5501 = vsub.s32 %v5221, %v5500
        %v5502 = vrot.slane %v5432, %v5501
        %v5503 = vlaneseq
        %v5504 = vshrl.u32 %v5503, 7
        %v5505 = vsub.s32 %v5492, %v5504
        %v5506 = vrot.slane %v5435, %v5505
        %v5507 = vsel %vm5497, %v5506, %v5502
        %v5508 = vlaneseq
        %v5509 = vshrl.u32 %v5508, 7
        %v5510 = vsub.s32 %v5221, %v5509
        %v5511 = vrot.slane %v5438, %v5510
        %v5512 = vlaneseq
        %v5513 = vshrl.u32 %v5512, 7
        %v5514 = vsub.s32 %v5492, %v5513
        %v5515 = vrot.slane %v5441, %v5514
        %v5516 = vsel %vm5497, %v5515, %v5511
        %v5517 = vlaneseq
        %v5518 = vshrl.u32 %v5517, 7
        %v5519 = vsub.s32 %v5221, %v5518
        %v5520 = vrot.slane %v5444, %v5519
        %v5521 = vlaneseq
        %v5522 = vshrl.u32 %v5521, 7
        %v5523 = vsub.s32 %v5492, %v5522
        %v5524 = vrot.slane %v5447, %v5523
        %v5525 = vsel %vm5497, %v5524, %v5520
        %v5526 = vlaneseq
        %v5527 = vshrl.u32 %v5526, 7
        %v5528 = vsub.s32 %v5221, %v5527
        %v5529 = vrot.slane %v5450, %v5528
        %v5530 = vlaneseq
        %v5531 = vshrl.u32 %v5530, 7
        %v5532 = vsub.s32 %v5492, %v5531
        %v5533 = vrot.slane %v5453, %v5532
        %v5534 = vsel %vm5497, %v5533, %v5529
        %v5535 = vlaneseq
        %v5536 = vshrl.u32 %v5535, 7
        %v5537 = vsub.s32 %v5221, %v5536
        %v5538 = vrot.slane %v5456, %v5537
        %v5539 = vlaneseq
        %v5540 = vshrl.u32 %v5539, 7
        %v5541 = vsub.s32 %v5492, %v5540
        %v5542 = vrot.slane %v5459, %v5541
        %v5543 = vsel %vm5497, %v5542, %v5538
        %v5544 = vlaneseq
        %v5545 = vshrl.u32 %v5544, 7
        %v5546 = vsub.s32 %v5221, %v5545
        %v5547 = vrot.slane %v5462, %v5546
        %v5548 = vlaneseq
        %v5549 = vshrl.u32 %v5548, 7
        %v5550 = vsub.s32 %v5492, %v5549
        %v5551 = vrot.slane %v5465, %v5550
        %v5552 = vsel %vm5497, %v5551, %v5547
        %v5553 = vlaneseq
        %v5554 = vshrl.u32 %v5553, 7
        %v5555 = vsub.s32 %v5221, %v5554
        %v5556 = vrot.slane %v5468, %v5555
        %v5557 = vlaneseq
        %v5558 = vshrl.u32 %v5557, 7
        %v5559 = vsub.s32 %v5492, %v5558
        %v5560 = vrot.slane %v5471, %v5559
        %v5561 = vsel %vm5497, %v5560, %v5556
        %v5562 = vsel %vm5369, %v5507, %v5498
        %v5563 = vsel %vm5371, %v5516, %v5562
        %v5564 = vsel %vm5373, %v5525, %v5563
        %v5565 = vsel %vm5375, %v5534, %v5564
        %v5566 = vsel %vm5377, %v5543, %v5565
        %v5567 = vsel %vm5379, %v5552, %v5566
        %v5568 = vsel %vm5381, %v5561, %v5567
        %v5570 = vmax.f32 %v5408, %v5568
        %5571 = vxpose.xlu0.b32.start [1/16] %v5570, 128
        %5572 = vxpose.xlu0.b32.cont [2/16] 0.0, 128
        %5573 = vxpose.xlu0.b32.cont [3/16] 0.0, 128
        %5574 = vxpose.xlu0.b32.cont [4/16] 0.0, 128
        %5575 = vxpose.xlu0.b32.cont [5/16] 0.0, 128
        %5576 = vxpose.xlu0.b32.cont [6/16] 0.0, 128
        %5577 = vxpose.xlu0.b32.cont [7/16] 0.0, 128
        %5578 = vxpose.xlu0.b32.cont [8/16] 0.0, 128
        %5579 = vxpose.xlu0.b32.cont [9/16] 0.0, 128
        %5580 = vxpose.xlu0.b32.cont [10/16] 0.0, 128
        %5581 = vxpose.xlu0.b32.cont [11/16] 0.0, 128
        %5582 = vxpose.xlu0.b32.cont [12/16] 0.0, 128
        %5583 = vxpose.xlu0.b32.cont [13/16] 0.0, 128
        %5584 = vxpose.xlu0.b32.cont [14/16] 0.0, 128
        %5585 = vxpose.xlu0.b32.cont [15/16] 0.0, 128
        %5586 = vxpose.xlu0.b32.end [16/16] 0.0, 128
        %v5587 = vpop.trf.xlu0
        %v5588 = vpop.trf.xlu0
        %v5589 = vpop.trf.xlu0
        %v5590 = vpop.trf.xlu0
        %v5591 = vpop.trf.xlu0
        %v5592 = vpop.trf.xlu0
        %v5593 = vpop.trf.xlu0
        %v5594 = vpop.trf.xlu0
        %v5595 = vpop.trf.xlu0
        %v5596 = vpop.trf.xlu0
        %v5597 = vpop.trf.xlu0
        %v5598 = vpop.trf.xlu0
        %v5599 = vpop.trf.xlu0
        %v5600 = vpop.trf.xlu0
        %v5601 = vpop.trf.xlu0
        %v5602 = vpop.trf.xlu0
        %v5603 = vlaneseq
        %v5604 = vshrl.u32 %v5603, 7
        %v5605 = vsub.s32 0, %v5604
        %v5606 = vrot.slane %v5587, %v5605
        %5608 = vbcast.lane.b32.xlu0 %v5606, 256
        %v5609 = vpop.permute.xlu0 %5608
        %v5610 = vlaneseq
        %v5611 = vshrl.u32 %v5610, 7
        %v5612 = vsub.s32 1, %v5611
        %v5613 = vrot.slane %v5587, %v5612
        %5615 = vbcast.lane.b32.xlu0 %v5613, 256
        %v5616 = vpop.permute.xlu0 %5615
        %v5617 = vlaneseq
        %v5618 = vshrl.u32 %v5617, 7
        %v5619 = vsub.s32 2, %v5618
        %v5620 = vrot.slane %v5587, %v5619
        %5622 = vbcast.lane.b32.xlu0 %v5620, 256
        %v5623 = vpop.permute.xlu0 %5622
        %v5624 = vlaneseq
        %v5625 = vshrl.u32 %v5624, 7
        %v5626 = vsub.s32 3, %v5625
        %v5627 = vrot.slane %v5587, %v5626
        %5629 = vbcast.lane.b32.xlu0 %v5627, 256
        %v5630 = vpop.permute.xlu0 %5629
        %v5631 = vlaneseq
        %v5632 = vshrl.u32 %v5631, 7
        %v5633 = vsub.s32 4, %v5632
        %v5634 = vrot.slane %v5587, %v5633
        %5636 = vbcast.lane.b32.xlu0 %v5634, 256
        %v5637 = vpop.permute.xlu0 %5636
        %v5638 = vlaneseq
        %v5639 = vshrl.u32 %v5638, 7
        %v5640 = vsub.s32 5, %v5639
        %v5641 = vrot.slane %v5587, %v5640
        %5643 = vbcast.lane.b32.xlu0 %v5641, 256
        %v5644 = vpop.permute.xlu0 %5643
        %v5645 = vlaneseq
        %v5646 = vshrl.u32 %v5645, 7
        %v5647 = vsub.s32 6, %v5646
        %v5648 = vrot.slane %v5587, %v5647
        %5650 = vbcast.lane.b32.xlu0 %v5648, 256
        %v5651 = vpop.permute.xlu0 %5650
        %v5652 = vlaneseq
        %v5653 = vshrl.u32 %v5652, 7
        %v5654 = vsub.s32 7, %v5653
        %v5655 = vrot.slane %v5587, %v5654
        %5657 = vbcast.lane.b32.xlu0 %v5655, 256
        %v5658 = vpop.permute.xlu0 %5657
        %v5659 = vlaneseq
        %v5660 = vshrl.u32 %v5659, 7
        %v5661 = vsub.s32 0, %v5660
        %v5662 = vrot.slane %v5588, %v5661
        %5664 = vbcast.lane.b32.xlu0 %v5662, 256
        %v5665 = vpop.permute.xlu0 %5664
        %v5666 = vlaneseq
        %v5667 = vshrl.u32 %v5666, 7
        %v5668 = vsub.s32 1, %v5667
        %v5669 = vrot.slane %v5588, %v5668
        %5671 = vbcast.lane.b32.xlu0 %v5669, 256
        %v5672 = vpop.permute.xlu0 %5671
        %v5673 = vlaneseq
        %v5674 = vshrl.u32 %v5673, 7
        %v5675 = vsub.s32 2, %v5674
        %v5676 = vrot.slane %v5588, %v5675
        %5678 = vbcast.lane.b32.xlu0 %v5676, 256
        %v5679 = vpop.permute.xlu0 %5678
        %v5680 = vlaneseq
        %v5681 = vshrl.u32 %v5680, 7
        %v5682 = vsub.s32 3, %v5681
        %v5683 = vrot.slane %v5588, %v5682
        %5685 = vbcast.lane.b32.xlu0 %v5683, 256
        %v5686 = vpop.permute.xlu0 %5685
        %v5687 = vlaneseq
        %v5688 = vshrl.u32 %v5687, 7
        %v5689 = vsub.s32 4, %v5688
        %v5690 = vrot.slane %v5588, %v5689
        %5692 = vbcast.lane.b32.xlu0 %v5690, 256
        %v5693 = vpop.permute.xlu0 %5692
        %v5694 = vlaneseq
        %v5695 = vshrl.u32 %v5694, 7
        %v5696 = vsub.s32 5, %v5695
        %v5697 = vrot.slane %v5588, %v5696
        %5699 = vbcast.lane.b32.xlu0 %v5697, 256
        %v5700 = vpop.permute.xlu0 %5699
        %v5701 = vlaneseq
        %v5702 = vshrl.u32 %v5701, 7
        %v5703 = vsub.s32 6, %v5702
        %v5704 = vrot.slane %v5588, %v5703
        %5706 = vbcast.lane.b32.xlu0 %v5704, 256
        %v5707 = vpop.permute.xlu0 %5706
        %v5708 = vlaneseq
        %v5709 = vshrl.u32 %v5708, 7
        %v5710 = vsub.s32 7, %v5709
        %v5711 = vrot.slane %v5588, %v5710
        %5713 = vbcast.lane.b32.xlu0 %v5711, 256
        %v5714 = vpop.permute.xlu0 %5713
        %v5715 = vsub.f32 %v5225, %v5609
        %v5716 = vsub.f32 %v5226, %v5616
        %v5717 = vsub.f32 %v5227, %v5623
        %v5718 = vsub.f32 %v5228, %v5630
        %v5719 = vsub.f32 %v5229, %v5637
        %v5720 = vsub.f32 %v5230, %v5644
        %v5721 = vsub.f32 %v5231, %v5651
        %v5722 = vsub.f32 %v5232, %v5658
        %v5723 = vsub.f32 %v5233, %v5665
        %v5724 = vsub.f32 %v5234, %v5672
        %v5725 = vsub.f32 %v5235, %v5679
        %v5726 = vsub.f32 %v5236, %v5686
        %v5727 = vsub.f32 %v5237, %v5693
        %v5728 = vsub.f32 %v5238, %v5700
        %v5729 = vsub.f32 %v5239, %v5707
        %v5730 = vsub.f32 %v5240, %v5714
        %v5731 = vmul.f32 %v5715, 1.442695
        %v5732 = vpow.pop %v5731
        %v5733 = vmul.f32 %v5716, 1.442695
        %v5734 = vpow.pop %v5733
        %v5735 = vmul.f32 %v5717, 1.442695
        %v5736 = vpow.pop %v5735
        %v5737 = vmul.f32 %v5718, 1.442695
        %v5738 = vpow.pop %v5737
        %v5739 = vmul.f32 %v5719, 1.442695
        %v5740 = vpow.pop %v5739
        %v5741 = vmul.f32 %v5720, 1.442695
        %v5742 = vpow.pop %v5741
        %v5743 = vmul.f32 %v5721, 1.442695
        %v5744 = vpow.pop %v5743
        %v5745 = vmul.f32 %v5722, 1.442695
        %v5746 = vpow.pop %v5745
        %v5747 = vmul.f32 %v5723, 1.442695
        %v5748 = vpow.pop %v5747
        %v5749 = vmul.f32 %v5724, 1.442695
        %v5750 = vpow.pop %v5749
        %v5751 = vmul.f32 %v5725, 1.442695
        %v5752 = vpow.pop %v5751
        %v5753 = vmul.f32 %v5726, 1.442695
        %v5754 = vpow.pop %v5753
        %v5755 = vmul.f32 %v5727, 1.442695
        %v5756 = vpow.pop %v5755
        %v5757 = vmul.f32 %v5728, 1.442695
        %v5758 = vpow.pop %v5757
        %v5759 = vmul.f32 %v5729, 1.442695
        %v5760 = vpow.pop %v5759
        %v5761 = vmul.f32 %v5730, 1.442695
        %v5762 = vpow.pop %v5761
        %v5763 = vlaneseq
        %v5764 = vshrl.u32 %v5763, 7
        %v5765 = vsub.s32 0, %v5764
        %v5766 = vrot.slane %v5570, %v5765
        %5768 = vbcast.lane.b32.xlu0 %v5766, 256
        %v5769 = vpop.permute.xlu0 %5768
        %s5771 = sor.u32 256, 8
        %5772 = vbcast.lane.b32.xlu0 %v5766, %s5771
        %v5773 = vpop.permute.xlu0 %5772
        %v5774 = vlaneseq
        %v5775 = vshrl.u32 %v5774, 7
        %v5776 = vsub.s32 1, %v5775
        %v5777 = vrot.slane %v5570, %v5776
        %5779 = vbcast.lane.b32.xlu0 %v5777, 256
        %v5780 = vpop.permute.xlu0 %5779
        %s5782 = sor.u32 256, 8
        %5783 = vbcast.lane.b32.xlu0 %v5777, %s5782
        %v5784 = vpop.permute.xlu0 %5783
        %v5785 = vlaneseq
        %v5786 = vshrl.u32 %v5785, 7
        %v5787 = vsub.s32 2, %v5786
        %v5788 = vrot.slane %v5570, %v5787
        %5790 = vbcast.lane.b32.xlu0 %v5788, 256
        %v5791 = vpop.permute.xlu0 %5790
        %s5793 = sor.u32 256, 8
        %5794 = vbcast.lane.b32.xlu0 %v5788, %s5793
        %v5795 = vpop.permute.xlu0 %5794
        %v5796 = vlaneseq
        %v5797 = vshrl.u32 %v5796, 7
        %v5798 = vsub.s32 3, %v5797
        %v5799 = vrot.slane %v5570, %v5798
        %5801 = vbcast.lane.b32.xlu0 %v5799, 256
        %v5802 = vpop.permute.xlu0 %5801
        %s5804 = sor.u32 256, 8
        %5805 = vbcast.lane.b32.xlu0 %v5799, %s5804
        %v5806 = vpop.permute.xlu0 %5805
        %v5807 = vlaneseq
        %v5808 = vshrl.u32 %v5807, 7
        %v5809 = vsub.s32 4, %v5808
        %v5810 = vrot.slane %v5570, %v5809
        %5812 = vbcast.lane.b32.xlu0 %v5810, 256
        %v5813 = vpop.permute.xlu0 %5812
        %s5815 = sor.u32 256, 8
        %5816 = vbcast.lane.b32.xlu0 %v5810, %s5815
        %v5817 = vpop.permute.xlu0 %5816
        %v5818 = vlaneseq
        %v5819 = vshrl.u32 %v5818, 7
        %v5820 = vsub.s32 5, %v5819
        %v5821 = vrot.slane %v5570, %v5820
        %5823 = vbcast.lane.b32.xlu0 %v5821, 256
        %v5824 = vpop.permute.xlu0 %5823
        %s5826 = sor.u32 256, 8
        %5827 = vbcast.lane.b32.xlu0 %v5821, %s5826
        %v5828 = vpop.permute.xlu0 %5827
        %v5829 = vlaneseq
        %v5830 = vshrl.u32 %v5829, 7
        %v5831 = vsub.s32 6, %v5830
        %v5832 = vrot.slane %v5570, %v5831
        %5834 = vbcast.lane.b32.xlu0 %v5832, 256
        %v5835 = vpop.permute.xlu0 %5834
        %s5837 = sor.u32 256, 8
        %5838 = vbcast.lane.b32.xlu0 %v5832, %s5837
        %v5839 = vpop.permute.xlu0 %5838
        %v5840 = vlaneseq
        %v5841 = vshrl.u32 %v5840, 7
        %v5842 = vsub.s32 7, %v5841
        %v5843 = vrot.slane %v5570, %v5842
        %5845 = vbcast.lane.b32.xlu0 %v5843, 256
        %v5846 = vpop.permute.xlu0 %5845
        %s5848 = sor.u32 256, 8
        %5849 = vbcast.lane.b32.xlu0 %v5843, %s5848
        %v5850 = vpop.permute.xlu0 %5849
        %v5851 = vsub.f32 %v4881, %v5769
        %v5852 = vsub.f32 %v4884, %v5773
        %v5853 = vsub.f32 %v4928, %v5780
        %v5854 = vsub.f32 %v4931, %v5784
        %v5855 = vsub.f32 %v4975, %v5791
        %v5856 = vsub.f32 %v4978, %v5795
        %v5857 = vsub.f32 %v5022, %v5802
        %v5858 = vsub.f32 %v5025, %v5806
        %v5859 = vsub.f32 %v5069, %v5813
        %v5860 = vsub.f32 %v5072, %v5817
        %v5861 = vsub.f32 %v5116, %v5824
        %v5862 = vsub.f32 %v5119, %v5828
        %v5863 = vsub.f32 %v5163, %v5835
        %v5864 = vsub.f32 %v5166, %v5839
        %v5865 = vsub.f32 %v5210, %v5846
        %v5866 = vsub.f32 %v5213, %v5850
        %v5867 = vmul.f32 %v5851, 1.442695
        %v5868 = vpow.pop %v5867
        %v5869 = vmul.f32 %v5852, 1.442695
        %v5870 = vpow.pop %v5869
        %v5871 = vmul.f32 %v5853, 1.442695
        %v5872 = vpow.pop %v5871
        %v5873 = vmul.f32 %v5854, 1.442695
        %v5874 = vpow.pop %v5873
        %v5875 = vmul.f32 %v5855, 1.442695
        %v5876 = vpow.pop %v5875
        %v5877 = vmul.f32 %v5856, 1.442695
        %v5878 = vpow.pop %v5877
        %v5879 = vmul.f32 %v5857, 1.442695
        %v5880 = vpow.pop %v5879
        %v5881 = vmul.f32 %v5858, 1.442695
        %v5882 = vpow.pop %v5881
        %v5883 = vmul.f32 %v5859, 1.442695
        %v5884 = vpow.pop %v5883
        %v5885 = vmul.f32 %v5860, 1.442695
        %v5886 = vpow.pop %v5885
        %v5887 = vmul.f32 %v5861, 1.442695
        %v5888 = vpow.pop %v5887
        %v5889 = vmul.f32 %v5862, 1.442695
        %v5890 = vpow.pop %v5889
        %v5891 = vmul.f32 %v5863, 1.442695
        %v5892 = vpow.pop %v5891
        %v5893 = vmul.f32 %v5864, 1.442695
        %v5894 = vpow.pop %v5893
        %v5895 = vmul.f32 %v5865, 1.442695
        %v5896 = vpow.pop %v5895
        %v5897 = vmul.f32 %v5866, 1.442695
        %v5898 = vpow.pop %v5897
        %v5899 = vsel %vm3060, %v5732, 0.0
        %5900 = vadd.xlane.f32.xlu0 %v5899
        %v5901 = vpop.xlane.xlu0 %5900
        %v5902 = vsel %vm3060, %v5734, 0.0
        %5903 = vadd.xlane.f32.xlu0 %v5902
        %v5904 = vpop.xlane.xlu0 %5903
        %v5905 = vsel %vm3060, %v5736, 0.0
        %5906 = vadd.xlane.f32.xlu0 %v5905
        %v5907 = vpop.xlane.xlu0 %5906
        %v5908 = vsel %vm3060, %v5738, 0.0
        %5909 = vadd.xlane.f32.xlu0 %v5908
        %v5910 = vpop.xlane.xlu0 %5909
        %v5911 = vsel %vm3060, %v5740, 0.0
        %5912 = vadd.xlane.f32.xlu0 %v5911
        %v5913 = vpop.xlane.xlu0 %5912
        %v5914 = vsel %vm3060, %v5742, 0.0
        %5915 = vadd.xlane.f32.xlu0 %v5914
        %v5916 = vpop.xlane.xlu0 %5915
        %v5917 = vsel %vm3060, %v5744, 0.0
        %5918 = vadd.xlane.f32.xlu0 %v5917
        %v5919 = vpop.xlane.xlu0 %5918
        %v5920 = vsel %vm3060, %v5746, 0.0
        %5921 = vadd.xlane.f32.xlu0 %v5920
        %v5922 = vpop.xlane.xlu0 %5921
        %v5923 = vsel %vm3060, %v5748, 0.0
        %5924 = vadd.xlane.f32.xlu0 %v5923
        %v5925 = vpop.xlane.xlu0 %5924
        %v5926 = vsel %vm3060, %v5750, 0.0
        %5927 = vadd.xlane.f32.xlu0 %v5926
        %v5928 = vpop.xlane.xlu0 %5927
        %v5929 = vsel %vm3060, %v5752, 0.0
        %5930 = vadd.xlane.f32.xlu0 %v5929
        %v5931 = vpop.xlane.xlu0 %5930
        %v5932 = vsel %vm3060, %v5754, 0.0
        %5933 = vadd.xlane.f32.xlu0 %v5932
        %v5934 = vpop.xlane.xlu0 %5933
        %v5935 = vsel %vm3060, %v5756, 0.0
        %5936 = vadd.xlane.f32.xlu0 %v5935
        %v5937 = vpop.xlane.xlu0 %5936
        %v5938 = vsel %vm3060, %v5758, 0.0
        %5939 = vadd.xlane.f32.xlu0 %v5938
        %v5940 = vpop.xlane.xlu0 %5939
        %v5941 = vsel %vm3060, %v5760, 0.0
        %5942 = vadd.xlane.f32.xlu0 %v5941
        %v5943 = vpop.xlane.xlu0 %5942
        %v5944 = vsel %vm3060, %v5762, 0.0
        %5945 = vadd.xlane.f32.xlu0 %v5944
        %v5946 = vpop.xlane.xlu0 %5945
        %v5963 = vlaneseq
        %v5964 = vshrl.u32 %v5963, 7
        %v5965 = vsub.s32 %v5221, %v5964
        %v5966 = vrot.slane %v5901, %v5965
        %v5967 = vlaneseq
        %v5968 = vshrl.u32 %v5967, 7
        %v5969 = vsub.s32 %v5221, %v5968
        %v5970 = vrot.slane %v5904, %v5969
        %v5971 = vlaneseq
        %v5972 = vshrl.u32 %v5971, 7
        %v5973 = vsub.s32 %v5221, %v5972
        %v5974 = vrot.slane %v5907, %v5973
        %v5975 = vlaneseq
        %v5976 = vshrl.u32 %v5975, 7
        %v5977 = vsub.s32 %v5221, %v5976
        %v5978 = vrot.slane %v5910, %v5977
        %v5979 = vlaneseq
        %v5980 = vshrl.u32 %v5979, 7
        %v5981 = vsub.s32 %v5221, %v5980
        %v5982 = vrot.slane %v5913, %v5981
        %v5983 = vlaneseq
        %v5984 = vshrl.u32 %v5983, 7
        %v5985 = vsub.s32 %v5221, %v5984
        %v5986 = vrot.slane %v5916, %v5985
        %v5987 = vlaneseq
        %v5988 = vshrl.u32 %v5987, 7
        %v5989 = vsub.s32 %v5221, %v5988
        %v5990 = vrot.slane %v5919, %v5989
        %v5991 = vlaneseq
        %v5992 = vshrl.u32 %v5991, 7
        %v5993 = vsub.s32 %v5221, %v5992
        %v5994 = vrot.slane %v5922, %v5993
        %v5995 = vlaneseq
        %v5996 = vshrl.u32 %v5995, 7
        %v5997 = vsub.s32 %v5221, %v5996
        %v5998 = vrot.slane %v5925, %v5997
        %v5999 = vlaneseq
        %v6000 = vshrl.u32 %v5999, 7
        %v6001 = vsub.s32 %v5221, %v6000
        %v6002 = vrot.slane %v5928, %v6001
        %v6003 = vlaneseq
        %v6004 = vshrl.u32 %v6003, 7
        %v6005 = vsub.s32 %v5221, %v6004
        %v6006 = vrot.slane %v5931, %v6005
        %v6007 = vlaneseq
        %v6008 = vshrl.u32 %v6007, 7
        %v6009 = vsub.s32 %v5221, %v6008
        %v6010 = vrot.slane %v5934, %v6009
        %v6011 = vlaneseq
        %v6012 = vshrl.u32 %v6011, 7
        %v6013 = vsub.s32 %v5221, %v6012
        %v6014 = vrot.slane %v5937, %v6013
        %v6015 = vlaneseq
        %v6016 = vshrl.u32 %v6015, 7
        %v6017 = vsub.s32 %v5221, %v6016
        %v6018 = vrot.slane %v5940, %v6017
        %v6019 = vlaneseq
        %v6020 = vshrl.u32 %v6019, 7
        %v6021 = vsub.s32 %v5221, %v6020
        %v6022 = vrot.slane %v5943, %v6021
        %v6023 = vlaneseq
        %v6024 = vshrl.u32 %v6023, 7
        %v6025 = vsub.s32 %v5221, %v6024
        %v6026 = vrot.slane %v5946, %v6025
        %v6027 = vsel %vm5369, %v5970, %v5966
        %v6028 = vsel %vm5371, %v5974, %v6027
        %v6029 = vsel %vm5373, %v5978, %v6028
        %v6030 = vsel %vm5375, %v5982, %v6029
        %v6031 = vsel %vm5377, %v5986, %v6030
        %v6032 = vsel %vm5379, %v5990, %v6031
        %v6033 = vsel %vm5381, %v5994, %v6032
        %v6034 = vsel %vm5369, %v6002, %v5998
        %v6035 = vsel %vm5371, %v6006, %v6034
        %v6036 = vsel %vm5373, %v6010, %v6035
        %v6037 = vsel %vm5375, %v6014, %v6036
        %v6038 = vsel %vm5377, %v6018, %v6037
        %v6039 = vsel %vm5379, %v6022, %v6038
        %v6040 = vsel %vm5381, %v6026, %v6039
        %6043 = vxpose.xlu0.b32.start [1/16] %v6033, 128
        %6044 = vxpose.xlu0.b32.cont [2/16] %v6040, 128
        %6045 = vxpose.xlu0.b32.cont [3/16] 0.0, 128
        %6046 = vxpose.xlu0.b32.cont [4/16] 0.0, 128
        %6047 = vxpose.xlu0.b32.cont [5/16] 0.0, 128
        %6048 = vxpose.xlu0.b32.cont [6/16] 0.0, 128
        %6049 = vxpose.xlu0.b32.cont [7/16] 0.0, 128
        %6050 = vxpose.xlu0.b32.cont [8/16] 0.0, 128
        %6051 = vxpose.xlu0.b32.cont [9/16] 0.0, 128
        %6052 = vxpose.xlu0.b32.cont [10/16] 0.0, 128
        %6053 = vxpose.xlu0.b32.cont [11/16] 0.0, 128
        %6054 = vxpose.xlu0.b32.cont [12/16] 0.0, 128
        %6055 = vxpose.xlu0.b32.cont [13/16] 0.0, 128
        %6056 = vxpose.xlu0.b32.cont [14/16] 0.0, 128
        %6057 = vxpose.xlu0.b32.cont [15/16] 0.0, 128
        %6058 = vxpose.xlu0.b32.end [16/16] 0.0, 128
        %v6059 = vpop.trf.xlu0
        %v6060 = vpop.trf.xlu0
        %v6061 = vpop.trf.xlu0
        %v6062 = vpop.trf.xlu0
        %v6063 = vpop.trf.xlu0
        %v6064 = vpop.trf.xlu0
        %v6065 = vpop.trf.xlu0
        %v6066 = vpop.trf.xlu0
        %v6067 = vpop.trf.xlu0
        %v6068 = vpop.trf.xlu0
        %v6069 = vpop.trf.xlu0
        %v6070 = vpop.trf.xlu0
        %v6071 = vpop.trf.xlu0
        %v6072 = vpop.trf.xlu0
        %v6073 = vpop.trf.xlu0
        %v6074 = vpop.trf.xlu0
        %v6075 = vsel %vm3060, %v5868, 0.0
        %6076 = vadd.xlane.f32.xlu0 %v6075
        %v6077 = vpop.xlane.xlu0 %6076
        %v6078 = vsel %vm3060, %v5870, 0.0
        %6079 = vadd.xlane.f32.xlu0 %v6078
        %v6080 = vpop.xlane.xlu0 %6079
        %v6081 = vsel %vm3060, %v5872, 0.0
        %6082 = vadd.xlane.f32.xlu0 %v6081
        %v6083 = vpop.xlane.xlu0 %6082
        %v6084 = vsel %vm3060, %v5874, 0.0
        %6085 = vadd.xlane.f32.xlu0 %v6084
        %v6086 = vpop.xlane.xlu0 %6085
        %v6087 = vsel %vm3060, %v5876, 0.0
        %6088 = vadd.xlane.f32.xlu0 %v6087
        %v6089 = vpop.xlane.xlu0 %6088
        %v6090 = vsel %vm3060, %v5878, 0.0
        %6091 = vadd.xlane.f32.xlu0 %v6090
        %v6092 = vpop.xlane.xlu0 %6091
        %v6093 = vsel %vm3060, %v5880, 0.0
        %6094 = vadd.xlane.f32.xlu0 %v6093
        %v6095 = vpop.xlane.xlu0 %6094
        %v6096 = vsel %vm3060, %v5882, 0.0
        %6097 = vadd.xlane.f32.xlu0 %v6096
        %v6098 = vpop.xlane.xlu0 %6097
        %v6099 = vsel %vm3060, %v5884, 0.0
        %6100 = vadd.xlane.f32.xlu0 %v6099
        %v6101 = vpop.xlane.xlu0 %6100
        %v6102 = vsel %vm3060, %v5886, 0.0
        %6103 = vadd.xlane.f32.xlu0 %v6102
        %v6104 = vpop.xlane.xlu0 %6103
        %v6105 = vsel %vm3060, %v5888, 0.0
        %6106 = vadd.xlane.f32.xlu0 %v6105
        %v6107 = vpop.xlane.xlu0 %6106
        %v6108 = vsel %vm3060, %v5890, 0.0
        %6109 = vadd.xlane.f32.xlu0 %v6108
        %v6110 = vpop.xlane.xlu0 %6109
        %v6111 = vsel %vm3060, %v5892, 0.0
        %6112 = vadd.xlane.f32.xlu0 %v6111
        %v6113 = vpop.xlane.xlu0 %6112
        %v6114 = vsel %vm3060, %v5894, 0.0
        %6115 = vadd.xlane.f32.xlu0 %v6114
        %v6116 = vpop.xlane.xlu0 %6115
        %v6117 = vsel %vm3060, %v5896, 0.0
        %6118 = vadd.xlane.f32.xlu0 %v6117
        %v6119 = vpop.xlane.xlu0 %6118
        %v6120 = vsel %vm3060, %v5898, 0.0
        %6121 = vadd.xlane.f32.xlu0 %v6120
        %v6122 = vpop.xlane.xlu0 %6121
        %v6139 = vlaneseq
        %v6140 = vshrl.u32 %v6139, 7
        %v6141 = vsub.s32 %v5221, %v6140
        %v6142 = vrot.slane %v6077, %v6141
        %v6143 = vlaneseq
        %v6144 = vshrl.u32 %v6143, 7
        %v6145 = vsub.s32 %v5492, %v6144
        %v6146 = vrot.slane %v6080, %v6145
        %v6147 = vsel %vm5497, %v6146, %v6142
        %v6148 = vlaneseq
        %v6149 = vshrl.u32 %v6148, 7
        %v6150 = vsub.s32 %v5221, %v6149
        %v6151 = vrot.slane %v6083, %v6150
        %v6152 = vlaneseq
        %v6153 = vshrl.u32 %v6152, 7
        %v6154 = vsub.s32 %v5492, %v6153
        %v6155 = vrot.slane %v6086, %v6154
        %v6156 = vsel %vm5497, %v6155, %v6151
        %v6157 = vlaneseq
        %v6158 = vshrl.u32 %v6157, 7
        %v6159 = vsub.s32 %v5221, %v6158
        %v6160 = vrot.slane %v6089, %v6159
        %v6161 = vlaneseq
        %v6162 = vshrl.u32 %v6161, 7
        %v6163 = vsub.s32 %v5492, %v6162
        %v6164 = vrot.slane %v6092, %v6163
        %v6165 = vsel %vm5497, %v6164, %v6160
        %v6166 = vlaneseq
        %v6167 = vshrl.u32 %v6166, 7
        %v6168 = vsub.s32 %v5221, %v6167
        %v6169 = vrot.slane %v6095, %v6168
        %v6170 = vlaneseq
        %v6171 = vshrl.u32 %v6170, 7
        %v6172 = vsub.s32 %v5492, %v6171
        %v6173 = vrot.slane %v6098, %v6172
        %v6174 = vsel %vm5497, %v6173, %v6169
        %v6175 = vlaneseq
        %v6176 = vshrl.u32 %v6175, 7
        %v6177 = vsub.s32 %v5221, %v6176
        %v6178 = vrot.slane %v6101, %v6177
        %v6179 = vlaneseq
        %v6180 = vshrl.u32 %v6179, 7
        %v6181 = vsub.s32 %v5492, %v6180
        %v6182 = vrot.slane %v6104, %v6181
        %v6183 = vsel %vm5497, %v6182, %v6178
        %v6184 = vlaneseq
        %v6185 = vshrl.u32 %v6184, 7
        %v6186 = vsub.s32 %v5221, %v6185
        %v6187 = vrot.slane %v6107, %v6186
        %v6188 = vlaneseq
        %v6189 = vshrl.u32 %v6188, 7
        %v6190 = vsub.s32 %v5492, %v6189
        %v6191 = vrot.slane %v6110, %v6190
        %v6192 = vsel %vm5497, %v6191, %v6187
        %v6193 = vlaneseq
        %v6194 = vshrl.u32 %v6193, 7
        %v6195 = vsub.s32 %v5221, %v6194
        %v6196 = vrot.slane %v6113, %v6195
        %v6197 = vlaneseq
        %v6198 = vshrl.u32 %v6197, 7
        %v6199 = vsub.s32 %v5492, %v6198
        %v6200 = vrot.slane %v6116, %v6199
        %v6201 = vsel %vm5497, %v6200, %v6196
        %v6202 = vlaneseq
        %v6203 = vshrl.u32 %v6202, 7
        %v6204 = vsub.s32 %v5221, %v6203
        %v6205 = vrot.slane %v6119, %v6204
        %v6206 = vlaneseq
        %v6207 = vshrl.u32 %v6206, 7
        %v6208 = vsub.s32 %v5492, %v6207
        %v6209 = vrot.slane %v6122, %v6208
        %v6210 = vsel %vm5497, %v6209, %v6205
        %v6211 = vsel %vm5369, %v6156, %v6147
        %v6212 = vsel %vm5371, %v6165, %v6211
        %v6213 = vsel %vm5373, %v6174, %v6212
        %v6214 = vsel %vm5375, %v6183, %v6213
        %v6215 = vsel %vm5377, %v6192, %v6214
        %v6216 = vsel %vm5379, %v6201, %v6215
        %v6217 = vsel %vm5381, %v6210, %v6216
        %v6219 = vadd.f32 %v6059, %v6217
        %v6220 = vrcp.pop %v6219
        %6221 = vxpose.xlu0.b32.start [1/16] %v6220, 128
        %6222 = vxpose.xlu0.b32.cont [2/16] 0.0, 128
        %6223 = vxpose.xlu0.b32.cont [3/16] 0.0, 128
        %6224 = vxpose.xlu0.b32.cont [4/16] 0.0, 128
        %6225 = vxpose.xlu0.b32.cont [5/16] 0.0, 128
        %6226 = vxpose.xlu0.b32.cont [6/16] 0.0, 128
        %6227 = vxpose.xlu0.b32.cont [7/16] 0.0, 128
        %6228 = vxpose.xlu0.b32.cont [8/16] 0.0, 128
        %6229 = vxpose.xlu0.b32.cont [9/16] 0.0, 128
        %6230 = vxpose.xlu0.b32.cont [10/16] 0.0, 128
        %6231 = vxpose.xlu0.b32.cont [11/16] 0.0, 128
        %6232 = vxpose.xlu0.b32.cont [12/16] 0.0, 128
        %6233 = vxpose.xlu0.b32.cont [13/16] 0.0, 128
        %6234 = vxpose.xlu0.b32.cont [14/16] 0.0, 128
        %6235 = vxpose.xlu0.b32.cont [15/16] 0.0, 128
        %6236 = vxpose.xlu0.b32.end [16/16] 0.0, 128
        %v6237 = vpop.trf.xlu0
        %v6238 = vpop.trf.xlu0
        %v6239 = vpop.trf.xlu0
        %v6240 = vpop.trf.xlu0
        %v6241 = vpop.trf.xlu0
        %v6242 = vpop.trf.xlu0
        %v6243 = vpop.trf.xlu0
        %v6244 = vpop.trf.xlu0
        %v6245 = vpop.trf.xlu0
        %v6246 = vpop.trf.xlu0
        %v6247 = vpop.trf.xlu0
        %v6248 = vpop.trf.xlu0
        %v6249 = vpop.trf.xlu0
        %v6250 = vpop.trf.xlu0
        %v6251 = vpop.trf.xlu0
        %v6252 = vpop.trf.xlu0
        %v6253 = vlaneseq
        %v6254 = vshrl.u32 %v6253, 7
        %v6255 = vsub.s32 0, %v6254
        %v6256 = vrot.slane %v6237, %v6255
        %6258 = vbcast.lane.b32.xlu0 %v6256, 256
        %v6259 = vpop.permute.xlu0 %6258
        %v6260 = vlaneseq
        %v6261 = vshrl.u32 %v6260, 7
        %v6262 = vsub.s32 1, %v6261
        %v6263 = vrot.slane %v6237, %v6262
        %6265 = vbcast.lane.b32.xlu0 %v6263, 256
        %v6266 = vpop.permute.xlu0 %6265
        %v6267 = vlaneseq
        %v6268 = vshrl.u32 %v6267, 7
        %v6269 = vsub.s32 2, %v6268
        %v6270 = vrot.slane %v6237, %v6269
        %6272 = vbcast.lane.b32.xlu0 %v6270, 256
        %v6273 = vpop.permute.xlu0 %6272
        %v6274 = vlaneseq
        %v6275 = vshrl.u32 %v6274, 7
        %v6276 = vsub.s32 3, %v6275
        %v6277 = vrot.slane %v6237, %v6276
        %6279 = vbcast.lane.b32.xlu0 %v6277, 256
        %v6280 = vpop.permute.xlu0 %6279
        %v6281 = vlaneseq
        %v6282 = vshrl.u32 %v6281, 7
        %v6283 = vsub.s32 4, %v6282
        %v6284 = vrot.slane %v6237, %v6283
        %6286 = vbcast.lane.b32.xlu0 %v6284, 256
        %v6287 = vpop.permute.xlu0 %6286
        %v6288 = vlaneseq
        %v6289 = vshrl.u32 %v6288, 7
        %v6290 = vsub.s32 5, %v6289
        %v6291 = vrot.slane %v6237, %v6290
        %6293 = vbcast.lane.b32.xlu0 %v6291, 256
        %v6294 = vpop.permute.xlu0 %6293
        %v6295 = vlaneseq
        %v6296 = vshrl.u32 %v6295, 7
        %v6297 = vsub.s32 6, %v6296
        %v6298 = vrot.slane %v6237, %v6297
        %6300 = vbcast.lane.b32.xlu0 %v6298, 256
        %v6301 = vpop.permute.xlu0 %6300
        %v6302 = vlaneseq
        %v6303 = vshrl.u32 %v6302, 7
        %v6304 = vsub.s32 7, %v6303
        %v6305 = vrot.slane %v6237, %v6304
        %6307 = vbcast.lane.b32.xlu0 %v6305, 256
        %v6308 = vpop.permute.xlu0 %6307
        %v6309 = vlaneseq
        %v6310 = vshrl.u32 %v6309, 7
        %v6311 = vsub.s32 0, %v6310
        %v6312 = vrot.slane %v6238, %v6311
        %6314 = vbcast.lane.b32.xlu0 %v6312, 256
        %v6315 = vpop.permute.xlu0 %6314
        %v6316 = vlaneseq
        %v6317 = vshrl.u32 %v6316, 7
        %v6318 = vsub.s32 1, %v6317
        %v6319 = vrot.slane %v6238, %v6318
        %6321 = vbcast.lane.b32.xlu0 %v6319, 256
        %v6322 = vpop.permute.xlu0 %6321
        %v6323 = vlaneseq
        %v6324 = vshrl.u32 %v6323, 7
        %v6325 = vsub.s32 2, %v6324
        %v6326 = vrot.slane %v6238, %v6325
        %6328 = vbcast.lane.b32.xlu0 %v6326, 256
        %v6329 = vpop.permute.xlu0 %6328
        %v6330 = vlaneseq
        %v6331 = vshrl.u32 %v6330, 7
        %v6332 = vsub.s32 3, %v6331
        %v6333 = vrot.slane %v6238, %v6332
        %6335 = vbcast.lane.b32.xlu0 %v6333, 256
        %v6336 = vpop.permute.xlu0 %6335
        %v6337 = vlaneseq
        %v6338 = vshrl.u32 %v6337, 7
        %v6339 = vsub.s32 4, %v6338
        %v6340 = vrot.slane %v6238, %v6339
        %6342 = vbcast.lane.b32.xlu0 %v6340, 256
        %v6343 = vpop.permute.xlu0 %6342
        %v6344 = vlaneseq
        %v6345 = vshrl.u32 %v6344, 7
        %v6346 = vsub.s32 5, %v6345
        %v6347 = vrot.slane %v6238, %v6346
        %6349 = vbcast.lane.b32.xlu0 %v6347, 256
        %v6350 = vpop.permute.xlu0 %6349
        %v6351 = vlaneseq
        %v6352 = vshrl.u32 %v6351, 7
        %v6353 = vsub.s32 6, %v6352
        %v6354 = vrot.slane %v6238, %v6353
        %6356 = vbcast.lane.b32.xlu0 %v6354, 256
        %v6357 = vpop.permute.xlu0 %6356
        %v6358 = vlaneseq
        %v6359 = vshrl.u32 %v6358, 7
        %v6360 = vsub.s32 7, %v6359
        %v6361 = vrot.slane %v6238, %v6360
        %6363 = vbcast.lane.b32.xlu0 %v6361, 256
        %v6364 = vpop.permute.xlu0 %6363
        %v6365 = vmul.f32 %v5732, %v6259
        %v6366 = vmul.f32 %v5734, %v6266
        %v6367 = vmul.f32 %v5736, %v6273
        %v6368 = vmul.f32 %v5738, %v6280
        %v6369 = vmul.f32 %v5740, %v6287
        %v6370 = vmul.f32 %v5742, %v6294
        %v6371 = vmul.f32 %v5744, %v6301
        %v6372 = vmul.f32 %v5746, %v6308
        %v6373 = vmul.f32 %v5748, %v6315
        %v6374 = vmul.f32 %v5750, %v6322
        %v6375 = vmul.f32 %v5752, %v6329
        %v6376 = vmul.f32 %v5754, %v6336
        %v6377 = vmul.f32 %v5756, %v6343
        %v6378 = vmul.f32 %v5758, %v6350
        %v6379 = vmul.f32 %v5760, %v6357
        %v6380 = vmul.f32 %v5762, %v6364
        %v6381 = vpack.c.bf16 %v6365, %v6365
        %v6382 = vpack.c.bf16 %v6366, %v6366
        %v6383 = vpack.c.bf16 %v6367, %v6367
        %v6384 = vpack.c.bf16 %v6368, %v6368
        %v6385 = vpack.c.bf16 %v6369, %v6369
        %v6386 = vpack.c.bf16 %v6370, %v6370
        %v6387 = vpack.c.bf16 %v6371, %v6371
        %v6388 = vpack.c.bf16 %v6372, %v6372
        %v6389 = vpack.c.bf16 %v6373, %v6373
        %v6390 = vpack.c.bf16 %v6374, %v6374
        %v6391 = vpack.c.bf16 %v6375, %v6375
        %v6392 = vpack.c.bf16 %v6376, %v6376
        %v6393 = vpack.c.bf16 %v6377, %v6377
        %v6394 = vpack.c.bf16 %v6378, %v6378
        %v6395 = vpack.c.bf16 %v6379, %v6379
        %v6396 = vpack.c.bf16 %v6380, %v6380
        %v6397 = vlaneseq
        %v6398 = vshrl.u32 %v6397, 7
        %v6399 = vsub.s32 0, %v6398
        %v6400 = vrot.slane %v6220, %v6399
        %6402 = vbcast.lane.b32.xlu0 %v6400, 256
        %v6403 = vpop.permute.xlu0 %6402
        %s6405 = sor.u32 256, 8
        %6406 = vbcast.lane.b32.xlu0 %v6400, %s6405
        %v6407 = vpop.permute.xlu0 %6406
        %v6408 = vlaneseq
        %v6409 = vshrl.u32 %v6408, 7
        %v6410 = vsub.s32 1, %v6409
        %v6411 = vrot.slane %v6220, %v6410
        %6413 = vbcast.lane.b32.xlu0 %v6411, 256
        %v6414 = vpop.permute.xlu0 %6413
        %s6416 = sor.u32 256, 8
        %6417 = vbcast.lane.b32.xlu0 %v6411, %s6416
        %v6418 = vpop.permute.xlu0 %6417
        %v6419 = vlaneseq
        %v6420 = vshrl.u32 %v6419, 7
        %v6421 = vsub.s32 2, %v6420
        %v6422 = vrot.slane %v6220, %v6421
        %6424 = vbcast.lane.b32.xlu0 %v6422, 256
        %v6425 = vpop.permute.xlu0 %6424
        %s6427 = sor.u32 256, 8
        %6428 = vbcast.lane.b32.xlu0 %v6422, %s6427
        %v6429 = vpop.permute.xlu0 %6428
        %v6430 = vlaneseq
        %v6431 = vshrl.u32 %v6430, 7
        %v6432 = vsub.s32 3, %v6431
        %v6433 = vrot.slane %v6220, %v6432
        %6435 = vbcast.lane.b32.xlu0 %v6433, 256
        %v6436 = vpop.permute.xlu0 %6435
        %s6438 = sor.u32 256, 8
        %6439 = vbcast.lane.b32.xlu0 %v6433, %s6438
        %v6440 = vpop.permute.xlu0 %6439
        %v6441 = vlaneseq
        %v6442 = vshrl.u32 %v6441, 7
        %v6443 = vsub.s32 4, %v6442
        %v6444 = vrot.slane %v6220, %v6443
        %6446 = vbcast.lane.b32.xlu0 %v6444, 256
        %v6447 = vpop.permute.xlu0 %6446
        %s6449 = sor.u32 256, 8
        %6450 = vbcast.lane.b32.xlu0 %v6444, %s6449
        %v6451 = vpop.permute.xlu0 %6450
        %v6452 = vlaneseq
        %v6453 = vshrl.u32 %v6452, 7
        %v6454 = vsub.s32 5, %v6453
        %v6455 = vrot.slane %v6220, %v6454
        %6457 = vbcast.lane.b32.xlu0 %v6455, 256
        %v6458 = vpop.permute.xlu0 %6457
        %s6460 = sor.u32 256, 8
        %6461 = vbcast.lane.b32.xlu0 %v6455, %s6460
        %v6462 = vpop.permute.xlu0 %6461
        %v6463 = vlaneseq
        %v6464 = vshrl.u32 %v6463, 7
        %v6465 = vsub.s32 6, %v6464
        %v6466 = vrot.slane %v6220, %v6465
        %6468 = vbcast.lane.b32.xlu0 %v6466, 256
        %v6469 = vpop.permute.xlu0 %6468
        %s6471 = sor.u32 256, 8
        %6472 = vbcast.lane.b32.xlu0 %v6466, %s6471
        %v6473 = vpop.permute.xlu0 %6472
        %v6474 = vlaneseq
        %v6475 = vshrl.u32 %v6474, 7
        %v6476 = vsub.s32 7, %v6475
        %v6477 = vrot.slane %v6220, %v6476
        %6479 = vbcast.lane.b32.xlu0 %v6477, 256
        %v6480 = vpop.permute.xlu0 %6479
        %s6482 = sor.u32 256, 8
        %6483 = vbcast.lane.b32.xlu0 %v6477, %s6482
        %v6484 = vpop.permute.xlu0 %6483
        %v6485 = vmul.f32 %v5868, %v6403
        %v6486 = vmul.f32 %v5870, %v6407
        %v6487 = vmul.f32 %v5872, %v6414
        %v6488 = vmul.f32 %v5874, %v6418
        %v6489 = vmul.f32 %v5876, %v6425
        %v6490 = vmul.f32 %v5878, %v6429
        %v6491 = vmul.f32 %v5880, %v6436
        %v6492 = vmul.f32 %v5882, %v6440
        %v6493 = vmul.f32 %v5884, %v6447
        %v6494 = vmul.f32 %v5886, %v6451
        %v6495 = vmul.f32 %v5888, %v6458
        %v6496 = vmul.f32 %v5890, %v6462
        %v6497 = vmul.f32 %v5892, %v6469
        %v6498 = vmul.f32 %v5894, %v6473
        %v6499 = vmul.f32 %v5896, %v6480
        %v6500 = vmul.f32 %v5898, %v6484
        %v6501 = vpack.c.bf16 %v6486, %v6485
        %v6502 = vpack.c.bf16 %v6488, %v6487
        %v6503 = vpack.c.bf16 %v6490, %v6489
        %v6504 = vpack.c.bf16 %v6492, %v6491
        %v6505 = vpack.c.bf16 %v6494, %v6493
        %v6506 = vpack.c.bf16 %v6496, %v6495
        %v6507 = vpack.c.bf16 %v6498, %v6497
        %v6508 = vpack.c.bf16 %v6500, %v6499
        %v6510 = vsel %vm3060, %v3682, 0
        %v6513 = vsel %vm3060, %v6381, 0
        %6515 = vmatprep.subr.bf16.mxu0 0
        %6516 = vmatpush1.bf16.xpose.msra.mxu0 %v6513
        %6517 = vmatprep.subr.bf16.mxu0 0
        %6518 = vmatpush1.bf16.xpose.msra.mxu0 0
        %6519 = vmatprep.subr.bf16.mxu0 0
        %6520 = vmatpush1.bf16.xpose.msra.mxu0 0
        %6521 = vmatprep.subr.bf16.mxu0 0
        %6522 = vmatpush1.bf16.xpose.msra.mxu0 0
        %6523 = vmatprep.subr.bf16.mxu0 0
        %6524 = vmatpush1.bf16.xpose.msra.mxu0 0
        %6525 = vmatprep.subr.bf16.mxu0 0
        %6526 = vmatpush1.bf16.xpose.msra.mxu0 0
        %6527 = vmatprep.subr.bf16.mxu0 0
        %6528 = vmatpush1.bf16.xpose.msra.mxu0 0
        %6529 = vmatprep.subr.bf16.mxu0 0
        %6530 = vmatpush1.bf16.xpose.msra.mxu0 0
        %6531 = vmatprep.subr.bf16.mxu0 0
        %6532 = vmatpush1.bf16.xpose.msra.mxu0 0
        %6533 = vmatprep.subr.bf16.mxu0 0
        %6534 = vmatpush1.bf16.xpose.msra.mxu0 0
        %6535 = vmatprep.subr.bf16.mxu0 0
        %6536 = vmatpush1.bf16.xpose.msra.mxu0 0
        %6537 = vmatprep.subr.bf16.mxu0 0
        %6538 = vmatpush1.bf16.xpose.msra.mxu0 0
        %6539 = vmatprep.subr.bf16.mxu0 0
        %6540 = vmatpush1.bf16.xpose.msra.mxu0 0
        %6541 = vmatprep.subr.bf16.mxu0 0
        %6542 = vmatpush1.bf16.xpose.msra.mxu0 0
        %6543 = vmatprep.subr.bf16.mxu0 0
        %6544 = vmatpush1.bf16.xpose.msra.mxu0 0
        %6545 = vmatprep.subr.bf16.mxu0 0
        %6546 = vmatpush1.bf16.xpose.msra.mxu0 0
        %6547 = vmatprep.mubr.bf16.mxu0 0
        %6548 = vmatmul.mubr.bf16.gmra.mrb[0].mxu0 %v6510
        %v6549 = vpop.f32.mrb[0].mxu0
        %v6550 = vadd.f32 0.0, %v6549
        %v6551 = vpop.f32.mrb[0].mxu0
        %v6552 = vpop.f32.mrb[0].mxu0
        %v6553 = vadd.f32 0.0, %v6552
        %v6554 = vpop.f32.mrb[0].mxu0
        %6555 = vdwg.mxu0
        %v6557 = vsel %vm3060, %v3683, 0
        %v6560 = vsel %vm3060, %v6382, 0
        %6562 = vmatprep.subr.bf16.mxu0 0
        %6563 = vmatpush1.bf16.xpose.msra.mxu0 %v6560
        %6564 = vmatprep.subr.bf16.mxu0 0
        %6565 = vmatpush1.bf16.xpose.msra.mxu0 0
        %6566 = vmatprep.subr.bf16.mxu0 0
        %6567 = vmatpush1.bf16.xpose.msra.mxu0 0
        %6568 = vmatprep.subr.bf16.mxu0 0
        %6569 = vmatpush1.bf16.xpose.msra.mxu0 0
        %6570 = vmatprep.subr.bf16.mxu0 0
        %6571 = vmatpush1.bf16.xpose.msra.mxu0 0
        %6572 = vmatprep.subr.bf16.mxu0 0
        %6573 = vmatpush1.bf16.xpose.msra.mxu0 0
        %6574 = vmatprep.subr.bf16.mxu0 0
        %6575 = vmatpush1.bf16.xpose.msra.mxu0 0
        %6576 = vmatprep.subr.bf16.mxu0 0
        %6577 = vmatpush1.bf16.xpose.msra.mxu0 0
        %6578 = vmatprep.subr.bf16.mxu0 0
        %6579 = vmatpush1.bf16.xpose.msra.mxu0 0
        %6580 = vmatprep.subr.bf16.mxu0 0
        %6581 = vmatpush1.bf16.xpose.msra.mxu0 0
        %6582 = vmatprep.subr.bf16.mxu0 0
        %6583 = vmatpush1.bf16.xpose.msra.mxu0 0
        %6584 = vmatprep.subr.bf16.mxu0 0
        %6585 = vmatpush1.bf16.xpose.msra.mxu0 0
        %6586 = vmatprep.subr.bf16.mxu0 0
        %6587 = vmatpush1.bf16.xpose.msra.mxu0 0
        %6588 = vmatprep.subr.bf16.mxu0 0
        %6589 = vmatpush1.bf16.xpose.msra.mxu0 0
        %6590 = vmatprep.subr.bf16.mxu0 0
        %6591 = vmatpush1.bf16.xpose.msra.mxu0 0
        %6592 = vmatprep.subr.bf16.mxu0 0
        %6593 = vmatpush1.bf16.xpose.msra.mxu0 0
        %6594 = vmatprep.mubr.bf16.mxu0 0
        %6595 = vmatmul.mubr.bf16.gmra.mrb[0].mxu0 %v6557
        %v6596 = vpop.f32.mrb[0].mxu0
        %v6597 = vadd.f32 0.0, %v6596
        %v6598 = vpop.f32.mrb[0].mxu0
        %v6599 = vpop.f32.mrb[0].mxu0
        %v6600 = vadd.f32 0.0, %v6599
        %v6601 = vpop.f32.mrb[0].mxu0
        %6602 = vdwg.mxu0
        %v6604 = vsel %vm3060, %v3684, 0
        %v6607 = vsel %vm3060, %v6383, 0
        %6609 = vmatprep.subr.bf16.mxu0 0
        %6610 = vmatpush1.bf16.xpose.msra.mxu0 %v6607
        %6611 = vmatprep.subr.bf16.mxu0 0
        %6612 = vmatpush1.bf16.xpose.msra.mxu0 0
        %6613 = vmatprep.subr.bf16.mxu0 0
        %6614 = vmatpush1.bf16.xpose.msra.mxu0 0
        %6615 = vmatprep.subr.bf16.mxu0 0
        %6616 = vmatpush1.bf16.xpose.msra.mxu0 0
        %6617 = vmatprep.subr.bf16.mxu0 0
        %6618 = vmatpush1.bf16.xpose.msra.mxu0 0
        %6619 = vmatprep.subr.bf16.mxu0 0
        %6620 = vmatpush1.bf16.xpose.msra.mxu0 0
        %6621 = vmatprep.subr.bf16.mxu0 0
        %6622 = vmatpush1.bf16.xpose.msra.mxu0 0
        %6623 = vmatprep.subr.bf16.mxu0 0
        %6624 = vmatpush1.bf16.xpose.msra.mxu0 0
        %6625 = vmatprep.subr.bf16.mxu0 0
        %6626 = vmatpush1.bf16.xpose.msra.mxu0 0
        %6627 = vmatprep.subr.bf16.mxu0 0
        %6628 = vmatpush1.bf16.xpose.msra.mxu0 0
        %6629 = vmatprep.subr.bf16.mxu0 0
        %6630 = vmatpush1.bf16.xpose.msra.mxu0 0
        %6631 = vmatprep.subr.bf16.mxu0 0
        %6632 = vmatpush1.bf16.xpose.msra.mxu0 0
        %6633 = vmatprep.subr.bf16.mxu0 0
        %6634 = vmatpush1.bf16.xpose.msra.mxu0 0
        %6635 = vmatprep.subr.bf16.mxu0 0
        %6636 = vmatpush1.bf16.xpose.msra.mxu0 0
        %6637 = vmatprep.subr.bf16.mxu0 0
        %6638 = vmatpush1.bf16.xpose.msra.mxu0 0
        %6639 = vmatprep.subr.bf16.mxu0 0
        %6640 = vmatpush1.bf16.xpose.msra.mxu0 0
        %6641 = vmatprep.mubr.bf16.mxu0 0
        %6642 = vmatmul.mubr.bf16.gmra.mrb[0].mxu0 %v6604
        %v6643 = vpop.f32.mrb[0].mxu0
        %v6644 = vadd.f32 0.0, %v6643
        %v6645 = vpop.f32.mrb[0].mxu0
        %v6646 = vpop.f32.mrb[0].mxu0
        %v6647 = vadd.f32 0.0, %v6646
        %v6648 = vpop.f32.mrb[0].mxu0
        %6649 = vdwg.mxu0
        %v6651 = vsel %vm3060, %v3685, 0
        %v6654 = vsel %vm3060, %v6384, 0
        %6656 = vmatprep.subr.bf16.mxu0 0
        %6657 = vmatpush1.bf16.xpose.msra.mxu0 %v6654
        %6658 = vmatprep.subr.bf16.mxu0 0
        %6659 = vmatpush1.bf16.xpose.msra.mxu0 0
        %6660 = vmatprep.subr.bf16.mxu0 0
        %6661 = vmatpush1.bf16.xpose.msra.mxu0 0
        %6662 = vmatprep.subr.bf16.mxu0 0
        %6663 = vmatpush1.bf16.xpose.msra.mxu0 0
        %6664 = vmatprep.subr.bf16.mxu0 0
        %6665 = vmatpush1.bf16.xpose.msra.mxu0 0
        %6666 = vmatprep.subr.bf16.mxu0 0
        %6667 = vmatpush1.bf16.xpose.msra.mxu0 0
        %6668 = vmatprep.subr.bf16.mxu0 0
        %6669 = vmatpush1.bf16.xpose.msra.mxu0 0
        %6670 = vmatprep.subr.bf16.mxu0 0
        %6671 = vmatpush1.bf16.xpose.msra.mxu0 0
        %6672 = vmatprep.subr.bf16.mxu0 0
        %6673 = vmatpush1.bf16.xpose.msra.mxu0 0
        %6674 = vmatprep.subr.bf16.mxu0 0
        %6675 = vmatpush1.bf16.xpose.msra.mxu0 0
        %6676 = vmatprep.subr.bf16.mxu0 0
        %6677 = vmatpush1.bf16.xpose.msra.mxu0 0
        %6678 = vmatprep.subr.bf16.mxu0 0
        %6679 = vmatpush1.bf16.xpose.msra.mxu0 0
        %6680 = vmatprep.subr.bf16.mxu0 0
        %6681 = vmatpush1.bf16.xpose.msra.mxu0 0
        %6682 = vmatprep.subr.bf16.mxu0 0
        %6683 = vmatpush1.bf16.xpose.msra.mxu0 0
        %6684 = vmatprep.subr.bf16.mxu0 0
        %6685 = vmatpush1.bf16.xpose.msra.mxu0 0
        %6686 = vmatprep.subr.bf16.mxu0 0
        %6687 = vmatpush1.bf16.xpose.msra.mxu0 0
        %6688 = vmatprep.mubr.bf16.mxu0 0
        %6689 = vmatmul.mubr.bf16.gmra.mrb[0].mxu0 %v6651
        %v6690 = vpop.f32.mrb[0].mxu0
        %v6691 = vadd.f32 0.0, %v6690
        %v6692 = vpop.f32.mrb[0].mxu0
        %v6693 = vpop.f32.mrb[0].mxu0
        %v6694 = vadd.f32 0.0, %v6693
        %v6695 = vpop.f32.mrb[0].mxu0
        %6696 = vdwg.mxu0
        %v6698 = vsel %vm3060, %v3686, 0
        %v6701 = vsel %vm3060, %v6385, 0
        %6703 = vmatprep.subr.bf16.mxu0 0
        %6704 = vmatpush1.bf16.xpose.msra.mxu0 %v6701
        %6705 = vmatprep.subr.bf16.mxu0 0
        %6706 = vmatpush1.bf16.xpose.msra.mxu0 0
        %6707 = vmatprep.subr.bf16.mxu0 0
        %6708 = vmatpush1.bf16.xpose.msra.mxu0 0
        %6709 = vmatprep.subr.bf16.mxu0 0
        %6710 = vmatpush1.bf16.xpose.msra.mxu0 0
        %6711 = vmatprep.subr.bf16.mxu0 0
        %6712 = vmatpush1.bf16.xpose.msra.mxu0 0
        %6713 = vmatprep.subr.bf16.mxu0 0
        %6714 = vmatpush1.bf16.xpose.msra.mxu0 0
        %6715 = vmatprep.subr.bf16.mxu0 0
        %6716 = vmatpush1.bf16.xpose.msra.mxu0 0
        %6717 = vmatprep.subr.bf16.mxu0 0
        %6718 = vmatpush1.bf16.xpose.msra.mxu0 0
        %6719 = vmatprep.subr.bf16.mxu0 0
        %6720 = vmatpush1.bf16.xpose.msra.mxu0 0
        %6721 = vmatprep.subr.bf16.mxu0 0
        %6722 = vmatpush1.bf16.xpose.msra.mxu0 0
        %6723 = vmatprep.subr.bf16.mxu0 0
        %6724 = vmatpush1.bf16.xpose.msra.mxu0 0
        %6725 = vmatprep.subr.bf16.mxu0 0
        %6726 = vmatpush1.bf16.xpose.msra.mxu0 0
        %6727 = vmatprep.subr.bf16.mxu0 0
        %6728 = vmatpush1.bf16.xpose.msra.mxu0 0
        %6729 = vmatprep.subr.bf16.mxu0 0
        %6730 = vmatpush1.bf16.xpose.msra.mxu0 0
        %6731 = vmatprep.subr.bf16.mxu0 0
        %6732 = vmatpush1.bf16.xpose.msra.mxu0 0
        %6733 = vmatprep.subr.bf16.mxu0 0
        %6734 = vmatpush1.bf16.xpose.msra.mxu0 0
        %6735 = vmatprep.mubr.bf16.mxu0 0
        %6736 = vmatmul.mubr.bf16.gmra.mrb[0].mxu0 %v6698
        %v6737 = vpop.f32.mrb[0].mxu0
        %v6738 = vadd.f32 0.0, %v6737
        %v6739 = vpop.f32.mrb[0].mxu0
        %v6740 = vpop.f32.mrb[0].mxu0
        %v6741 = vadd.f32 0.0, %v6740
        %v6742 = vpop.f32.mrb[0].mxu0
        %6743 = vdwg.mxu0
        %v6745 = vsel %vm3060, %v3687, 0
        %v6748 = vsel %vm3060, %v6386, 0
        %6750 = vmatprep.subr.bf16.mxu0 0
        %6751 = vmatpush1.bf16.xpose.msra.mxu0 %v6748
        %6752 = vmatprep.subr.bf16.mxu0 0
        %6753 = vmatpush1.bf16.xpose.msra.mxu0 0
        %6754 = vmatprep.subr.bf16.mxu0 0
        %6755 = vmatpush1.bf16.xpose.msra.mxu0 0
        %6756 = vmatprep.subr.bf16.mxu0 0
        %6757 = vmatpush1.bf16.xpose.msra.mxu0 0
        %6758 = vmatprep.subr.bf16.mxu0 0
        %6759 = vmatpush1.bf16.xpose.msra.mxu0 0
        %6760 = vmatprep.subr.bf16.mxu0 0
        %6761 = vmatpush1.bf16.xpose.msra.mxu0 0
        %6762 = vmatprep.subr.bf16.mxu0 0
        %6763 = vmatpush1.bf16.xpose.msra.mxu0 0
        %6764 = vmatprep.subr.bf16.mxu0 0
        %6765 = vmatpush1.bf16.xpose.msra.mxu0 0
        %6766 = vmatprep.subr.bf16.mxu0 0
        %6767 = vmatpush1.bf16.xpose.msra.mxu0 0
        %6768 = vmatprep.subr.bf16.mxu0 0
        %6769 = vmatpush1.bf16.xpose.msra.mxu0 0
        %6770 = vmatprep.subr.bf16.mxu0 0
        %6771 = vmatpush1.bf16.xpose.msra.mxu0 0
        %6772 = vmatprep.subr.bf16.mxu0 0
        %6773 = vmatpush1.bf16.xpose.msra.mxu0 0
        %6774 = vmatprep.subr.bf16.mxu0 0
        %6775 = vmatpush1.bf16.xpose.msra.mxu0 0
        %6776 = vmatprep.subr.bf16.mxu0 0
        %6777 = vmatpush1.bf16.xpose.msra.mxu0 0
        %6778 = vmatprep.subr.bf16.mxu0 0
        %6779 = vmatpush1.bf16.xpose.msra.mxu0 0
        %6780 = vmatprep.subr.bf16.mxu0 0
        %6781 = vmatpush1.bf16.xpose.msra.mxu0 0
        %6782 = vmatprep.mubr.bf16.mxu0 0
        %6783 = vmatmul.mubr.bf16.gmra.mrb[0].mxu0 %v6745
        %v6784 = vpop.f32.mrb[0].mxu0
        %v6785 = vadd.f32 0.0, %v6784
        %v6786 = vpop.f32.mrb[0].mxu0
        %v6787 = vpop.f32.mrb[0].mxu0
        %v6788 = vadd.f32 0.0, %v6787
        %v6789 = vpop.f32.mrb[0].mxu0
        %6790 = vdwg.mxu0
        %v6792 = vsel %vm3060, %v3688, 0
        %v6795 = vsel %vm3060, %v6387, 0
        %6797 = vmatprep.subr.bf16.mxu0 0
        %6798 = vmatpush1.bf16.xpose.msra.mxu0 %v6795
        %6799 = vmatprep.subr.bf16.mxu0 0
        %6800 = vmatpush1.bf16.xpose.msra.mxu0 0
        %6801 = vmatprep.subr.bf16.mxu0 0
        %6802 = vmatpush1.bf16.xpose.msra.mxu0 0
        %6803 = vmatprep.subr.bf16.mxu0 0
        %6804 = vmatpush1.bf16.xpose.msra.mxu0 0
        %6805 = vmatprep.subr.bf16.mxu0 0
        %6806 = vmatpush1.bf16.xpose.msra.mxu0 0
        %6807 = vmatprep.subr.bf16.mxu0 0
        %6808 = vmatpush1.bf16.xpose.msra.mxu0 0
        %6809 = vmatprep.subr.bf16.mxu0 0
        %6810 = vmatpush1.bf16.xpose.msra.mxu0 0
        %6811 = vmatprep.subr.bf16.mxu0 0
        %6812 = vmatpush1.bf16.xpose.msra.mxu0 0
        %6813 = vmatprep.subr.bf16.mxu0 0
        %6814 = vmatpush1.bf16.xpose.msra.mxu0 0
        %6815 = vmatprep.subr.bf16.mxu0 0
        %6816 = vmatpush1.bf16.xpose.msra.mxu0 0
        %6817 = vmatprep.subr.bf16.mxu0 0
        %6818 = vmatpush1.bf16.xpose.msra.mxu0 0
        %6819 = vmatprep.subr.bf16.mxu0 0
        %6820 = vmatpush1.bf16.xpose.msra.mxu0 0
        %6821 = vmatprep.subr.bf16.mxu0 0
        %6822 = vmatpush1.bf16.xpose.msra.mxu0 0
        %6823 = vmatprep.subr.bf16.mxu0 0
        %6824 = vmatpush1.bf16.xpose.msra.mxu0 0
        %6825 = vmatprep.subr.bf16.mxu0 0
        %6826 = vmatpush1.bf16.xpose.msra.mxu0 0
        %6827 = vmatprep.subr.bf16.mxu0 0
        %6828 = vmatpush1.bf16.xpose.msra.mxu0 0
        %6829 = vmatprep.mubr.bf16.mxu0 0
        %6830 = vmatmul.mubr.bf16.gmra.mrb[0].mxu0 %v6792
        %v6831 = vpop.f32.mrb[0].mxu0
        %v6832 = vadd.f32 0.0, %v6831
        %v6833 = vpop.f32.mrb[0].mxu0
        %v6834 = vpop.f32.mrb[0].mxu0
        %v6835 = vadd.f32 0.0, %v6834
        %v6836 = vpop.f32.mrb[0].mxu0
        %6837 = vdwg.mxu0
        %v6839 = vsel %vm3060, %v3689, 0
        %v6842 = vsel %vm3060, %v6388, 0
        %6844 = vmatprep.subr.bf16.mxu0 0
        %6845 = vmatpush1.bf16.xpose.msra.mxu0 %v6842
        %6846 = vmatprep.subr.bf16.mxu0 0
        %6847 = vmatpush1.bf16.xpose.msra.mxu0 0
        %6848 = vmatprep.subr.bf16.mxu0 0
        %6849 = vmatpush1.bf16.xpose.msra.mxu0 0
        %6850 = vmatprep.subr.bf16.mxu0 0
        %6851 = vmatpush1.bf16.xpose.msra.mxu0 0
        %6852 = vmatprep.subr.bf16.mxu0 0
        %6853 = vmatpush1.bf16.xpose.msra.mxu0 0
        %6854 = vmatprep.subr.bf16.mxu0 0
        %6855 = vmatpush1.bf16.xpose.msra.mxu0 0
        %6856 = vmatprep.subr.bf16.mxu0 0
        %6857 = vmatpush1.bf16.xpose.msra.mxu0 0
        %6858 = vmatprep.subr.bf16.mxu0 0
        %6859 = vmatpush1.bf16.xpose.msra.mxu0 0
        %6860 = vmatprep.subr.bf16.mxu0 0
        %6861 = vmatpush1.bf16.xpose.msra.mxu0 0
        %6862 = vmatprep.subr.bf16.mxu0 0
        %6863 = vmatpush1.bf16.xpose.msra.mxu0 0
        %6864 = vmatprep.subr.bf16.mxu0 0
        %6865 = vmatpush1.bf16.xpose.msra.mxu0 0
        %6866 = vmatprep.subr.bf16.mxu0 0
        %6867 = vmatpush1.bf16.xpose.msra.mxu0 0
        %6868 = vmatprep.subr.bf16.mxu0 0
        %6869 = vmatpush1.bf16.xpose.msra.mxu0 0
        %6870 = vmatprep.subr.bf16.mxu0 0
        %6871 = vmatpush1.bf16.xpose.msra.mxu0 0
        %6872 = vmatprep.subr.bf16.mxu0 0
        %6873 = vmatpush1.bf16.xpose.msra.mxu0 0
        %6874 = vmatprep.subr.bf16.mxu0 0
        %6875 = vmatpush1.bf16.xpose.msra.mxu0 0
        %6876 = vmatprep.mubr.bf16.mxu0 0
        %6877 = vmatmul.mubr.bf16.gmra.mrb[0].mxu0 %v6839
        %v6878 = vpop.f32.mrb[0].mxu0
        %v6879 = vadd.f32 0.0, %v6878
        %v6880 = vpop.f32.mrb[0].mxu0
        %v6881 = vpop.f32.mrb[0].mxu0
        %v6882 = vadd.f32 0.0, %v6881
        %v6883 = vpop.f32.mrb[0].mxu0
        %6884 = vdwg.mxu0
        %v6886 = vsel %vm3060, %v3690, 0
        %v6889 = vsel %vm3060, %v6389, 0
        %6891 = vmatprep.subr.bf16.mxu0 0
        %6892 = vmatpush1.bf16.xpose.msra.mxu0 %v6889
        %6893 = vmatprep.subr.bf16.mxu0 0
        %6894 = vmatpush1.bf16.xpose.msra.mxu0 0
        %6895 = vmatprep.subr.bf16.mxu0 0
        %6896 = vmatpush1.bf16.xpose.msra.mxu0 0
        %6897 = vmatprep.subr.bf16.mxu0 0
        %6898 = vmatpush1.bf16.xpose.msra.mxu0 0
        %6899 = vmatprep.subr.bf16.mxu0 0
        %6900 = vmatpush1.bf16.xpose.msra.mxu0 0
        %6901 = vmatprep.subr.bf16.mxu0 0
        %6902 = vmatpush1.bf16.xpose.msra.mxu0 0
        %6903 = vmatprep.subr.bf16.mxu0 0
        %6904 = vmatpush1.bf16.xpose.msra.mxu0 0
        %6905 = vmatprep.subr.bf16.mxu0 0
        %6906 = vmatpush1.bf16.xpose.msra.mxu0 0
        %6907 = vmatprep.subr.bf16.mxu0 0
        %6908 = vmatpush1.bf16.xpose.msra.mxu0 0
        %6909 = vmatprep.subr.bf16.mxu0 0
        %6910 = vmatpush1.bf16.xpose.msra.mxu0 0
        %6911 = vmatprep.subr.bf16.mxu0 0
        %6912 = vmatpush1.bf16.xpose.msra.mxu0 0
        %6913 = vmatprep.subr.bf16.mxu0 0
        %6914 = vmatpush1.bf16.xpose.msra.mxu0 0
        %6915 = vmatprep.subr.bf16.mxu0 0
        %6916 = vmatpush1.bf16.xpose.msra.mxu0 0
        %6917 = vmatprep.subr.bf16.mxu0 0
        %6918 = vmatpush1.bf16.xpose.msra.mxu0 0
        %6919 = vmatprep.subr.bf16.mxu0 0
        %6920 = vmatpush1.bf16.xpose.msra.mxu0 0
        %6921 = vmatprep.subr.bf16.mxu0 0
        %6922 = vmatpush1.bf16.xpose.msra.mxu0 0
        %6923 = vmatprep.mubr.bf16.mxu0 0
        %6924 = vmatmul.mubr.bf16.gmra.mrb[0].mxu0 %v6886
        %v6925 = vpop.f32.mrb[0].mxu0
        %v6926 = vadd.f32 0.0, %v6925
        %v6927 = vpop.f32.mrb[0].mxu0
        %v6928 = vpop.f32.mrb[0].mxu0
        %v6929 = vadd.f32 0.0, %v6928
        %v6930 = vpop.f32.mrb[0].mxu0
        %6931 = vdwg.mxu0
        %v6933 = vsel %vm3060, %v3691, 0
        %v6936 = vsel %vm3060, %v6390, 0
        %6938 = vmatprep.subr.bf16.mxu0 0
        %6939 = vmatpush1.bf16.xpose.msra.mxu0 %v6936
        %6940 = vmatprep.subr.bf16.mxu0 0
        %6941 = vmatpush1.bf16.xpose.msra.mxu0 0
        %6942 = vmatprep.subr.bf16.mxu0 0
        %6943 = vmatpush1.bf16.xpose.msra.mxu0 0
        %6944 = vmatprep.subr.bf16.mxu0 0
        %6945 = vmatpush1.bf16.xpose.msra.mxu0 0
        %6946 = vmatprep.subr.bf16.mxu0 0
        %6947 = vmatpush1.bf16.xpose.msra.mxu0 0
        %6948 = vmatprep.subr.bf16.mxu0 0
        %6949 = vmatpush1.bf16.xpose.msra.mxu0 0
        %6950 = vmatprep.subr.bf16.mxu0 0
        %6951 = vmatpush1.bf16.xpose.msra.mxu0 0
        %6952 = vmatprep.subr.bf16.mxu0 0
        %6953 = vmatpush1.bf16.xpose.msra.mxu0 0
        %6954 = vmatprep.subr.bf16.mxu0 0
        %6955 = vmatpush1.bf16.xpose.msra.mxu0 0
        %6956 = vmatprep.subr.bf16.mxu0 0
        %6957 = vmatpush1.bf16.xpose.msra.mxu0 0
        %6958 = vmatprep.subr.bf16.mxu0 0
        %6959 = vmatpush1.bf16.xpose.msra.mxu0 0
        %6960 = vmatprep.subr.bf16.mxu0 0
        %6961 = vmatpush1.bf16.xpose.msra.mxu0 0
        %6962 = vmatprep.subr.bf16.mxu0 0
        %6963 = vmatpush1.bf16.xpose.msra.mxu0 0
        %6964 = vmatprep.subr.bf16.mxu0 0
        %6965 = vmatpush1.bf16.xpose.msra.mxu0 0
        %6966 = vmatprep.subr.bf16.mxu0 0
        %6967 = vmatpush1.bf16.xpose.msra.mxu0 0
        %6968 = vmatprep.subr.bf16.mxu0 0
        %6969 = vmatpush1.bf16.xpose.msra.mxu0 0
        %6970 = vmatprep.mubr.bf16.mxu0 0
        %6971 = vmatmul.mubr.bf16.gmra.mrb[0].mxu0 %v6933
        %v6972 = vpop.f32.mrb[0].mxu0
        %v6973 = vadd.f32 0.0, %v6972
        %v6974 = vpop.f32.mrb[0].mxu0
        %v6975 = vpop.f32.mrb[0].mxu0
        %v6976 = vadd.f32 0.0, %v6975
        %v6977 = vpop.f32.mrb[0].mxu0
        %6978 = vdwg.mxu0
        %v6980 = vsel %vm3060, %v3692, 0
        %v6983 = vsel %vm3060, %v6391, 0
        %6985 = vmatprep.subr.bf16.mxu0 0
        %6986 = vmatpush1.bf16.xpose.msra.mxu0 %v6983
        %6987 = vmatprep.subr.bf16.mxu0 0
        %6988 = vmatpush1.bf16.xpose.msra.mxu0 0
        %6989 = vmatprep.subr.bf16.mxu0 0
        %6990 = vmatpush1.bf16.xpose.msra.mxu0 0
        %6991 = vmatprep.subr.bf16.mxu0 0
        %6992 = vmatpush1.bf16.xpose.msra.mxu0 0
        %6993 = vmatprep.subr.bf16.mxu0 0
        %6994 = vmatpush1.bf16.xpose.msra.mxu0 0
        %6995 = vmatprep.subr.bf16.mxu0 0
        %6996 = vmatpush1.bf16.xpose.msra.mxu0 0
        %6997 = vmatprep.subr.bf16.mxu0 0
        %6998 = vmatpush1.bf16.xpose.msra.mxu0 0
        %6999 = vmatprep.subr.bf16.mxu0 0
        %7000 = vmatpush1.bf16.xpose.msra.mxu0 0
        %7001 = vmatprep.subr.bf16.mxu0 0
        %7002 = vmatpush1.bf16.xpose.msra.mxu0 0
        %7003 = vmatprep.subr.bf16.mxu0 0
        %7004 = vmatpush1.bf16.xpose.msra.mxu0 0
        %7005 = vmatprep.subr.bf16.mxu0 0
        %7006 = vmatpush1.bf16.xpose.msra.mxu0 0
        %7007 = vmatprep.subr.bf16.mxu0 0
        %7008 = vmatpush1.bf16.xpose.msra.mxu0 0
        %7009 = vmatprep.subr.bf16.mxu0 0
        %7010 = vmatpush1.bf16.xpose.msra.mxu0 0
        %7011 = vmatprep.subr.bf16.mxu0 0
        %7012 = vmatpush1.bf16.xpose.msra.mxu0 0
        %7013 = vmatprep.subr.bf16.mxu0 0
        %7014 = vmatpush1.bf16.xpose.msra.mxu0 0
        %7015 = vmatprep.subr.bf16.mxu0 0
        %7016 = vmatpush1.bf16.xpose.msra.mxu0 0
        %7017 = vmatprep.mubr.bf16.mxu0 0
        %7018 = vmatmul.mubr.bf16.gmra.mrb[0].mxu0 %v6980
        %v7019 = vpop.f32.mrb[0].mxu0
        %v7020 = vadd.f32 0.0, %v7019
        %v7021 = vpop.f32.mrb[0].mxu0
        %v7022 = vpop.f32.mrb[0].mxu0
        %v7023 = vadd.f32 0.0, %v7022
        %v7024 = vpop.f32.mrb[0].mxu0
        %7025 = vdwg.mxu0
        %v7027 = vsel %vm3060, %v3693, 0
        %v7030 = vsel %vm3060, %v6392, 0
        %7032 = vmatprep.subr.bf16.mxu0 0
        %7033 = vmatpush1.bf16.xpose.msra.mxu0 %v7030
        %7034 = vmatprep.subr.bf16.mxu0 0
        %7035 = vmatpush1.bf16.xpose.msra.mxu0 0
        %7036 = vmatprep.subr.bf16.mxu0 0
        %7037 = vmatpush1.bf16.xpose.msra.mxu0 0
        %7038 = vmatprep.subr.bf16.mxu0 0
        %7039 = vmatpush1.bf16.xpose.msra.mxu0 0
        %7040 = vmatprep.subr.bf16.mxu0 0
        %7041 = vmatpush1.bf16.xpose.msra.mxu0 0
        %7042 = vmatprep.subr.bf16.mxu0 0
        %7043 = vmatpush1.bf16.xpose.msra.mxu0 0
        %7044 = vmatprep.subr.bf16.mxu0 0
        %7045 = vmatpush1.bf16.xpose.msra.mxu0 0
        %7046 = vmatprep.subr.bf16.mxu0 0
        %7047 = vmatpush1.bf16.xpose.msra.mxu0 0
        %7048 = vmatprep.subr.bf16.mxu0 0
        %7049 = vmatpush1.bf16.xpose.msra.mxu0 0
        %7050 = vmatprep.subr.bf16.mxu0 0
        %7051 = vmatpush1.bf16.xpose.msra.mxu0 0
        %7052 = vmatprep.subr.bf16.mxu0 0
        %7053 = vmatpush1.bf16.xpose.msra.mxu0 0
        %7054 = vmatprep.subr.bf16.mxu0 0
        %7055 = vmatpush1.bf16.xpose.msra.mxu0 0
        %7056 = vmatprep.subr.bf16.mxu0 0
        %7057 = vmatpush1.bf16.xpose.msra.mxu0 0
        %7058 = vmatprep.subr.bf16.mxu0 0
        %7059 = vmatpush1.bf16.xpose.msra.mxu0 0
        %7060 = vmatprep.subr.bf16.mxu0 0
        %7061 = vmatpush1.bf16.xpose.msra.mxu0 0
        %7062 = vmatprep.subr.bf16.mxu0 0
        %7063 = vmatpush1.bf16.xpose.msra.mxu0 0
        %7064 = vmatprep.mubr.bf16.mxu0 0
        %7065 = vmatmul.mubr.bf16.gmra.mrb[0].mxu0 %v7027
        %v7066 = vpop.f32.mrb[0].mxu0
        %v7067 = vadd.f32 0.0, %v7066
        %v7068 = vpop.f32.mrb[0].mxu0
        %v7069 = vpop.f32.mrb[0].mxu0
        %v7070 = vadd.f32 0.0, %v7069
        %v7071 = vpop.f32.mrb[0].mxu0
        %7072 = vdwg.mxu0
        %v7074 = vsel %vm3060, %v3694, 0
        %v7077 = vsel %vm3060, %v6393, 0
        %7079 = vmatprep.subr.bf16.mxu0 0
        %7080 = vmatpush1.bf16.xpose.msra.mxu0 %v7077
        %7081 = vmatprep.subr.bf16.mxu0 0
        %7082 = vmatpush1.bf16.xpose.msra.mxu0 0
        %7083 = vmatprep.subr.bf16.mxu0 0
        %7084 = vmatpush1.bf16.xpose.msra.mxu0 0
        %7085 = vmatprep.subr.bf16.mxu0 0
        %7086 = vmatpush1.bf16.xpose.msra.mxu0 0
        %7087 = vmatprep.subr.bf16.mxu0 0
        %7088 = vmatpush1.bf16.xpose.msra.mxu0 0
        %7089 = vmatprep.subr.bf16.mxu0 0
        %7090 = vmatpush1.bf16.xpose.msra.mxu0 0
        %7091 = vmatprep.subr.bf16.mxu0 0
        %7092 = vmatpush1.bf16.xpose.msra.mxu0 0
        %7093 = vmatprep.subr.bf16.mxu0 0
        %7094 = vmatpush1.bf16.xpose.msra.mxu0 0
        %7095 = vmatprep.subr.bf16.mxu0 0
        %7096 = vmatpush1.bf16.xpose.msra.mxu0 0
        %7097 = vmatprep.subr.bf16.mxu0 0
        %7098 = vmatpush1.bf16.xpose.msra.mxu0 0
        %7099 = vmatprep.subr.bf16.mxu0 0
        %7100 = vmatpush1.bf16.xpose.msra.mxu0 0
        %7101 = vmatprep.subr.bf16.mxu0 0
        %7102 = vmatpush1.bf16.xpose.msra.mxu0 0
        %7103 = vmatprep.subr.bf16.mxu0 0
        %7104 = vmatpush1.bf16.xpose.msra.mxu0 0
        %7105 = vmatprep.subr.bf16.mxu0 0
        %7106 = vmatpush1.bf16.xpose.msra.mxu0 0
        %7107 = vmatprep.subr.bf16.mxu0 0
        %7108 = vmatpush1.bf16.xpose.msra.mxu0 0
        %7109 = vmatprep.subr.bf16.mxu0 0
        %7110 = vmatpush1.bf16.xpose.msra.mxu0 0
        %7111 = vmatprep.mubr.bf16.mxu0 0
        %7112 = vmatmul.mubr.bf16.gmra.mrb[0].mxu0 %v7074
        %v7113 = vpop.f32.mrb[0].mxu0
        %v7114 = vadd.f32 0.0, %v7113
        %v7115 = vpop.f32.mrb[0].mxu0
        %v7116 = vpop.f32.mrb[0].mxu0
        %v7117 = vadd.f32 0.0, %v7116
        %v7118 = vpop.f32.mrb[0].mxu0
        %7119 = vdwg.mxu0
        %v7121 = vsel %vm3060, %v3695, 0
        %v7124 = vsel %vm3060, %v6394, 0
        %7126 = vmatprep.subr.bf16.mxu0 0
        %7127 = vmatpush1.bf16.xpose.msra.mxu0 %v7124
        %7128 = vmatprep.subr.bf16.mxu0 0
        %7129 = vmatpush1.bf16.xpose.msra.mxu0 0
        %7130 = vmatprep.subr.bf16.mxu0 0
        %7131 = vmatpush1.bf16.xpose.msra.mxu0 0
        %7132 = vmatprep.subr.bf16.mxu0 0
        %7133 = vmatpush1.bf16.xpose.msra.mxu0 0
        %7134 = vmatprep.subr.bf16.mxu0 0
        %7135 = vmatpush1.bf16.xpose.msra.mxu0 0
        %7136 = vmatprep.subr.bf16.mxu0 0
        %7137 = vmatpush1.bf16.xpose.msra.mxu0 0
        %7138 = vmatprep.subr.bf16.mxu0 0
        %7139 = vmatpush1.bf16.xpose.msra.mxu0 0
        %7140 = vmatprep.subr.bf16.mxu0 0
        %7141 = vmatpush1.bf16.xpose.msra.mxu0 0
        %7142 = vmatprep.subr.bf16.mxu0 0
        %7143 = vmatpush1.bf16.xpose.msra.mxu0 0
        %7144 = vmatprep.subr.bf16.mxu0 0
        %7145 = vmatpush1.bf16.xpose.msra.mxu0 0
        %7146 = vmatprep.subr.bf16.mxu0 0
        %7147 = vmatpush1.bf16.xpose.msra.mxu0 0
        %7148 = vmatprep.subr.bf16.mxu0 0
        %7149 = vmatpush1.bf16.xpose.msra.mxu0 0
        %7150 = vmatprep.subr.bf16.mxu0 0
        %7151 = vmatpush1.bf16.xpose.msra.mxu0 0
        %7152 = vmatprep.subr.bf16.mxu0 0
        %7153 = vmatpush1.bf16.xpose.msra.mxu0 0
        %7154 = vmatprep.subr.bf16.mxu0 0
        %7155 = vmatpush1.bf16.xpose.msra.mxu0 0
        %7156 = vmatprep.subr.bf16.mxu0 0
        %7157 = vmatpush1.bf16.xpose.msra.mxu0 0
        %7158 = vmatprep.mubr.bf16.mxu0 0
        %7159 = vmatmul.mubr.bf16.gmra.mrb[0].mxu0 %v7121
        %v7160 = vpop.f32.mrb[0].mxu0
        %v7161 = vadd.f32 0.0, %v7160
        %v7162 = vpop.f32.mrb[0].mxu0
        %v7163 = vpop.f32.mrb[0].mxu0
        %v7164 = vadd.f32 0.0, %v7163
        %v7165 = vpop.f32.mrb[0].mxu0
        %7166 = vdwg.mxu0
        %v7168 = vsel %vm3060, %v3696, 0
        %v7171 = vsel %vm3060, %v6395, 0
        %7173 = vmatprep.subr.bf16.mxu0 0
        %7174 = vmatpush1.bf16.xpose.msra.mxu0 %v7171
        %7175 = vmatprep.subr.bf16.mxu0 0
        %7176 = vmatpush1.bf16.xpose.msra.mxu0 0
        %7177 = vmatprep.subr.bf16.mxu0 0
        %7178 = vmatpush1.bf16.xpose.msra.mxu0 0
        %7179 = vmatprep.subr.bf16.mxu0 0
        %7180 = vmatpush1.bf16.xpose.msra.mxu0 0
        %7181 = vmatprep.subr.bf16.mxu0 0
        %7182 = vmatpush1.bf16.xpose.msra.mxu0 0
        %7183 = vmatprep.subr.bf16.mxu0 0
        %7184 = vmatpush1.bf16.xpose.msra.mxu0 0
        %7185 = vmatprep.subr.bf16.mxu0 0
        %7186 = vmatpush1.bf16.xpose.msra.mxu0 0
        %7187 = vmatprep.subr.bf16.mxu0 0
        %7188 = vmatpush1.bf16.xpose.msra.mxu0 0
        %7189 = vmatprep.subr.bf16.mxu0 0
        %7190 = vmatpush1.bf16.xpose.msra.mxu0 0
        %7191 = vmatprep.subr.bf16.mxu0 0
        %7192 = vmatpush1.bf16.xpose.msra.mxu0 0
        %7193 = vmatprep.subr.bf16.mxu0 0
        %7194 = vmatpush1.bf16.xpose.msra.mxu0 0
        %7195 = vmatprep.subr.bf16.mxu0 0
        %7196 = vmatpush1.bf16.xpose.msra.mxu0 0
        %7197 = vmatprep.subr.bf16.mxu0 0
        %7198 = vmatpush1.bf16.xpose.msra.mxu0 0
        %7199 = vmatprep.subr.bf16.mxu0 0
        %7200 = vmatpush1.bf16.xpose.msra.mxu0 0
        %7201 = vmatprep.subr.bf16.mxu0 0
        %7202 = vmatpush1.bf16.xpose.msra.mxu0 0
        %7203 = vmatprep.subr.bf16.mxu0 0
        %7204 = vmatpush1.bf16.xpose.msra.mxu0 0
        %7205 = vmatprep.mubr.bf16.mxu0 0
        %7206 = vmatmul.mubr.bf16.gmra.mrb[0].mxu0 %v7168
        %v7207 = vpop.f32.mrb[0].mxu0
        %v7208 = vadd.f32 0.0, %v7207
        %v7209 = vpop.f32.mrb[0].mxu0
        %v7210 = vpop.f32.mrb[0].mxu0
        %v7211 = vadd.f32 0.0, %v7210
        %v7212 = vpop.f32.mrb[0].mxu0
        %7213 = vdwg.mxu0
        %v7215 = vsel %vm3060, %v3697, 0
        %v7218 = vsel %vm3060, %v6396, 0
        %7220 = vmatprep.subr.bf16.mxu0 0
        %7221 = vmatpush1.bf16.xpose.msra.mxu0 %v7218
        %7222 = vmatprep.subr.bf16.mxu0 0
        %7223 = vmatpush1.bf16.xpose.msra.mxu0 0
        %7224 = vmatprep.subr.bf16.mxu0 0
        %7225 = vmatpush1.bf16.xpose.msra.mxu0 0
        %7226 = vmatprep.subr.bf16.mxu0 0
        %7227 = vmatpush1.bf16.xpose.msra.mxu0 0
        %7228 = vmatprep.subr.bf16.mxu0 0
        %7229 = vmatpush1.bf16.xpose.msra.mxu0 0
        %7230 = vmatprep.subr.bf16.mxu0 0
        %7231 = vmatpush1.bf16.xpose.msra.mxu0 0
        %7232 = vmatprep.subr.bf16.mxu0 0
        %7233 = vmatpush1.bf16.xpose.msra.mxu0 0
        %7234 = vmatprep.subr.bf16.mxu0 0
        %7235 = vmatpush1.bf16.xpose.msra.mxu0 0
        %7236 = vmatprep.subr.bf16.mxu0 0
        %7237 = vmatpush1.bf16.xpose.msra.mxu0 0
        %7238 = vmatprep.subr.bf16.mxu0 0
        %7239 = vmatpush1.bf16.xpose.msra.mxu0 0
        %7240 = vmatprep.subr.bf16.mxu0 0
        %7241 = vmatpush1.bf16.xpose.msra.mxu0 0
        %7242 = vmatprep.subr.bf16.mxu0 0
        %7243 = vmatpush1.bf16.xpose.msra.mxu0 0
        %7244 = vmatprep.subr.bf16.mxu0 0
        %7245 = vmatpush1.bf16.xpose.msra.mxu0 0
        %7246 = vmatprep.subr.bf16.mxu0 0
        %7247 = vmatpush1.bf16.xpose.msra.mxu0 0
        %7248 = vmatprep.subr.bf16.mxu0 0
        %7249 = vmatpush1.bf16.xpose.msra.mxu0 0
        %7250 = vmatprep.subr.bf16.mxu0 0
        %7251 = vmatpush1.bf16.xpose.msra.mxu0 0
        %7252 = vmatprep.mubr.bf16.mxu0 0
        %7253 = vmatmul.mubr.bf16.gmra.mrb[0].mxu0 %v7215
        %v7254 = vpop.f32.mrb[0].mxu0
        %v7255 = vadd.f32 0.0, %v7254
        %v7256 = vpop.f32.mrb[0].mxu0
        %v7257 = vpop.f32.mrb[0].mxu0
        %v7258 = vadd.f32 0.0, %v7257
        %v7259 = vpop.f32.mrb[0].mxu0
        %7260 = vdwg.mxu0
        %v7262 = vsel %vm3060, %v3710, 0
        %v7265 = vsel %vm3060, %v6501, 0
        %7267 = vmatprep.subr.bf16.mxu0 0
        %7268 = vmatpush1.bf16.xpose.msra.mxu0 %v7265
        %7269 = vmatprep.subr.bf16.mxu0 0
        %7270 = vmatpush1.bf16.xpose.msra.mxu0 0
        %7271 = vmatprep.subr.bf16.mxu0 0
        %7272 = vmatpush1.bf16.xpose.msra.mxu0 0
        %7273 = vmatprep.subr.bf16.mxu0 0
        %7274 = vmatpush1.bf16.xpose.msra.mxu0 0
        %7275 = vmatprep.subr.bf16.mxu0 0
        %7276 = vmatpush1.bf16.xpose.msra.mxu0 0
        %7277 = vmatprep.subr.bf16.mxu0 0
        %7278 = vmatpush1.bf16.xpose.msra.mxu0 0
        %7279 = vmatprep.subr.bf16.mxu0 0
        %7280 = vmatpush1.bf16.xpose.msra.mxu0 0
        %7281 = vmatprep.subr.bf16.mxu0 0
        %7282 = vmatpush1.bf16.xpose.msra.mxu0 0
        %7283 = vmatprep.subr.bf16.mxu0 0
        %7284 = vmatpush1.bf16.xpose.msra.mxu0 0
        %7285 = vmatprep.subr.bf16.mxu0 0
        %7286 = vmatpush1.bf16.xpose.msra.mxu0 0
        %7287 = vmatprep.subr.bf16.mxu0 0
        %7288 = vmatpush1.bf16.xpose.msra.mxu0 0
        %7289 = vmatprep.subr.bf16.mxu0 0
        %7290 = vmatpush1.bf16.xpose.msra.mxu0 0
        %7291 = vmatprep.subr.bf16.mxu0 0
        %7292 = vmatpush1.bf16.xpose.msra.mxu0 0
        %7293 = vmatprep.subr.bf16.mxu0 0
        %7294 = vmatpush1.bf16.xpose.msra.mxu0 0
        %7295 = vmatprep.subr.bf16.mxu0 0
        %7296 = vmatpush1.bf16.xpose.msra.mxu0 0
        %7297 = vmatprep.subr.bf16.mxu0 0
        %7298 = vmatpush1.bf16.xpose.msra.mxu0 0
        %7299 = vmatprep.mubr.bf16.mxu0 0
        %7300 = vmatmul.mubr.bf16.gmra.mrb[0].mxu0 %v7262
        %v7301 = vpop.f32.mrb[0].mxu0
        %v7302 = vadd.f32 0.0, %v7301
        %v7303 = vpop.f32.mrb[0].mxu0
        %v7304 = vpop.f32.mrb[0].mxu0
        %v7305 = vadd.f32 0.0, %v7304
        %v7306 = vpop.f32.mrb[0].mxu0
        %7307 = vdwg.mxu0
        %v7309 = vsel %vm3060, %v3711, 0
        %v7312 = vsel %vm3060, %v6502, 0
        %7314 = vmatprep.subr.bf16.mxu0 0
        %7315 = vmatpush1.bf16.xpose.msra.mxu0 %v7312
        %7316 = vmatprep.subr.bf16.mxu0 0
        %7317 = vmatpush1.bf16.xpose.msra.mxu0 0
        %7318 = vmatprep.subr.bf16.mxu0 0
        %7319 = vmatpush1.bf16.xpose.msra.mxu0 0
        %7320 = vmatprep.subr.bf16.mxu0 0
        %7321 = vmatpush1.bf16.xpose.msra.mxu0 0
        %7322 = vmatprep.subr.bf16.mxu0 0
        %7323 = vmatpush1.bf16.xpose.msra.mxu0 0
        %7324 = vmatprep.subr.bf16.mxu0 0
        %7325 = vmatpush1.bf16.xpose.msra.mxu0 0
        %7326 = vmatprep.subr.bf16.mxu0 0
        %7327 = vmatpush1.bf16.xpose.msra.mxu0 0
        %7328 = vmatprep.subr.bf16.mxu0 0
        %7329 = vmatpush1.bf16.xpose.msra.mxu0 0
        %7330 = vmatprep.subr.bf16.mxu0 0
        %7331 = vmatpush1.bf16.xpose.msra.mxu0 0
        %7332 = vmatprep.subr.bf16.mxu0 0
        %7333 = vmatpush1.bf16.xpose.msra.mxu0 0
        %7334 = vmatprep.subr.bf16.mxu0 0
        %7335 = vmatpush1.bf16.xpose.msra.mxu0 0
        %7336 = vmatprep.subr.bf16.mxu0 0
        %7337 = vmatpush1.bf16.xpose.msra.mxu0 0
        %7338 = vmatprep.subr.bf16.mxu0 0
        %7339 = vmatpush1.bf16.xpose.msra.mxu0 0
        %7340 = vmatprep.subr.bf16.mxu0 0
        %7341 = vmatpush1.bf16.xpose.msra.mxu0 0
        %7342 = vmatprep.subr.bf16.mxu0 0
        %7343 = vmatpush1.bf16.xpose.msra.mxu0 0
        %7344 = vmatprep.subr.bf16.mxu0 0
        %7345 = vmatpush1.bf16.xpose.msra.mxu0 0
        %7346 = vmatprep.mubr.bf16.mxu0 0
        %7347 = vmatmul.mubr.bf16.gmra.mrb[0].mxu0 %v7309
        %v7348 = vpop.f32.mrb[0].mxu0
        %v7349 = vadd.f32 0.0, %v7348
        %v7350 = vpop.f32.mrb[0].mxu0
        %v7351 = vpop.f32.mrb[0].mxu0
        %v7352 = vadd.f32 0.0, %v7351
        %v7353 = vpop.f32.mrb[0].mxu0
        %7354 = vdwg.mxu0
        %v7356 = vsel %vm3060, %v3712, 0
        %v7359 = vsel %vm3060, %v6503, 0
        %7361 = vmatprep.subr.bf16.mxu0 0
        %7362 = vmatpush1.bf16.xpose.msra.mxu0 %v7359
        %7363 = vmatprep.subr.bf16.mxu0 0
        %7364 = vmatpush1.bf16.xpose.msra.mxu0 0
        %7365 = vmatprep.subr.bf16.mxu0 0
        %7366 = vmatpush1.bf16.xpose.msra.mxu0 0
        %7367 = vmatprep.subr.bf16.mxu0 0
        %7368 = vmatpush1.bf16.xpose.msra.mxu0 0
        %7369 = vmatprep.subr.bf16.mxu0 0
        %7370 = vmatpush1.bf16.xpose.msra.mxu0 0
        %7371 = vmatprep.subr.bf16.mxu0 0
        %7372 = vmatpush1.bf16.xpose.msra.mxu0 0
        %7373 = vmatprep.subr.bf16.mxu0 0
        %7374 = vmatpush1.bf16.xpose.msra.mxu0 0
        %7375 = vmatprep.subr.bf16.mxu0 0
        %7376 = vmatpush1.bf16.xpose.msra.mxu0 0
        %7377 = vmatprep.subr.bf16.mxu0 0
        %7378 = vmatpush1.bf16.xpose.msra.mxu0 0
        %7379 = vmatprep.subr.bf16.mxu0 0
        %7380 = vmatpush1.bf16.xpose.msra.mxu0 0
        %7381 = vmatprep.subr.bf16.mxu0 0
        %7382 = vmatpush1.bf16.xpose.msra.mxu0 0
        %7383 = vmatprep.subr.bf16.mxu0 0
        %7384 = vmatpush1.bf16.xpose.msra.mxu0 0
        %7385 = vmatprep.subr.bf16.mxu0 0
        %7386 = vmatpush1.bf16.xpose.msra.mxu0 0
        %7387 = vmatprep.subr.bf16.mxu0 0
        %7388 = vmatpush1.bf16.xpose.msra.mxu0 0
        %7389 = vmatprep.subr.bf16.mxu0 0
        %7390 = vmatpush1.bf16.xpose.msra.mxu0 0
        %7391 = vmatprep.subr.bf16.mxu0 0
        %7392 = vmatpush1.bf16.xpose.msra.mxu0 0
        %7393 = vmatprep.mubr.bf16.mxu0 0
        %7394 = vmatmul.mubr.bf16.gmra.mrb[0].mxu0 %v7356
        %v7395 = vpop.f32.mrb[0].mxu0
        %v7396 = vadd.f32 0.0, %v7395
        %v7397 = vpop.f32.mrb[0].mxu0
        %v7398 = vpop.f32.mrb[0].mxu0
        %v7399 = vadd.f32 0.0, %v7398
        %v7400 = vpop.f32.mrb[0].mxu0
        %7401 = vdwg.mxu0
        %v7403 = vsel %vm3060, %v3713, 0
        %v7406 = vsel %vm3060, %v6504, 0
        %7408 = vmatprep.subr.bf16.mxu0 0
        %7409 = vmatpush1.bf16.xpose.msra.mxu0 %v7406
        %7410 = vmatprep.subr.bf16.mxu0 0
        %7411 = vmatpush1.bf16.xpose.msra.mxu0 0
        %7412 = vmatprep.subr.bf16.mxu0 0
        %7413 = vmatpush1.bf16.xpose.msra.mxu0 0
        %7414 = vmatprep.subr.bf16.mxu0 0
        %7415 = vmatpush1.bf16.xpose.msra.mxu0 0
        %7416 = vmatprep.subr.bf16.mxu0 0
        %7417 = vmatpush1.bf16.xpose.msra.mxu0 0
        %7418 = vmatprep.subr.bf16.mxu0 0
        %7419 = vmatpush1.bf16.xpose.msra.mxu0 0
        %7420 = vmatprep.subr.bf16.mxu0 0
        %7421 = vmatpush1.bf16.xpose.msra.mxu0 0
        %7422 = vmatprep.subr.bf16.mxu0 0
        %7423 = vmatpush1.bf16.xpose.msra.mxu0 0
        %7424 = vmatprep.subr.bf16.mxu0 0
        %7425 = vmatpush1.bf16.xpose.msra.mxu0 0
        %7426 = vmatprep.subr.bf16.mxu0 0
        %7427 = vmatpush1.bf16.xpose.msra.mxu0 0
        %7428 = vmatprep.subr.bf16.mxu0 0
        %7429 = vmatpush1.bf16.xpose.msra.mxu0 0
        %7430 = vmatprep.subr.bf16.mxu0 0
        %7431 = vmatpush1.bf16.xpose.msra.mxu0 0
        %7432 = vmatprep.subr.bf16.mxu0 0
        %7433 = vmatpush1.bf16.xpose.msra.mxu0 0
        %7434 = vmatprep.subr.bf16.mxu0 0
        %7435 = vmatpush1.bf16.xpose.msra.mxu0 0
        %7436 = vmatprep.subr.bf16.mxu0 0
        %7437 = vmatpush1.bf16.xpose.msra.mxu0 0
        %7438 = vmatprep.subr.bf16.mxu0 0
        %7439 = vmatpush1.bf16.xpose.msra.mxu0 0
        %7440 = vmatprep.mubr.bf16.mxu0 0
        %7441 = vmatmul.mubr.bf16.gmra.mrb[0].mxu0 %v7403
        %v7442 = vpop.f32.mrb[0].mxu0
        %v7443 = vadd.f32 0.0, %v7442
        %v7444 = vpop.f32.mrb[0].mxu0
        %v7445 = vpop.f32.mrb[0].mxu0
        %v7446 = vadd.f32 0.0, %v7445
        %v7447 = vpop.f32.mrb[0].mxu0
        %7448 = vdwg.mxu0
        %v7450 = vsel %vm3060, %v3714, 0
        %v7453 = vsel %vm3060, %v6505, 0
        %7455 = vmatprep.subr.bf16.mxu0 0
        %7456 = vmatpush1.bf16.xpose.msra.mxu0 %v7453
        %7457 = vmatprep.subr.bf16.mxu0 0
        %7458 = vmatpush1.bf16.xpose.msra.mxu0 0
        %7459 = vmatprep.subr.bf16.mxu0 0
        %7460 = vmatpush1.bf16.xpose.msra.mxu0 0
        %7461 = vmatprep.subr.bf16.mxu0 0
        %7462 = vmatpush1.bf16.xpose.msra.mxu0 0
        %7463 = vmatprep.subr.bf16.mxu0 0
        %7464 = vmatpush1.bf16.xpose.msra.mxu0 0
        %7465 = vmatprep.subr.bf16.mxu0 0
        %7466 = vmatpush1.bf16.xpose.msra.mxu0 0
        %7467 = vmatprep.subr.bf16.mxu0 0
        %7468 = vmatpush1.bf16.xpose.msra.mxu0 0
        %7469 = vmatprep.subr.bf16.mxu0 0
        %7470 = vmatpush1.bf16.xpose.msra.mxu0 0
        %7471 = vmatprep.subr.bf16.mxu0 0
        %7472 = vmatpush1.bf16.xpose.msra.mxu0 0
        %7473 = vmatprep.subr.bf16.mxu0 0
        %7474 = vmatpush1.bf16.xpose.msra.mxu0 0
        %7475 = vmatprep.subr.bf16.mxu0 0
        %7476 = vmatpush1.bf16.xpose.msra.mxu0 0
        %7477 = vmatprep.subr.bf16.mxu0 0
        %7478 = vmatpush1.bf16.xpose.msra.mxu0 0
        %7479 = vmatprep.subr.bf16.mxu0 0
        %7480 = vmatpush1.bf16.xpose.msra.mxu0 0
        %7481 = vmatprep.subr.bf16.mxu0 0
        %7482 = vmatpush1.bf16.xpose.msra.mxu0 0
        %7483 = vmatprep.subr.bf16.mxu0 0
        %7484 = vmatpush1.bf16.xpose.msra.mxu0 0
        %7485 = vmatprep.subr.bf16.mxu0 0
        %7486 = vmatpush1.bf16.xpose.msra.mxu0 0
        %7487 = vmatprep.mubr.bf16.mxu0 0
        %7488 = vmatmul.mubr.bf16.gmra.mrb[0].mxu0 %v7450
        %v7489 = vpop.f32.mrb[0].mxu0
        %v7490 = vadd.f32 0.0, %v7489
        %v7491 = vpop.f32.mrb[0].mxu0
        %v7492 = vpop.f32.mrb[0].mxu0
        %v7493 = vadd.f32 0.0, %v7492
        %v7494 = vpop.f32.mrb[0].mxu0
        %7495 = vdwg.mxu0
        %v7497 = vsel %vm3060, %v3715, 0
        %v7500 = vsel %vm3060, %v6506, 0
        %7502 = vmatprep.subr.bf16.mxu0 0
        %7503 = vmatpush1.bf16.xpose.msra.mxu0 %v7500
        %7504 = vmatprep.subr.bf16.mxu0 0
        %7505 = vmatpush1.bf16.xpose.msra.mxu0 0
        %7506 = vmatprep.subr.bf16.mxu0 0
        %7507 = vmatpush1.bf16.xpose.msra.mxu0 0
        %7508 = vmatprep.subr.bf16.mxu0 0
        %7509 = vmatpush1.bf16.xpose.msra.mxu0 0
        %7510 = vmatprep.subr.bf16.mxu0 0
        %7511 = vmatpush1.bf16.xpose.msra.mxu0 0
        %7512 = vmatprep.subr.bf16.mxu0 0
        %7513 = vmatpush1.bf16.xpose.msra.mxu0 0
        %7514 = vmatprep.subr.bf16.mxu0 0
        %7515 = vmatpush1.bf16.xpose.msra.mxu0 0
        %7516 = vmatprep.subr.bf16.mxu0 0
        %7517 = vmatpush1.bf16.xpose.msra.mxu0 0
        %7518 = vmatprep.subr.bf16.mxu0 0
        %7519 = vmatpush1.bf16.xpose.msra.mxu0 0
        %7520 = vmatprep.subr.bf16.mxu0 0
        %7521 = vmatpush1.bf16.xpose.msra.mxu0 0
        %7522 = vmatprep.subr.bf16.mxu0 0
        %7523 = vmatpush1.bf16.xpose.msra.mxu0 0
        %7524 = vmatprep.subr.bf16.mxu0 0
        %7525 = vmatpush1.bf16.xpose.msra.mxu0 0
        %7526 = vmatprep.subr.bf16.mxu0 0
        %7527 = vmatpush1.bf16.xpose.msra.mxu0 0
        %7528 = vmatprep.subr.bf16.mxu0 0
        %7529 = vmatpush1.bf16.xpose.msra.mxu0 0
        %7530 = vmatprep.subr.bf16.mxu0 0
        %7531 = vmatpush1.bf16.xpose.msra.mxu0 0
        %7532 = vmatprep.subr.bf16.mxu0 0
        %7533 = vmatpush1.bf16.xpose.msra.mxu0 0
        %7534 = vmatprep.mubr.bf16.mxu0 0
        %7535 = vmatmul.mubr.bf16.gmra.mrb[0].mxu0 %v7497
        %v7536 = vpop.f32.mrb[0].mxu0
        %v7537 = vadd.f32 0.0, %v7536
        %v7538 = vpop.f32.mrb[0].mxu0
        %v7539 = vpop.f32.mrb[0].mxu0
        %v7540 = vadd.f32 0.0, %v7539
        %v7541 = vpop.f32.mrb[0].mxu0
        %7542 = vdwg.mxu0
        %v7544 = vsel %vm3060, %v3716, 0
        %v7547 = vsel %vm3060, %v6507, 0
        %7549 = vmatprep.subr.bf16.mxu0 0
        %7550 = vmatpush1.bf16.xpose.msra.mxu0 %v7547
        %7551 = vmatprep.subr.bf16.mxu0 0
        %7552 = vmatpush1.bf16.xpose.msra.mxu0 0
        %7553 = vmatprep.subr.bf16.mxu0 0
        %7554 = vmatpush1.bf16.xpose.msra.mxu0 0
        %7555 = vmatprep.subr.bf16.mxu0 0
        %7556 = vmatpush1.bf16.xpose.msra.mxu0 0
        %7557 = vmatprep.subr.bf16.mxu0 0
        %7558 = vmatpush1.bf16.xpose.msra.mxu0 0
        %7559 = vmatprep.subr.bf16.mxu0 0
        %7560 = vmatpush1.bf16.xpose.msra.mxu0 0
        %7561 = vmatprep.subr.bf16.mxu0 0
        %7562 = vmatpush1.bf16.xpose.msra.mxu0 0
        %7563 = vmatprep.subr.bf16.mxu0 0
        %7564 = vmatpush1.bf16.xpose.msra.mxu0 0
        %7565 = vmatprep.subr.bf16.mxu0 0
        %7566 = vmatpush1.bf16.xpose.msra.mxu0 0
        %7567 = vmatprep.subr.bf16.mxu0 0
        %7568 = vmatpush1.bf16.xpose.msra.mxu0 0
        %7569 = vmatprep.subr.bf16.mxu0 0
        %7570 = vmatpush1.bf16.xpose.msra.mxu0 0
        %7571 = vmatprep.subr.bf16.mxu0 0
        %7572 = vmatpush1.bf16.xpose.msra.mxu0 0
        %7573 = vmatprep.subr.bf16.mxu0 0
        %7574 = vmatpush1.bf16.xpose.msra.mxu0 0
        %7575 = vmatprep.subr.bf16.mxu0 0
        %7576 = vmatpush1.bf16.xpose.msra.mxu0 0
        %7577 = vmatprep.subr.bf16.mxu0 0
        %7578 = vmatpush1.bf16.xpose.msra.mxu0 0
        %7579 = vmatprep.subr.bf16.mxu0 0
        %7580 = vmatpush1.bf16.xpose.msra.mxu0 0
        %7581 = vmatprep.mubr.bf16.mxu0 0
        %7582 = vmatmul.mubr.bf16.gmra.mrb[0].mxu0 %v7544
        %v7583 = vpop.f32.mrb[0].mxu0
        %v7584 = vadd.f32 0.0, %v7583
        %v7585 = vpop.f32.mrb[0].mxu0
        %v7586 = vpop.f32.mrb[0].mxu0
        %v7587 = vadd.f32 0.0, %v7586
        %v7588 = vpop.f32.mrb[0].mxu0
        %7589 = vdwg.mxu0
        %v7591 = vsel %vm3060, %v3717, 0
        %v7594 = vsel %vm3060, %v6508, 0
        %7596 = vmatprep.subr.bf16.mxu0 0
        %7597 = vmatpush1.bf16.xpose.msra.mxu0 %v7594
        %7598 = vmatprep.subr.bf16.mxu0 0
        %7599 = vmatpush1.bf16.xpose.msra.mxu0 0
        %7600 = vmatprep.subr.bf16.mxu0 0
        %7601 = vmatpush1.bf16.xpose.msra.mxu0 0
        %7602 = vmatprep.subr.bf16.mxu0 0
        %7603 = vmatpush1.bf16.xpose.msra.mxu0 0
        %7604 = vmatprep.subr.bf16.mxu0 0
        %7605 = vmatpush1.bf16.xpose.msra.mxu0 0
        %7606 = vmatprep.subr.bf16.mxu0 0
        %7607 = vmatpush1.bf16.xpose.msra.mxu0 0
        %7608 = vmatprep.subr.bf16.mxu0 0
        %7609 = vmatpush1.bf16.xpose.msra.mxu0 0
        %7610 = vmatprep.subr.bf16.mxu0 0
        %7611 = vmatpush1.bf16.xpose.msra.mxu0 0
        %7612 = vmatprep.subr.bf16.mxu0 0
        %7613 = vmatpush1.bf16.xpose.msra.mxu0 0
        %7614 = vmatprep.subr.bf16.mxu0 0
        %7615 = vmatpush1.bf16.xpose.msra.mxu0 0
        %7616 = vmatprep.subr.bf16.mxu0 0
        %7617 = vmatpush1.bf16.xpose.msra.mxu0 0
        %7618 = vmatprep.subr.bf16.mxu0 0
        %7619 = vmatpush1.bf16.xpose.msra.mxu0 0
        %7620 = vmatprep.subr.bf16.mxu0 0
        %7621 = vmatpush1.bf16.xpose.msra.mxu0 0
        %7622 = vmatprep.subr.bf16.mxu0 0
        %7623 = vmatpush1.bf16.xpose.msra.mxu0 0
        %7624 = vmatprep.subr.bf16.mxu0 0
        %7625 = vmatpush1.bf16.xpose.msra.mxu0 0
        %7626 = vmatprep.subr.bf16.mxu0 0
        %7627 = vmatpush1.bf16.xpose.msra.mxu0 0
        %7628 = vmatprep.mubr.bf16.mxu0 0
        %7629 = vmatmul.mubr.bf16.gmra.mrb[0].mxu0 %v7591
        %v7630 = vpop.f32.mrb[0].mxu0
        %v7631 = vadd.f32 0.0, %v7630
        %v7632 = vpop.f32.mrb[0].mxu0
        %v7633 = vpop.f32.mrb[0].mxu0
        %v7634 = vadd.f32 0.0, %v7633
        %v7635 = vpop.f32.mrb[0].mxu0
        %7636 = vdwg.mxu0
        %v7637 = vcombine.low %v6550, %v6644
        %v7638 = vcombine.high %v6550, %v6644
        %v7640 = vunpack.c.l.s4 1983009808
        %v7641 = vunpack.c.0.s8 %v7640
        %v7642 = vlaneseq
        %v7643 = vshrl.u32 %v7642, 7
        %v7644 = vsub.s32 %v7641, %v7643
        %v7645 = vrot.slane %v7637, %v7644
        %v7647 = vunpack.c.l.s4 1983009808
        %v7648 = vunpack.c.0.s8 %v7647
        %v7649 = vlaneseq
        %v7650 = vshrl.u32 %v7649, 7
        %v7651 = vsub.s32 %v7648, %v7650
        %v7652 = vrot.slane %v7638, %v7651
        %v7653 = vcombine.low %v6597, %v6691
        %v7654 = vcombine.high %v6597, %v6691
        %v7656 = vunpack.c.l.s4 1983009808
        %v7657 = vunpack.c.0.s8 %v7656
        %v7658 = vlaneseq
        %v7659 = vshrl.u32 %v7658, 7
        %v7660 = vsub.s32 %v7657, %v7659
        %v7661 = vrot.slane %v7653, %v7660
        %v7663 = vunpack.c.l.s4 1983009808
        %v7664 = vunpack.c.0.s8 %v7663
        %v7665 = vlaneseq
        %v7666 = vshrl.u32 %v7665, 7
        %v7667 = vsub.s32 %v7664, %v7666
        %v7668 = vrot.slane %v7654, %v7667
        %v7669 = vcombine.low %v6738, %v6832
        %v7670 = vcombine.high %v6738, %v6832
        %v7672 = vunpack.c.l.s4 1983009808
        %v7673 = vunpack.c.0.s8 %v7672
        %v7674 = vlaneseq
        %v7675 = vshrl.u32 %v7674, 7
        %v7676 = vsub.s32 %v7673, %v7675
        %v7677 = vrot.slane %v7669, %v7676
        %v7679 = vunpack.c.l.s4 1983009808
        %v7680 = vunpack.c.0.s8 %v7679
        %v7681 = vlaneseq
        %v7682 = vshrl.u32 %v7681, 7
        %v7683 = vsub.s32 %v7680, %v7682
        %v7684 = vrot.slane %v7670, %v7683
        %v7685 = vcombine.low %v6785, %v6879
        %v7686 = vcombine.high %v6785, %v6879
        %v7688 = vunpack.c.l.s4 1983009808
        %v7689 = vunpack.c.0.s8 %v7688
        %v7690 = vlaneseq
        %v7691 = vshrl.u32 %v7690, 7
        %v7692 = vsub.s32 %v7689, %v7691
        %v7693 = vrot.slane %v7685, %v7692
        %v7695 = vunpack.c.l.s4 1983009808
        %v7696 = vunpack.c.0.s8 %v7695
        %v7697 = vlaneseq
        %v7698 = vshrl.u32 %v7697, 7
        %v7699 = vsub.s32 %v7696, %v7698
        %v7700 = vrot.slane %v7686, %v7699
        %v7701 = vcombine.low %v7645, %v7661
        %v7702 = vcombine.high %v7645, %v7661
        %v7704 = vunpack.c.l.s4 1934713408
        %v7705 = vunpack.c.0.s8 %v7704
        %v7706 = vlaneseq
        %v7707 = vshrl.u32 %v7706, 7
        %v7708 = vsub.s32 %v7705, %v7707
        %v7709 = vrot.slane %v7701, %v7708
        %v7711 = vunpack.c.l.s4 1934713408
        %v7712 = vunpack.c.0.s8 %v7711
        %v7713 = vlaneseq
        %v7714 = vshrl.u32 %v7713, 7
        %v7715 = vsub.s32 %v7712, %v7714
        %v7716 = vrot.slane %v7702, %v7715
        %v7717 = vcombine.low %v7652, %v7668
        %v7718 = vcombine.high %v7652, %v7668
        %v7720 = vunpack.c.l.s4 1934713408
        %v7721 = vunpack.c.0.s8 %v7720
        %v7722 = vlaneseq
        %v7723 = vshrl.u32 %v7722, 7
        %v7724 = vsub.s32 %v7721, %v7723
        %v7725 = vrot.slane %v7717, %v7724
        %v7727 = vunpack.c.l.s4 1934713408
        %v7728 = vunpack.c.0.s8 %v7727
        %v7729 = vlaneseq
        %v7730 = vshrl.u32 %v7729, 7
        %v7731 = vsub.s32 %v7728, %v7730
        %v7732 = vrot.slane %v7718, %v7731
        %v7733 = vcombine.low %v7677, %v7693
        %v7734 = vcombine.high %v7677, %v7693
        %v7736 = vunpack.c.l.s4 1934713408
        %v7737 = vunpack.c.0.s8 %v7736
        %v7738 = vlaneseq
        %v7739 = vshrl.u32 %v7738, 7
        %v7740 = vsub.s32 %v7737, %v7739
        %v7741 = vrot.slane %v7733, %v7740
        %v7743 = vunpack.c.l.s4 1934713408
        %v7744 = vunpack.c.0.s8 %v7743
        %v7745 = vlaneseq
        %v7746 = vshrl.u32 %v7745, 7
        %v7747 = vsub.s32 %v7744, %v7746
        %v7748 = vrot.slane %v7734, %v7747
        %v7749 = vcombine.low %v7684, %v7700
        %v7750 = vcombine.high %v7684, %v7700
        %v7752 = vunpack.c.l.s4 1934713408
        %v7753 = vunpack.c.0.s8 %v7752
        %v7754 = vlaneseq
        %v7755 = vshrl.u32 %v7754, 7
        %v7756 = vsub.s32 %v7753, %v7755
        %v7757 = vrot.slane %v7749, %v7756
        %v7759 = vunpack.c.l.s4 1934713408
        %v7760 = vunpack.c.0.s8 %v7759
        %v7761 = vlaneseq
        %v7762 = vshrl.u32 %v7761, 7
        %v7763 = vsub.s32 %v7760, %v7762
        %v7764 = vrot.slane %v7750, %v7763
        %v7765 = vcombine.low %v7709, %v7741
        %v7766 = vcombine.high %v7709, %v7741
        %v7767 = vcombine.low %v7716, %v7748
        %v7768 = vcombine.high %v7716, %v7748
        %v7769 = vcombine.low %v7725, %v7757
        %v7770 = vcombine.high %v7725, %v7757
        %v7771 = vcombine.low %v7732, %v7764
        %v7772 = vcombine.high %v7732, %v7764
        %v7773 = vcombine.low %v6926, %v7020
        %v7774 = vcombine.high %v6926, %v7020
        %v7776 = vunpack.c.l.s4 1983009808
        %v7777 = vunpack.c.0.s8 %v7776
        %v7778 = vlaneseq
        %v7779 = vshrl.u32 %v7778, 7
        %v7780 = vsub.s32 %v7777, %v7779
        %v7781 = vrot.slane %v7773, %v7780
        %v7783 = vunpack.c.l.s4 1983009808
        %v7784 = vunpack.c.0.s8 %v7783
        %v7785 = vlaneseq
        %v7786 = vshrl.u32 %v7785, 7
        %v7787 = vsub.s32 %v7784, %v7786
        %v7788 = vrot.slane %v7774, %v7787
        %v7789 = vcombine.low %v6973, %v7067
        %v7790 = vcombine.high %v6973, %v7067
        %v7792 = vunpack.c.l.s4 1983009808
        %v7793 = vunpack.c.0.s8 %v7792
        %v7794 = vlaneseq
        %v7795 = vshrl.u32 %v7794, 7
        %v7796 = vsub.s32 %v7793, %v7795
        %v7797 = vrot.slane %v7789, %v7796
        %v7799 = vunpack.c.l.s4 1983009808
        %v7800 = vunpack.c.0.s8 %v7799
        %v7801 = vlaneseq
        %v7802 = vshrl.u32 %v7801, 7
        %v7803 = vsub.s32 %v7800, %v7802
        %v7804 = vrot.slane %v7790, %v7803
        %v7805 = vcombine.low %v7114, %v7208
        %v7806 = vcombine.high %v7114, %v7208
        %v7808 = vunpack.c.l.s4 1983009808
        %v7809 = vunpack.c.0.s8 %v7808
        %v7810 = vlaneseq
        %v7811 = vshrl.u32 %v7810, 7
        %v7812 = vsub.s32 %v7809, %v7811
        %v7813 = vrot.slane %v7805, %v7812
        %v7815 = vunpack.c.l.s4 1983009808
        %v7816 = vunpack.c.0.s8 %v7815
        %v7817 = vlaneseq
        %v7818 = vshrl.u32 %v7817, 7
        %v7819 = vsub.s32 %v7816, %v7818
        %v7820 = vrot.slane %v7806, %v7819
        %v7821 = vcombine.low %v7161, %v7255
        %v7822 = vcombine.high %v7161, %v7255
        %v7824 = vunpack.c.l.s4 1983009808
        %v7825 = vunpack.c.0.s8 %v7824
        %v7826 = vlaneseq
        %v7827 = vshrl.u32 %v7826, 7
        %v7828 = vsub.s32 %v7825, %v7827
        %v7829 = vrot.slane %v7821, %v7828
        %v7831 = vunpack.c.l.s4 1983009808
        %v7832 = vunpack.c.0.s8 %v7831
        %v7833 = vlaneseq
        %v7834 = vshrl.u32 %v7833, 7
        %v7835 = vsub.s32 %v7832, %v7834
        %v7836 = vrot.slane %v7822, %v7835
        %v7837 = vcombine.low %v7781, %v7797
        %v7838 = vcombine.high %v7781, %v7797
        %v7840 = vunpack.c.l.s4 1934713408
        %v7841 = vunpack.c.0.s8 %v7840
        %v7842 = vlaneseq
        %v7843 = vshrl.u32 %v7842, 7
        %v7844 = vsub.s32 %v7841, %v7843
        %v7845 = vrot.slane %v7837, %v7844
        %v7847 = vunpack.c.l.s4 1934713408
        %v7848 = vunpack.c.0.s8 %v7847
        %v7849 = vlaneseq
        %v7850 = vshrl.u32 %v7849, 7
        %v7851 = vsub.s32 %v7848, %v7850
        %v7852 = vrot.slane %v7838, %v7851
        %v7853 = vcombine.low %v7788, %v7804
        %v7854 = vcombine.high %v7788, %v7804
        %v7856 = vunpack.c.l.s4 1934713408
        %v7857 = vunpack.c.0.s8 %v7856
        %v7858 = vlaneseq
        %v7859 = vshrl.u32 %v7858, 7
        %v7860 = vsub.s32 %v7857, %v7859
        %v7861 = vrot.slane %v7853, %v7860
        %v7863 = vunpack.c.l.s4 1934713408
        %v7864 = vunpack.c.0.s8 %v7863
        %v7865 = vlaneseq
        %v7866 = vshrl.u32 %v7865, 7
        %v7867 = vsub.s32 %v7864, %v7866
        %v7868 = vrot.slane %v7854, %v7867
        %v7869 = vcombine.low %v7813, %v7829
        %v7870 = vcombine.high %v7813, %v7829
        %v7872 = vunpack.c.l.s4 1934713408
        %v7873 = vunpack.c.0.s8 %v7872
        %v7874 = vlaneseq
        %v7875 = vshrl.u32 %v7874, 7
        %v7876 = vsub.s32 %v7873, %v7875
        %v7877 = vrot.slane %v7869, %v7876
        %v7879 = vunpack.c.l.s4 1934713408
        %v7880 = vunpack.c.0.s8 %v7879
        %v7881 = vlaneseq
        %v7882 = vshrl.u32 %v7881, 7
        %v7883 = vsub.s32 %v7880, %v7882
        %v7884 = vrot.slane %v7870, %v7883
        %v7885 = vcombine.low %v7820, %v7836
        %v7886 = vcombine.high %v7820, %v7836
        %v7888 = vunpack.c.l.s4 1934713408
        %v7889 = vunpack.c.0.s8 %v7888
        %v7890 = vlaneseq
        %v7891 = vshrl.u32 %v7890, 7
        %v7892 = vsub.s32 %v7889, %v7891
        %v7893 = vrot.slane %v7885, %v7892
        %v7895 = vunpack.c.l.s4 1934713408
        %v7896 = vunpack.c.0.s8 %v7895
        %v7897 = vlaneseq
        %v7898 = vshrl.u32 %v7897, 7
        %v7899 = vsub.s32 %v7896, %v7898
        %v7900 = vrot.slane %v7886, %v7899
        %v7901 = vcombine.low %v7845, %v7877
        %v7902 = vcombine.high %v7845, %v7877
        %v7903 = vcombine.low %v7852, %v7884
        %v7904 = vcombine.high %v7852, %v7884
        %v7905 = vcombine.low %v7861, %v7893
        %v7906 = vcombine.high %v7861, %v7893
        %v7907 = vcombine.low %v7868, %v7900
        %v7908 = vcombine.high %v7868, %v7900
        %v7909 = vcombine.low %v6553, %v6647
        %v7910 = vcombine.high %v6553, %v6647
        %v7912 = vunpack.c.l.s4 1983009808
        %v7913 = vunpack.c.0.s8 %v7912
        %v7914 = vlaneseq
        %v7915 = vshrl.u32 %v7914, 7
        %v7916 = vsub.s32 %v7913, %v7915
        %v7917 = vrot.slane %v7909, %v7916
        %v7919 = vunpack.c.l.s4 1983009808
        %v7920 = vunpack.c.0.s8 %v7919
        %v7921 = vlaneseq
        %v7922 = vshrl.u32 %v7921, 7
        %v7923 = vsub.s32 %v7920, %v7922
        %v7924 = vrot.slane %v7910, %v7923
        %v7925 = vcombine.low %v6600, %v6694
        %v7926 = vcombine.high %v6600, %v6694
        %v7928 = vunpack.c.l.s4 1983009808
        %v7929 = vunpack.c.0.s8 %v7928
        %v7930 = vlaneseq
        %v7931 = vshrl.u32 %v7930, 7
        %v7932 = vsub.s32 %v7929, %v7931
        %v7933 = vrot.slane %v7925, %v7932
        %v7935 = vunpack.c.l.s4 1983009808
        %v7936 = vunpack.c.0.s8 %v7935
        %v7937 = vlaneseq
        %v7938 = vshrl.u32 %v7937, 7
        %v7939 = vsub.s32 %v7936, %v7938
        %v7940 = vrot.slane %v7926, %v7939
        %v7941 = vcombine.low %v6741, %v6835
        %v7942 = vcombine.high %v6741, %v6835
        %v7944 = vunpack.c.l.s4 1983009808
        %v7945 = vunpack.c.0.s8 %v7944
        %v7946 = vlaneseq
        %v7947 = vshrl.u32 %v7946, 7
        %v7948 = vsub.s32 %v7945, %v7947
        %v7949 = vrot.slane %v7941, %v7948
        %v7951 = vunpack.c.l.s4 1983009808
        %v7952 = vunpack.c.0.s8 %v7951
        %v7953 = vlaneseq
        %v7954 = vshrl.u32 %v7953, 7
        %v7955 = vsub.s32 %v7952, %v7954
        %v7956 = vrot.slane %v7942, %v7955
        %v7957 = vcombine.low %v6788, %v6882
        %v7958 = vcombine.high %v6788, %v6882
        %v7960 = vunpack.c.l.s4 1983009808
        %v7961 = vunpack.c.0.s8 %v7960
        %v7962 = vlaneseq
        %v7963 = vshrl.u32 %v7962, 7
        %v7964 = vsub.s32 %v7961, %v7963
        %v7965 = vrot.slane %v7957, %v7964
        %v7967 = vunpack.c.l.s4 1983009808
        %v7968 = vunpack.c.0.s8 %v7967
        %v7969 = vlaneseq
        %v7970 = vshrl.u32 %v7969, 7
        %v7971 = vsub.s32 %v7968, %v7970
        %v7972 = vrot.slane %v7958, %v7971
        %v7973 = vcombine.low %v7917, %v7933
        %v7974 = vcombine.high %v7917, %v7933
        %v7976 = vunpack.c.l.s4 1934713408
        %v7977 = vunpack.c.0.s8 %v7976
        %v7978 = vlaneseq
        %v7979 = vshrl.u32 %v7978, 7
        %v7980 = vsub.s32 %v7977, %v7979
        %v7981 = vrot.slane %v7973, %v7980
        %v7983 = vunpack.c.l.s4 1934713408
        %v7984 = vunpack.c.0.s8 %v7983
        %v7985 = vlaneseq
        %v7986 = vshrl.u32 %v7985, 7
        %v7987 = vsub.s32 %v7984, %v7986
        %v7988 = vrot.slane %v7974, %v7987
        %v7989 = vcombine.low %v7924, %v7940
        %v7990 = vcombine.high %v7924, %v7940
        %v7992 = vunpack.c.l.s4 1934713408
        %v7993 = vunpack.c.0.s8 %v7992
        %v7994 = vlaneseq
        %v7995 = vshrl.u32 %v7994, 7
        %v7996 = vsub.s32 %v7993, %v7995
        %v7997 = vrot.slane %v7989, %v7996
        %v7999 = vunpack.c.l.s4 1934713408
        %v8000 = vunpack.c.0.s8 %v7999
        %v8001 = vlaneseq
        %v8002 = vshrl.u32 %v8001, 7
        %v8003 = vsub.s32 %v8000, %v8002
        %v8004 = vrot.slane %v7990, %v8003
        %v8005 = vcombine.low %v7949, %v7965
        %v8006 = vcombine.high %v7949, %v7965
        %v8008 = vunpack.c.l.s4 1934713408
        %v8009 = vunpack.c.0.s8 %v8008
        %v8010 = vlaneseq
        %v8011 = vshrl.u32 %v8010, 7
        %v8012 = vsub.s32 %v8009, %v8011
        %v8013 = vrot.slane %v8005, %v8012
        %v8015 = vunpack.c.l.s4 1934713408
        %v8016 = vunpack.c.0.s8 %v8015
        %v8017 = vlaneseq
        %v8018 = vshrl.u32 %v8017, 7
        %v8019 = vsub.s32 %v8016, %v8018
        %v8020 = vrot.slane %v8006, %v8019
        %v8021 = vcombine.low %v7956, %v7972
        %v8022 = vcombine.high %v7956, %v7972
        %v8024 = vunpack.c.l.s4 1934713408
        %v8025 = vunpack.c.0.s8 %v8024
        %v8026 = vlaneseq
        %v8027 = vshrl.u32 %v8026, 7
        %v8028 = vsub.s32 %v8025, %v8027
        %v8029 = vrot.slane %v8021, %v8028
        %v8031 = vunpack.c.l.s4 1934713408
        %v8032 = vunpack.c.0.s8 %v8031
        %v8033 = vlaneseq
        %v8034 = vshrl.u32 %v8033, 7
        %v8035 = vsub.s32 %v8032, %v8034
        %v8036 = vrot.slane %v8022, %v8035
        %v8037 = vcombine.low %v7981, %v8013
        %v8038 = vcombine.high %v7981, %v8013
        %v8039 = vcombine.low %v7988, %v8020
        %v8040 = vcombine.high %v7988, %v8020
        %v8041 = vcombine.low %v7997, %v8029
        %v8042 = vcombine.high %v7997, %v8029
        %v8043 = vcombine.low %v8004, %v8036
        %v8044 = vcombine.high %v8004, %v8036
        %v8045 = vcombine.low %v6929, %v7023
        %v8046 = vcombine.high %v6929, %v7023
        %v8048 = vunpack.c.l.s4 1983009808
        %v8049 = vunpack.c.0.s8 %v8048
        %v8050 = vlaneseq
        %v8051 = vshrl.u32 %v8050, 7
        %v8052 = vsub.s32 %v8049, %v8051
        %v8053 = vrot.slane %v8045, %v8052
        %v8055 = vunpack.c.l.s4 1983009808
        %v8056 = vunpack.c.0.s8 %v8055
        %v8057 = vlaneseq
        %v8058 = vshrl.u32 %v8057, 7
        %v8059 = vsub.s32 %v8056, %v8058
        %v8060 = vrot.slane %v8046, %v8059
        %v8061 = vcombine.low %v6976, %v7070
        %v8062 = vcombine.high %v6976, %v7070
        %v8064 = vunpack.c.l.s4 1983009808
        %v8065 = vunpack.c.0.s8 %v8064
        %v8066 = vlaneseq
        %v8067 = vshrl.u32 %v8066, 7
        %v8068 = vsub.s32 %v8065, %v8067
        %v8069 = vrot.slane %v8061, %v8068
        %v8071 = vunpack.c.l.s4 1983009808
        %v8072 = vunpack.c.0.s8 %v8071
        %v8073 = vlaneseq
        %v8074 = vshrl.u32 %v8073, 7
        %v8075 = vsub.s32 %v8072, %v8074
        %v8076 = vrot.slane %v8062, %v8075
        %v8077 = vcombine.low %v7117, %v7211
        %v8078 = vcombine.high %v7117, %v7211
        %v8080 = vunpack.c.l.s4 1983009808
        %v8081 = vunpack.c.0.s8 %v8080
        %v8082 = vlaneseq
        %v8083 = vshrl.u32 %v8082, 7
        %v8084 = vsub.s32 %v8081, %v8083
        %v8085 = vrot.slane %v8077, %v8084
        %v8087 = vunpack.c.l.s4 1983009808
        %v8088 = vunpack.c.0.s8 %v8087
        %v8089 = vlaneseq
        %v8090 = vshrl.u32 %v8089, 7
        %v8091 = vsub.s32 %v8088, %v8090
        %v8092 = vrot.slane %v8078, %v8091
        %v8093 = vcombine.low %v7164, %v7258
        %v8094 = vcombine.high %v7164, %v7258
        %v8096 = vunpack.c.l.s4 1983009808
        %v8097 = vunpack.c.0.s8 %v8096
        %v8098 = vlaneseq
        %v8099 = vshrl.u32 %v8098, 7
        %v8100 = vsub.s32 %v8097, %v8099
        %v8101 = vrot.slane %v8093, %v8100
        %v8103 = vunpack.c.l.s4 1983009808
        %v8104 = vunpack.c.0.s8 %v8103
        %v8105 = vlaneseq
        %v8106 = vshrl.u32 %v8105, 7
        %v8107 = vsub.s32 %v8104, %v8106
        %v8108 = vrot.slane %v8094, %v8107
        %v8109 = vcombine.low %v8053, %v8069
        %v8110 = vcombine.high %v8053, %v8069
        %v8112 = vunpack.c.l.s4 1934713408
        %v8113 = vunpack.c.0.s8 %v8112
        %v8114 = vlaneseq
        %v8115 = vshrl.u32 %v8114, 7
        %v8116 = vsub.s32 %v8113, %v8115
        %v8117 = vrot.slane %v8109, %v8116
        %v8119 = vunpack.c.l.s4 1934713408
        %v8120 = vunpack.c.0.s8 %v8119
        %v8121 = vlaneseq
        %v8122 = vshrl.u32 %v8121, 7
        %v8123 = vsub.s32 %v8120, %v8122
        %v8124 = vrot.slane %v8110, %v8123
        %v8125 = vcombine.low %v8060, %v8076
        %v8126 = vcombine.high %v8060, %v8076
        %v8128 = vunpack.c.l.s4 1934713408
        %v8129 = vunpack.c.0.s8 %v8128
        %v8130 = vlaneseq
        %v8131 = vshrl.u32 %v8130, 7
        %v8132 = vsub.s32 %v8129, %v8131
        %v8133 = vrot.slane %v8125, %v8132
        %v8135 = vunpack.c.l.s4 1934713408
        %v8136 = vunpack.c.0.s8 %v8135
        %v8137 = vlaneseq
        %v8138 = vshrl.u32 %v8137, 7
        %v8139 = vsub.s32 %v8136, %v8138
        %v8140 = vrot.slane %v8126, %v8139
        %v8141 = vcombine.low %v8085, %v8101
        %v8142 = vcombine.high %v8085, %v8101
        %v8144 = vunpack.c.l.s4 1934713408
        %v8145 = vunpack.c.0.s8 %v8144
        %v8146 = vlaneseq
        %v8147 = vshrl.u32 %v8146, 7
        %v8148 = vsub.s32 %v8145, %v8147
        %v8149 = vrot.slane %v8141, %v8148
        %v8151 = vunpack.c.l.s4 1934713408
        %v8152 = vunpack.c.0.s8 %v8151
        %v8153 = vlaneseq
        %v8154 = vshrl.u32 %v8153, 7
        %v8155 = vsub.s32 %v8152, %v8154
        %v8156 = vrot.slane %v8142, %v8155
        %v8157 = vcombine.low %v8092, %v8108
        %v8158 = vcombine.high %v8092, %v8108
        %v8160 = vunpack.c.l.s4 1934713408
        %v8161 = vunpack.c.0.s8 %v8160
        %v8162 = vlaneseq
        %v8163 = vshrl.u32 %v8162, 7
        %v8164 = vsub.s32 %v8161, %v8163
        %v8165 = vrot.slane %v8157, %v8164
        %v8167 = vunpack.c.l.s4 1934713408
        %v8168 = vunpack.c.0.s8 %v8167
        %v8169 = vlaneseq
        %v8170 = vshrl.u32 %v8169, 7
        %v8171 = vsub.s32 %v8168, %v8170
        %v8172 = vrot.slane %v8158, %v8171
        %v8173 = vcombine.low %v8117, %v8149
        %v8174 = vcombine.high %v8117, %v8149
        %v8175 = vcombine.low %v8124, %v8156
        %v8176 = vcombine.high %v8124, %v8156
        %v8177 = vcombine.low %v8133, %v8165
        %v8178 = vcombine.high %v8133, %v8165
        %v8179 = vcombine.low %v8140, %v8172
        %v8180 = vcombine.high %v8140, %v8172
        %8181 = vxpose.xlu0.b32.start [1/16] %v7765, 128
        %8182 = vxpose.xlu0.b32.cont [2/16] %v7901, 128
        %8183 = vxpose.xlu0.b32.cont [3/16] 0.0, 128
        %8184 = vxpose.xlu0.b32.cont [4/16] 0.0, 128
        %8185 = vxpose.xlu0.b32.cont [5/16] 0.0, 128
        %8186 = vxpose.xlu0.b32.cont [6/16] 0.0, 128
        %8187 = vxpose.xlu0.b32.cont [7/16] 0.0, 128
        %8188 = vxpose.xlu0.b32.cont [8/16] 0.0, 128
        %8189 = vxpose.xlu0.b32.cont [9/16] 0.0, 128
        %8190 = vxpose.xlu0.b32.cont [10/16] 0.0, 128
        %8191 = vxpose.xlu0.b32.cont [11/16] 0.0, 128
        %8192 = vxpose.xlu0.b32.cont [12/16] 0.0, 128
        %8193 = vxpose.xlu0.b32.cont [13/16] 0.0, 128
        %8194 = vxpose.xlu0.b32.cont [14/16] 0.0, 128
        %8195 = vxpose.xlu0.b32.cont [15/16] 0.0, 128
        %8196 = vxpose.xlu0.b32.end [16/16] 0.0, 128
        %v8197 = vpop.trf.xlu0
        %v8198 = vpop.trf.xlu0
        %v8199 = vpop.trf.xlu0
        %v8200 = vpop.trf.xlu0
        %v8201 = vpop.trf.xlu0
        %v8202 = vpop.trf.xlu0
        %v8203 = vpop.trf.xlu0
        %v8204 = vpop.trf.xlu0
        %v8205 = vpop.trf.xlu0
        %v8206 = vpop.trf.xlu0
        %v8207 = vpop.trf.xlu0
        %v8208 = vpop.trf.xlu0
        %v8209 = vpop.trf.xlu0
        %v8210 = vpop.trf.xlu0
        %v8211 = vpop.trf.xlu0
        %v8212 = vpop.trf.xlu0
        %8213 = vxpose.xlu0.b32.start [1/16] %v7766, 128
        %8214 = vxpose.xlu0.b32.cont [2/16] %v7902, 128
        %8215 = vxpose.xlu0.b32.cont [3/16] 0.0, 128
        %8216 = vxpose.xlu0.b32.cont [4/16] 0.0, 128
        %8217 = vxpose.xlu0.b32.cont [5/16] 0.0, 128
        %8218 = vxpose.xlu0.b32.cont [6/16] 0.0, 128
        %8219 = vxpose.xlu0.b32.cont [7/16] 0.0, 128
        %8220 = vxpose.xlu0.b32.cont [8/16] 0.0, 128
        %8221 = vxpose.xlu0.b32.cont [9/16] 0.0, 128
        %8222 = vxpose.xlu0.b32.cont [10/16] 0.0, 128
        %8223 = vxpose.xlu0.b32.cont [11/16] 0.0, 128
        %8224 = vxpose.xlu0.b32.cont [12/16] 0.0, 128
        %8225 = vxpose.xlu0.b32.cont [13/16] 0.0, 128
        %8226 = vxpose.xlu0.b32.cont [14/16] 0.0, 128
        %8227 = vxpose.xlu0.b32.cont [15/16] 0.0, 128
        %8228 = vxpose.xlu0.b32.end [16/16] 0.0, 128
        %v8229 = vpop.trf.xlu0
        %v8230 = vpop.trf.xlu0
        %v8231 = vpop.trf.xlu0
        %v8232 = vpop.trf.xlu0
        %v8233 = vpop.trf.xlu0
        %v8234 = vpop.trf.xlu0
        %v8235 = vpop.trf.xlu0
        %v8236 = vpop.trf.xlu0
        %v8237 = vpop.trf.xlu0
        %v8238 = vpop.trf.xlu0
        %v8239 = vpop.trf.xlu0
        %v8240 = vpop.trf.xlu0
        %v8241 = vpop.trf.xlu0
        %v8242 = vpop.trf.xlu0
        %v8243 = vpop.trf.xlu0
        %v8244 = vpop.trf.xlu0
        %8245 = vxpose.xlu0.b32.start [1/16] %v7767, 128
        %8246 = vxpose.xlu0.b32.cont [2/16] %v7903, 128
        %8247 = vxpose.xlu0.b32.cont [3/16] 0.0, 128
        %8248 = vxpose.xlu0.b32.cont [4/16] 0.0, 128
        %8249 = vxpose.xlu0.b32.cont [5/16] 0.0, 128
        %8250 = vxpose.xlu0.b32.cont [6/16] 0.0, 128
        %8251 = vxpose.xlu0.b32.cont [7/16] 0.0, 128
        %8252 = vxpose.xlu0.b32.cont [8/16] 0.0, 128
        %8253 = vxpose.xlu0.b32.cont [9/16] 0.0, 128
        %8254 = vxpose.xlu0.b32.cont [10/16] 0.0, 128
        %8255 = vxpose.xlu0.b32.cont [11/16] 0.0, 128
        %8256 = vxpose.xlu0.b32.cont [12/16] 0.0, 128
        %8257 = vxpose.xlu0.b32.cont [13/16] 0.0, 128
        %8258 = vxpose.xlu0.b32.cont [14/16] 0.0, 128
        %8259 = vxpose.xlu0.b32.cont [15/16] 0.0, 128
        %8260 = vxpose.xlu0.b32.end [16/16] 0.0, 128
        %v8261 = vpop.trf.xlu0
        %v8262 = vpop.trf.xlu0
        %v8263 = vpop.trf.xlu0
        %v8264 = vpop.trf.xlu0
        %v8265 = vpop.trf.xlu0
        %v8266 = vpop.trf.xlu0
        %v8267 = vpop.trf.xlu0
        %v8268 = vpop.trf.xlu0
        %v8269 = vpop.trf.xlu0
        %v8270 = vpop.trf.xlu0
        %v8271 = vpop.trf.xlu0
        %v8272 = vpop.trf.xlu0
        %v8273 = vpop.trf.xlu0
        %v8274 = vpop.trf.xlu0
        %v8275 = vpop.trf.xlu0
        %v8276 = vpop.trf.xlu0
        %8277 = vxpose.xlu0.b32.start [1/16] %v7768, 128
        %8278 = vxpose.xlu0.b32.cont [2/16] %v7904, 128
        %8279 = vxpose.xlu0.b32.cont [3/16] 0.0, 128
        %8280 = vxpose.xlu0.b32.cont [4/16] 0.0, 128
        %8281 = vxpose.xlu0.b32.cont [5/16] 0.0, 128
        %8282 = vxpose.xlu0.b32.cont [6/16] 0.0, 128
        %8283 = vxpose.xlu0.b32.cont [7/16] 0.0, 128
        %8284 = vxpose.xlu0.b32.cont [8/16] 0.0, 128
        %8285 = vxpose.xlu0.b32.cont [9/16] 0.0, 128
        %8286 = vxpose.xlu0.b32.cont [10/16] 0.0, 128
        %8287 = vxpose.xlu0.b32.cont [11/16] 0.0, 128
        %8288 = vxpose.xlu0.b32.cont [12/16] 0.0, 128
        %8289 = vxpose.xlu0.b32.cont [13/16] 0.0, 128
        %8290 = vxpose.xlu0.b32.cont [14/16] 0.0, 128
        %8291 = vxpose.xlu0.b32.cont [15/16] 0.0, 128
        %8292 = vxpose.xlu0.b32.end [16/16] 0.0, 128
        %v8293 = vpop.trf.xlu0
        %v8294 = vpop.trf.xlu0
        %v8295 = vpop.trf.xlu0
        %v8296 = vpop.trf.xlu0
        %v8297 = vpop.trf.xlu0
        %v8298 = vpop.trf.xlu0
        %v8299 = vpop.trf.xlu0
        %v8300 = vpop.trf.xlu0
        %v8301 = vpop.trf.xlu0
        %v8302 = vpop.trf.xlu0
        %v8303 = vpop.trf.xlu0
        %v8304 = vpop.trf.xlu0
        %v8305 = vpop.trf.xlu0
        %v8306 = vpop.trf.xlu0
        %v8307 = vpop.trf.xlu0
        %v8308 = vpop.trf.xlu0
        %8309 = vxpose.xlu0.b32.start [1/16] %v7769, 128
        %8310 = vxpose.xlu0.b32.cont [2/16] %v7905, 128
        %8311 = vxpose.xlu0.b32.cont [3/16] 0.0, 128
        %8312 = vxpose.xlu0.b32.cont [4/16] 0.0, 128
        %8313 = vxpose.xlu0.b32.cont [5/16] 0.0, 128
        %8314 = vxpose.xlu0.b32.cont [6/16] 0.0, 128
        %8315 = vxpose.xlu0.b32.cont [7/16] 0.0, 128
        %8316 = vxpose.xlu0.b32.cont [8/16] 0.0, 128
        %8317 = vxpose.xlu0.b32.cont [9/16] 0.0, 128
        %8318 = vxpose.xlu0.b32.cont [10/16] 0.0, 128
        %8319 = vxpose.xlu0.b32.cont [11/16] 0.0, 128
        %8320 = vxpose.xlu0.b32.cont [12/16] 0.0, 128
        %8321 = vxpose.xlu0.b32.cont [13/16] 0.0, 128
        %8322 = vxpose.xlu0.b32.cont [14/16] 0.0, 128
        %8323 = vxpose.xlu0.b32.cont [15/16] 0.0, 128
        %8324 = vxpose.xlu0.b32.end [16/16] 0.0, 128
        %v8325 = vpop.trf.xlu0
        %v8326 = vpop.trf.xlu0
        %v8327 = vpop.trf.xlu0
        %v8328 = vpop.trf.xlu0
        %v8329 = vpop.trf.xlu0
        %v8330 = vpop.trf.xlu0
        %v8331 = vpop.trf.xlu0
        %v8332 = vpop.trf.xlu0
        %v8333 = vpop.trf.xlu0
        %v8334 = vpop.trf.xlu0
        %v8335 = vpop.trf.xlu0
        %v8336 = vpop.trf.xlu0
        %v8337 = vpop.trf.xlu0
        %v8338 = vpop.trf.xlu0
        %v8339 = vpop.trf.xlu0
        %v8340 = vpop.trf.xlu0
        %8341 = vxpose.xlu0.b32.start [1/16] %v7770, 128
        %8342 = vxpose.xlu0.b32.cont [2/16] %v7906, 128
        %8343 = vxpose.xlu0.b32.cont [3/16] 0.0, 128
        %8344 = vxpose.xlu0.b32.cont [4/16] 0.0, 128
        %8345 = vxpose.xlu0.b32.cont [5/16] 0.0, 128
        %8346 = vxpose.xlu0.b32.cont [6/16] 0.0, 128
        %8347 = vxpose.xlu0.b32.cont [7/16] 0.0, 128
        %8348 = vxpose.xlu0.b32.cont [8/16] 0.0, 128
        %8349 = vxpose.xlu0.b32.cont [9/16] 0.0, 128
        %8350 = vxpose.xlu0.b32.cont [10/16] 0.0, 128
        %8351 = vxpose.xlu0.b32.cont [11/16] 0.0, 128
        %8352 = vxpose.xlu0.b32.cont [12/16] 0.0, 128
        %8353 = vxpose.xlu0.b32.cont [13/16] 0.0, 128
        %8354 = vxpose.xlu0.b32.cont [14/16] 0.0, 128
        %8355 = vxpose.xlu0.b32.cont [15/16] 0.0, 128
        %8356 = vxpose.xlu0.b32.end [16/16] 0.0, 128
        %v8357 = vpop.trf.xlu0
        %v8358 = vpop.trf.xlu0
        %v8359 = vpop.trf.xlu0
        %v8360 = vpop.trf.xlu0
        %v8361 = vpop.trf.xlu0
        %v8362 = vpop.trf.xlu0
        %v8363 = vpop.trf.xlu0
        %v8364 = vpop.trf.xlu0
        %v8365 = vpop.trf.xlu0
        %v8366 = vpop.trf.xlu0
        %v8367 = vpop.trf.xlu0
        %v8368 = vpop.trf.xlu0
        %v8369 = vpop.trf.xlu0
        %v8370 = vpop.trf.xlu0
        %v8371 = vpop.trf.xlu0
        %v8372 = vpop.trf.xlu0
        %8373 = vxpose.xlu0.b32.start [1/16] %v7771, 128
        %8374 = vxpose.xlu0.b32.cont [2/16] %v7907, 128
        %8375 = vxpose.xlu0.b32.cont [3/16] 0.0, 128
        %8376 = vxpose.xlu0.b32.cont [4/16] 0.0, 128
        %8377 = vxpose.xlu0.b32.cont [5/16] 0.0, 128
        %8378 = vxpose.xlu0.b32.cont [6/16] 0.0, 128
        %8379 = vxpose.xlu0.b32.cont [7/16] 0.0, 128
        %8380 = vxpose.xlu0.b32.cont [8/16] 0.0, 128
        %8381 = vxpose.xlu0.b32.cont [9/16] 0.0, 128
        %8382 = vxpose.xlu0.b32.cont [10/16] 0.0, 128
        %8383 = vxpose.xlu0.b32.cont [11/16] 0.0, 128
        %8384 = vxpose.xlu0.b32.cont [12/16] 0.0, 128
        %8385 = vxpose.xlu0.b32.cont [13/16] 0.0, 128
        %8386 = vxpose.xlu0.b32.cont [14/16] 0.0, 128
        %8387 = vxpose.xlu0.b32.cont [15/16] 0.0, 128
        %8388 = vxpose.xlu0.b32.end [16/16] 0.0, 128
        %v8389 = vpop.trf.xlu0
        %v8390 = vpop.trf.xlu0
        %v8391 = vpop.trf.xlu0
        %v8392 = vpop.trf.xlu0
        %v8393 = vpop.trf.xlu0
        %v8394 = vpop.trf.xlu0
        %v8395 = vpop.trf.xlu0
        %v8396 = vpop.trf.xlu0
        %v8397 = vpop.trf.xlu0
        %v8398 = vpop.trf.xlu0
        %v8399 = vpop.trf.xlu0
        %v8400 = vpop.trf.xlu0
        %v8401 = vpop.trf.xlu0
        %v8402 = vpop.trf.xlu0
        %v8403 = vpop.trf.xlu0
        %v8404 = vpop.trf.xlu0
        %8405 = vxpose.xlu0.b32.start [1/16] %v7772, 128
        %8406 = vxpose.xlu0.b32.cont [2/16] %v7908, 128
        %8407 = vxpose.xlu0.b32.cont [3/16] 0.0, 128
        %8408 = vxpose.xlu0.b32.cont [4/16] 0.0, 128
        %8409 = vxpose.xlu0.b32.cont [5/16] 0.0, 128
        %8410 = vxpose.xlu0.b32.cont [6/16] 0.0, 128
        %8411 = vxpose.xlu0.b32.cont [7/16] 0.0, 128
        %8412 = vxpose.xlu0.b32.cont [8/16] 0.0, 128
        %8413 = vxpose.xlu0.b32.cont [9/16] 0.0, 128
        %8414 = vxpose.xlu0.b32.cont [10/16] 0.0, 128
        %8415 = vxpose.xlu0.b32.cont [11/16] 0.0, 128
        %8416 = vxpose.xlu0.b32.cont [12/16] 0.0, 128
        %8417 = vxpose.xlu0.b32.cont [13/16] 0.0, 128
        %8418 = vxpose.xlu0.b32.cont [14/16] 0.0, 128
        %8419 = vxpose.xlu0.b32.cont [15/16] 0.0, 128
        %8420 = vxpose.xlu0.b32.end [16/16] 0.0, 128
        %v8421 = vpop.trf.xlu0
        %v8422 = vpop.trf.xlu0
        %v8423 = vpop.trf.xlu0
        %v8424 = vpop.trf.xlu0
        %v8425 = vpop.trf.xlu0
        %v8426 = vpop.trf.xlu0
        %v8427 = vpop.trf.xlu0
        %v8428 = vpop.trf.xlu0
        %v8429 = vpop.trf.xlu0
        %v8430 = vpop.trf.xlu0
        %v8431 = vpop.trf.xlu0
        %v8432 = vpop.trf.xlu0
        %v8433 = vpop.trf.xlu0
        %v8434 = vpop.trf.xlu0
        %v8435 = vpop.trf.xlu0
        %v8436 = vpop.trf.xlu0
        %8437 = vxpose.xlu0.b32.start [1/16] %v8037, 128
        %8438 = vxpose.xlu0.b32.cont [2/16] %v8173, 128
        %8439 = vxpose.xlu0.b32.cont [3/16] 0.0, 128
        %8440 = vxpose.xlu0.b32.cont [4/16] 0.0, 128
        %8441 = vxpose.xlu0.b32.cont [5/16] 0.0, 128
        %8442 = vxpose.xlu0.b32.cont [6/16] 0.0, 128
        %8443 = vxpose.xlu0.b32.cont [7/16] 0.0, 128
        %8444 = vxpose.xlu0.b32.cont [8/16] 0.0, 128
        %8445 = vxpose.xlu0.b32.cont [9/16] 0.0, 128
        %8446 = vxpose.xlu0.b32.cont [10/16] 0.0, 128
        %8447 = vxpose.xlu0.b32.cont [11/16] 0.0, 128
        %8448 = vxpose.xlu0.b32.cont [12/16] 0.0, 128
        %8449 = vxpose.xlu0.b32.cont [13/16] 0.0, 128
        %8450 = vxpose.xlu0.b32.cont [14/16] 0.0, 128
        %8451 = vxpose.xlu0.b32.cont [15/16] 0.0, 128
        %8452 = vxpose.xlu0.b32.end [16/16] 0.0, 128
        %v8453 = vpop.trf.xlu0
        %v8454 = vpop.trf.xlu0
        %v8455 = vpop.trf.xlu0
        %v8456 = vpop.trf.xlu0
        %v8457 = vpop.trf.xlu0
        %v8458 = vpop.trf.xlu0
        %v8459 = vpop.trf.xlu0
        %v8460 = vpop.trf.xlu0
        %v8461 = vpop.trf.xlu0
        %v8462 = vpop.trf.xlu0
        %v8463 = vpop.trf.xlu0
        %v8464 = vpop.trf.xlu0
        %v8465 = vpop.trf.xlu0
        %v8466 = vpop.trf.xlu0
        %v8467 = vpop.trf.xlu0
        %v8468 = vpop.trf.xlu0
        %8469 = vxpose.xlu0.b32.start [1/16] %v8038, 128
        %8470 = vxpose.xlu0.b32.cont [2/16] %v8174, 128
        %8471 = vxpose.xlu0.b32.cont [3/16] 0.0, 128
        %8472 = vxpose.xlu0.b32.cont [4/16] 0.0, 128
        %8473 = vxpose.xlu0.b32.cont [5/16] 0.0, 128
        %8474 = vxpose.xlu0.b32.cont [6/16] 0.0, 128
        %8475 = vxpose.xlu0.b32.cont [7/16] 0.0, 128
        %8476 = vxpose.xlu0.b32.cont [8/16] 0.0, 128
        %8477 = vxpose.xlu0.b32.cont [9/16] 0.0, 128
        %8478 = vxpose.xlu0.b32.cont [10/16] 0.0, 128
        %8479 = vxpose.xlu0.b32.cont [11/16] 0.0, 128
        %8480 = vxpose.xlu0.b32.cont [12/16] 0.0, 128
        %8481 = vxpose.xlu0.b32.cont [13/16] 0.0, 128
        %8482 = vxpose.xlu0.b32.cont [14/16] 0.0, 128
        %8483 = vxpose.xlu0.b32.cont [15/16] 0.0, 128
        %8484 = vxpose.xlu0.b32.end [16/16] 0.0, 128
        %v8485 = vpop.trf.xlu0
        %v8486 = vpop.trf.xlu0
        %v8487 = vpop.trf.xlu0
        %v8488 = vpop.trf.xlu0
        %v8489 = vpop.trf.xlu0
        %v8490 = vpop.trf.xlu0
        %v8491 = vpop.trf.xlu0
        %v8492 = vpop.trf.xlu0
        %v8493 = vpop.trf.xlu0
        %v8494 = vpop.trf.xlu0
        %v8495 = vpop.trf.xlu0
        %v8496 = vpop.trf.xlu0
        %v8497 = vpop.trf.xlu0
        %v8498 = vpop.trf.xlu0
        %v8499 = vpop.trf.xlu0
        %v8500 = vpop.trf.xlu0
        %8501 = vxpose.xlu0.b32.start [1/16] %v8039, 128
        %8502 = vxpose.xlu0.b32.cont [2/16] %v8175, 128
        %8503 = vxpose.xlu0.b32.cont [3/16] 0.0, 128
        %8504 = vxpose.xlu0.b32.cont [4/16] 0.0, 128
        %8505 = vxpose.xlu0.b32.cont [5/16] 0.0, 128
        %8506 = vxpose.xlu0.b32.cont [6/16] 0.0, 128
        %8507 = vxpose.xlu0.b32.cont [7/16] 0.0, 128
        %8508 = vxpose.xlu0.b32.cont [8/16] 0.0, 128
        %8509 = vxpose.xlu0.b32.cont [9/16] 0.0, 128
        %8510 = vxpose.xlu0.b32.cont [10/16] 0.0, 128
        %8511 = vxpose.xlu0.b32.cont [11/16] 0.0, 128
        %8512 = vxpose.xlu0.b32.cont [12/16] 0.0, 128
        %8513 = vxpose.xlu0.b32.cont [13/16] 0.0, 128
        %8514 = vxpose.xlu0.b32.cont [14/16] 0.0, 128
        %8515 = vxpose.xlu0.b32.cont [15/16] 0.0, 128
        %8516 = vxpose.xlu0.b32.end [16/16] 0.0, 128
        %v8517 = vpop.trf.xlu0
        %v8518 = vpop.trf.xlu0
        %v8519 = vpop.trf.xlu0
        %v8520 = vpop.trf.xlu0
        %v8521 = vpop.trf.xlu0
        %v8522 = vpop.trf.xlu0
        %v8523 = vpop.trf.xlu0
        %v8524 = vpop.trf.xlu0
        %v8525 = vpop.trf.xlu0
        %v8526 = vpop.trf.xlu0
        %v8527 = vpop.trf.xlu0
        %v8528 = vpop.trf.xlu0
        %v8529 = vpop.trf.xlu0
        %v8530 = vpop.trf.xlu0
        %v8531 = vpop.trf.xlu0
        %v8532 = vpop.trf.xlu0
        %8533 = vxpose.xlu0.b32.start [1/16] %v8040, 128
        %8534 = vxpose.xlu0.b32.cont [2/16] %v8176, 128
        %8535 = vxpose.xlu0.b32.cont [3/16] 0.0, 128
        %8536 = vxpose.xlu0.b32.cont [4/16] 0.0, 128
        %8537 = vxpose.xlu0.b32.cont [5/16] 0.0, 128
        %8538 = vxpose.xlu0.b32.cont [6/16] 0.0, 128
        %8539 = vxpose.xlu0.b32.cont [7/16] 0.0, 128
        %8540 = vxpose.xlu0.b32.cont [8/16] 0.0, 128
        %8541 = vxpose.xlu0.b32.cont [9/16] 0.0, 128
        %8542 = vxpose.xlu0.b32.cont [10/16] 0.0, 128
        %8543 = vxpose.xlu0.b32.cont [11/16] 0.0, 128
        %8544 = vxpose.xlu0.b32.cont [12/16] 0.0, 128
        %8545 = vxpose.xlu0.b32.cont [13/16] 0.0, 128
        %8546 = vxpose.xlu0.b32.cont [14/16] 0.0, 128
        %8547 = vxpose.xlu0.b32.cont [15/16] 0.0, 128
        %8548 = vxpose.xlu0.b32.end [16/16] 0.0, 128
        %v8549 = vpop.trf.xlu0
        %v8550 = vpop.trf.xlu0
        %v8551 = vpop.trf.xlu0
        %v8552 = vpop.trf.xlu0
        %v8553 = vpop.trf.xlu0
        %v8554 = vpop.trf.xlu0
        %v8555 = vpop.trf.xlu0
        %v8556 = vpop.trf.xlu0
        %v8557 = vpop.trf.xlu0
        %v8558 = vpop.trf.xlu0
        %v8559 = vpop.trf.xlu0
        %v8560 = vpop.trf.xlu0
        %v8561 = vpop.trf.xlu0
        %v8562 = vpop.trf.xlu0
        %v8563 = vpop.trf.xlu0
        %v8564 = vpop.trf.xlu0
        %8565 = vxpose.xlu0.b32.start [1/16] %v8041, 128
        %8566 = vxpose.xlu0.b32.cont [2/16] %v8177, 128
        %8567 = vxpose.xlu0.b32.cont [3/16] 0.0, 128
        %8568 = vxpose.xlu0.b32.cont [4/16] 0.0, 128
        %8569 = vxpose.xlu0.b32.cont [5/16] 0.0, 128
        %8570 = vxpose.xlu0.b32.cont [6/16] 0.0, 128
        %8571 = vxpose.xlu0.b32.cont [7/16] 0.0, 128
        %8572 = vxpose.xlu0.b32.cont [8/16] 0.0, 128
        %8573 = vxpose.xlu0.b32.cont [9/16] 0.0, 128
        %8574 = vxpose.xlu0.b32.cont [10/16] 0.0, 128
        %8575 = vxpose.xlu0.b32.cont [11/16] 0.0, 128
        %8576 = vxpose.xlu0.b32.cont [12/16] 0.0, 128
        %8577 = vxpose.xlu0.b32.cont [13/16] 0.0, 128
        %8578 = vxpose.xlu0.b32.cont [14/16] 0.0, 128
        %8579 = vxpose.xlu0.b32.cont [15/16] 0.0, 128
        %8580 = vxpose.xlu0.b32.end [16/16] 0.0, 128
        %v8581 = vpop.trf.xlu0
        %v8582 = vpop.trf.xlu0
        %v8583 = vpop.trf.xlu0
        %v8584 = vpop.trf.xlu0
        %v8585 = vpop.trf.xlu0
        %v8586 = vpop.trf.xlu0
        %v8587 = vpop.trf.xlu0
        %v8588 = vpop.trf.xlu0
        %v8589 = vpop.trf.xlu0
        %v8590 = vpop.trf.xlu0
        %v8591 = vpop.trf.xlu0
        %v8592 = vpop.trf.xlu0
        %v8593 = vpop.trf.xlu0
        %v8594 = vpop.trf.xlu0
        %v8595 = vpop.trf.xlu0
        %v8596 = vpop.trf.xlu0
        %8597 = vxpose.xlu0.b32.start [1/16] %v8042, 128
        %8598 = vxpose.xlu0.b32.cont [2/16] %v8178, 128
        %8599 = vxpose.xlu0.b32.cont [3/16] 0.0, 128
        %8600 = vxpose.xlu0.b32.cont [4/16] 0.0, 128
        %8601 = vxpose.xlu0.b32.cont [5/16] 0.0, 128
        %8602 = vxpose.xlu0.b32.cont [6/16] 0.0, 128
        %8603 = vxpose.xlu0.b32.cont [7/16] 0.0, 128
        %8604 = vxpose.xlu0.b32.cont [8/16] 0.0, 128
        %8605 = vxpose.xlu0.b32.cont [9/16] 0.0, 128
        %8606 = vxpose.xlu0.b32.cont [10/16] 0.0, 128
        %8607 = vxpose.xlu0.b32.cont [11/16] 0.0, 128
        %8608 = vxpose.xlu0.b32.cont [12/16] 0.0, 128
        %8609 = vxpose.xlu0.b32.cont [13/16] 0.0, 128
        %8610 = vxpose.xlu0.b32.cont [14/16] 0.0, 128
        %8611 = vxpose.xlu0.b32.cont [15/16] 0.0, 128
        %8612 = vxpose.xlu0.b32.end [16/16] 0.0, 128
        %v8613 = vpop.trf.xlu0
        %v8614 = vpop.trf.xlu0
        %v8615 = vpop.trf.xlu0
        %v8616 = vpop.trf.xlu0
        %v8617 = vpop.trf.xlu0
        %v8618 = vpop.trf.xlu0
        %v8619 = vpop.trf.xlu0
        %v8620 = vpop.trf.xlu0
        %v8621 = vpop.trf.xlu0
        %v8622 = vpop.trf.xlu0
        %v8623 = vpop.trf.xlu0
        %v8624 = vpop.trf.xlu0
        %v8625 = vpop.trf.xlu0
        %v8626 = vpop.trf.xlu0
        %v8627 = vpop.trf.xlu0
        %v8628 = vpop.trf.xlu0
        %8629 = vxpose.xlu0.b32.start [1/16] %v8043, 128
        %8630 = vxpose.xlu0.b32.cont [2/16] %v8179, 128
        %8631 = vxpose.xlu0.b32.cont [3/16] 0.0, 128
        %8632 = vxpose.xlu0.b32.cont [4/16] 0.0, 128
        %8633 = vxpose.xlu0.b32.cont [5/16] 0.0, 128
        %8634 = vxpose.xlu0.b32.cont [6/16] 0.0, 128
        %8635 = vxpose.xlu0.b32.cont [7/16] 0.0, 128
        %8636 = vxpose.xlu0.b32.cont [8/16] 0.0, 128
        %8637 = vxpose.xlu0.b32.cont [9/16] 0.0, 128
        %8638 = vxpose.xlu0.b32.cont [10/16] 0.0, 128
        %8639 = vxpose.xlu0.b32.cont [11/16] 0.0, 128
        %8640 = vxpose.xlu0.b32.cont [12/16] 0.0, 128
        %8641 = vxpose.xlu0.b32.cont [13/16] 0.0, 128
        %8642 = vxpose.xlu0.b32.cont [14/16] 0.0, 128
        %8643 = vxpose.xlu0.b32.cont [15/16] 0.0, 128
        %8644 = vxpose.xlu0.b32.end [16/16] 0.0, 128
        %v8645 = vpop.trf.xlu0
        %v8646 = vpop.trf.xlu0
        %v8647 = vpop.trf.xlu0
        %v8648 = vpop.trf.xlu0
        %v8649 = vpop.trf.xlu0
        %v8650 = vpop.trf.xlu0
        %v8651 = vpop.trf.xlu0
        %v8652 = vpop.trf.xlu0
        %v8653 = vpop.trf.xlu0
        %v8654 = vpop.trf.xlu0
        %v8655 = vpop.trf.xlu0
        %v8656 = vpop.trf.xlu0
        %v8657 = vpop.trf.xlu0
        %v8658 = vpop.trf.xlu0
        %v8659 = vpop.trf.xlu0
        %v8660 = vpop.trf.xlu0
        %8661 = vxpose.xlu0.b32.start [1/16] %v8044, 128
        %8662 = vxpose.xlu0.b32.cont [2/16] %v8180, 128
        %8663 = vxpose.xlu0.b32.cont [3/16] 0.0, 128
        %8664 = vxpose.xlu0.b32.cont [4/16] 0.0, 128
        %8665 = vxpose.xlu0.b32.cont [5/16] 0.0, 128
        %8666 = vxpose.xlu0.b32.cont [6/16] 0.0, 128
        %8667 = vxpose.xlu0.b32.cont [7/16] 0.0, 128
        %8668 = vxpose.xlu0.b32.cont [8/16] 0.0, 128
        %8669 = vxpose.xlu0.b32.cont [9/16] 0.0, 128
        %8670 = vxpose.xlu0.b32.cont [10/16] 0.0, 128
        %8671 = vxpose.xlu0.b32.cont [11/16] 0.0, 128
        %8672 = vxpose.xlu0.b32.cont [12/16] 0.0, 128
        %8673 = vxpose.xlu0.b32.cont [13/16] 0.0, 128
        %8674 = vxpose.xlu0.b32.cont [14/16] 0.0, 128
        %8675 = vxpose.xlu0.b32.cont [15/16] 0.0, 128
        %8676 = vxpose.xlu0.b32.end [16/16] 0.0, 128
        %v8677 = vpop.trf.xlu0
        %v8678 = vpop.trf.xlu0
        %v8679 = vpop.trf.xlu0
        %v8680 = vpop.trf.xlu0
        %v8681 = vpop.trf.xlu0
        %v8682 = vpop.trf.xlu0
        %v8683 = vpop.trf.xlu0
        %v8684 = vpop.trf.xlu0
        %v8685 = vpop.trf.xlu0
        %v8686 = vpop.trf.xlu0
        %v8687 = vpop.trf.xlu0
        %v8688 = vpop.trf.xlu0
        %v8689 = vpop.trf.xlu0
        %v8690 = vpop.trf.xlu0
        %v8691 = vpop.trf.xlu0
        %v8692 = vpop.trf.xlu0
        %v8693 = vcombine.low %v7302, %v7396
        %v8694 = vcombine.high %v7302, %v7396
        %v8696 = vunpack.c.l.s4 1983009808
        %v8697 = vunpack.c.0.s8 %v8696
        %v8698 = vlaneseq
        %v8699 = vshrl.u32 %v8698, 7
        %v8700 = vsub.s32 %v8697, %v8699
        %v8701 = vrot.slane %v8693, %v8700
        %v8703 = vunpack.c.l.s4 1983009808
        %v8704 = vunpack.c.0.s8 %v8703
        %v8705 = vlaneseq
        %v8706 = vshrl.u32 %v8705, 7
        %v8707 = vsub.s32 %v8704, %v8706
        %v8708 = vrot.slane %v8694, %v8707
        %v8709 = vcombine.low %v7349, %v7443
        %v8710 = vcombine.high %v7349, %v7443
        %v8712 = vunpack.c.l.s4 1983009808
        %v8713 = vunpack.c.0.s8 %v8712
        %v8714 = vlaneseq
        %v8715 = vshrl.u32 %v8714, 7
        %v8716 = vsub.s32 %v8713, %v8715
        %v8717 = vrot.slane %v8709, %v8716
        %v8719 = vunpack.c.l.s4 1983009808
        %v8720 = vunpack.c.0.s8 %v8719
        %v8721 = vlaneseq
        %v8722 = vshrl.u32 %v8721, 7
        %v8723 = vsub.s32 %v8720, %v8722
        %v8724 = vrot.slane %v8710, %v8723
        %v8725 = vcombine.low %v7490, %v7584
        %v8726 = vcombine.high %v7490, %v7584
        %v8728 = vunpack.c.l.s4 1983009808
        %v8729 = vunpack.c.0.s8 %v8728
        %v8730 = vlaneseq
        %v8731 = vshrl.u32 %v8730, 7
        %v8732 = vsub.s32 %v8729, %v8731
        %v8733 = vrot.slane %v8725, %v8732
        %v8735 = vunpack.c.l.s4 1983009808
        %v8736 = vunpack.c.0.s8 %v8735
        %v8737 = vlaneseq
        %v8738 = vshrl.u32 %v8737, 7
        %v8739 = vsub.s32 %v8736, %v8738
        %v8740 = vrot.slane %v8726, %v8739
        %v8741 = vcombine.low %v7537, %v7631
        %v8742 = vcombine.high %v7537, %v7631
        %v8744 = vunpack.c.l.s4 1983009808
        %v8745 = vunpack.c.0.s8 %v8744
        %v8746 = vlaneseq
        %v8747 = vshrl.u32 %v8746, 7
        %v8748 = vsub.s32 %v8745, %v8747
        %v8749 = vrot.slane %v8741, %v8748
        %v8751 = vunpack.c.l.s4 1983009808
        %v8752 = vunpack.c.0.s8 %v8751
        %v8753 = vlaneseq
        %v8754 = vshrl.u32 %v8753, 7
        %v8755 = vsub.s32 %v8752, %v8754
        %v8756 = vrot.slane %v8742, %v8755
        %v8757 = vcombine.low %v8701, %v8717
        %v8758 = vcombine.high %v8701, %v8717
        %v8760 = vunpack.c.l.s4 1934713408
        %v8761 = vunpack.c.0.s8 %v8760
        %v8762 = vlaneseq
        %v8763 = vshrl.u32 %v8762, 7
        %v8764 = vsub.s32 %v8761, %v8763
        %v8765 = vrot.slane %v8757, %v8764
        %v8767 = vunpack.c.l.s4 1934713408
        %v8768 = vunpack.c.0.s8 %v8767
        %v8769 = vlaneseq
        %v8770 = vshrl.u32 %v8769, 7
        %v8771 = vsub.s32 %v8768, %v8770
        %v8772 = vrot.slane %v8758, %v8771
        %v8773 = vcombine.low %v8708, %v8724
        %v8774 = vcombine.high %v8708, %v8724
        %v8776 = vunpack.c.l.s4 1934713408
        %v8777 = vunpack.c.0.s8 %v8776
        %v8778 = vlaneseq
        %v8779 = vshrl.u32 %v8778, 7
        %v8780 = vsub.s32 %v8777, %v8779
        %v8781 = vrot.slane %v8773, %v8780
        %v8783 = vunpack.c.l.s4 1934713408
        %v8784 = vunpack.c.0.s8 %v8783
        %v8785 = vlaneseq
        %v8786 = vshrl.u32 %v8785, 7
        %v8787 = vsub.s32 %v8784, %v8786
        %v8788 = vrot.slane %v8774, %v8787
        %v8789 = vcombine.low %v8733, %v8749
        %v8790 = vcombine.high %v8733, %v8749
        %v8792 = vunpack.c.l.s4 1934713408
        %v8793 = vunpack.c.0.s8 %v8792
        %v8794 = vlaneseq
        %v8795 = vshrl.u32 %v8794, 7
        %v8796 = vsub.s32 %v8793, %v8795
        %v8797 = vrot.slane %v8789, %v8796
        %v8799 = vunpack.c.l.s4 1934713408
        %v8800 = vunpack.c.0.s8 %v8799
        %v8801 = vlaneseq
        %v8802 = vshrl.u32 %v8801, 7
        %v8803 = vsub.s32 %v8800, %v8802
        %v8804 = vrot.slane %v8790, %v8803
        %v8805 = vcombine.low %v8740, %v8756
        %v8806 = vcombine.high %v8740, %v8756
        %v8808 = vunpack.c.l.s4 1934713408
        %v8809 = vunpack.c.0.s8 %v8808
        %v8810 = vlaneseq
        %v8811 = vshrl.u32 %v8810, 7
        %v8812 = vsub.s32 %v8809, %v8811
        %v8813 = vrot.slane %v8805, %v8812
        %v8815 = vunpack.c.l.s4 1934713408
        %v8816 = vunpack.c.0.s8 %v8815
        %v8817 = vlaneseq
        %v8818 = vshrl.u32 %v8817, 7
        %v8819 = vsub.s32 %v8816, %v8818
        %v8820 = vrot.slane %v8806, %v8819
        %v8821 = vcombine.low %v8765, %v8797
        %v8822 = vcombine.high %v8765, %v8797
        %v8823 = vcombine.low %v8772, %v8804
        %v8824 = vcombine.high %v8772, %v8804
        %v8825 = vcombine.low %v8781, %v8813
        %v8826 = vcombine.high %v8781, %v8813
        %v8827 = vcombine.low %v8788, %v8820
        %v8828 = vcombine.high %v8788, %v8820
        %v8829 = vcombine.low %v7305, %v7399
        %v8830 = vcombine.high %v7305, %v7399
        %v8832 = vunpack.c.l.s4 1983009808
        %v8833 = vunpack.c.0.s8 %v8832
        %v8834 = vlaneseq
        %v8835 = vshrl.u32 %v8834, 7
        %v8836 = vsub.s32 %v8833, %v8835
        %v8837 = vrot.slane %v8829, %v8836
        %v8839 = vunpack.c.l.s4 1983009808
        %v8840 = vunpack.c.0.s8 %v8839
        %v8841 = vlaneseq
        %v8842 = vshrl.u32 %v8841, 7
        %v8843 = vsub.s32 %v8840, %v8842
        %v8844 = vrot.slane %v8830, %v8843
        %v8845 = vcombine.low %v7352, %v7446
        %v8846 = vcombine.high %v7352, %v7446
        %v8848 = vunpack.c.l.s4 1983009808
        %v8849 = vunpack.c.0.s8 %v8848
        %v8850 = vlaneseq
        %v8851 = vshrl.u32 %v8850, 7
        %v8852 = vsub.s32 %v8849, %v8851
        %v8853 = vrot.slane %v8845, %v8852
        %v8855 = vunpack.c.l.s4 1983009808
        %v8856 = vunpack.c.0.s8 %v8855
        %v8857 = vlaneseq
        %v8858 = vshrl.u32 %v8857, 7
        %v8859 = vsub.s32 %v8856, %v8858
        %v8860 = vrot.slane %v8846, %v8859
        %v8861 = vcombine.low %v7493, %v7587
        %v8862 = vcombine.high %v7493, %v7587
        %v8864 = vunpack.c.l.s4 1983009808
        %v8865 = vunpack.c.0.s8 %v8864
        %v8866 = vlaneseq
        %v8867 = vshrl.u32 %v8866, 7
        %v8868 = vsub.s32 %v8865, %v8867
        %v8869 = vrot.slane %v8861, %v8868
        %v8871 = vunpack.c.l.s4 1983009808
        %v8872 = vunpack.c.0.s8 %v8871
        %v8873 = vlaneseq
        %v8874 = vshrl.u32 %v8873, 7
        %v8875 = vsub.s32 %v8872, %v8874
        %v8876 = vrot.slane %v8862, %v8875
        %v8877 = vcombine.low %v7540, %v7634
        %v8878 = vcombine.high %v7540, %v7634
        %v8880 = vunpack.c.l.s4 1983009808
        %v8881 = vunpack.c.0.s8 %v8880
        %v8882 = vlaneseq
        %v8883 = vshrl.u32 %v8882, 7
        %v8884 = vsub.s32 %v8881, %v8883
        %v8885 = vrot.slane %v8877, %v8884
        %v8887 = vunpack.c.l.s4 1983009808
        %v8888 = vunpack.c.0.s8 %v8887
        %v8889 = vlaneseq
        %v8890 = vshrl.u32 %v8889, 7
        %v8891 = vsub.s32 %v8888, %v8890
        %v8892 = vrot.slane %v8878, %v8891
        %v8893 = vcombine.low %v8837, %v8853
        %v8894 = vcombine.high %v8837, %v8853
        %v8896 = vunpack.c.l.s4 1934713408
        %v8897 = vunpack.c.0.s8 %v8896
        %v8898 = vlaneseq
        %v8899 = vshrl.u32 %v8898, 7
        %v8900 = vsub.s32 %v8897, %v8899
        %v8901 = vrot.slane %v8893, %v8900
        %v8903 = vunpack.c.l.s4 1934713408
        %v8904 = vunpack.c.0.s8 %v8903
        %v8905 = vlaneseq
        %v8906 = vshrl.u32 %v8905, 7
        %v8907 = vsub.s32 %v8904, %v8906
        %v8908 = vrot.slane %v8894, %v8907
        %v8909 = vcombine.low %v8844, %v8860
        %v8910 = vcombine.high %v8844, %v8860
        %v8912 = vunpack.c.l.s4 1934713408
        %v8913 = vunpack.c.0.s8 %v8912
        %v8914 = vlaneseq
        %v8915 = vshrl.u32 %v8914, 7
        %v8916 = vsub.s32 %v8913, %v8915
        %v8917 = vrot.slane %v8909, %v8916
        %v8919 = vunpack.c.l.s4 1934713408
        %v8920 = vunpack.c.0.s8 %v8919
        %v8921 = vlaneseq
        %v8922 = vshrl.u32 %v8921, 7
        %v8923 = vsub.s32 %v8920, %v8922
        %v8924 = vrot.slane %v8910, %v8923
        %v8925 = vcombine.low %v8869, %v8885
        %v8926 = vcombine.high %v8869, %v8885
        %v8928 = vunpack.c.l.s4 1934713408
        %v8929 = vunpack.c.0.s8 %v8928
        %v8930 = vlaneseq
        %v8931 = vshrl.u32 %v8930, 7
        %v8932 = vsub.s32 %v8929, %v8931
        %v8933 = vrot.slane %v8925, %v8932
        %v8935 = vunpack.c.l.s4 1934713408
        %v8936 = vunpack.c.0.s8 %v8935
        %v8937 = vlaneseq
        %v8938 = vshrl.u32 %v8937, 7
        %v8939 = vsub.s32 %v8936, %v8938
        %v8940 = vrot.slane %v8926, %v8939
        %v8941 = vcombine.low %v8876, %v8892
        %v8942 = vcombine.high %v8876, %v8892
        %v8944 = vunpack.c.l.s4 1934713408
        %v8945 = vunpack.c.0.s8 %v8944
        %v8946 = vlaneseq
        %v8947 = vshrl.u32 %v8946, 7
        %v8948 = vsub.s32 %v8945, %v8947
        %v8949 = vrot.slane %v8941, %v8948
        %v8951 = vunpack.c.l.s4 1934713408
        %v8952 = vunpack.c.0.s8 %v8951
        %v8953 = vlaneseq
        %v8954 = vshrl.u32 %v8953, 7
        %v8955 = vsub.s32 %v8952, %v8954
        %v8956 = vrot.slane %v8942, %v8955
        %v8957 = vcombine.low %v8901, %v8933
        %v8958 = vcombine.high %v8901, %v8933
        %v8959 = vcombine.low %v8908, %v8940
        %v8960 = vcombine.high %v8908, %v8940
        %v8961 = vcombine.low %v8917, %v8949
        %v8962 = vcombine.high %v8917, %v8949
        %v8963 = vcombine.low %v8924, %v8956
        %v8964 = vcombine.high %v8924, %v8956
        %v8965 = vadd.f32 %v8197, %v8821
        %v8966 = vadd.f32 %v8229, %v8822
        %v8967 = vadd.f32 %v8261, %v8823
        %v8968 = vadd.f32 %v8293, %v8824
        %v8969 = vadd.f32 %v8325, %v8825
        %v8970 = vadd.f32 %v8357, %v8826
        %v8971 = vadd.f32 %v8389, %v8827
        %v8972 = vadd.f32 %v8421, %v8828
        %v8973 = vadd.f32 %v8453, %v8957
        %v8974 = vadd.f32 %v8485, %v8958
        %v8975 = vadd.f32 %v8517, %v8959
        %v8976 = vadd.f32 %v8549, %v8960
        %v8977 = vadd.f32 %v8581, %v8961
        %v8978 = vadd.f32 %v8613, %v8962
        %v8979 = vadd.f32 %v8645, %v8963
        %v8980 = vadd.f32 %v8677, %v8964
        %v8981 = vcombine.low %v8965, %v8967
        %v8982 = vcombine.high %v8965, %v8967
        %v8984 = vunpack.c.l.s4 1983009808
        %v8985 = vunpack.c.0.s8 %v8984
        %v8986 = vlaneseq
        %v8987 = vshrl.u32 %v8986, 7
        %v8988 = vsub.s32 %v8985, %v8987
        %v8989 = vrot.slane %v8981, %v8988
        %v8991 = vunpack.c.l.s4 1983009808
        %v8992 = vunpack.c.0.s8 %v8991
        %v8993 = vlaneseq
        %v8994 = vshrl.u32 %v8993, 7
        %v8995 = vsub.s32 %v8992, %v8994
        %v8996 = vrot.slane %v8982, %v8995
        %v8997 = vcombine.low %v8966, %v8968
        %v8998 = vcombine.high %v8966, %v8968
        %v9000 = vunpack.c.l.s4 1983009808
        %v9001 = vunpack.c.0.s8 %v9000
        %v9002 = vlaneseq
        %v9003 = vshrl.u32 %v9002, 7
        %v9004 = vsub.s32 %v9001, %v9003
        %v9005 = vrot.slane %v8997, %v9004
        %v9007 = vunpack.c.l.s4 1983009808
        %v9008 = vunpack.c.0.s8 %v9007
        %v9009 = vlaneseq
        %v9010 = vshrl.u32 %v9009, 7
        %v9011 = vsub.s32 %v9008, %v9010
        %v9012 = vrot.slane %v8998, %v9011
        %v9013 = vcombine.low %v8969, %v8971
        %v9014 = vcombine.high %v8969, %v8971
        %v9016 = vunpack.c.l.s4 1983009808
        %v9017 = vunpack.c.0.s8 %v9016
        %v9018 = vlaneseq
        %v9019 = vshrl.u32 %v9018, 7
        %v9020 = vsub.s32 %v9017, %v9019
        %v9021 = vrot.slane %v9013, %v9020
        %v9023 = vunpack.c.l.s4 1983009808
        %v9024 = vunpack.c.0.s8 %v9023
        %v9025 = vlaneseq
        %v9026 = vshrl.u32 %v9025, 7
        %v9027 = vsub.s32 %v9024, %v9026
        %v9028 = vrot.slane %v9014, %v9027
        %v9029 = vcombine.low %v8970, %v8972
        %v9030 = vcombine.high %v8970, %v8972
        %v9032 = vunpack.c.l.s4 1983009808
        %v9033 = vunpack.c.0.s8 %v9032
        %v9034 = vlaneseq
        %v9035 = vshrl.u32 %v9034, 7
        %v9036 = vsub.s32 %v9033, %v9035
        %v9037 = vrot.slane %v9029, %v9036
        %v9039 = vunpack.c.l.s4 1983009808
        %v9040 = vunpack.c.0.s8 %v9039
        %v9041 = vlaneseq
        %v9042 = vshrl.u32 %v9041, 7
        %v9043 = vsub.s32 %v9040, %v9042
        %v9044 = vrot.slane %v9030, %v9043
        %v9045 = vcombine.low %v8989, %v9005
        %v9046 = vcombine.high %v8989, %v9005
        %v9048 = vunpack.c.l.s4 1934713408
        %v9049 = vunpack.c.0.s8 %v9048
        %v9050 = vlaneseq
        %v9051 = vshrl.u32 %v9050, 7
        %v9052 = vsub.s32 %v9049, %v9051
        %v9053 = vrot.slane %v9045, %v9052
        %v9055 = vunpack.c.l.s4 1934713408
        %v9056 = vunpack.c.0.s8 %v9055
        %v9057 = vlaneseq
        %v9058 = vshrl.u32 %v9057, 7
        %v9059 = vsub.s32 %v9056, %v9058
        %v9060 = vrot.slane %v9046, %v9059
        %v9061 = vcombine.low %v8996, %v9012
        %v9062 = vcombine.high %v8996, %v9012
        %v9064 = vunpack.c.l.s4 1934713408
        %v9065 = vunpack.c.0.s8 %v9064
        %v9066 = vlaneseq
        %v9067 = vshrl.u32 %v9066, 7
        %v9068 = vsub.s32 %v9065, %v9067
        %v9069 = vrot.slane %v9061, %v9068
        %v9071 = vunpack.c.l.s4 1934713408
        %v9072 = vunpack.c.0.s8 %v9071
        %v9073 = vlaneseq
        %v9074 = vshrl.u32 %v9073, 7
        %v9075 = vsub.s32 %v9072, %v9074
        %v9076 = vrot.slane %v9062, %v9075
        %v9077 = vcombine.low %v9021, %v9037
        %v9078 = vcombine.high %v9021, %v9037
        %v9080 = vunpack.c.l.s4 1934713408
        %v9081 = vunpack.c.0.s8 %v9080
        %v9082 = vlaneseq
        %v9083 = vshrl.u32 %v9082, 7
        %v9084 = vsub.s32 %v9081, %v9083
        %v9085 = vrot.slane %v9077, %v9084
        %v9087 = vunpack.c.l.s4 1934713408
        %v9088 = vunpack.c.0.s8 %v9087
        %v9089 = vlaneseq
        %v9090 = vshrl.u32 %v9089, 7
        %v9091 = vsub.s32 %v9088, %v9090
        %v9092 = vrot.slane %v9078, %v9091
        %v9093 = vcombine.low %v9028, %v9044
        %v9094 = vcombine.high %v9028, %v9044
        %v9096 = vunpack.c.l.s4 1934713408
        %v9097 = vunpack.c.0.s8 %v9096
        %v9098 = vlaneseq
        %v9099 = vshrl.u32 %v9098, 7
        %v9100 = vsub.s32 %v9097, %v9099
        %v9101 = vrot.slane %v9093, %v9100
        %v9103 = vunpack.c.l.s4 1934713408
        %v9104 = vunpack.c.0.s8 %v9103
        %v9105 = vlaneseq
        %v9106 = vshrl.u32 %v9105, 7
        %v9107 = vsub.s32 %v9104, %v9106
        %v9108 = vrot.slane %v9094, %v9107
        %v9109 = vcombine.low %v9053, %v9085
        %v9110 = vcombine.high %v9053, %v9085
        %v9111 = vcombine.low %v9060, %v9092
        %v9112 = vcombine.high %v9060, %v9092
        %v9113 = vcombine.low %v9069, %v9101
        %v9114 = vcombine.high %v9069, %v9101
        %v9115 = vcombine.low %v9076, %v9108
        %v9116 = vcombine.high %v9076, %v9108
        %v9117 = vcombine.low %v8973, %v8975
        %v9118 = vcombine.high %v8973, %v8975
        %v9120 = vunpack.c.l.s4 1983009808
        %v9121 = vunpack.c.0.s8 %v9120
        %v9122 = vlaneseq
        %v9123 = vshrl.u32 %v9122, 7
        %v9124 = vsub.s32 %v9121, %v9123
        %v9125 = vrot.slane %v9117, %v9124
        %v9127 = vunpack.c.l.s4 1983009808
        %v9128 = vunpack.c.0.s8 %v9127
        %v9129 = vlaneseq
        %v9130 = vshrl.u32 %v9129, 7
        %v9131 = vsub.s32 %v9128, %v9130
        %v9132 = vrot.slane %v9118, %v9131
        %v9133 = vcombine.low %v8974, %v8976
        %v9134 = vcombine.high %v8974, %v8976
        %v9136 = vunpack.c.l.s4 1983009808
        %v9137 = vunpack.c.0.s8 %v9136
        %v9138 = vlaneseq
        %v9139 = vshrl.u32 %v9138, 7
        %v9140 = vsub.s32 %v9137, %v9139
        %v9141 = vrot.slane %v9133, %v9140
        %v9143 = vunpack.c.l.s4 1983009808
        %v9144 = vunpack.c.0.s8 %v9143
        %v9145 = vlaneseq
        %v9146 = vshrl.u32 %v9145, 7
        %v9147 = vsub.s32 %v9144, %v9146
        %v9148 = vrot.slane %v9134, %v9147
        %v9149 = vcombine.low %v8977, %v8979
        %v9150 = vcombine.high %v8977, %v8979
        %v9152 = vunpack.c.l.s4 1983009808
        %v9153 = vunpack.c.0.s8 %v9152
        %v9154 = vlaneseq
        %v9155 = vshrl.u32 %v9154, 7
        %v9156 = vsub.s32 %v9153, %v9155
        %v9157 = vrot.slane %v9149, %v9156
        %v9159 = vunpack.c.l.s4 1983009808
        %v9160 = vunpack.c.0.s8 %v9159
        %v9161 = vlaneseq
        %v9162 = vshrl.u32 %v9161, 7
        %v9163 = vsub.s32 %v9160, %v9162
        %v9164 = vrot.slane %v9150, %v9163
        %v9165 = vcombine.low %v8978, %v8980
        %v9166 = vcombine.high %v8978, %v8980
        %v9168 = vunpack.c.l.s4 1983009808
        %v9169 = vunpack.c.0.s8 %v9168
        %v9170 = vlaneseq
        %v9171 = vshrl.u32 %v9170, 7
        %v9172 = vsub.s32 %v9169, %v9171
        %v9173 = vrot.slane %v9165, %v9172
        %v9175 = vunpack.c.l.s4 1983009808
        %v9176 = vunpack.c.0.s8 %v9175
        %v9177 = vlaneseq
        %v9178 = vshrl.u32 %v9177, 7
        %v9179 = vsub.s32 %v9176, %v9178
        %v9180 = vrot.slane %v9166, %v9179
        %v9181 = vcombine.low %v9125, %v9141
        %v9182 = vcombine.high %v9125, %v9141
        %v9184 = vunpack.c.l.s4 1934713408
        %v9185 = vunpack.c.0.s8 %v9184
        %v9186 = vlaneseq
        %v9187 = vshrl.u32 %v9186, 7
        %v9188 = vsub.s32 %v9185, %v9187
        %v9189 = vrot.slane %v9181, %v9188
        %v9191 = vunpack.c.l.s4 1934713408
        %v9192 = vunpack.c.0.s8 %v9191
        %v9193 = vlaneseq
        %v9194 = vshrl.u32 %v9193, 7
        %v9195 = vsub.s32 %v9192, %v9194
        %v9196 = vrot.slane %v9182, %v9195
        %v9197 = vcombine.low %v9132, %v9148
        %v9198 = vcombine.high %v9132, %v9148
        %v9200 = vunpack.c.l.s4 1934713408
        %v9201 = vunpack.c.0.s8 %v9200
        %v9202 = vlaneseq
        %v9203 = vshrl.u32 %v9202, 7
        %v9204 = vsub.s32 %v9201, %v9203
        %v9205 = vrot.slane %v9197, %v9204
        %v9207 = vunpack.c.l.s4 1934713408
        %v9208 = vunpack.c.0.s8 %v9207
        %v9209 = vlaneseq
        %v9210 = vshrl.u32 %v9209, 7
        %v9211 = vsub.s32 %v9208, %v9210
        %v9212 = vrot.slane %v9198, %v9211
        %v9213 = vcombine.low %v9157, %v9173
        %v9214 = vcombine.high %v9157, %v9173
        %v9216 = vunpack.c.l.s4 1934713408
        %v9217 = vunpack.c.0.s8 %v9216
        %v9218 = vlaneseq
        %v9219 = vshrl.u32 %v9218, 7
        %v9220 = vsub.s32 %v9217, %v9219
        %v9221 = vrot.slane %v9213, %v9220
        %v9223 = vunpack.c.l.s4 1934713408
        %v9224 = vunpack.c.0.s8 %v9223
        %v9225 = vlaneseq
        %v9226 = vshrl.u32 %v9225, 7
        %v9227 = vsub.s32 %v9224, %v9226
        %v9228 = vrot.slane %v9214, %v9227
        %v9229 = vcombine.low %v9164, %v9180
        %v9230 = vcombine.high %v9164, %v9180
        %v9232 = vunpack.c.l.s4 1934713408
        %v9233 = vunpack.c.0.s8 %v9232
        %v9234 = vlaneseq
        %v9235 = vshrl.u32 %v9234, 7
        %v9236 = vsub.s32 %v9233, %v9235
        %v9237 = vrot.slane %v9229, %v9236
        %v9239 = vunpack.c.l.s4 1934713408
        %v9240 = vunpack.c.0.s8 %v9239
        %v9241 = vlaneseq
        %v9242 = vshrl.u32 %v9241, 7
        %v9243 = vsub.s32 %v9240, %v9242
        %v9244 = vrot.slane %v9230, %v9243
        %v9245 = vcombine.low %v9189, %v9221
        %v9246 = vcombine.high %v9189, %v9221
        %v9247 = vcombine.low %v9196, %v9228
        %v9248 = vcombine.high %v9196, %v9228
        %v9249 = vcombine.low %v9205, %v9237
        %v9250 = vcombine.high %v9205, %v9237
        %v9251 = vcombine.low %v9212, %v9244
        %v9252 = vcombine.high %v9212, %v9244
        %9255 = vrot.lane.b32.xlu0 %v9110, 16
        %v9256 = vpop.permute.xlu0 %9255
        %9257 = vrot.lane.b32.xlu0 %v9246, 16
        %v9258 = vpop.permute.xlu0 %9257
        %9263 = vrot.lane.b32.xlu0 %v9111, 32
        %v9264 = vpop.permute.xlu0 %9263
        %9265 = vrot.lane.b32.xlu0 %v9247, 32
        %v9266 = vpop.permute.xlu0 %9265
        %9271 = vrot.lane.b32.xlu0 %v9112, 48
        %v9272 = vpop.permute.xlu0 %9271
        %9273 = vrot.lane.b32.xlu0 %v9248, 48
        %v9274 = vpop.permute.xlu0 %9273
        %9279 = vrot.lane.b32.xlu0 %v9113, 64
        %v9280 = vpop.permute.xlu0 %9279
        %9281 = vrot.lane.b32.xlu0 %v9249, 64
        %v9282 = vpop.permute.xlu0 %9281
        %9287 = vrot.lane.b32.xlu0 %v9114, 80
        %v9288 = vpop.permute.xlu0 %9287
        %9289 = vrot.lane.b32.xlu0 %v9250, 80
        %v9290 = vpop.permute.xlu0 %9289
        %9295 = vrot.lane.b32.xlu0 %v9115, 96
        %v9296 = vpop.permute.xlu0 %9295
        %9297 = vrot.lane.b32.xlu0 %v9251, 96
        %v9298 = vpop.permute.xlu0 %9297
        %9303 = vrot.lane.b32.xlu0 %v9116, 112
        %v9304 = vpop.permute.xlu0 %9303
        %9305 = vrot.lane.b32.xlu0 %v9252, 112
        %v9306 = vpop.permute.xlu0 %9305
        %v9309 = vsel %vm3060, %v9109, %v9256
        %v9310 = vsel %vm3060, %v9245, %v9258
        %vm9311 = vcmask 261120
        %v9312 = vsel %vm9311, %v9309, %v9264
        %v9313 = vsel %vm9311, %v9310, %v9266
        %vm9314 = vcmask 392192
        %v9315 = vsel %vm9314, %v9312, %v9272
        %v9316 = vsel %vm9314, %v9313, %v9274
        %vm9317 = vcmask 523264
        %v9318 = vsel %vm9317, %v9315, %v9280
        %v9319 = vsel %vm9317, %v9316, %v9282
        %vm9320 = vcmask 654336
        %v9321 = vsel %vm9320, %v9318, %v9288
        %v9322 = vsel %vm9320, %v9319, %v9290
        %vm9323 = vcmask 785408
        %v9324 = vsel %vm9323, %v9321, %v9296
        %v9325 = vsel %vm9323, %v9322, %v9298
        %vm9326 = vcmask 916480
        %v9327 = vsel %vm9326, %v9324, %v9304
        %v9328 = vsel %vm9326, %v9325, %v9306
        %s9329 = sld [smem:[#allocation6]]
        %v9330 = vstv %s9329
        %v9331 = vmul.f32 %v9330, %v9327
        %v9332 = vmul.f32 %v9330, %v9328
        %v9333 = vadd.f32 %v9331, %v3049
        %v9334 = vadd.f32 %v9332, %v3050
        %9335 = vst [vmem:[%s487] sm:$0xff] %v9333
        %9336 = vst [vmem:[%s487 + $0x8] sm:$0xff] %v9334
        %s9337 = sand.u32 %s256, 1
        %s9338 = scalar_lea.sflag [#allocation9], %s9337
        %s9339 = sand.u32 %s256, 1
        %s9340 = smul.addr %s9339, 16
        %s9341 = scalar_lea.vmem [#allocation21], %s9340
        // Predicated region
        $region93: #{criss_cross_attention.1} parent=55 // pred_check
          %p9342 = pneg %p266
        $region94: #{criss_cross_attention.1} parent=55 // pred_check_branch
          %9344 = sbr.rel (%p9342) target = $region96
        $region95: #{criss_cross_attention.1} parent=55 // pred_region
          %s9346 = ssub.s32 256, 256
          %9347 = vsyncadd %s9338, %s9346
          %s9348 = smul.addr %s37, 4
          %s9349 = sadd.s32 %s38, %s9348
          %s9350 = smul.addr %s9349, 128
          %s9351 = scalar_lea.hbm %s9, %s9350
          %s9352 = sshll.u32 %s9341, 4
          %s9353 = int_to_ptr.vmem [resolvable:$true] %s9352
          %9358 = dma.vmem_to_hbm [thread:$0]  %s9353, 256, %s9351, %s9338, 128, 256, 8
        $region96: #{criss_cross_attention.1} parent=55 // pred_fallthru
          _
      $region56: #{criss_cross_attention.1} parent=5 // pred_fallthru
        _
      %p9359 = scmp.le.s32.totalorder 2, %s28
      // Predicated region
      $region97: #{criss_cross_attention.1} parent=5 // pred_check
        %p9360 = pneg %p9359
      $region98: #{criss_cross_attention.1} parent=5 // pred_check_branch
        %9362 = sbr.rel (%p9360) target = $region100
      $region99: #{criss_cross_attention.1} parent=5 // pred_region
        %s9363 = ssub.s32 %s28, 2
        // Predicated region
        $region101: #{criss_cross_attention.1} parent=99 // pred_check
          %p9364 = pneg %p272
        $region102: #{criss_cross_attention.1} parent=99 // pred_check_branch
          %9366 = sbr.rel (%p9364) target = $region104
        $region103: #{criss_cross_attention.1} parent=99 // pred_region
          %s9367 = sand.u32 %s257, 1
          %s9368 = scalar_lea.sflag [#allocation9], %s9367
          %s9369 = sand.u32 %s257, 1
          %s9370 = smul.addr %s9369, 16
          %s9371 = scalar_lea.vmem [#allocation21], %s9370
          %9372 = dma.done %s9368, 256
        $region104: #{criss_cross_attention.1} parent=99 // pred_fallthru
          _
      $region100: #{criss_cross_attention.1} parent=5 // pred_fallthru
        _
    $region6: #{criss_cross_attention.1} parent=1 // loop_footer
      %s32 = sadd.s32 1, %s28
    $region7: #{criss_cross_attention.1} parent=1 // loop_footer_branch
      %27 = sbr.rel target = $region3
    $region8: #{criss_cross_attention.1} parent=1 // loop_exit
      _
    %9373 = vsyncpa [#allocation8], 1
    %s9374 = scalar_lea.sflag [#allocation8], 1
    %9375 = vsyncpa %s9374, 1
    %9376 = vsyncpa [#allocation11], 1
    %s9377 = scalar_lea.sflag [#allocation11], 1
    %9378 = vsyncpa %s9377, 1
    %9379 = vsyncpa [#allocation14], 1
    %9380 = vsyncpa [#allocation17], 1
    %9381 = vsyncpa [#allocation20], 1
    %9382 = vsyncpa [#allocation9], 1
    %s9383 = scalar_lea.sflag [#allocation9], 1
    %9384 = vsyncpa %s9383, 1

</llo_original>
